<compile_context>
chip_gen: v7x
topology: tpu7x:2x2x1
jax: 0.10.0
libtpu: 0.0.40
codegen_flags: <defaults>
</compile_context>

<pallas_src>
import functools

import jax
import jax.numpy as jnp
from jax import lax
from jax.experimental import pallas as pl
from jax.experimental.pallas import tpu as pltpu

# ----------------------------- configuration --------------------------------
PATCH = 4
IMG_SIZE = 16
IMG_CHANNELS = 3
VISION_DIM = 32
VISION_HEADS = 2
VISION_LAYERS = 2
VISION_MLP = 64

VOCAB = 64
TEXT_LEN = 8
TEXT_DIM = 32
TEXT_HEADS = 2
TEXT_LAYERS = 2
TEXT_MLP = 64

PROJ_DIM = 16
NUM_CLASSES = 2
LN_EPS = 1e-5

N_PATCHES = (IMG_SIZE // PATCH) ** 2          # 16
VISION_SEQ = N_PATCHES + 1                    # 17 (CLS + patches)
VISION_SEQ_PAD = 24                           # padded to a multiple of 8 sublanes
PATCH_DIM = IMG_CHANNELS * PATCH * PATCH      # 48

OUT_LANES = 128                               # lane-dense output slab width
MAX_IMG_BLOCK = 8                             # images per grid step (upper bound)


# --------------------------- in-kernel building blocks ------------------------
def _layer_norm(x, g, b):
    mu = jnp.mean(x, axis=-1, keepdims=True)
    xc = x - mu
    var = jnp.mean(xc * xc, axis=-1, keepdims=True)
    return xc * lax.rsqrt(var + LN_EPS) * g + b


def _quick_gelu(x):
    return x * jax.nn.sigmoid(1.702 * x)


def _softmax_rows(s, *, approx):
    s = s - jnp.max(s, axis=-1, keepdims=True)
    p = jnp.exp(s)
    denom = jnp.sum(p, axis=-1, keepdims=True)
    if approx:
        return p * pl.reciprocal(denom, approx=True)     # EUP slot, nearly free
    return p / denom


def _mm(a, b):
    """bf16 MXU matmul with f32 accumulation (elementwise math stays f32)."""
    return jnp.dot(a.astype(jnp.bfloat16), b.astype(jnp.bfloat16),
                   preferred_element_type=jnp.float32)


def _vec_slices(dim, mlp):
    """Lane offsets of the per-layer bias/LN vectors inside the packed vec slab."""
    offs, o = {}, 0
    for name, w in (("ln1_g", dim), ("ln1_b", dim), ("qkv_b", 3 * dim),
                    ("o_b", dim), ("ln2_g", dim), ("ln2_b", dim),
                    ("fc1_b", mlp), ("fc2_b", dim)):
        offs[name] = (o, o + w)
        o += w
    return offs, o


def _encoder_stack(x, nimg, seq, mats_ref, ow_ref, fc2_ref, vecs_ref,
                   *, dim, heads, mlp, layers, mask):
    """x: (nimg*seq, dim) f32.  Pre-LN CLIP transformer, layers unrolled,
    attention batched over the image/prompt axis with 3-D einsums."""
    dh = dim // heads
    scale = dh ** -0.5
    offs, _ = _vec_slices(dim, mlp)
    n = nimg * seq

    def vec(l, name):
        a, b = offs[name]
        return vecs_ref[l, :, a:b]                       # (1, width) f32

    for l in range(layers):
        # ---------------- multi-head self-attention ----------------
        res = x
        h = _layer_norm(x, vec(l, "ln1_g"), vec(l, "ln1_b"))
        qkv = _mm(h, mats_ref[l, :, 0:3 * dim]) + vec(l, "qkv_b")      # (n, 3*dim)
        attn = vec(l, "o_b")                                           # (1, dim)
        for hh in range(heads):
            lo = hh * dh
            q = qkv[:, lo:lo + dh].reshape(nimg, seq, dh)
            k = qkv[:, dim + lo:dim + lo + dh].reshape(nimg, seq, dh)
            v = qkv[:, 2 * dim + lo:2 * dim + lo + dh].reshape(nimg, seq, dh)
            s = jnp.einsum("bqd,bkd->bqk", q.astype(jnp.bfloat16),
                           k.astype(jnp.bfloat16),
                           preferred_element_type=jnp.float32) * scale
            if mask is not None:
                s = s + mask
            p = _softmax_rows(s, approx=True)
            head = jnp.einsum("bqk,bkd->bqd", p.astype(jnp.bfloat16),
                              v.astype(jnp.bfloat16),
                              preferred_element_type=jnp.float32)      # (nimg, seq, dh)
            # concat(heads) @ W_o  ==  sum_h head_h @ W_o[h]  (head-split, no slices)
            attn = attn + _mm(head.reshape(n, dh), ow_ref[l, hh])      # (n, dim)
        x = res + attn

        # ---------------- MLP block ----------------
        res = x
        h = _layer_norm(x, vec(l, "ln2_g"), vec(l, "ln2_b"))
        h = _mm(h, mats_ref[l, :, 3 * dim:3 * dim + mlp]) + vec(l, "fc1_b")
        h = _quick_gelu(h)
        h = _mm(h, fc2_ref[l]) + vec(l, "fc2_b")
        x = res + h
    return x


def _vision_tower(patches, v_patch_ref, v_base_ref, v_mats_ref, v_ow_ref,
                  v_fc2_ref, v_vecs_ref, v_proj_ref):
    """patches: (Bblk, S_PAD, PATCH_DIM) f32 -> projected CLS features (Bblk, PROJ)."""
    bblk, s_pad, _ = patches.shape
    n = bblk * s_pad
    pos_cls = v_base_ref[0:VISION_SEQ_PAD, :]                     # (S_PAD, D) f32
    pre_g = v_base_ref[VISION_SEQ_PAD + 0:VISION_SEQ_PAD + 1, :]
    pre_b = v_base_ref[VISION_SEQ_PAD + 1:VISION_SEQ_PAD + 2, :]
    post_g = v_base_ref[VISION_SEQ_PAD + 2:VISION_SEQ_PAD + 3, :]
    post_b = v_base_ref[VISION_SEQ_PAD + 3:VISION_SEQ_PAD + 4, :]

    x = _mm(patches.reshape(n, PATCH_DIM), v_patch_ref[...])      # (n, D)
    x = (x.reshape(bblk, s_pad, VISION_DIM) + pos_cls).reshape(n, VISION_DIM)
    x = _layer_norm(x, pre_g, pre_b)

    # additive key mask: padded sequence rows (cols >= VISION_SEQ) never attended to
    col = lax.broadcasted_iota(jnp.int32, (s_pad, s_pad), 1)
    kmask = jnp.where(col < VISION_SEQ, 0.0, -1e9).astype(jnp.float32)

    x = _encoder_stack(x, bblk, s_pad, v_mats_ref, v_ow_ref, v_fc2_ref, v_vecs_ref,
                       dim=VISION_DIM, heads=VISION_HEADS, mlp=VISION_MLP,
                       layers=VISION_LAYERS, mask=kmask)

    cls = jnp.concatenate([x[b * s_pad:b * s_pad + 1, :] for b in range(bblk)], axis=0)
    cls = _layer_norm(cls, post_g, post_b)
    return _mm(cls, v_proj_ref[...])                              # (Bblk, PROJ) f32


def _text_tower(x0_ref, t_mats_ref, t_ow_ref, t_fc2_ref, t_vecs_ref,
                t_base_ref, t_proj_ref):
    """x0_ref: (P, T, D) f32 token+pos embeddings -> projected features (P, PROJ)."""
    n_prompts, seq, dim = x0_ref.shape
    x = x0_ref[...].reshape(n_prompts * seq, dim)

    row = lax.broadcasted_iota(jnp.int32, (seq, seq), 0)
    col = lax.broadcasted_iota(jnp.int32, (seq, seq), 1)
    causal = jnp.where(col <= row, 0.0, -1e9).astype(jnp.float32)

    x = _encoder_stack(x, n_prompts, seq, t_mats_ref, t_ow_ref, t_fc2_ref, t_vecs_ref,
                       dim=TEXT_DIM, heads=TEXT_HEADS, mlp=TEXT_MLP,
                       layers=TEXT_LAYERS, mask=causal)
    # TODO(synk): HF CLIP pools at each prompt's EOS position; fixed-length synthetic
    # prompts pool the final token instead.
    pooled = jnp.concatenate(
        [x[p * seq + seq - 1:p * seq + seq, :] for p in range(n_prompts)], axis=0)
    pooled = _layer_norm(pooled, t_base_ref[0:1, :], t_base_ref[1:2, :])
    return _mm(pooled, t_proj_ref[...])                           # (P, PROJ) f32


# ------------------------------ fused kernels ---------------------------------
def _zero_shot_kernel(patches_ref, v_patch_ref, v_base_ref, v_mats_ref, v_ow_ref,
                      v_fc2_ref, v_vecs_ref, v_proj_ref,
                      x0_ref, t_mats_ref, t_ow_ref, t_fc2_ref, t_vecs_ref,
                      t_base_ref, t_proj_ref,
                      sim_ref, feat_acc_ref, *, num_blocks, block_b):
    i = pl.program_id(0)
    feats = _vision_tower(patches_ref[...], v_patch_ref, v_base_ref, v_mats_ref,
                          v_ow_ref, v_fc2_ref, v_vecs_ref, v_proj_ref)

    def similarity(img):
        txt = _text_tower(x0_ref, t_mats_ref, t_ow_ref, t_fc2_ref, t_vecs_ref,
                          t_base_ref, t_proj_ref)                  # (P, PROJ)
        img = img * lax.rsqrt(jnp.sum(img * img, axis=-1, keepdims=True) + 1e-12)
        txt = txt * lax.rsqrt(jnp.sum(txt * txt, axis=-1, keepdims=True) + 1e-12)
        logits = 100.0 * jnp.dot(img, txt.T, preferred_element_type=jnp.float32)
        probs = _softmax_rows(logits, approx=False)                # exact final softmax
        pad = jnp.zeros((img.shape[0], sim_ref.shape[1] - probs.shape[1]), jnp.float32)
        sim_ref[...] = jnp.concatenate([probs, pad], axis=-1)      # lane-dense store

    if num_blocks == 1:
        # whole batch in this step: no scratch round-trip needed.
        similarity(feats)
    else:
        feat_acc_ref[pl.ds(i * block_b, block_b), :] = feats
        @pl.when(i == num_blocks - 1)
        def _():
            similarity(feat_acc_ref[...])


def _fine_tune_kernel(patches_ref, v_patch_ref, v_base_ref, v_mats_ref, v_ow_ref,
                      v_fc2_ref, v_vecs_ref, v_proj_ref, v_clsf_ref, out_ref):
    feats = _vision_tower(patches_ref[...], v_patch_ref, v_base_ref, v_mats_ref,
                          v_ow_ref, v_fc2_ref, v_vecs_ref, v_proj_ref)
    logits = (jnp.dot(feats, v_clsf_ref[0:PROJ_DIM, :],
                      preferred_element_type=jnp.float32)
              + v_clsf_ref[PROJ_DIM:PROJ_DIM + 1, :])
    pad = jnp.zeros((feats.shape[0], out_ref.shape[1] - NUM_CLASSES), jnp.float32)
    out_ref[...] = jnp.concatenate([logits, pad], axis=-1)         # lane-dense store


# ------------------------------ Pallas wrappers -------------------------------
def _full_spec(arr):
    zeros = (0,) * arr.ndim
    return pl.BlockSpec(tuple(arr.shape), lambda i, _z=zeros: _z)


def _pick_block(batch):
    for cand in (MAX_IMG_BLOCK, 4, 2, 1):
        if cand <= batch and batch % cand == 0:
            return cand
    return 1


def _make_patches(images):
    """NCHW images -> (B, S_PAD, PATCH_DIM) f32; row 0 = CLS slot, tail rows = padding."""
    B, C, H, W = images.shape
    nh, nw = H // PATCH, W // PATCH
    p = (images.reshape(B, C, nh, PATCH, nw, PATCH)
               .transpose(0, 2, 4, 1, 3, 5)
               .reshape(B, nh * nw, PATCH_DIM)).astype(jnp.float32)
    return jnp.pad(p, ((0, 0), (1, VISION_SEQ_PAD - 1 - nh * nw), (0, 0)))


def clip_zero_shot(params, images, token_ids):
    vp, tp = params["vision"], params["text"]
    patches = _make_patches(images)
    B = patches.shape[0]
    bblk = _pick_block(B)
    nb = B // bblk
    n_prompts = token_ids.shape[0]

    # token-embedding gather + positional add is plain JAX glue
    x0 = (tp["tok_embed"][token_ids] + tp["pos_embed"][None]).astype(jnp.float32)

    weight_args = [vp["patch_w"], vp["base"], vp["mats"], vp["o_w"], vp["fc2"],
                   vp["vecs"], vp["proj"],
                   x0, tp["mats"], tp["o_w"], tp["fc2"], tp["vecs"],
                   tp["base"], tp["proj"]]

    kernel = functools.partial(_zero_shot_kernel, num_blocks=nb, block_b=bblk)
    sim_pad = pl.pallas_call(
        kernel,
        out_shape=jax.ShapeDtypeStruct((B, OUT_LANES), jnp.float32),
        grid=(nb,),
        in_specs=([pl.BlockSpec((bblk, VISION_SEQ_PAD, PATCH_DIM), lambda i: (i, 0, 0))]
                  + [_full_spec(a) for a in weight_args]),
        out_specs=pl.BlockSpec((B, OUT_LANES), lambda i: (0, 0)),
        scratch_shapes=[pltpu.VMEM((B, PROJ_DIM), jnp.float32)],
        compiler_params=pltpu.CompilerParams(
            dimension_semantics=("arbitrary",)),   # last step consumes all blocks
    )(patches, *weight_args)
    return sim_pad[:, :n_prompts]


def clip_fine_tune(params, images):
    vp = params["vision"]
    patches = _make_patches(images)
    B = patches.shape[0]
    bblk = _pick_block(B)
    nb = B // bblk

    weight_args = [vp["patch_w"], vp["base"], vp["mats"], vp["o_w"], vp["fc2"],
                   vp["vecs"], vp["proj"], params["classifier"]]

    out_pad = pl.pallas_call(
        _fine_tune_kernel,
        out_shape=jax.ShapeDtypeStruct((B, OUT_LANES), jnp.float32),
        grid=(nb,),
        in_specs=([pl.BlockSpec((bblk, VISION_SEQ_PAD, PATCH_DIM), lambda i: (i, 0, 0))]
                  + [_full_spec(a) for a in weight_args]),
        out_specs=pl.BlockSpec((bblk, OUT_LANES), lambda i: (i, 0)),
        compiler_params=pltpu.CompilerParams(
            dimension_semantics=("parallel",)),    # image blocks across TCs on v7x
    )(patches, *weight_args)
    return out_pad[:, :NUM_CLASSES]


# ------------------------------ parameter init --------------------------------
def _init_tower(key, dim, heads, mlp, layers, scale=0.02):
    dh = dim // heads
    ks = jax.random.split(key, 4)
    qkv_w = scale * jax.random.normal(ks[0], (layers, dim, 3 * dim), jnp.float32)
    fc1_w = scale * jax.random.normal(ks[1], (layers, dim, mlp), jnp.float32)
    o_w = scale * jax.random.normal(ks[2], (layers, dim, dim), jnp.float32)
    fc2_w = scale * jax.random.normal(ks[3], (layers, mlp, dim), jnp.float32)

    def ones(w):  return jnp.ones((layers, 1, w), jnp.float32)
    def zeros(w): return jnp.zeros((layers, 1, w), jnp.float32)
    # order must match _vec_slices: ln1_g, ln1_b, qkv_b, o_b, ln2_g, ln2_b, fc1_b, fc2_b
    vecs = jnp.concatenate([ones(dim), zeros(dim), zeros(3 * dim), zeros(dim),
                            ones(dim), zeros(dim), zeros(mlp), zeros(dim)], axis=-1)

    return dict(
        mats=jnp.concatenate([qkv_w, fc1_w], axis=-1).astype(jnp.bfloat16),  # [qkv|fc1]
        o_w=o_w.reshape(layers, heads, dh, dim).astype(jnp.bfloat16),        # head-split
        fc2=fc2_w.astype(jnp.bfloat16),
        vecs=vecs)


def init_params(key):
    keys = jax.random.split(key, 10)
    # ----- vision tower -----
    patch_w = 0.02 * jax.random.normal(keys[0], (PATCH_DIM, VISION_DIM), jnp.float32)
    class_embed = 0.02 * jax.random.normal(keys[1], (1, VISION_DIM), jnp.float32)
    pos_embed = 0.02 * jax.random.normal(keys[2], (VISION_SEQ, VISION_DIM), jnp.float32)
    pos_cls = pos_embed.at[0:1, :].add(class_embed)                   # CLS folded into row 0
    pos_cls = jnp.pad(pos_cls, ((0, VISION_SEQ_PAD - VISION_SEQ), (0, 0)))
    ln_rows = jnp.stack([jnp.ones((VISION_DIM,), jnp.float32),        # pre-LN gamma
                         jnp.zeros((VISION_DIM,), jnp.float32),       # pre-LN beta
                         jnp.ones((VISION_DIM,), jnp.float32),        # post-LN gamma
                         jnp.zeros((VISION_DIM,), jnp.float32)])      # post-LN beta
    vision = dict(
        patch_w=patch_w.astype(jnp.bfloat16),
        base=jnp.concatenate([pos_cls, ln_rows], axis=0),             # (S_PAD+4, D) f32
        proj=(0.02 * jax.random.normal(keys[3], (VISION_DIM, PROJ_DIM),
                                       jnp.float32)).astype(jnp.bfloat16),
        **_init_tower(keys[4], VISION_DIM, VISION_HEADS, VISION_MLP, VISION_LAYERS))
    # ----- text tower -----
    text = dict(
        tok_embed=0.02 * jax.random.normal(keys[5], (VOCAB, TEXT_DIM), jnp.float32),
        pos_embed=0.02 * jax.random.normal(keys[6], (TEXT_LEN, TEXT_DIM), jnp.float32),
        base=jnp.stack([jnp.ones((TEXT_DIM,), jnp.float32),           # final-LN gamma
                        jnp.zeros((TEXT_DIM,), jnp.float32)]),        # final-LN beta
        proj=(0.02 * jax.random.normal(keys[7], (TEXT_DIM, PROJ_DIM),
                                       jnp.float32)).astype(jnp.bfloat16),
        **_init_tower(keys[8], TEXT_DIM, TEXT_HEADS, TEXT_MLP, TEXT_LAYERS))
    # ----- linear classifier head (fine-tune mode): rows [W ; b] -----
    classifier = jnp.concatenate(
        [0.02 * jax.random.normal(keys[9], (PROJ_DIM, NUM_CLASSES), jnp.float32),
         jnp.zeros((1, NUM_CLASSES), jnp.float32)], axis=0)
    return dict(vision=vision, text=text, classifier=classifier)


# ------------------------------ model forward ---------------------------------
@functools.partial(jax.jit, static_argnames=("mode",))
def clip_wrapper_forward(params, images, token_ids=None, mode="zero-shot"):
    if mode == "zero-shot" and token_ids is not None:
        return clip_zero_shot(params, images, token_ids)
    # fine-tune branch: linear classifier on the projected CLS feature
    return clip_fine_tune(params, images)


# ------------------------------------ main -------------------------------------
if __name__ == "__main__":
    key = jax.random.PRNGKey(0)
    k_img, k_tok = jax.random.split(key)
    images = jax.random.normal(
        k_img, (2, IMG_CHANNELS, IMG_SIZE, IMG_SIZE), jnp.float32)    # NCHW
    token_ids = jax.random.randint(k_tok, (2, TEXT_LEN), 0, VOCAB)    # 2 synthetic prompts

    params = init_params(jax.random.PRNGKey(42))

    similarity = clip_wrapper_forward(params, images, token_ids, mode="zero-shot")
    logits = clip_wrapper_forward(params, images, None, mode="fine-tune")
    jax.block_until_ready(similarity)
    jax.block_until_ready(logits)

    assert similarity.shape == (2, 2)
    assert logits.shape == (2, NUM_CLASSES)
    row_sums = jnp.sum(similarity, axis=-1)
    assert bool(jnp.all(jnp.abs(row_sums - 1.0) < 1e-4))
    print("KERNEL_OK")
</pallas_src>

<mosaic_0001>
module attributes {stable_mosaic.version = 11 : i64} {
  func.func @_zero_shot_kernel(%arg0: i32, %arg1: memref<2x24x48xf32, #tpu.memory_space<vmem>>, %arg2: memref<48x32xbf16, #tpu.memory_space<vmem>>, %arg3: memref<28x32xf32, #tpu.memory_space<vmem>>, %arg4: memref<2x32x160xbf16, #tpu.memory_space<vmem>>, %arg5: memref<2x2x16x32xbf16, #tpu.memory_space<vmem>>, %arg6: memref<2x64x32xbf16, #tpu.memory_space<vmem>>, %arg7: memref<2x1x352xf32, #tpu.memory_space<vmem>>, %arg8: memref<32x16xbf16, #tpu.memory_space<vmem>>, %arg9: memref<2x8x32xf32, #tpu.memory_space<vmem>>, %arg10: memref<2x32x160xbf16, #tpu.memory_space<vmem>>, %arg11: memref<2x2x16x32xbf16, #tpu.memory_space<vmem>>, %arg12: memref<2x64x32xbf16, #tpu.memory_space<vmem>>, %arg13: memref<2x1x352xf32, #tpu.memory_space<vmem>>, %arg14: memref<2x32xf32, #tpu.memory_space<vmem>>, %arg15: memref<32x16xbf16, #tpu.memory_space<vmem>>, %arg16: memref<2x128xf32, #tpu.memory_space<vmem>>, %arg17: memref<2x16xf32, #tpu.memory_space<vmem>>) attributes {dimension_semantics = [#tpu.dimension_semantics<arbitrary>], iteration_bounds = array<i64: 1>, scalar_prefetch = 0 : i64, scratch_operands = 1 : i64, tpu.core_type = #tpu.core_type<tc>, window_params = [{transform_indices = @transform_0, window_bounds = array<i64: 2, 24, 48>}, {pipeline_mode = #tpu.pipeline_mode<synchronous>, transform_indices = @transform_1, window_bounds = array<i64: 48, 32>}, {pipeline_mode = #tpu.pipeline_mode<synchronous>, transform_indices = @transform_2, window_bounds = array<i64: 28, 32>}, {pipeline_mode = #tpu.pipeline_mode<synchronous>, transform_indices = @transform_3, window_bounds = array<i64: 2, 32, 160>}, {pipeline_mode = #tpu.pipeline_mode<synchronous>, transform_indices = @transform_4, window_bounds = array<i64: 2, 2, 16, 32>}, {pipeline_mode = #tpu.pipeline_mode<synchronous>, transform_indices = @transform_5, window_bounds = array<i64: 2, 64, 32>}, {pipeline_mode = #tpu.pipeline_mode<synchronous>, transform_indices = @transform_6, window_bounds = array<i64: 2, 1, 352>}, {pipeline_mode = #tpu.pipeline_mode<synchronous>, transform_indices = @transform_7, window_bounds = array<i64: 32, 16>}, {pipeline_mode = #tpu.pipeline_mode<synchronous>, transform_indices = @transform_8, window_bounds = array<i64: 2, 8, 32>}, {pipeline_mode = #tpu.pipeline_mode<synchronous>, transform_indices = @transform_9, window_bounds = array<i64: 2, 32, 160>}, {pipeline_mode = #tpu.pipeline_mode<synchronous>, transform_indices = @transform_10, window_bounds = array<i64: 2, 2, 16, 32>}, {pipeline_mode = #tpu.pipeline_mode<synchronous>, transform_indices = @transform_11, window_bounds = array<i64: 2, 64, 32>}, {pipeline_mode = #tpu.pipeline_mode<synchronous>, transform_indices = @transform_12, window_bounds = array<i64: 2, 1, 352>}, {pipeline_mode = #tpu.pipeline_mode<synchronous>, transform_indices = @transform_13, window_bounds = array<i64: 2, 32>}, {pipeline_mode = #tpu.pipeline_mode<synchronous>, transform_indices = @transform_14, window_bounds = array<i64: 32, 16>}, {pipeline_mode = #tpu.pipeline_mode<synchronous>, transform_indices = @transform_15, window_bounds = array<i64: 2, 128>}]} {
    %c0 = arith.constant 0 : index
    %c0_0 = arith.constant 0 : index
    %c0_1 = arith.constant 0 : index
    %0 = vector.load %arg1[%c0, %c0_0, %c0_1] : memref<2x24x48xf32, #tpu.memory_space<vmem>>, vector<2x24x48xf32>
    %c0_2 = arith.constant 0 : index
    %c0_3 = arith.constant 0 : index
    %1 = vector.load %arg3[%c0_2, %c0_3] : memref<28x32xf32, #tpu.memory_space<vmem>>, vector<24x32xf32>
    %c24 = arith.constant 24 : index
    %c0_4 = arith.constant 0 : index
    %2 = vector.load %arg3[%c24, %c0_4] : memref<28x32xf32, #tpu.memory_space<vmem>>, vector<1x32xf32>
    %c25 = arith.constant 25 : index
    %c0_5 = arith.constant 0 : index
    %3 = vector.load %arg3[%c25, %c0_5] : memref<28x32xf32, #tpu.memory_space<vmem>>, vector<1x32xf32>
    %c26 = arith.constant 26 : index
    %c0_6 = arith.constant 0 : index
    %4 = vector.load %arg3[%c26, %c0_6] : memref<28x32xf32, #tpu.memory_space<vmem>>, vector<1x32xf32>
    %c27 = arith.constant 27 : index
    %c0_7 = arith.constant 0 : index
    %5 = vector.load %arg3[%c27, %c0_7] : memref<28x32xf32, #tpu.memory_space<vmem>>, vector<1x32xf32>
    %6 = vector.shape_cast %0 : vector<2x24x48xf32> to vector<48x48xf32>
    %c0_8 = arith.constant 0 : index
    %c0_9 = arith.constant 0 : index
    %7 = vector.load %arg2[%c0_8, %c0_9] : memref<48x32xbf16, #tpu.memory_space<vmem>>, vector<48x32xbf16>
    %8 = arith.truncf %6 : vector<48x48xf32> to vector<48x48xbf16>
    %cst = arith.constant dense<0.000000e+00> : vector<48x32xf32>
    %9 = tpu.matmul %8, %7, %cst {dimension_numbers = #tpu.dot_dimension_numbers<[1], [0], [0], [1], [0, 0, 1, 1], [], []>} : vector<48x48xbf16>, vector<48x32xbf16>, vector<48x32xf32> -> vector<48x32xf32>
    %10 = vector.shape_cast %9 : vector<48x32xf32> to vector<2x24x32xf32>
    %11 = vector.shape_cast %1 : vector<24x32xf32> to vector<1x24x32xf32>
    %12 = vector.broadcast %11 : vector<1x24x32xf32> to vector<2x24x32xf32>
    %13 = arith.addf %10, %12 : vector<2x24x32xf32>
    %14 = vector.shape_cast %13 : vector<2x24x32xf32> to vector<48x32xf32>
    %cst_10 = arith.constant dense<0.000000e+00> : vector<48xf32>
    %15 = vector.multi_reduction <add>, %14, %cst_10 [1] : vector<48x32xf32> to vector<48xf32>
    %16 = vector.shape_cast %15 : vector<48xf32> to vector<48x1xf32>
    %cst_11 = arith.constant 3.200000e+01 : f32
    %17 = vector.broadcast %cst_11 : f32 to vector<48x1xf32>
    %18 = arith.divf %16, %17 : vector<48x1xf32>
    %19 = vector.broadcast %18 : vector<48x1xf32> to vector<48x32xf32>
    %20 = arith.subf %14, %19 : vector<48x32xf32>
    %21 = arith.mulf %20, %20 : vector<48x32xf32>
    %cst_12 = arith.constant dense<0.000000e+00> : vector<48xf32>
    %22 = vector.multi_reduction <add>, %21, %cst_12 [1] : vector<48x32xf32> to vector<48xf32>
    %23 = vector.shape_cast %22 : vector<48xf32> to vector<48x1xf32>
    %cst_13 = arith.constant 3.200000e+01 : f32
    %24 = vector.broadcast %cst_13 : f32 to vector<48x1xf32>
    %25 = arith.divf %23, %24 : vector<48x1xf32>
    %cst_14 = arith.constant 9.99999974E-6 : f32
    %26 = vector.broadcast %cst_14 : f32 to vector<48x1xf32>
    %27 = arith.addf %25, %26 : vector<48x1xf32>
    %28 = math.rsqrt %27 : vector<48x1xf32>
    %29 = vector.broadcast %28 : vector<48x1xf32> to vector<48x32xf32>
    %30 = arith.mulf %20, %29 : vector<48x32xf32>
    %31 = vector.broadcast %2 : vector<1x32xf32> to vector<48x32xf32>
    %32 = arith.mulf %30, %31 : vector<48x32xf32>
    %33 = vector.broadcast %3 : vector<1x32xf32> to vector<48x32xf32>
    %34 = arith.addf %32, %33 : vector<48x32xf32>
    %35 = tpu.iota {dimensions = array<i32: 1>} : vector<24x24xi32>
    %c17_i32 = arith.constant 17 : i32
    %36 = vector.broadcast %c17_i32 : i32 to vector<24x24xi32>
    %37 = arith.cmpi slt, %35, %36 : vector<24x24xi32>
    %cst_15 = arith.constant 0.000000e+00 : f32
    %cst_16 = arith.constant -1.000000e+09 : f32
    %38 = vector.broadcast %cst_15 : f32 to vector<24x24xf32>
    %39 = vector.broadcast %cst_16 : f32 to vector<24x24xf32>
    %40 = arith.select %37, %38, %39 : vector<24x24xi1>, vector<24x24xf32>
    %c0_17 = arith.constant 0 : index
    %c0_18 = arith.constant 0 : index
    %c0_19 = arith.constant 0 : index
    %41 = vector.load %arg7[%c0_17, %c0_18, %c0_19] : memref<2x1x352xf32, #tpu.memory_space<vmem>>, vector<1x1x32xf32>
    %42 = vector.shape_cast %41 : vector<1x1x32xf32> to vector<1x32xf32>
    %c0_20 = arith.constant 0 : index
    %c0_21 = arith.constant 0 : index
    %c32 = arith.constant 32 : index
    %43 = vector.load %arg7[%c0_20, %c0_21, %c32] : memref<2x1x352xf32, #tpu.memory_space<vmem>>, vector<1x1x32xf32>
    %44 = vector.shape_cast %43 : vector<1x1x32xf32> to vector<1x32xf32>
    %cst_22 = arith.constant dense<0.000000e+00> : vector<48xf32>
    %45 = vector.multi_reduction <add>, %34, %cst_22 [1] : vector<48x32xf32> to vector<48xf32>
    %46 = vector.shape_cast %45 : vector<48xf32> to vector<48x1xf32>
    %cst_23 = arith.constant 3.200000e+01 : f32
    %47 = vector.broadcast %cst_23 : f32 to vector<48x1xf32>
    %48 = arith.divf %46, %47 : vector<48x1xf32>
    %49 = vector.broadcast %48 : vector<48x1xf32> to vector<48x32xf32>
    %50 = arith.subf %34, %49 : vector<48x32xf32>
    %51 = arith.mulf %50, %50 : vector<48x32xf32>
    %cst_24 = arith.constant dense<0.000000e+00> : vector<48xf32>
    %52 = vector.multi_reduction <add>, %51, %cst_24 [1] : vector<48x32xf32> to vector<48xf32>
    %53 = vector.shape_cast %52 : vector<48xf32> to vector<48x1xf32>
    %cst_25 = arith.constant 3.200000e+01 : f32
    %54 = vector.broadcast %cst_25 : f32 to vector<48x1xf32>
    %55 = arith.divf %53, %54 : vector<48x1xf32>
    %cst_26 = arith.constant 9.99999974E-6 : f32
    %56 = vector.broadcast %cst_26 : f32 to vector<48x1xf32>
    %57 = arith.addf %55, %56 : vector<48x1xf32>
    %58 = math.rsqrt %57 : vector<48x1xf32>
    %59 = vector.broadcast %58 : vector<48x1xf32> to vector<48x32xf32>
    %60 = arith.mulf %50, %59 : vector<48x32xf32>
    %61 = vector.broadcast %42 : vector<1x32xf32> to vector<48x32xf32>
    %62 = arith.mulf %60, %61 : vector<48x32xf32>
    %63 = vector.broadcast %44 : vector<1x32xf32> to vector<48x32xf32>
    %64 = arith.addf %62, %63 : vector<48x32xf32>
    %c0_27 = arith.constant 0 : index
    %c0_28 = arith.constant 0 : index
    %c0_29 = arith.constant 0 : index
    %65 = vector.load %arg4[%c0_27, %c0_28, %c0_29] : memref<2x32x160xbf16, #tpu.memory_space<vmem>>, vector<1x32x96xbf16>
    %66 = vector.shape_cast %65 : vector<1x32x96xbf16> to vector<32x96xbf16>
    %67 = arith.truncf %64 : vector<48x32xf32> to vector<48x32xbf16>
    %cst_30 = arith.constant dense<0.000000e+00> : vector<48x96xf32>
    %68 = tpu.matmul %67, %66, %cst_30 {dimension_numbers = #tpu.dot_dimension_numbers<[1], [0], [0], [1], [0, 0, 1, 1], [], []>} : vector<48x32xbf16>, vector<32x96xbf16>, vector<48x96xf32> -> vector<48x96xf32>
    %c0_31 = arith.constant 0 : index
    %c0_32 = arith.constant 0 : index
    %c64 = arith.constant 64 : index
    %69 = vector.load %arg7[%c0_31, %c0_32, %c64] : memref<2x1x352xf32, #tpu.memory_space<vmem>>, vector<1x1x96xf32>
    %70 = vector.shape_cast %69 : vector<1x1x96xf32> to vector<1x96xf32>
    %71 = vector.broadcast %70 : vector<1x96xf32> to vector<48x96xf32>
    %72 = arith.addf %68, %71 : vector<48x96xf32>
    %c0_33 = arith.constant 0 : index
    %c0_34 = arith.constant 0 : index
    %c160 = arith.constant 160 : index
    %73 = vector.load %arg7[%c0_33, %c0_34, %c160] : memref<2x1x352xf32, #tpu.memory_space<vmem>>, vector<1x1x32xf32>
    %74 = vector.shape_cast %73 : vector<1x1x32xf32> to vector<1x32xf32>
    %75 = vector.extract_strided_slice %72 {offsets = [0, 0], sizes = [48, 16], strides = [1, 1]} : vector<48x96xf32> to vector<48x16xf32>
    %76 = vector.shape_cast %75 : vector<48x16xf32> to vector<2x24x16xf32>
    %77 = vector.extract_strided_slice %72 {offsets = [0, 32], sizes = [48, 16], strides = [1, 1]} : vector<48x96xf32> to vector<48x16xf32>
    %78 = vector.shape_cast %77 : vector<48x16xf32> to vector<2x24x16xf32>
    %79 = vector.extract_strided_slice %72 {offsets = [0, 64], sizes = [48, 16], strides = [1, 1]} : vector<48x96xf32> to vector<48x16xf32>
    %80 = vector.shape_cast %79 : vector<48x16xf32> to vector<2x24x16xf32>
    %81 = arith.truncf %76 : vector<2x24x16xf32> to vector<2x24x16xbf16>
    %82 = arith.truncf %78 : vector<2x24x16xf32> to vector<2x24x16xbf16>
    "tpu.trace_start"() <{level = 10 : i32, message = "bqd,bkd->bqk"}> : () -> ()
    %cst_35 = arith.constant dense<0.000000e+00> : vector<2x24x24xf32>
    %83 = tpu.matmul %81, %82, %cst_35 {dimension_numbers = #tpu.dot_dimension_numbers<[2], [2], [1], [1], [0, 0, 0, 1, 1, 1], [0], [0]>} : vector<2x24x16xbf16>, vector<2x24x16xbf16>, vector<2x24x24xf32> -> vector<2x24x24xf32>
    "tpu.trace_stop"() : () -> ()
    %cst_36 = arith.constant 2.500000e-01 : f32
    %84 = vector.broadcast %cst_36 : f32 to vector<2x24x24xf32>
    %85 = arith.mulf %83, %84 : vector<2x24x24xf32>
    %86 = vector.shape_cast %40 : vector<24x24xf32> to vector<1x24x24xf32>
    %87 = vector.broadcast %86 : vector<1x24x24xf32> to vector<2x24x24xf32>
    %88 = arith.addf %85, %87 : vector<2x24x24xf32>
    %cst_37 = arith.constant dense<0xFF800000> : vector<2x24xf32>
    %89 = vector.multi_reduction <maximumf>, %88, %cst_37 [2] : vector<2x24x24xf32> to vector<2x24xf32>
    %90 = vector.shape_cast %89 : vector<2x24xf32> to vector<2x24x1xf32>
    %91 = vector.broadcast %90 : vector<2x24x1xf32> to vector<2x24x24xf32>
    %92 = arith.subf %88, %91 : vector<2x24x24xf32>
    %93 = math.exp %92 : vector<2x24x24xf32>
    %cst_38 = arith.constant dense<0.000000e+00> : vector<2x24xf32>
    %94 = vector.multi_reduction <add>, %93, %cst_38 [2] : vector<2x24x24xf32> to vector<2x24xf32>
    %95 = vector.shape_cast %94 : vector<2x24xf32> to vector<2x24x1xf32>
    %96 = tpu.reciprocal %95 {approx = true} : vector<2x24x1xf32> -> vector<2x24x1xf32>
    %97 = vector.broadcast %96 : vector<2x24x1xf32> to vector<2x24x24xf32>
    %98 = arith.mulf %93, %97 : vector<2x24x24xf32>
    %99 = arith.truncf %98 : vector<2x24x24xf32> to vector<2x24x24xbf16>
    %100 = arith.truncf %80 : vector<2x24x16xf32> to vector<2x24x16xbf16>
    "tpu.trace_start"() <{level = 10 : i32, message = "bqk,bkd->bqd"}> : () -> ()
    %cst_39 = arith.constant dense<0.000000e+00> : vector<2x24x16xf32>
    %101 = tpu.matmul %99, %100, %cst_39 {dimension_numbers = #tpu.dot_dimension_numbers<[2], [1], [1], [2], [0, 0, 0, 1, 1, 2], [0], [0]>} : vector<2x24x24xbf16>, vector<2x24x16xbf16>, vector<2x24x16xf32> -> vector<2x24x16xf32>
    "tpu.trace_stop"() : () -> ()
    %102 = vector.shape_cast %101 : vector<2x24x16xf32> to vector<48x16xf32>
    %c0_40 = arith.constant 0 : index
    %c0_41 = arith.constant 0 : index
    %c0_42 = arith.constant 0 : index
    %c0_43 = arith.constant 0 : index
    %103 = vector.load %arg5[%c0_40, %c0_41, %c0_42, %c0_43] : memref<2x2x16x32xbf16, #tpu.memory_space<vmem>>, vector<1x1x16x32xbf16>
    %104 = vector.shape_cast %103 : vector<1x1x16x32xbf16> to vector<16x32xbf16>
    %105 = arith.truncf %102 : vector<48x16xf32> to vector<48x16xbf16>
    %cst_44 = arith.constant dense<0.000000e+00> : vector<48x32xf32>
    %106 = tpu.matmul %105, %104, %cst_44 {dimension_numbers = #tpu.dot_dimension_numbers<[1], [0], [0], [1], [0, 0, 1, 1], [], []>} : vector<48x16xbf16>, vector<16x32xbf16>, vector<48x32xf32> -> vector<48x32xf32>
    %107 = vector.broadcast %74 : vector<1x32xf32> to vector<48x32xf32>
    %108 = arith.addf %107, %106 : vector<48x32xf32>
    %109 = vector.extract_strided_slice %72 {offsets = [0, 16], sizes = [48, 16], strides = [1, 1]} : vector<48x96xf32> to vector<48x16xf32>
    %110 = vector.shape_cast %109 : vector<48x16xf32> to vector<2x24x16xf32>
    %111 = vector.extract_strided_slice %72 {offsets = [0, 48], sizes = [48, 16], strides = [1, 1]} : vector<48x96xf32> to vector<48x16xf32>
    %112 = vector.shape_cast %111 : vector<48x16xf32> to vector<2x24x16xf32>
    %113 = vector.extract_strided_slice %72 {offsets = [0, 80], sizes = [48, 16], strides = [1, 1]} : vector<48x96xf32> to vector<48x16xf32>
    %114 = vector.shape_cast %113 : vector<48x16xf32> to vector<2x24x16xf32>
    %115 = arith.truncf %110 : vector<2x24x16xf32> to vector<2x24x16xbf16>
    %116 = arith.truncf %112 : vector<2x24x16xf32> to vector<2x24x16xbf16>
    "tpu.trace_start"() <{level = 10 : i32, message = "bqd,bkd->bqk"}> : () -> ()
    %cst_45 = arith.constant dense<0.000000e+00> : vector<2x24x24xf32>
    %117 = tpu.matmul %115, %116, %cst_45 {dimension_numbers = #tpu.dot_dimension_numbers<[2], [2], [1], [1], [0, 0, 0, 1, 1, 1], [0], [0]>} : vector<2x24x16xbf16>, vector<2x24x16xbf16>, vector<2x24x24xf32> -> vector<2x24x24xf32>
    "tpu.trace_stop"() : () -> ()
    %cst_46 = arith.constant 2.500000e-01 : f32
    %118 = vector.broadcast %cst_46 : f32 to vector<2x24x24xf32>
    %119 = arith.mulf %117, %118 : vector<2x24x24xf32>
    %120 = vector.shape_cast %40 : vector<24x24xf32> to vector<1x24x24xf32>
    %121 = vector.broadcast %120 : vector<1x24x24xf32> to vector<2x24x24xf32>
    %122 = arith.addf %119, %121 : vector<2x24x24xf32>
    %cst_47 = arith.constant dense<0xFF800000> : vector<2x24xf32>
    %123 = vector.multi_reduction <maximumf>, %122, %cst_47 [2] : vector<2x24x24xf32> to vector<2x24xf32>
    %124 = vector.shape_cast %123 : vector<2x24xf32> to vector<2x24x1xf32>
    %125 = vector.broadcast %124 : vector<2x24x1xf32> to vector<2x24x24xf32>
    %126 = arith.subf %122, %125 : vector<2x24x24xf32>
    %127 = math.exp %126 : vector<2x24x24xf32>
    %cst_48 = arith.constant dense<0.000000e+00> : vector<2x24xf32>
    %128 = vector.multi_reduction <add>, %127, %cst_48 [2] : vector<2x24x24xf32> to vector<2x24xf32>
    %129 = vector.shape_cast %128 : vector<2x24xf32> to vector<2x24x1xf32>
    %130 = tpu.reciprocal %129 {approx = true} : vector<2x24x1xf32> -> vector<2x24x1xf32>
    %131 = vector.broadcast %130 : vector<2x24x1xf32> to vector<2x24x24xf32>
    %132 = arith.mulf %127, %131 : vector<2x24x24xf32>
    %133 = arith.truncf %132 : vector<2x24x24xf32> to vector<2x24x24xbf16>
    %134 = arith.truncf %114 : vector<2x24x16xf32> to vector<2x24x16xbf16>
    "tpu.trace_start"() <{level = 10 : i32, message = "bqk,bkd->bqd"}> : () -> ()
    %cst_49 = arith.constant dense<0.000000e+00> : vector<2x24x16xf32>
    %135 = tpu.matmul %133, %134, %cst_49 {dimension_numbers = #tpu.dot_dimension_numbers<[2], [1], [1], [2], [0, 0, 0, 1, 1, 2], [0], [0]>} : vector<2x24x24xbf16>, vector<2x24x16xbf16>, vector<2x24x16xf32> -> vector<2x24x16xf32>
    "tpu.trace_stop"() : () -> ()
    %136 = vector.shape_cast %135 : vector<2x24x16xf32> to vector<48x16xf32>
    %c0_50 = arith.constant 0 : index
    %c1 = arith.constant 1 : index
    %c0_51 = arith.constant 0 : index
    %c0_52 = arith.constant 0 : index
    %137 = vector.load %arg5[%c0_50, %c1, %c0_51, %c0_52] : memref<2x2x16x32xbf16, #tpu.memory_space<vmem>>, vector<1x1x16x32xbf16>
    %138 = vector.shape_cast %137 : vector<1x1x16x32xbf16> to vector<16x32xbf16>
    %139 = arith.truncf %136 : vector<48x16xf32> to vector<48x16xbf16>
    %cst_53 = arith.constant dense<0.000000e+00> : vector<48x32xf32>
    %140 = tpu.matmul %139, %138, %cst_53 {dimension_numbers = #tpu.dot_dimension_numbers<[1], [0], [0], [1], [0, 0, 1, 1], [], []>} : vector<48x16xbf16>, vector<16x32xbf16>, vector<48x32xf32> -> vector<48x32xf32>
    %141 = arith.addf %108, %140 : vector<48x32xf32>
    %142 = arith.addf %34, %141 : vector<48x32xf32>
    %c0_54 = arith.constant 0 : index
    %c0_55 = arith.constant 0 : index
    %c192 = arith.constant 192 : index
    %143 = vector.load %arg7[%c0_54, %c0_55, %c192] : memref<2x1x352xf32, #tpu.memory_space<vmem>>, vector<1x1x32xf32>
    %144 = vector.shape_cast %143 : vector<1x1x32xf32> to vector<1x32xf32>
    %c0_56 = arith.constant 0 : index
    %c0_57 = arith.constant 0 : index
    %c224 = arith.constant 224 : index
    %145 = vector.load %arg7[%c0_56, %c0_57, %c224] : memref<2x1x352xf32, #tpu.memory_space<vmem>>, vector<1x1x32xf32>
    %146 = vector.shape_cast %145 : vector<1x1x32xf32> to vector<1x32xf32>
    %cst_58 = arith.constant dense<0.000000e+00> : vector<48xf32>
    %147 = vector.multi_reduction <add>, %142, %cst_58 [1] : vector<48x32xf32> to vector<48xf32>
    %148 = vector.shape_cast %147 : vector<48xf32> to vector<48x1xf32>
    %cst_59 = arith.constant 3.200000e+01 : f32
    %149 = vector.broadcast %cst_59 : f32 to vector<48x1xf32>
    %150 = arith.divf %148, %149 : vector<48x1xf32>
    %151 = vector.broadcast %150 : vector<48x1xf32> to vector<48x32xf32>
    %152 = arith.subf %142, %151 : vector<48x32xf32>
    %153 = arith.mulf %152, %152 : vector<48x32xf32>
    %cst_60 = arith.constant dense<0.000000e+00> : vector<48xf32>
    %154 = vector.multi_reduction <add>, %153, %cst_60 [1] : vector<48x32xf32> to vector<48xf32>
    %155 = vector.shape_cast %154 : vector<48xf32> to vector<48x1xf32>
    %cst_61 = arith.constant 3.200000e+01 : f32
    %156 = vector.broadcast %cst_61 : f32 to vector<48x1xf32>
    %157 = arith.divf %155, %156 : vector<48x1xf32>
    %cst_62 = arith.constant 9.99999974E-6 : f32
    %158 = vector.broadcast %cst_62 : f32 to vector<48x1xf32>
    %159 = arith.addf %157, %158 : vector<48x1xf32>
    %160 = math.rsqrt %159 : vector<48x1xf32>
    %161 = vector.broadcast %160 : vector<48x1xf32> to vector<48x32xf32>
    %162 = arith.mulf %152, %161 : vector<48x32xf32>
    %163 = vector.broadcast %144 : vector<1x32xf32> to vector<48x32xf32>
    %164 = arith.mulf %162, %163 : vector<48x32xf32>
    %165 = vector.broadcast %146 : vector<1x32xf32> to vector<48x32xf32>
    %166 = arith.addf %164, %165 : vector<48x32xf32>
    %c0_63 = arith.constant 0 : index
    %c0_64 = arith.constant 0 : index
    %c96 = arith.constant 96 : index
    %167 = vector.load %arg4[%c0_63, %c0_64, %c96] : memref<2x32x160xbf16, #tpu.memory_space<vmem>>, vector<1x32x64xbf16>
    %168 = vector.shape_cast %167 : vector<1x32x64xbf16> to vector<32x64xbf16>
    %169 = arith.truncf %166 : vector<48x32xf32> to vector<48x32xbf16>
    %cst_65 = arith.constant dense<0.000000e+00> : vector<48x64xf32>
    %170 = tpu.matmul %169, %168, %cst_65 {dimension_numbers = #tpu.dot_dimension_numbers<[1], [0], [0], [1], [0, 0, 1, 1], [], []>} : vector<48x32xbf16>, vector<32x64xbf16>, vector<48x64xf32> -> vector<48x64xf32>
    %c0_66 = arith.constant 0 : index
    %c0_67 = arith.constant 0 : index
    %c256 = arith.constant 256 : index
    %171 = vector.load %arg7[%c0_66, %c0_67, %c256] : memref<2x1x352xf32, #tpu.memory_space<vmem>>, vector<1x1x64xf32>
    %172 = vector.shape_cast %171 : vector<1x1x64xf32> to vector<1x64xf32>
    %173 = vector.broadcast %172 : vector<1x64xf32> to vector<48x64xf32>
    %174 = arith.addf %170, %173 : vector<48x64xf32>
    %cst_68 = arith.constant 1.702000e+00 : f32
    %175 = vector.broadcast %cst_68 : f32 to vector<48x64xf32>
    %176 = arith.mulf %175, %174 : vector<48x64xf32>
    %177 = arith.negf %176 : vector<48x64xf32>
    %178 = math.exp %177 : vector<48x64xf32>
    %cst_69 = arith.constant 1.000000e+00 : f32
    %179 = vector.broadcast %cst_69 : f32 to vector<48x64xf32>
    %180 = arith.addf %179, %178 : vector<48x64xf32>
    %181 = arith.divf %179, %180 : vector<48x64xf32>
    %182 = arith.mulf %174, %181 : vector<48x64xf32>
    %c0_70 = arith.constant 0 : index
    %c0_71 = arith.constant 0 : index
    %c0_72 = arith.constant 0 : index
    %183 = vector.load %arg6[%c0_70, %c0_71, %c0_72] : memref<2x64x32xbf16, #tpu.memory_space<vmem>>, vector<1x64x32xbf16>
    %184 = vector.shape_cast %183 : vector<1x64x32xbf16> to vector<64x32xbf16>
    %185 = arith.truncf %182 : vector<48x64xf32> to vector<48x64xbf16>
    %cst_73 = arith.constant dense<0.000000e+00> : vector<48x32xf32>
    %186 = tpu.matmul %185, %184, %cst_73 {dimension_numbers = #tpu.dot_dimension_numbers<[1], [0], [0], [1], [0, 0, 1, 1], [], []>} : vector<48x64xbf16>, vector<64x32xbf16>, vector<48x32xf32> -> vector<48x32xf32>
    %c0_74 = arith.constant 0 : index
    %c0_75 = arith.constant 0 : index
    %c320 = arith.constant 320 : index
    %187 = vector.load %arg7[%c0_74, %c0_75, %c320] : memref<2x1x352xf32, #tpu.memory_space<vmem>>, vector<1x1x32xf32>
    %188 = vector.shape_cast %187 : vector<1x1x32xf32> to vector<1x32xf32>
    %189 = vector.broadcast %188 : vector<1x32xf32> to vector<48x32xf32>
    %190 = arith.addf %186, %189 : vector<48x32xf32>
    %191 = arith.addf %142, %190 : vector<48x32xf32>
    %c1_76 = arith.constant 1 : index
    %c0_77 = arith.constant 0 : index
    %c0_78 = arith.constant 0 : index
    %192 = vector.load %arg7[%c1_76, %c0_77, %c0_78] : memref<2x1x352xf32, #tpu.memory_space<vmem>>, vector<1x1x32xf32>
    %193 = vector.shape_cast %192 : vector<1x1x32xf32> to vector<1x32xf32>
    %c1_79 = arith.constant 1 : index
    %c0_80 = arith.constant 0 : index
    %c32_81 = arith.constant 32 : index
    %194 = vector.load %arg7[%c1_79, %c0_80, %c32_81] : memref<2x1x352xf32, #tpu.memory_space<vmem>>, vector<1x1x32xf32>
    %195 = vector.shape_cast %194 : vector<1x1x32xf32> to vector<1x32xf32>
    %cst_82 = arith.constant dense<0.000000e+00> : vector<48xf32>
    %196 = vector.multi_reduction <add>, %191, %cst_82 [1] : vector<48x32xf32> to vector<48xf32>
    %197 = vector.shape_cast %196 : vector<48xf32> to vector<48x1xf32>
    %cst_83 = arith.constant 3.200000e+01 : f32
    %198 = vector.broadcast %cst_83 : f32 to vector<48x1xf32>
    %199 = arith.divf %197, %198 : vector<48x1xf32>
    %200 = vector.broadcast %199 : vector<48x1xf32> to vector<48x32xf32>
    %201 = arith.subf %191, %200 : vector<48x32xf32>
    %202 = arith.mulf %201, %201 : vector<48x32xf32>
    %cst_84 = arith.constant dense<0.000000e+00> : vector<48xf32>
    %203 = vector.multi_reduction <add>, %202, %cst_84 [1] : vector<48x32xf32> to vector<48xf32>
    %204 = vector.shape_cast %203 : vector<48xf32> to vector<48x1xf32>
    %cst_85 = arith.constant 3.200000e+01 : f32
    %205 = vector.broadcast %cst_85 : f32 to vector<48x1xf32>
    %206 = arith.divf %204, %205 : vector<48x1xf32>
    %cst_86 = arith.constant 9.99999974E-6 : f32
    %207 = vector.broadcast %cst_86 : f32 to vector<48x1xf32>
    %208 = arith.addf %206, %207 : vector<48x1xf32>
    %209 = math.rsqrt %208 : vector<48x1xf32>
    %210 = vector.broadcast %209 : vector<48x1xf32> to vector<48x32xf32>
    %211 = arith.mulf %201, %210 : vector<48x32xf32>
    %212 = vector.broadcast %193 : vector<1x32xf32> to vector<48x32xf32>
    %213 = arith.mulf %211, %212 : vector<48x32xf32>
    %214 = vector.broadcast %195 : vector<1x32xf32> to vector<48x32xf32>
    %215 = arith.addf %213, %214 : vector<48x32xf32>
    %c1_87 = arith.constant 1 : index
    %c0_88 = arith.constant 0 : index
    %c0_89 = arith.constant 0 : index
    %216 = vector.load %arg4[%c1_87, %c0_88, %c0_89] : memref<2x32x160xbf16, #tpu.memory_space<vmem>>, vector<1x32x96xbf16>
    %217 = vector.shape_cast %216 : vector<1x32x96xbf16> to vector<32x96xbf16>
    %218 = arith.truncf %215 : vector<48x32xf32> to vector<48x32xbf16>
    %cst_90 = arith.constant dense<0.000000e+00> : vector<48x96xf32>
    %219 = tpu.matmul %218, %217, %cst_90 {dimension_numbers = #tpu.dot_dimension_numbers<[1], [0], [0], [1], [0, 0, 1, 1], [], []>} : vector<48x32xbf16>, vector<32x96xbf16>, vector<48x96xf32> -> vector<48x96xf32>
    %c1_91 = arith.constant 1 : index
    %c0_92 = arith.constant 0 : index
    %c64_93 = arith.constant 64 : index
    %220 = vector.load %arg7[%c1_91, %c0_92, %c64_93] : memref<2x1x352xf32, #tpu.memory_space<vmem>>, vector<1x1x96xf32>
    %221 = vector.shape_cast %220 : vector<1x1x96xf32> to vector<1x96xf32>
    %222 = vector.broadcast %221 : vector<1x96xf32> to vector<48x96xf32>
    %223 = arith.addf %219, %222 : vector<48x96xf32>
    %c1_94 = arith.constant 1 : index
    %c0_95 = arith.constant 0 : index
    %c160_96 = arith.constant 160 : index
    %224 = vector.load %arg7[%c1_94, %c0_95, %c160_96] : memref<2x1x352xf32, #tpu.memory_space<vmem>>, vector<1x1x32xf32>
    %225 = vector.shape_cast %224 : vector<1x1x32xf32> to vector<1x32xf32>
    %226 = vector.extract_strided_slice %223 {offsets = [0, 0], sizes = [48, 16], strides = [1, 1]} : vector<48x96xf32> to vector<48x16xf32>
    %227 = vector.shape_cast %226 : vector<48x16xf32> to vector<2x24x16xf32>
    %228 = vector.extract_strided_slice %223 {offsets = [0, 32], sizes = [48, 16], strides = [1, 1]} : vector<48x96xf32> to vector<48x16xf32>
    %229 = vector.shape_cast %228 : vector<48x16xf32> to vector<2x24x16xf32>
    %230 = vector.extract_strided_slice %223 {offsets = [0, 64], sizes = [48, 16], strides = [1, 1]} : vector<48x96xf32> to vector<48x16xf32>
    %231 = vector.shape_cast %230 : vector<48x16xf32> to vector<2x24x16xf32>
    %232 = arith.truncf %227 : vector<2x24x16xf32> to vector<2x24x16xbf16>
    %233 = arith.truncf %229 : vector<2x24x16xf32> to vector<2x24x16xbf16>
    "tpu.trace_start"() <{level = 10 : i32, message = "bqd,bkd->bqk"}> : () -> ()
    %cst_97 = arith.constant dense<0.000000e+00> : vector<2x24x24xf32>
    %234 = tpu.matmul %232, %233, %cst_97 {dimension_numbers = #tpu.dot_dimension_numbers<[2], [2], [1], [1], [0, 0, 0, 1, 1, 1], [0], [0]>} : vector<2x24x16xbf16>, vector<2x24x16xbf16>, vector<2x24x24xf32> -> vector<2x24x24xf32>
    "tpu.trace_stop"() : () -> ()
    %cst_98 = arith.constant 2.500000e-01 : f32
    %235 = vector.broadcast %cst_98 : f32 to vector<2x24x24xf32>
    %236 = arith.mulf %234, %235 : vector<2x24x24xf32>
    %237 = vector.shape_cast %40 : vector<24x24xf32> to vector<1x24x24xf32>
    %238 = vector.broadcast %237 : vector<1x24x24xf32> to vector<2x24x24xf32>
    %239 = arith.addf %236, %238 : vector<2x24x24xf32>
    %cst_99 = arith.constant dense<0xFF800000> : vector<2x24xf32>
    %240 = vector.multi_reduction <maximumf>, %239, %cst_99 [2] : vector<2x24x24xf32> to vector<2x24xf32>
    %241 = vector.shape_cast %240 : vector<2x24xf32> to vector<2x24x1xf32>
    %242 = vector.broadcast %241 : vector<2x24x1xf32> to vector<2x24x24xf32>
    %243 = arith.subf %239, %242 : vector<2x24x24xf32>
    %244 = math.exp %243 : vector<2x24x24xf32>
    %cst_100 = arith.constant dense<0.000000e+00> : vector<2x24xf32>
    %245 = vector.multi_reduction <add>, %244, %cst_100 [2] : vector<2x24x24xf32> to vector<2x24xf32>
    %246 = vector.shape_cast %245 : vector<2x24xf32> to vector<2x24x1xf32>
    %247 = tpu.reciprocal %246 {approx = true} : vector<2x24x1xf32> -> vector<2x24x1xf32>
    %248 = vector.broadcast %247 : vector<2x24x1xf32> to vector<2x24x24xf32>
    %249 = arith.mulf %244, %248 : vector<2x24x24xf32>
    %250 = arith.truncf %249 : vector<2x24x24xf32> to vector<2x24x24xbf16>
    %251 = arith.truncf %231 : vector<2x24x16xf32> to vector<2x24x16xbf16>
    "tpu.trace_start"() <{level = 10 : i32, message = "bqk,bkd->bqd"}> : () -> ()
    %cst_101 = arith.constant dense<0.000000e+00> : vector<2x24x16xf32>
    %252 = tpu.matmul %250, %251, %cst_101 {dimension_numbers = #tpu.dot_dimension_numbers<[2], [1], [1], [2], [0, 0, 0, 1, 1, 2], [0], [0]>} : vector<2x24x24xbf16>, vector<2x24x16xbf16>, vector<2x24x16xf32> -> vector<2x24x16xf32>
    "tpu.trace_stop"() : () -> ()
    %253 = vector.shape_cast %252 : vector<2x24x16xf32> to vector<48x16xf32>
    %c1_102 = arith.constant 1 : index
    %c0_103 = arith.constant 0 : index
    %c0_104 = arith.constant 0 : index
    %c0_105 = arith.constant 0 : index
    %254 = vector.load %arg5[%c1_102, %c0_103, %c0_104, %c0_105] : memref<2x2x16x32xbf16, #tpu.memory_space<vmem>>, vector<1x1x16x32xbf16>
    %255 = vector.shape_cast %254 : vector<1x1x16x32xbf16> to vector<16x32xbf16>
    %256 = arith.truncf %253 : vector<48x16xf32> to vector<48x16xbf16>
    %cst_106 = arith.constant dense<0.000000e+00> : vector<48x32xf32>
    %257 = tpu.matmul %256, %255, %cst_106 {dimension_numbers = #tpu.dot_dimension_numbers<[1], [0], [0], [1], [0, 0, 1, 1], [], []>} : vector<48x16xbf16>, vector<16x32xbf16>, vector<48x32xf32> -> vector<48x32xf32>
    %258 = vector.broadcast %225 : vector<1x32xf32> to vector<48x32xf32>
    %259 = arith.addf %258, %257 : vector<48x32xf32>
    %260 = vector.extract_strided_slice %223 {offsets = [0, 16], sizes = [48, 16], strides = [1, 1]} : vector<48x96xf32> to vector<48x16xf32>
    %261 = vector.shape_cast %260 : vector<48x16xf32> to vector<2x24x16xf32>
    %262 = vector.extract_strided_slice %223 {offsets = [0, 48], sizes = [48, 16], strides = [1, 1]} : vector<48x96xf32> to vector<48x16xf32>
    %263 = vector.shape_cast %262 : vector<48x16xf32> to vector<2x24x16xf32>
    %264 = vector.extract_strided_slice %223 {offsets = [0, 80], sizes = [48, 16], strides = [1, 1]} : vector<48x96xf32> to vector<48x16xf32>
    %265 = vector.shape_cast %264 : vector<48x16xf32> to vector<2x24x16xf32>
    %266 = arith.truncf %261 : vector<2x24x16xf32> to vector<2x24x16xbf16>
    %267 = arith.truncf %263 : vector<2x24x16xf32> to vector<2x24x16xbf16>
    "tpu.trace_start"() <{level = 10 : i32, message = "bqd,bkd->bqk"}> : () -> ()
    %cst_107 = arith.constant dense<0.000000e+00> : vector<2x24x24xf32>
    %268 = tpu.matmul %266, %267, %cst_107 {dimension_numbers = #tpu.dot_dimension_numbers<[2], [2], [1], [1], [0, 0, 0, 1, 1, 1], [0], [0]>} : vector<2x24x16xbf16>, vector<2x24x16xbf16>, vector<2x24x24xf32> -> vector<2x24x24xf32>
    "tpu.trace_stop"() : () -> ()
    %cst_108 = arith.constant 2.500000e-01 : f32
    %269 = vector.broadcast %cst_108 : f32 to vector<2x24x24xf32>
    %270 = arith.mulf %268, %269 : vector<2x24x24xf32>
    %271 = vector.shape_cast %40 : vector<24x24xf32> to vector<1x24x24xf32>
    %272 = vector.broadcast %271 : vector<1x24x24xf32> to vector<2x24x24xf32>
    %273 = arith.addf %270, %272 : vector<2x24x24xf32>
    %cst_109 = arith.constant dense<0xFF800000> : vector<2x24xf32>
    %274 = vector.multi_reduction <maximumf>, %273, %cst_109 [2] : vector<2x24x24xf32> to vector<2x24xf32>
    %275 = vector.shape_cast %274 : vector<2x24xf32> to vector<2x24x1xf32>
    %276 = vector.broadcast %275 : vector<2x24x1xf32> to vector<2x24x24xf32>
    %277 = arith.subf %273, %276 : vector<2x24x24xf32>
    %278 = math.exp %277 : vector<2x24x24xf32>
    %cst_110 = arith.constant dense<0.000000e+00> : vector<2x24xf32>
    %279 = vector.multi_reduction <add>, %278, %cst_110 [2] : vector<2x24x24xf32> to vector<2x24xf32>
    %280 = vector.shape_cast %279 : vector<2x24xf32> to vector<2x24x1xf32>
    %281 = tpu.reciprocal %280 {approx = true} : vector<2x24x1xf32> -> vector<2x24x1xf32>
    %282 = vector.broadcast %281 : vector<2x24x1xf32> to vector<2x24x24xf32>
    %283 = arith.mulf %278, %282 : vector<2x24x24xf32>
    %284 = arith.truncf %283 : vector<2x24x24xf32> to vector<2x24x24xbf16>
    %285 = arith.truncf %265 : vector<2x24x16xf32> to vector<2x24x16xbf16>
    "tpu.trace_start"() <{level = 10 : i32, message = "bqk,bkd->bqd"}> : () -> ()
    %cst_111 = arith.constant dense<0.000000e+00> : vector<2x24x16xf32>
    %286 = tpu.matmul %284, %285, %cst_111 {dimension_numbers = #tpu.dot_dimension_numbers<[2], [1], [1], [2], [0, 0, 0, 1, 1, 2], [0], [0]>} : vector<2x24x24xbf16>, vector<2x24x16xbf16>, vector<2x24x16xf32> -> vector<2x24x16xf32>
    "tpu.trace_stop"() : () -> ()
    %287 = vector.shape_cast %286 : vector<2x24x16xf32> to vector<48x16xf32>
    %c1_112 = arith.constant 1 : index
    %c1_113 = arith.constant 1 : index
    %c0_114 = arith.constant 0 : index
    %c0_115 = arith.constant 0 : index
    %288 = vector.load %arg5[%c1_112, %c1_113, %c0_114, %c0_115] : memref<2x2x16x32xbf16, #tpu.memory_space<vmem>>, vector<1x1x16x32xbf16>
    %289 = vector.shape_cast %288 : vector<1x1x16x32xbf16> to vector<16x32xbf16>
    %290 = arith.truncf %287 : vector<48x16xf32> to vector<48x16xbf16>
    %cst_116 = arith.constant dense<0.000000e+00> : vector<48x32xf32>
    %291 = tpu.matmul %290, %289, %cst_116 {dimension_numbers = #tpu.dot_dimension_numbers<[1], [0], [0], [1], [0, 0, 1, 1], [], []>} : vector<48x16xbf16>, vector<16x32xbf16>, vector<48x32xf32> -> vector<48x32xf32>
    %292 = arith.addf %259, %291 : vector<48x32xf32>
    %293 = arith.addf %191, %292 : vector<48x32xf32>
    %c1_117 = arith.constant 1 : index
    %c0_118 = arith.constant 0 : index
    %c192_119 = arith.constant 192 : index
    %294 = vector.load %arg7[%c1_117, %c0_118, %c192_119] : memref<2x1x352xf32, #tpu.memory_space<vmem>>, vector<1x1x32xf32>
    %295 = vector.shape_cast %294 : vector<1x1x32xf32> to vector<1x32xf32>
    %c1_120 = arith.constant 1 : index
    %c0_121 = arith.constant 0 : index
    %c224_122 = arith.constant 224 : index
    %296 = vector.load %arg7[%c1_120, %c0_121, %c224_122] : memref<2x1x352xf32, #tpu.memory_space<vmem>>, vector<1x1x32xf32>
    %297 = vector.shape_cast %296 : vector<1x1x32xf32> to vector<1x32xf32>
    %cst_123 = arith.constant dense<0.000000e+00> : vector<48xf32>
    %298 = vector.multi_reduction <add>, %293, %cst_123 [1] : vector<48x32xf32> to vector<48xf32>
    %299 = vector.shape_cast %298 : vector<48xf32> to vector<48x1xf32>
    %cst_124 = arith.constant 3.200000e+01 : f32
    %300 = vector.broadcast %cst_124 : f32 to vector<48x1xf32>
    %301 = arith.divf %299, %300 : vector<48x1xf32>
    %302 = vector.broadcast %301 : vector<48x1xf32> to vector<48x32xf32>
    %303 = arith.subf %293, %302 : vector<48x32xf32>
    %304 = arith.mulf %303, %303 : vector<48x32xf32>
    %cst_125 = arith.constant dense<0.000000e+00> : vector<48xf32>
    %305 = vector.multi_reduction <add>, %304, %cst_125 [1] : vector<48x32xf32> to vector<48xf32>
    %306 = vector.shape_cast %305 : vector<48xf32> to vector<48x1xf32>
    %cst_126 = arith.constant 3.200000e+01 : f32
    %307 = vector.broadcast %cst_126 : f32 to vector<48x1xf32>
    %308 = arith.divf %306, %307 : vector<48x1xf32>
    %cst_127 = arith.constant 9.99999974E-6 : f32
    %309 = vector.broadcast %cst_127 : f32 to vector<48x1xf32>
    %310 = arith.addf %308, %309 : vector<48x1xf32>
    %311 = math.rsqrt %310 : vector<48x1xf32>
    %312 = vector.broadcast %311 : vector<48x1xf32> to vector<48x32xf32>
    %313 = arith.mulf %303, %312 : vector<48x32xf32>
    %314 = vector.broadcast %295 : vector<1x32xf32> to vector<48x32xf32>
    %315 = arith.mulf %313, %314 : vector<48x32xf32>
    %316 = vector.broadcast %297 : vector<1x32xf32> to vector<48x32xf32>
    %317 = arith.addf %315, %316 : vector<48x32xf32>
    %c1_128 = arith.constant 1 : index
    %c0_129 = arith.constant 0 : index
    %c96_130 = arith.constant 96 : index
    %318 = vector.load %arg4[%c1_128, %c0_129, %c96_130] : memref<2x32x160xbf16, #tpu.memory_space<vmem>>, vector<1x32x64xbf16>
    %319 = vector.shape_cast %318 : vector<1x32x64xbf16> to vector<32x64xbf16>
    %320 = arith.truncf %317 : vector<48x32xf32> to vector<48x32xbf16>
    %cst_131 = arith.constant dense<0.000000e+00> : vector<48x64xf32>
    %321 = tpu.matmul %320, %319, %cst_131 {dimension_numbers = #tpu.dot_dimension_numbers<[1], [0], [0], [1], [0, 0, 1, 1], [], []>} : vector<48x32xbf16>, vector<32x64xbf16>, vector<48x64xf32> -> vector<48x64xf32>
    %c1_132 = arith.constant 1 : index
    %c0_133 = arith.constant 0 : index
    %c256_134 = arith.constant 256 : index
    %322 = vector.load %arg7[%c1_132, %c0_133, %c256_134] : memref<2x1x352xf32, #tpu.memory_space<vmem>>, vector<1x1x64xf32>
    %323 = vector.shape_cast %322 : vector<1x1x64xf32> to vector<1x64xf32>
    %324 = vector.broadcast %323 : vector<1x64xf32> to vector<48x64xf32>
    %325 = arith.addf %321, %324 : vector<48x64xf32>
    %cst_135 = arith.constant 1.702000e+00 : f32
    %326 = vector.broadcast %cst_135 : f32 to vector<48x64xf32>
    %327 = arith.mulf %326, %325 : vector<48x64xf32>
    %328 = arith.negf %327 : vector<48x64xf32>
    %329 = math.exp %328 : vector<48x64xf32>
    %cst_136 = arith.constant 1.000000e+00 : f32
    %330 = vector.broadcast %cst_136 : f32 to vector<48x64xf32>
    %331 = arith.addf %330, %329 : vector<48x64xf32>
    %332 = arith.divf %330, %331 : vector<48x64xf32>
    %333 = arith.mulf %325, %332 : vector<48x64xf32>
    %c1_137 = arith.constant 1 : index
    %c0_138 = arith.constant 0 : index
    %c0_139 = arith.constant 0 : index
    %334 = vector.load %arg6[%c1_137, %c0_138, %c0_139] : memref<2x64x32xbf16, #tpu.memory_space<vmem>>, vector<1x64x32xbf16>
    %335 = vector.shape_cast %334 : vector<1x64x32xbf16> to vector<64x32xbf16>
    %336 = arith.truncf %333 : vector<48x64xf32> to vector<48x64xbf16>
    %cst_140 = arith.constant dense<0.000000e+00> : vector<48x32xf32>
    %337 = tpu.matmul %336, %335, %cst_140 {dimension_numbers = #tpu.dot_dimension_numbers<[1], [0], [0], [1], [0, 0, 1, 1], [], []>} : vector<48x64xbf16>, vector<64x32xbf16>, vector<48x32xf32> -> vector<48x32xf32>
    %c1_141 = arith.constant 1 : index
    %c0_142 = arith.constant 0 : index
    %c320_143 = arith.constant 320 : index
    %338 = vector.load %arg7[%c1_141, %c0_142, %c320_143] : memref<2x1x352xf32, #tpu.memory_space<vmem>>, vector<1x1x32xf32>
    %339 = vector.shape_cast %338 : vector<1x1x32xf32> to vector<1x32xf32>
    %340 = vector.broadcast %339 : vector<1x32xf32> to vector<48x32xf32>
    %341 = arith.addf %337, %340 : vector<48x32xf32>
    %342 = arith.addf %293, %341 : vector<48x32xf32>
    %343 = vector.extract_strided_slice %342 {offsets = [0, 0], sizes = [1, 32], strides = [1, 1]} : vector<48x32xf32> to vector<1x32xf32>
    %344 = vector.extract_strided_slice %342 {offsets = [24, 0], sizes = [1, 32], strides = [1, 1]} : vector<48x32xf32> to vector<1x32xf32>
    %345 = tpu.concatenate %343, %344 in 0 : vector<1x32xf32>, vector<1x32xf32> -> vector<2x32xf32>
    %cst_144 = arith.constant dense<0.000000e+00> : vector<2xf32>
    %346 = vector.multi_reduction <add>, %345, %cst_144 [1] : vector<2x32xf32> to vector<2xf32>
    %347 = vector.shape_cast %346 : vector<2xf32> to vector<2x1xf32>
    %cst_145 = arith.constant 3.200000e+01 : f32
    %348 = vector.broadcast %cst_145 : f32 to vector<2x1xf32>
    %349 = arith.divf %347, %348 : vector<2x1xf32>
    %350 = vector.broadcast %349 : vector<2x1xf32> to vector<2x32xf32>
    %351 = arith.subf %345, %350 : vector<2x32xf32>
    %352 = arith.mulf %351, %351 : vector<2x32xf32>
    %cst_146 = arith.constant dense<0.000000e+00> : vector<2xf32>
    %353 = vector.multi_reduction <add>, %352, %cst_146 [1] : vector<2x32xf32> to vector<2xf32>
    %354 = vector.shape_cast %353 : vector<2xf32> to vector<2x1xf32>
    %cst_147 = arith.constant 3.200000e+01 : f32
    %355 = vector.broadcast %cst_147 : f32 to vector<2x1xf32>
    %356 = arith.divf %354, %355 : vector<2x1xf32>
    %cst_148 = arith.constant 9.99999974E-6 : f32
    %357 = vector.broadcast %cst_148 : f32 to vector<2x1xf32>
    %358 = arith.addf %356, %357 : vector<2x1xf32>
    %359 = math.rsqrt %358 : vector<2x1xf32>
    %360 = vector.broadcast %359 : vector<2x1xf32> to vector<2x32xf32>
    %361 = arith.mulf %351, %360 : vector<2x32xf32>
    %362 = vector.broadcast %4 : vector<1x32xf32> to vector<2x32xf32>
    %363 = arith.mulf %361, %362 : vector<2x32xf32>
    %364 = vector.broadcast %5 : vector<1x32xf32> to vector<2x32xf32>
    %365 = arith.addf %363, %364 : vector<2x32xf32>
    %c0_149 = arith.constant 0 : index
    %c0_150 = arith.constant 0 : index
    %366 = vector.load %arg8[%c0_149, %c0_150] : memref<32x16xbf16, #tpu.memory_space<vmem>>, vector<32x16xbf16>
    %367 = arith.truncf %365 : vector<2x32xf32> to vector<2x32xbf16>
    %cst_151 = arith.constant dense<0.000000e+00> : vector<2x16xf32>
    %368 = tpu.matmul %367, %366, %cst_151 {dimension_numbers = #tpu.dot_dimension_numbers<[1], [0], [0], [1], [0, 0, 1, 1], [], []>} : vector<2x32xbf16>, vector<32x16xbf16>, vector<2x16xf32> -> vector<2x16xf32>
    %c0_152 = arith.constant 0 : index
    %c0_153 = arith.constant 0 : index
    %c0_154 = arith.constant 0 : index
    %369 = vector.load %arg9[%c0_152, %c0_153, %c0_154] : memref<2x8x32xf32, #tpu.memory_space<vmem>>, vector<2x8x32xf32>
    %370 = vector.shape_cast %369 : vector<2x8x32xf32> to vector<16x32xf32>
    %371 = tpu.iota {dimensions = array<i32: 0>} : vector<8x8xi32>
    %372 = tpu.iota {dimensions = array<i32: 1>} : vector<8x8xi32>
    %373 = arith.cmpi sle, %372, %371 : vector<8x8xi32>
    %cst_155 = arith.constant 0.000000e+00 : f32
    %cst_156 = arith.constant -1.000000e+09 : f32
    %374 = vector.broadcast %cst_155 : f32 to vector<8x8xf32>
    %375 = vector.broadcast %cst_156 : f32 to vector<8x8xf32>
    %376 = arith.select %373, %374, %375 : vector<8x8xi1>, vector<8x8xf32>
    %c0_157 = arith.constant 0 : index
    %c0_158 = arith.constant 0 : index
    %c0_159 = arith.constant 0 : index
    %377 = vector.load %arg13[%c0_157, %c0_158, %c0_159] : memref<2x1x352xf32, #tpu.memory_space<vmem>>, vector<1x1x32xf32>
    %378 = vector.shape_cast %377 : vector<1x1x32xf32> to vector<1x32xf32>
    %c0_160 = arith.constant 0 : index
    %c0_161 = arith.constant 0 : index
    %c32_162 = arith.constant 32 : index
    %379 = vector.load %arg13[%c0_160, %c0_161, %c32_162] : memref<2x1x352xf32, #tpu.memory_space<vmem>>, vector<1x1x32xf32>
    %380 = vector.shape_cast %379 : vector<1x1x32xf32> to vector<1x32xf32>
    %cst_163 = arith.constant dense<0.000000e+00> : vector<16xf32>
    %381 = vector.multi_reduction <add>, %370, %cst_163 [1] : vector<16x32xf32> to vector<16xf32>
    %382 = vector.shape_cast %381 : vector<16xf32> to vector<16x1xf32>
    %cst_164 = arith.constant 3.200000e+01 : f32
    %383 = vector.broadcast %cst_164 : f32 to vector<16x1xf32>
    %384 = arith.divf %382, %383 : vector<16x1xf32>
    %385 = vector.broadcast %384 : vector<16x1xf32> to vector<16x32xf32>
    %386 = arith.subf %370, %385 : vector<16x32xf32>
    %387 = arith.mulf %386, %386 : vector<16x32xf32>
    %cst_165 = arith.constant dense<0.000000e+00> : vector<16xf32>
    %388 = vector.multi_reduction <add>, %387, %cst_165 [1] : vector<16x32xf32> to vector<16xf32>
    %389 = vector.shape_cast %388 : vector<16xf32> to vector<16x1xf32>
    %cst_166 = arith.constant 3.200000e+01 : f32
    %390 = vector.broadcast %cst_166 : f32 to vector<16x1xf32>
    %391 = arith.divf %389, %390 : vector<16x1xf32>
    %cst_167 = arith.constant 9.99999974E-6 : f32
    %392 = vector.broadcast %cst_167 : f32 to vector<16x1xf32>
    %393 = arith.addf %391, %392 : vector<16x1xf32>
    %394 = math.rsqrt %393 : vector<16x1xf32>
    %395 = vector.broadcast %394 : vector<16x1xf32> to vector<16x32xf32>
    %396 = arith.mulf %386, %395 : vector<16x32xf32>
    %397 = vector.broadcast %378 : vector<1x32xf32> to vector<16x32xf32>
    %398 = arith.mulf %396, %397 : vector<16x32xf32>
    %399 = vector.broadcast %380 : vector<1x32xf32> to vector<16x32xf32>
    %400 = arith.addf %398, %399 : vector<16x32xf32>
    %c0_168 = arith.constant 0 : index
    %c0_169 = arith.constant 0 : index
    %c0_170 = arith.constant 0 : index
    %401 = vector.load %arg10[%c0_168, %c0_169, %c0_170] : memref<2x32x160xbf16, #tpu.memory_space<vmem>>, vector<1x32x96xbf16>
    %402 = vector.shape_cast %401 : vector<1x32x96xbf16> to vector<32x96xbf16>
    %403 = arith.truncf %400 : vector<16x32xf32> to vector<16x32xbf16>
    %cst_171 = arith.constant dense<0.000000e+00> : vector<16x96xf32>
    %404 = tpu.matmul %403, %402, %cst_171 {dimension_numbers = #tpu.dot_dimension_numbers<[1], [0], [0], [1], [0, 0, 1, 1], [], []>} : vector<16x32xbf16>, vector<32x96xbf16>, vector<16x96xf32> -> vector<16x96xf32>
    %c0_172 = arith.constant 0 : index
    %c0_173 = arith.constant 0 : index
    %c64_174 = arith.constant 64 : index
    %405 = vector.load %arg13[%c0_172, %c0_173, %c64_174] : memref<2x1x352xf32, #tpu.memory_space<vmem>>, vector<1x1x96xf32>
    %406 = vector.shape_cast %405 : vector<1x1x96xf32> to vector<1x96xf32>
    %407 = vector.broadcast %406 : vector<1x96xf32> to vector<16x96xf32>
    %408 = arith.addf %404, %407 : vector<16x96xf32>
    %c0_175 = arith.constant 0 : index
    %c0_176 = arith.constant 0 : index
    %c160_177 = arith.constant 160 : index
    %409 = vector.load %arg13[%c0_175, %c0_176, %c160_177] : memref<2x1x352xf32, #tpu.memory_space<vmem>>, vector<1x1x32xf32>
    %410 = vector.shape_cast %409 : vector<1x1x32xf32> to vector<1x32xf32>
    %411 = vector.extract_strided_slice %408 {offsets = [0, 0], sizes = [16, 16], strides = [1, 1]} : vector<16x96xf32> to vector<16x16xf32>
    %412 = vector.shape_cast %411 : vector<16x16xf32> to vector<2x8x16xf32>
    %413 = vector.extract_strided_slice %408 {offsets = [0, 32], sizes = [16, 16], strides = [1, 1]} : vector<16x96xf32> to vector<16x16xf32>
    %414 = vector.shape_cast %413 : vector<16x16xf32> to vector<2x8x16xf32>
    %415 = vector.extract_strided_slice %408 {offsets = [0, 64], sizes = [16, 16], strides = [1, 1]} : vector<16x96xf32> to vector<16x16xf32>
    %416 = vector.shape_cast %415 : vector<16x16xf32> to vector<2x8x16xf32>
    %417 = arith.truncf %412 : vector<2x8x16xf32> to vector<2x8x16xbf16>
    %418 = arith.truncf %414 : vector<2x8x16xf32> to vector<2x8x16xbf16>
    "tpu.trace_start"() <{level = 10 : i32, message = "bqd,bkd->bqk"}> : () -> ()
    %cst_178 = arith.constant dense<0.000000e+00> : vector<2x8x8xf32>
    %419 = tpu.matmul %417, %418, %cst_178 {dimension_numbers = #tpu.dot_dimension_numbers<[2], [2], [1], [1], [0, 0, 0, 1, 1, 1], [0], [0]>} : vector<2x8x16xbf16>, vector<2x8x16xbf16>, vector<2x8x8xf32> -> vector<2x8x8xf32>
    "tpu.trace_stop"() : () -> ()
    %cst_179 = arith.constant 2.500000e-01 : f32
    %420 = vector.broadcast %cst_179 : f32 to vector<2x8x8xf32>
    %421 = arith.mulf %419, %420 : vector<2x8x8xf32>
    %422 = vector.shape_cast %376 : vector<8x8xf32> to vector<1x8x8xf32>
    %423 = vector.broadcast %422 : vector<1x8x8xf32> to vector<2x8x8xf32>
    %424 = arith.addf %421, %423 : vector<2x8x8xf32>
    %cst_180 = arith.constant dense<0xFF800000> : vector<2x8xf32>
    %425 = vector.multi_reduction <maximumf>, %424, %cst_180 [2] : vector<2x8x8xf32> to vector<2x8xf32>
    %426 = vector.shape_cast %425 : vector<2x8xf32> to vector<2x8x1xf32>
    %427 = vector.broadcast %426 : vector<2x8x1xf32> to vector<2x8x8xf32>
    %428 = arith.subf %424, %427 : vector<2x8x8xf32>
    %429 = math.exp %428 : vector<2x8x8xf32>
    %cst_181 = arith.constant dense<0.000000e+00> : vector<2x8xf32>
    %430 = vector.multi_reduction <add>, %429, %cst_181 [2] : vector<2x8x8xf32> to vector<2x8xf32>
    %431 = vector.shape_cast %430 : vector<2x8xf32> to vector<2x8x1xf32>
    %432 = tpu.reciprocal %431 {approx = true} : vector<2x8x1xf32> -> vector<2x8x1xf32>
    %433 = vector.broadcast %432 : vector<2x8x1xf32> to vector<2x8x8xf32>
    %434 = arith.mulf %429, %433 : vector<2x8x8xf32>
    %435 = arith.truncf %434 : vector<2x8x8xf32> to vector<2x8x8xbf16>
    %436 = arith.truncf %416 : vector<2x8x16xf32> to vector<2x8x16xbf16>
    "tpu.trace_start"() <{level = 10 : i32, message = "bqk,bkd->bqd"}> : () -> ()
    %cst_182 = arith.constant dense<0.000000e+00> : vector<2x8x16xf32>
    %437 = tpu.matmul %435, %436, %cst_182 {dimension_numbers = #tpu.dot_dimension_numbers<[2], [1], [1], [2], [0, 0, 0, 1, 1, 2], [0], [0]>} : vector<2x8x8xbf16>, vector<2x8x16xbf16>, vector<2x8x16xf32> -> vector<2x8x16xf32>
    "tpu.trace_stop"() : () -> ()
    %438 = vector.shape_cast %437 : vector<2x8x16xf32> to vector<16x16xf32>
    %c0_183 = arith.constant 0 : index
    %c0_184 = arith.constant 0 : index
    %c0_185 = arith.constant 0 : index
    %c0_186 = arith.constant 0 : index
    %439 = vector.load %arg11[%c0_183, %c0_184, %c0_185, %c0_186] : memref<2x2x16x32xbf16, #tpu.memory_space<vmem>>, vector<1x1x16x32xbf16>
    %440 = vector.shape_cast %439 : vector<1x1x16x32xbf16> to vector<16x32xbf16>
    %441 = arith.truncf %438 : vector<16x16xf32> to vector<16x16xbf16>
    %cst_187 = arith.constant dense<0.000000e+00> : vector<16x32xf32>
    %442 = tpu.matmul %441, %440, %cst_187 {dimension_numbers = #tpu.dot_dimension_numbers<[1], [0], [0], [1], [0, 0, 1, 1], [], []>} : vector<16x16xbf16>, vector<16x32xbf16>, vector<16x32xf32> -> vector<16x32xf32>
    %443 = vector.broadcast %410 : vector<1x32xf32> to vector<16x32xf32>
    %444 = arith.addf %443, %442 : vector<16x32xf32>
    %445 = vector.extract_strided_slice %408 {offsets = [0, 16], sizes = [16, 16], strides = [1, 1]} : vector<16x96xf32> to vector<16x16xf32>
    %446 = vector.shape_cast %445 : vector<16x16xf32> to vector<2x8x16xf32>
    %447 = vector.extract_strided_slice %408 {offsets = [0, 48], sizes = [16, 16], strides = [1, 1]} : vector<16x96xf32> to vector<16x16xf32>
    %448 = vector.shape_cast %447 : vector<16x16xf32> to vector<2x8x16xf32>
    %449 = vector.extract_strided_slice %408 {offsets = [0, 80], sizes = [16, 16], strides = [1, 1]} : vector<16x96xf32> to vector<16x16xf32>
    %450 = vector.shape_cast %449 : vector<16x16xf32> to vector<2x8x16xf32>
    %451 = arith.truncf %446 : vector<2x8x16xf32> to vector<2x8x16xbf16>
    %452 = arith.truncf %448 : vector<2x8x16xf32> to vector<2x8x16xbf16>
    "tpu.trace_start"() <{level = 10 : i32, message = "bqd,bkd->bqk"}> : () -> ()
    %cst_188 = arith.constant dense<0.000000e+00> : vector<2x8x8xf32>
    %453 = tpu.matmul %451, %452, %cst_188 {dimension_numbers = #tpu.dot_dimension_numbers<[2], [2], [1], [1], [0, 0, 0, 1, 1, 1], [0], [0]>} : vector<2x8x16xbf16>, vector<2x8x16xbf16>, vector<2x8x8xf32> -> vector<2x8x8xf32>
    "tpu.trace_stop"() : () -> ()
    %cst_189 = arith.constant 2.500000e-01 : f32
    %454 = vector.broadcast %cst_189 : f32 to vector<2x8x8xf32>
    %455 = arith.mulf %453, %454 : vector<2x8x8xf32>
    %456 = vector.shape_cast %376 : vector<8x8xf32> to vector<1x8x8xf32>
    %457 = vector.broadcast %456 : vector<1x8x8xf32> to vector<2x8x8xf32>
    %458 = arith.addf %455, %457 : vector<2x8x8xf32>
    %cst_190 = arith.constant dense<0xFF800000> : vector<2x8xf32>
    %459 = vector.multi_reduction <maximumf>, %458, %cst_190 [2] : vector<2x8x8xf32> to vector<2x8xf32>
    %460 = vector.shape_cast %459 : vector<2x8xf32> to vector<2x8x1xf32>
    %461 = vector.broadcast %460 : vector<2x8x1xf32> to vector<2x8x8xf32>
    %462 = arith.subf %458, %461 : vector<2x8x8xf32>
    %463 = math.exp %462 : vector<2x8x8xf32>
    %cst_191 = arith.constant dense<0.000000e+00> : vector<2x8xf32>
    %464 = vector.multi_reduction <add>, %463, %cst_191 [2] : vector<2x8x8xf32> to vector<2x8xf32>
    %465 = vector.shape_cast %464 : vector<2x8xf32> to vector<2x8x1xf32>
    %466 = tpu.reciprocal %465 {approx = true} : vector<2x8x1xf32> -> vector<2x8x1xf32>
    %467 = vector.broadcast %466 : vector<2x8x1xf32> to vector<2x8x8xf32>
    %468 = arith.mulf %463, %467 : vector<2x8x8xf32>
    %469 = arith.truncf %468 : vector<2x8x8xf32> to vector<2x8x8xbf16>
    %470 = arith.truncf %450 : vector<2x8x16xf32> to vector<2x8x16xbf16>
    "tpu.trace_start"() <{level = 10 : i32, message = "bqk,bkd->bqd"}> : () -> ()
    %cst_192 = arith.constant dense<0.000000e+00> : vector<2x8x16xf32>
    %471 = tpu.matmul %469, %470, %cst_192 {dimension_numbers = #tpu.dot_dimension_numbers<[2], [1], [1], [2], [0, 0, 0, 1, 1, 2], [0], [0]>} : vector<2x8x8xbf16>, vector<2x8x16xbf16>, vector<2x8x16xf32> -> vector<2x8x16xf32>
    "tpu.trace_stop"() : () -> ()
    %472 = vector.shape_cast %471 : vector<2x8x16xf32> to vector<16x16xf32>
    %c0_193 = arith.constant 0 : index
    %c1_194 = arith.constant 1 : index
    %c0_195 = arith.constant 0 : index
    %c0_196 = arith.constant 0 : index
    %473 = vector.load %arg11[%c0_193, %c1_194, %c0_195, %c0_196] : memref<2x2x16x32xbf16, #tpu.memory_space<vmem>>, vector<1x1x16x32xbf16>
    %474 = vector.shape_cast %473 : vector<1x1x16x32xbf16> to vector<16x32xbf16>
    %475 = arith.truncf %472 : vector<16x16xf32> to vector<16x16xbf16>
    %cst_197 = arith.constant dense<0.000000e+00> : vector<16x32xf32>
    %476 = tpu.matmul %475, %474, %cst_197 {dimension_numbers = #tpu.dot_dimension_numbers<[1], [0], [0], [1], [0, 0, 1, 1], [], []>} : vector<16x16xbf16>, vector<16x32xbf16>, vector<16x32xf32> -> vector<16x32xf32>
    %477 = arith.addf %444, %476 : vector<16x32xf32>
    %478 = arith.addf %370, %477 : vector<16x32xf32>
    %c0_198 = arith.constant 0 : index
    %c0_199 = arith.constant 0 : index
    %c192_200 = arith.constant 192 : index
    %479 = vector.load %arg13[%c0_198, %c0_199, %c192_200] : memref<2x1x352xf32, #tpu.memory_space<vmem>>, vector<1x1x32xf32>
    %480 = vector.shape_cast %479 : vector<1x1x32xf32> to vector<1x32xf32>
    %c0_201 = arith.constant 0 : index
    %c0_202 = arith.constant 0 : index
    %c224_203 = arith.constant 224 : index
    %481 = vector.load %arg13[%c0_201, %c0_202, %c224_203] : memref<2x1x352xf32, #tpu.memory_space<vmem>>, vector<1x1x32xf32>
    %482 = vector.shape_cast %481 : vector<1x1x32xf32> to vector<1x32xf32>
    %cst_204 = arith.constant dense<0.000000e+00> : vector<16xf32>
    %483 = vector.multi_reduction <add>, %478, %cst_204 [1] : vector<16x32xf32> to vector<16xf32>
    %484 = vector.shape_cast %483 : vector<16xf32> to vector<16x1xf32>
    %cst_205 = arith.constant 3.200000e+01 : f32
    %485 = vector.broadcast %cst_205 : f32 to vector<16x1xf32>
    %486 = arith.divf %484, %485 : vector<16x1xf32>
    %487 = vector.broadcast %486 : vector<16x1xf32> to vector<16x32xf32>
    %488 = arith.subf %478, %487 : vector<16x32xf32>
    %489 = arith.mulf %488, %488 : vector<16x32xf32>
    %cst_206 = arith.constant dense<0.000000e+00> : vector<16xf32>
    %490 = vector.multi_reduction <add>, %489, %cst_206 [1] : vector<16x32xf32> to vector<16xf32>
    %491 = vector.shape_cast %490 : vector<16xf32> to vector<16x1xf32>
    %cst_207 = arith.constant 3.200000e+01 : f32
    %492 = vector.broadcast %cst_207 : f32 to vector<16x1xf32>
    %493 = arith.divf %491, %492 : vector<16x1xf32>
    %cst_208 = arith.constant 9.99999974E-6 : f32
    %494 = vector.broadcast %cst_208 : f32 to vector<16x1xf32>
    %495 = arith.addf %493, %494 : vector<16x1xf32>
    %496 = math.rsqrt %495 : vector<16x1xf32>
    %497 = vector.broadcast %496 : vector<16x1xf32> to vector<16x32xf32>
    %498 = arith.mulf %488, %497 : vector<16x32xf32>
    %499 = vector.broadcast %480 : vector<1x32xf32> to vector<16x32xf32>
    %500 = arith.mulf %498, %499 : vector<16x32xf32>
    %501 = vector.broadcast %482 : vector<1x32xf32> to vector<16x32xf32>
    %502 = arith.addf %500, %501 : vector<16x32xf32>
    %c0_209 = arith.constant 0 : index
    %c0_210 = arith.constant 0 : index
    %c96_211 = arith.constant 96 : index
    %503 = vector.load %arg10[%c0_209, %c0_210, %c96_211] : memref<2x32x160xbf16, #tpu.memory_space<vmem>>, vector<1x32x64xbf16>
    %504 = vector.shape_cast %503 : vector<1x32x64xbf16> to vector<32x64xbf16>
    %505 = arith.truncf %502 : vector<16x32xf32> to vector<16x32xbf16>
    %cst_212 = arith.constant dense<0.000000e+00> : vector<16x64xf32>
    %506 = tpu.matmul %505, %504, %cst_212 {dimension_numbers = #tpu.dot_dimension_numbers<[1], [0], [0], [1], [0, 0, 1, 1], [], []>} : vector<16x32xbf16>, vector<32x64xbf16>, vector<16x64xf32> -> vector<16x64xf32>
    %c0_213 = arith.constant 0 : index
    %c0_214 = arith.constant 0 : index
    %c256_215 = arith.constant 256 : index
    %507 = vector.load %arg13[%c0_213, %c0_214, %c256_215] : memref<2x1x352xf32, #tpu.memory_space<vmem>>, vector<1x1x64xf32>
    %508 = vector.shape_cast %507 : vector<1x1x64xf32> to vector<1x64xf32>
    %509 = vector.broadcast %508 : vector<1x64xf32> to vector<16x64xf32>
    %510 = arith.addf %506, %509 : vector<16x64xf32>
    %cst_216 = arith.constant 1.702000e+00 : f32
    %511 = vector.broadcast %cst_216 : f32 to vector<16x64xf32>
    %512 = arith.mulf %511, %510 : vector<16x64xf32>
    %513 = arith.negf %512 : vector<16x64xf32>
    %514 = math.exp %513 : vector<16x64xf32>
    %cst_217 = arith.constant 1.000000e+00 : f32
    %515 = vector.broadcast %cst_217 : f32 to vector<16x64xf32>
    %516 = arith.addf %515, %514 : vector<16x64xf32>
    %517 = arith.divf %515, %516 : vector<16x64xf32>
    %518 = arith.mulf %510, %517 : vector<16x64xf32>
    %c0_218 = arith.constant 0 : index
    %c0_219 = arith.constant 0 : index
    %c0_220 = arith.constant 0 : index
    %519 = vector.load %arg12[%c0_218, %c0_219, %c0_220] : memref<2x64x32xbf16, #tpu.memory_space<vmem>>, vector<1x64x32xbf16>
    %520 = vector.shape_cast %519 : vector<1x64x32xbf16> to vector<64x32xbf16>
    %521 = arith.truncf %518 : vector<16x64xf32> to vector<16x64xbf16>
    %cst_221 = arith.constant dense<0.000000e+00> : vector<16x32xf32>
    %522 = tpu.matmul %521, %520, %cst_221 {dimension_numbers = #tpu.dot_dimension_numbers<[1], [0], [0], [1], [0, 0, 1, 1], [], []>} : vector<16x64xbf16>, vector<64x32xbf16>, vector<16x32xf32> -> vector<16x32xf32>
    %c0_222 = arith.constant 0 : index
    %c0_223 = arith.constant 0 : index
    %c320_224 = arith.constant 320 : index
    %523 = vector.load %arg13[%c0_222, %c0_223, %c320_224] : memref<2x1x352xf32, #tpu.memory_space<vmem>>, vector<1x1x32xf32>
    %524 = vector.shape_cast %523 : vector<1x1x32xf32> to vector<1x32xf32>
    %525 = vector.broadcast %524 : vector<1x32xf32> to vector<16x32xf32>
    %526 = arith.addf %522, %525 : vector<16x32xf32>
    %527 = arith.addf %478, %526 : vector<16x32xf32>
    %c1_225 = arith.constant 1 : index
    %c0_226 = arith.constant 0 : index
    %c0_227 = arith.constant 0 : index
    %528 = vector.load %arg13[%c1_225, %c0_226, %c0_227] : memref<2x1x352xf32, #tpu.memory_space<vmem>>, vector<1x1x32xf32>
    %529 = vector.shape_cast %528 : vector<1x1x32xf32> to vector<1x32xf32>
    %c1_228 = arith.constant 1 : index
    %c0_229 = arith.constant 0 : index
    %c32_230 = arith.constant 32 : index
    %530 = vector.load %arg13[%c1_228, %c0_229, %c32_230] : memref<2x1x352xf32, #tpu.memory_space<vmem>>, vector<1x1x32xf32>
    %531 = vector.shape_cast %530 : vector<1x1x32xf32> to vector<1x32xf32>
    %cst_231 = arith.constant dense<0.000000e+00> : vector<16xf32>
    %532 = vector.multi_reduction <add>, %527, %cst_231 [1] : vector<16x32xf32> to vector<16xf32>
    %533 = vector.shape_cast %532 : vector<16xf32> to vector<16x1xf32>
    %cst_232 = arith.constant 3.200000e+01 : f32
    %534 = vector.broadcast %cst_232 : f32 to vector<16x1xf32>
    %535 = arith.divf %533, %534 : vector<16x1xf32>
    %536 = vector.broadcast %535 : vector<16x1xf32> to vector<16x32xf32>
    %537 = arith.subf %527, %536 : vector<16x32xf32>
    %538 = arith.mulf %537, %537 : vector<16x32xf32>
    %cst_233 = arith.constant dense<0.000000e+00> : vector<16xf32>
    %539 = vector.multi_reduction <add>, %538, %cst_233 [1] : vector<16x32xf32> to vector<16xf32>
    %540 = vector.shape_cast %539 : vector<16xf32> to vector<16x1xf32>
    %cst_234 = arith.constant 3.200000e+01 : f32
    %541 = vector.broadcast %cst_234 : f32 to vector<16x1xf32>
    %542 = arith.divf %540, %541 : vector<16x1xf32>
    %cst_235 = arith.constant 9.99999974E-6 : f32
    %543 = vector.broadcast %cst_235 : f32 to vector<16x1xf32>
    %544 = arith.addf %542, %543 : vector<16x1xf32>
    %545 = math.rsqrt %544 : vector<16x1xf32>
    %546 = vector.broadcast %545 : vector<16x1xf32> to vector<16x32xf32>
    %547 = arith.mulf %537, %546 : vector<16x32xf32>
    %548 = vector.broadcast %529 : vector<1x32xf32> to vector<16x32xf32>
    %549 = arith.mulf %547, %548 : vector<16x32xf32>
    %550 = vector.broadcast %531 : vector<1x32xf32> to vector<16x32xf32>
    %551 = arith.addf %549, %550 : vector<16x32xf32>
    %c1_236 = arith.constant 1 : index
    %c0_237 = arith.constant 0 : index
    %c0_238 = arith.constant 0 : index
    %552 = vector.load %arg10[%c1_236, %c0_237, %c0_238] : memref<2x32x160xbf16, #tpu.memory_space<vmem>>, vector<1x32x96xbf16>
    %553 = vector.shape_cast %552 : vector<1x32x96xbf16> to vector<32x96xbf16>
    %554 = arith.truncf %551 : vector<16x32xf32> to vector<16x32xbf16>
    %cst_239 = arith.constant dense<0.000000e+00> : vector<16x96xf32>
    %555 = tpu.matmul %554, %553, %cst_239 {dimension_numbers = #tpu.dot_dimension_numbers<[1], [0], [0], [1], [0, 0, 1, 1], [], []>} : vector<16x32xbf16>, vector<32x96xbf16>, vector<16x96xf32> -> vector<16x96xf32>
    %c1_240 = arith.constant 1 : index
    %c0_241 = arith.constant 0 : index
    %c64_242 = arith.constant 64 : index
    %556 = vector.load %arg13[%c1_240, %c0_241, %c64_242] : memref<2x1x352xf32, #tpu.memory_space<vmem>>, vector<1x1x96xf32>
    %557 = vector.shape_cast %556 : vector<1x1x96xf32> to vector<1x96xf32>
    %558 = vector.broadcast %557 : vector<1x96xf32> to vector<16x96xf32>
    %559 = arith.addf %555, %558 : vector<16x96xf32>
    %c1_243 = arith.constant 1 : index
    %c0_244 = arith.constant 0 : index
    %c160_245 = arith.constant 160 : index
    %560 = vector.load %arg13[%c1_243, %c0_244, %c160_245] : memref<2x1x352xf32, #tpu.memory_space<vmem>>, vector<1x1x32xf32>
    %561 = vector.shape_cast %560 : vector<1x1x32xf32> to vector<1x32xf32>
    %562 = vector.extract_strided_slice %559 {offsets = [0, 0], sizes = [16, 16], strides = [1, 1]} : vector<16x96xf32> to vector<16x16xf32>
    %563 = vector.shape_cast %562 : vector<16x16xf32> to vector<2x8x16xf32>
    %564 = vector.extract_strided_slice %559 {offsets = [0, 32], sizes = [16, 16], strides = [1, 1]} : vector<16x96xf32> to vector<16x16xf32>
    %565 = vector.shape_cast %564 : vector<16x16xf32> to vector<2x8x16xf32>
    %566 = vector.extract_strided_slice %559 {offsets = [0, 64], sizes = [16, 16], strides = [1, 1]} : vector<16x96xf32> to vector<16x16xf32>
    %567 = vector.shape_cast %566 : vector<16x16xf32> to vector<2x8x16xf32>
    %568 = arith.truncf %563 : vector<2x8x16xf32> to vector<2x8x16xbf16>
    %569 = arith.truncf %565 : vector<2x8x16xf32> to vector<2x8x16xbf16>
    "tpu.trace_start"() <{level = 10 : i32, message = "bqd,bkd->bqk"}> : () -> ()
    %cst_246 = arith.constant dense<0.000000e+00> : vector<2x8x8xf32>
    %570 = tpu.matmul %568, %569, %cst_246 {dimension_numbers = #tpu.dot_dimension_numbers<[2], [2], [1], [1], [0, 0, 0, 1, 1, 1], [0], [0]>} : vector<2x8x16xbf16>, vector<2x8x16xbf16>, vector<2x8x8xf32> -> vector<2x8x8xf32>
    "tpu.trace_stop"() : () -> ()
    %cst_247 = arith.constant 2.500000e-01 : f32
    %571 = vector.broadcast %cst_247 : f32 to vector<2x8x8xf32>
    %572 = arith.mulf %570, %571 : vector<2x8x8xf32>
    %573 = vector.shape_cast %376 : vector<8x8xf32> to vector<1x8x8xf32>
    %574 = vector.broadcast %573 : vector<1x8x8xf32> to vector<2x8x8xf32>
    %575 = arith.addf %572, %574 : vector<2x8x8xf32>
    %cst_248 = arith.constant dense<0xFF800000> : vector<2x8xf32>
    %576 = vector.multi_reduction <maximumf>, %575, %cst_248 [2] : vector<2x8x8xf32> to vector<2x8xf32>
    %577 = vector.shape_cast %576 : vector<2x8xf32> to vector<2x8x1xf32>
    %578 = vector.broadcast %577 : vector<2x8x1xf32> to vector<2x8x8xf32>
    %579 = arith.subf %575, %578 : vector<2x8x8xf32>
    %580 = math.exp %579 : vector<2x8x8xf32>
    %cst_249 = arith.constant dense<0.000000e+00> : vector<2x8xf32>
    %581 = vector.multi_reduction <add>, %580, %cst_249 [2] : vector<2x8x8xf32> to vector<2x8xf32>
    %582 = vector.shape_cast %581 : vector<2x8xf32> to vector<2x8x1xf32>
    %583 = tpu.reciprocal %582 {approx = true} : vector<2x8x1xf32> -> vector<2x8x1xf32>
    %584 = vector.broadcast %583 : vector<2x8x1xf32> to vector<2x8x8xf32>
    %585 = arith.mulf %580, %584 : vector<2x8x8xf32>
    %586 = arith.truncf %585 : vector<2x8x8xf32> to vector<2x8x8xbf16>
    %587 = arith.truncf %567 : vector<2x8x16xf32> to vector<2x8x16xbf16>
    "tpu.trace_start"() <{level = 10 : i32, message = "bqk,bkd->bqd"}> : () -> ()
    %cst_250 = arith.constant dense<0.000000e+00> : vector<2x8x16xf32>
    %588 = tpu.matmul %586, %587, %cst_250 {dimension_numbers = #tpu.dot_dimension_numbers<[2], [1], [1], [2], [0, 0, 0, 1, 1, 2], [0], [0]>} : vector<2x8x8xbf16>, vector<2x8x16xbf16>, vector<2x8x16xf32> -> vector<2x8x16xf32>
    "tpu.trace_stop"() : () -> ()
    %589 = vector.shape_cast %588 : vector<2x8x16xf32> to vector<16x16xf32>
    %c1_251 = arith.constant 1 : index
    %c0_252 = arith.constant 0 : index
    %c0_253 = arith.constant 0 : index
    %c0_254 = arith.constant 0 : index
    %590 = vector.load %arg11[%c1_251, %c0_252, %c0_253, %c0_254] : memref<2x2x16x32xbf16, #tpu.memory_space<vmem>>, vector<1x1x16x32xbf16>
    %591 = vector.shape_cast %590 : vector<1x1x16x32xbf16> to vector<16x32xbf16>
    %592 = arith.truncf %589 : vector<16x16xf32> to vector<16x16xbf16>
    %cst_255 = arith.constant dense<0.000000e+00> : vector<16x32xf32>
    %593 = tpu.matmul %592, %591, %cst_255 {dimension_numbers = #tpu.dot_dimension_numbers<[1], [0], [0], [1], [0, 0, 1, 1], [], []>} : vector<16x16xbf16>, vector<16x32xbf16>, vector<16x32xf32> -> vector<16x32xf32>
    %594 = vector.broadcast %561 : vector<1x32xf32> to vector<16x32xf32>
    %595 = arith.addf %594, %593 : vector<16x32xf32>
    %596 = vector.extract_strided_slice %559 {offsets = [0, 16], sizes = [16, 16], strides = [1, 1]} : vector<16x96xf32> to vector<16x16xf32>
    %597 = vector.shape_cast %596 : vector<16x16xf32> to vector<2x8x16xf32>
    %598 = vector.extract_strided_slice %559 {offsets = [0, 48], sizes = [16, 16], strides = [1, 1]} : vector<16x96xf32> to vector<16x16xf32>
    %599 = vector.shape_cast %598 : vector<16x16xf32> to vector<2x8x16xf32>
    %600 = vector.extract_strided_slice %559 {offsets = [0, 80], sizes = [16, 16], strides = [1, 1]} : vector<16x96xf32> to vector<16x16xf32>
    %601 = vector.shape_cast %600 : vector<16x16xf32> to vector<2x8x16xf32>
    %602 = arith.truncf %597 : vector<2x8x16xf32> to vector<2x8x16xbf16>
    %603 = arith.truncf %599 : vector<2x8x16xf32> to vector<2x8x16xbf16>
    "tpu.trace_start"() <{level = 10 : i32, message = "bqd,bkd->bqk"}> : () -> ()
    %cst_256 = arith.constant dense<0.000000e+00> : vector<2x8x8xf32>
    %604 = tpu.matmul %602, %603, %cst_256 {dimension_numbers = #tpu.dot_dimension_numbers<[2], [2], [1], [1], [0, 0, 0, 1, 1, 1], [0], [0]>} : vector<2x8x16xbf16>, vector<2x8x16xbf16>, vector<2x8x8xf32> -> vector<2x8x8xf32>
    "tpu.trace_stop"() : () -> ()
    %cst_257 = arith.constant 2.500000e-01 : f32
    %605 = vector.broadcast %cst_257 : f32 to vector<2x8x8xf32>
    %606 = arith.mulf %604, %605 : vector<2x8x8xf32>
    %607 = vector.shape_cast %376 : vector<8x8xf32> to vector<1x8x8xf32>
    %608 = vector.broadcast %607 : vector<1x8x8xf32> to vector<2x8x8xf32>
    %609 = arith.addf %606, %608 : vector<2x8x8xf32>
    %cst_258 = arith.constant dense<0xFF800000> : vector<2x8xf32>
    %610 = vector.multi_reduction <maximumf>, %609, %cst_258 [2] : vector<2x8x8xf32> to vector<2x8xf32>
    %611 = vector.shape_cast %610 : vector<2x8xf32> to vector<2x8x1xf32>
    %612 = vector.broadcast %611 : vector<2x8x1xf32> to vector<2x8x8xf32>
    %613 = arith.subf %609, %612 : vector<2x8x8xf32>
    %614 = math.exp %613 : vector<2x8x8xf32>
    %cst_259 = arith.constant dense<0.000000e+00> : vector<2x8xf32>
    %615 = vector.multi_reduction <add>, %614, %cst_259 [2] : vector<2x8x8xf32> to vector<2x8xf32>
    %616 = vector.shape_cast %615 : vector<2x8xf32> to vector<2x8x1xf32>
    %617 = tpu.reciprocal %616 {approx = true} : vector<2x8x1xf32> -> vector<2x8x1xf32>
    %618 = vector.broadcast %617 : vector<2x8x1xf32> to vector<2x8x8xf32>
    %619 = arith.mulf %614, %618 : vector<2x8x8xf32>
    %620 = arith.truncf %619 : vector<2x8x8xf32> to vector<2x8x8xbf16>
    %621 = arith.truncf %601 : vector<2x8x16xf32> to vector<2x8x16xbf16>
    "tpu.trace_start"() <{level = 10 : i32, message = "bqk,bkd->bqd"}> : () -> ()
    %cst_260 = arith.constant dense<0.000000e+00> : vector<2x8x16xf32>
    %622 = tpu.matmul %620, %621, %cst_260 {dimension_numbers = #tpu.dot_dimension_numbers<[2], [1], [1], [2], [0, 0, 0, 1, 1, 2], [0], [0]>} : vector<2x8x8xbf16>, vector<2x8x16xbf16>, vector<2x8x16xf32> -> vector<2x8x16xf32>
    "tpu.trace_stop"() : () -> ()
    %623 = vector.shape_cast %622 : vector<2x8x16xf32> to vector<16x16xf32>
    %c1_261 = arith.constant 1 : index
    %c1_262 = arith.constant 1 : index
    %c0_263 = arith.constant 0 : index
    %c0_264 = arith.constant 0 : index
    %624 = vector.load %arg11[%c1_261, %c1_262, %c0_263, %c0_264] : memref<2x2x16x32xbf16, #tpu.memory_space<vmem>>, vector<1x1x16x32xbf16>
    %625 = vector.shape_cast %624 : vector<1x1x16x32xbf16> to vector<16x32xbf16>
    %626 = arith.truncf %623 : vector<16x16xf32> to vector<16x16xbf16>
    %cst_265 = arith.constant dense<0.000000e+00> : vector<16x32xf32>
    %627 = tpu.matmul %626, %625, %cst_265 {dimension_numbers = #tpu.dot_dimension_numbers<[1], [0], [0], [1], [0, 0, 1, 1], [], []>} : vector<16x16xbf16>, vector<16x32xbf16>, vector<16x32xf32> -> vector<16x32xf32>
    %628 = arith.addf %595, %627 : vector<16x32xf32>
    %629 = arith.addf %527, %628 : vector<16x32xf32>
    %c1_266 = arith.constant 1 : index
    %c0_267 = arith.constant 0 : index
    %c192_268 = arith.constant 192 : index
    %630 = vector.load %arg13[%c1_266, %c0_267, %c192_268] : memref<2x1x352xf32, #tpu.memory_space<vmem>>, vector<1x1x32xf32>
    %631 = vector.shape_cast %630 : vector<1x1x32xf32> to vector<1x32xf32>
    %c1_269 = arith.constant 1 : index
    %c0_270 = arith.constant 0 : index
    %c224_271 = arith.constant 224 : index
    %632 = vector.load %arg13[%c1_269, %c0_270, %c224_271] : memref<2x1x352xf32, #tpu.memory_space<vmem>>, vector<1x1x32xf32>
    %633 = vector.shape_cast %632 : vector<1x1x32xf32> to vector<1x32xf32>
    %cst_272 = arith.constant dense<0.000000e+00> : vector<16xf32>
    %634 = vector.multi_reduction <add>, %629, %cst_272 [1] : vector<16x32xf32> to vector<16xf32>
    %635 = vector.shape_cast %634 : vector<16xf32> to vector<16x1xf32>
    %cst_273 = arith.constant 3.200000e+01 : f32
    %636 = vector.broadcast %cst_273 : f32 to vector<16x1xf32>
    %637 = arith.divf %635, %636 : vector<16x1xf32>
    %638 = vector.broadcast %637 : vector<16x1xf32> to vector<16x32xf32>
    %639 = arith.subf %629, %638 : vector<16x32xf32>
    %640 = arith.mulf %639, %639 : vector<16x32xf32>
    %cst_274 = arith.constant dense<0.000000e+00> : vector<16xf32>
    %641 = vector.multi_reduction <add>, %640, %cst_274 [1] : vector<16x32xf32> to vector<16xf32>
    %642 = vector.shape_cast %641 : vector<16xf32> to vector<16x1xf32>
    %cst_275 = arith.constant 3.200000e+01 : f32
    %643 = vector.broadcast %cst_275 : f32 to vector<16x1xf32>
    %644 = arith.divf %642, %643 : vector<16x1xf32>
    %cst_276 = arith.constant 9.99999974E-6 : f32
    %645 = vector.broadcast %cst_276 : f32 to vector<16x1xf32>
    %646 = arith.addf %644, %645 : vector<16x1xf32>
    %647 = math.rsqrt %646 : vector<16x1xf32>
    %648 = vector.broadcast %647 : vector<16x1xf32> to vector<16x32xf32>
    %649 = arith.mulf %639, %648 : vector<16x32xf32>
    %650 = vector.broadcast %631 : vector<1x32xf32> to vector<16x32xf32>
    %651 = arith.mulf %649, %650 : vector<16x32xf32>
    %652 = vector.broadcast %633 : vector<1x32xf32> to vector<16x32xf32>
    %653 = arith.addf %651, %652 : vector<16x32xf32>
    %c1_277 = arith.constant 1 : index
    %c0_278 = arith.constant 0 : index
    %c96_279 = arith.constant 96 : index
    %654 = vector.load %arg10[%c1_277, %c0_278, %c96_279] : memref<2x32x160xbf16, #tpu.memory_space<vmem>>, vector<1x32x64xbf16>
    %655 = vector.shape_cast %654 : vector<1x32x64xbf16> to vector<32x64xbf16>
    %656 = arith.truncf %653 : vector<16x32xf32> to vector<16x32xbf16>
    %cst_280 = arith.constant dense<0.000000e+00> : vector<16x64xf32>
    %657 = tpu.matmul %656, %655, %cst_280 {dimension_numbers = #tpu.dot_dimension_numbers<[1], [0], [0], [1], [0, 0, 1, 1], [], []>} : vector<16x32xbf16>, vector<32x64xbf16>, vector<16x64xf32> -> vector<16x64xf32>
    %c1_281 = arith.constant 1 : index
    %c0_282 = arith.constant 0 : index
    %c256_283 = arith.constant 256 : index
    %658 = vector.load %arg13[%c1_281, %c0_282, %c256_283] : memref<2x1x352xf32, #tpu.memory_space<vmem>>, vector<1x1x64xf32>
    %659 = vector.shape_cast %658 : vector<1x1x64xf32> to vector<1x64xf32>
    %660 = vector.broadcast %659 : vector<1x64xf32> to vector<16x64xf32>
    %661 = arith.addf %657, %660 : vector<16x64xf32>
    %cst_284 = arith.constant 1.702000e+00 : f32
    %662 = vector.broadcast %cst_284 : f32 to vector<16x64xf32>
    %663 = arith.mulf %662, %661 : vector<16x64xf32>
    %664 = arith.negf %663 : vector<16x64xf32>
    %665 = math.exp %664 : vector<16x64xf32>
    %cst_285 = arith.constant 1.000000e+00 : f32
    %666 = vector.broadcast %cst_285 : f32 to vector<16x64xf32>
    %667 = arith.addf %666, %665 : vector<16x64xf32>
    %668 = arith.divf %666, %667 : vector<16x64xf32>
    %669 = arith.mulf %661, %668 : vector<16x64xf32>
    %c1_286 = arith.constant 1 : index
    %c0_287 = arith.constant 0 : index
    %c0_288 = arith.constant 0 : index
    %670 = vector.load %arg12[%c1_286, %c0_287, %c0_288] : memref<2x64x32xbf16, #tpu.memory_space<vmem>>, vector<1x64x32xbf16>
    %671 = vector.shape_cast %670 : vector<1x64x32xbf16> to vector<64x32xbf16>
    %672 = arith.truncf %669 : vector<16x64xf32> to vector<16x64xbf16>
    %cst_289 = arith.constant dense<0.000000e+00> : vector<16x32xf32>
    %673 = tpu.matmul %672, %671, %cst_289 {dimension_numbers = #tpu.dot_dimension_numbers<[1], [0], [0], [1], [0, 0, 1, 1], [], []>} : vector<16x64xbf16>, vector<64x32xbf16>, vector<16x32xf32> -> vector<16x32xf32>
    %c1_290 = arith.constant 1 : index
    %c0_291 = arith.constant 0 : index
    %c320_292 = arith.constant 320 : index
    %674 = vector.load %arg13[%c1_290, %c0_291, %c320_292] : memref<2x1x352xf32, #tpu.memory_space<vmem>>, vector<1x1x32xf32>
    %675 = vector.shape_cast %674 : vector<1x1x32xf32> to vector<1x32xf32>
    %676 = vector.broadcast %675 : vector<1x32xf32> to vector<16x32xf32>
    %677 = arith.addf %673, %676 : vector<16x32xf32>
    %678 = arith.addf %629, %677 : vector<16x32xf32>
    %679 = vector.extract_strided_slice %678 {offsets = [7, 0], sizes = [1, 32], strides = [1, 1]} : vector<16x32xf32> to vector<1x32xf32>
    %680 = vector.extract_strided_slice %678 {offsets = [15, 0], sizes = [1, 32], strides = [1, 1]} : vector<16x32xf32> to vector<1x32xf32>
    %681 = tpu.concatenate %679, %680 in 0 : vector<1x32xf32>, vector<1x32xf32> -> vector<2x32xf32>
    %c0_293 = arith.constant 0 : index
    %c0_294 = arith.constant 0 : index
    %682 = vector.load %arg14[%c0_293, %c0_294] : memref<2x32xf32, #tpu.memory_space<vmem>>, vector<1x32xf32>
    %c1_295 = arith.constant 1 : index
    %c0_296 = arith.constant 0 : index
    %683 = vector.load %arg14[%c1_295, %c0_296] : memref<2x32xf32, #tpu.memory_space<vmem>>, vector<1x32xf32>
    %cst_297 = arith.constant dense<0.000000e+00> : vector<2xf32>
    %684 = vector.multi_reduction <add>, %681, %cst_297 [1] : vector<2x32xf32> to vector<2xf32>
    %685 = vector.shape_cast %684 : vector<2xf32> to vector<2x1xf32>
    %cst_298 = arith.constant 3.200000e+01 : f32
    %686 = vector.broadcast %cst_298 : f32 to vector<2x1xf32>
    %687 = arith.divf %685, %686 : vector<2x1xf32>
    %688 = vector.broadcast %687 : vector<2x1xf32> to vector<2x32xf32>
    %689 = arith.subf %681, %688 : vector<2x32xf32>
    %690 = arith.mulf %689, %689 : vector<2x32xf32>
    %cst_299 = arith.constant dense<0.000000e+00> : vector<2xf32>
    %691 = vector.multi_reduction <add>, %690, %cst_299 [1] : vector<2x32xf32> to vector<2xf32>
    %692 = vector.shape_cast %691 : vector<2xf32> to vector<2x1xf32>
    %cst_300 = arith.constant 3.200000e+01 : f32
    %693 = vector.broadcast %cst_300 : f32 to vector<2x1xf32>
    %694 = arith.divf %692, %693 : vector<2x1xf32>
    %cst_301 = arith.constant 9.99999974E-6 : f32
    %695 = vector.broadcast %cst_301 : f32 to vector<2x1xf32>
    %696 = arith.addf %694, %695 : vector<2x1xf32>
    %697 = math.rsqrt %696 : vector<2x1xf32>
    %698 = vector.broadcast %697 : vector<2x1xf32> to vector<2x32xf32>
    %699 = arith.mulf %689, %698 : vector<2x32xf32>
    %700 = vector.broadcast %682 : vector<1x32xf32> to vector<2x32xf32>
    %701 = arith.mulf %699, %700 : vector<2x32xf32>
    %702 = vector.broadcast %683 : vector<1x32xf32> to vector<2x32xf32>
    %703 = arith.addf %701, %702 : vector<2x32xf32>
    %c0_302 = arith.constant 0 : index
    %c0_303 = arith.constant 0 : index
    %704 = vector.load %arg15[%c0_302, %c0_303] : memref<32x16xbf16, #tpu.memory_space<vmem>>, vector<32x16xbf16>
    %705 = arith.truncf %703 : vector<2x32xf32> to vector<2x32xbf16>
    %cst_304 = arith.constant dense<0.000000e+00> : vector<2x16xf32>
    %706 = tpu.matmul %705, %704, %cst_304 {dimension_numbers = #tpu.dot_dimension_numbers<[1], [0], [0], [1], [0, 0, 1, 1], [], []>} : vector<2x32xbf16>, vector<32x16xbf16>, vector<2x16xf32> -> vector<2x16xf32>
    %707 = arith.mulf %368, %368 : vector<2x16xf32>
    %cst_305 = arith.constant dense<0.000000e+00> : vector<2xf32>
    %708 = vector.multi_reduction <add>, %707, %cst_305 [1] : vector<2x16xf32> to vector<2xf32>
    %709 = vector.shape_cast %708 : vector<2xf32> to vector<2x1xf32>
    %cst_306 = arith.constant 9.99999996E-13 : f32
    %710 = vector.broadcast %cst_306 : f32 to vector<2x1xf32>
    %711 = arith.addf %709, %710 : vector<2x1xf32>
    %712 = math.rsqrt %711 : vector<2x1xf32>
    %713 = vector.broadcast %712 : vector<2x1xf32> to vector<2x16xf32>
    %714 = arith.mulf %368, %713 : vector<2x16xf32>
    %715 = arith.mulf %706, %706 : vector<2x16xf32>
    %cst_307 = arith.constant dense<0.000000e+00> : vector<2xf32>
    %716 = vector.multi_reduction <add>, %715, %cst_307 [1] : vector<2x16xf32> to vector<2xf32>
    %717 = vector.shape_cast %716 : vector<2xf32> to vector<2x1xf32>
    %cst_308 = arith.constant 9.99999996E-13 : f32
    %718 = vector.broadcast %cst_308 : f32 to vector<2x1xf32>
    %719 = arith.addf %717, %718 : vector<2x1xf32>
    %720 = math.rsqrt %719 : vector<2x1xf32>
    %721 = vector.broadcast %720 : vector<2x1xf32> to vector<2x16xf32>
    %722 = arith.mulf %706, %721 : vector<2x16xf32>
    %723 = tpu.transpose %722, [1, 0] : vector<2x16xf32> -> vector<16x2xf32>
    %cst_309 = arith.constant dense<0.000000e+00> : vector<2x2xf32>
    %724 = tpu.matmul %714, %723, %cst_309 {dimension_numbers = #tpu.dot_dimension_numbers<[1], [0], [0], [1], [0, 0, 1, 1], [], []>} : vector<2x16xf32>, vector<16x2xf32>, vector<2x2xf32> -> vector<2x2xf32>
    %cst_310 = arith.constant 1.000000e+02 : f32
    %725 = vector.broadcast %cst_310 : f32 to vector<2x2xf32>
    %726 = arith.mulf %725, %724 : vector<2x2xf32>
    %cst_311 = arith.constant dense<0xFF800000> : vector<2xf32>
    %727 = vector.multi_reduction <maximumf>, %726, %cst_311 [1] : vector<2x2xf32> to vector<2xf32>
    %728 = vector.shape_cast %727 : vector<2xf32> to vector<2x1xf32>
    %729 = vector.broadcast %728 : vector<2x1xf32> to vector<2x2xf32>
    %730 = arith.subf %726, %729 : vector<2x2xf32>
    %731 = math.exp %730 : vector<2x2xf32>
    %cst_312 = arith.constant dense<0.000000e+00> : vector<2xf32>
    %732 = vector.multi_reduction <add>, %731, %cst_312 [1] : vector<2x2xf32> to vector<2xf32>
    %733 = vector.shape_cast %732 : vector<2xf32> to vector<2x1xf32>
    %734 = vector.broadcast %733 : vector<2x1xf32> to vector<2x2xf32>
    %735 = arith.divf %731, %734 : vector<2x2xf32>
    %cst_313 = arith.constant 0.000000e+00 : f32
    %736 = vector.broadcast %cst_313 : f32 to vector<2x126xf32>
    %737 = tpu.concatenate %735, %736 in 1 : vector<2x2xf32>, vector<2x126xf32> -> vector<2x128xf32>
    %c0_314 = arith.constant 0 : index
    %c0_315 = arith.constant 0 : index
    %738 = vector.load %arg16[%c0_314, %c0_315] : memref<2x128xf32, #tpu.memory_space<vmem>>, vector<2x128xf32>
    tpu.vector_store %arg16[%c0_314, %c0_315], %737 {strides = array<i32>} : memref<2x128xf32, #tpu.memory_space<vmem>>, vector<2x128xf32>,
    return
  }
  func.func @transform_0(%arg0: i32) -> (i32, i32, i32) {
    %c0_i32 = arith.constant 0 : i32
    %c0_i32_0 = arith.constant 0 : i32
    %c0_i32_1 = arith.constant 0 : i32
    return %arg0, %c0_i32, %c0_i32_0 : i32, i32, i32
  }
  func.func @transform_1(%arg0: i32) -> (i32, i32) {
    %c0_i32 = arith.constant 0 : i32
    %c0_i32_0 = arith.constant 0 : i32
    %c0_i32_1 = arith.constant 0 : i32
    return %c0_i32, %c0_i32_0 : i32, i32
  }
  func.func @transform_2(%arg0: i32) -> (i32, i32) {
    %c0_i32 = arith.constant 0 : i32
    %c0_i32_0 = arith.constant 0 : i32
    %c0_i32_1 = arith.constant 0 : i32
    return %c0_i32, %c0_i32_0 : i32, i32
  }
  func.func @transform_3(%arg0: i32) -> (i32, i32, i32) {
    %c0_i32 = arith.constant 0 : i32
    %c0_i32_0 = arith.constant 0 : i32
    %c0_i32_1 = arith.constant 0 : i32
    %c0_i32_2 = arith.constant 0 : i32
    return %c0_i32, %c0_i32_0, %c0_i32_1 : i32, i32, i32
  }
  func.func @transform_4(%arg0: i32) -> (i32, i32, i32, i32) {
    %c0_i32 = arith.constant 0 : i32
    %c0_i32_0 = arith.constant 0 : i32
    %c0_i32_1 = arith.constant 0 : i32
    %c0_i32_2 = arith.constant 0 : i32
    %c0_i32_3 = arith.constant 0 : i32
    return %c0_i32, %c0_i32_0, %c0_i32_1, %c0_i32_2 : i32, i32, i32, i32
  }
  func.func @transform_5(%arg0: i32) -> (i32, i32, i32) {
    %c0_i32 = arith.constant 0 : i32
    %c0_i32_0 = arith.constant 0 : i32
    %c0_i32_1 = arith.constant 0 : i32
    %c0_i32_2 = arith.constant 0 : i32
    return %c0_i32, %c0_i32_0, %c0_i32_1 : i32, i32, i32
  }
  func.func @transform_6(%arg0: i32) -> (i32, i32, i32) {
    %c0_i32 = arith.constant 0 : i32
    %c0_i32_0 = arith.constant 0 : i32
    %c0_i32_1 = arith.constant 0 : i32
    %c0_i32_2 = arith.constant 0 : i32
    return %c0_i32, %c0_i32_0, %c0_i32_1 : i32, i32, i32
  }
  func.func @transform_7(%arg0: i32) -> (i32, i32) {
    %c0_i32 = arith.constant 0 : i32
    %c0_i32_0 = arith.constant 0 : i32
    %c0_i32_1 = arith.constant 0 : i32
    return %c0_i32, %c0_i32_0 : i32, i32
  }
  func.func @transform_8(%arg0: i32) -> (i32, i32, i32) {
    %c0_i32 = arith.constant 0 : i32
    %c0_i32_0 = arith.constant 0 : i32
    %c0_i32_1 = arith.constant 0 : i32
    %c0_i32_2 = arith.constant 0 : i32
    return %c0_i32, %c0_i32_0, %c0_i32_1 : i32, i32, i32
  }
  func.func @transform_9(%arg0: i32) -> (i32, i32, i32) {
    %c0_i32 = arith.constant 0 : i32
    %c0_i32_0 = arith.constant 0 : i32
    %c0_i32_1 = arith.constant 0 : i32
    %c0_i32_2 = arith.constant 0 : i32
    return %c0_i32, %c0_i32_0, %c0_i32_1 : i32, i32, i32
  }
  func.func @transform_10(%arg0: i32) -> (i32, i32, i32, i32) {
    %c0_i32 = arith.constant 0 : i32
    %c0_i32_0 = arith.constant 0 : i32
    %c0_i32_1 = arith.constant 0 : i32
    %c0_i32_2 = arith.constant 0 : i32
    %c0_i32_3 = arith.constant 0 : i32
    return %c0_i32, %c0_i32_0, %c0_i32_1, %c0_i32_2 : i32, i32, i32, i32
  }
  func.func @transform_11(%arg0: i32) -> (i32, i32, i32) {
    %c0_i32 = arith.constant 0 : i32
    %c0_i32_0 = arith.constant 0 : i32
    %c0_i32_1 = arith.constant 0 : i32
    %c0_i32_2 = arith.constant 0 : i32
    return %c0_i32, %c0_i32_0, %c0_i32_1 : i32, i32, i32
  }
  func.func @transform_12(%arg0: i32) -> (i32, i32, i32) {
    %c0_i32 = arith.constant 0 : i32
    %c0_i32_0 = arith.constant 0 : i32
    %c0_i32_1 = arith.constant 0 : i32
    %c0_i32_2 = arith.constant 0 : i32
    return %c0_i32, %c0_i32_0, %c0_i32_1 : i32, i32, i32
  }
  func.func @transform_13(%arg0: i32) -> (i32, i32) {
    %c0_i32 = arith.constant 0 : i32
    %c0_i32_0 = arith.constant 0 : i32
    %c0_i32_1 = arith.constant 0 : i32
    return %c0_i32, %c0_i32_0 : i32, i32
  }
  func.func @transform_14(%arg0: i32) -> (i32, i32) {
    %c0_i32 = arith.constant 0 : i32
    %c0_i32_0 = arith.constant 0 : i32
    %c0_i32_1 = arith.constant 0 : i32
    return %c0_i32, %c0_i32_0 : i32, i32
  }
  func.func @transform_15(%arg0: i32) -> (i32, i32) {
    %c0_i32 = arith.constant 0 : i32
    %c0_i32_0 = arith.constant 0 : i32
    %c0_i32_1 = arith.constant 0 : i32
    return %c0_i32, %c0_i32_0 : i32, i32
  }
}

</mosaic_0001>

<llo_original>
// kernel: clip_wrapper_forward.1
$region0: #{clip_wrapper_forward.1}
  #allocation0 [shape = 'u32[]', space=smem, size = 0x4, offset = 0x4, fixed_abs, tag = 'smem constant byte address 0x4 - core index']
  #allocation1 [shape = 'u32[144,128]{1,0:T(1,128)}', space=vmem, size = 0x12000, scoped, tag = 'internal scratch']
  #allocation2 [shape = 'f32[2,16]{1,0:T(2,128)}', space=vmem, size = 0x400, scoped, tag = 'scratch operand']
  %s0 = inlined_call_operand.vmem [shape: f32[2,24,48], index: 0, kind: input, shape index: {}]
  %s1 = inlined_call_operand.vmem [shape: bf16[48,32], index: 1, kind: input, shape index: {}]
  %s2 = inlined_call_operand.vmem [shape: f32[28,32], index: 2, kind: input, shape index: {}]
  %s3 = inlined_call_operand.vmem [shape: bf16[2,32,160], index: 3, kind: input, shape index: {}]
  %s4 = inlined_call_operand.vmem [shape: bf16[2,2,16,32], index: 4, kind: input, shape index: {}]
  %s5 = inlined_call_operand.vmem [shape: bf16[2,64,32], index: 5, kind: input, shape index: {}]
  %s6 = inlined_call_operand.vmem [shape: f32[2,1,352], index: 6, kind: input, shape index: {}]
  %s7 = inlined_call_operand.vmem [shape: bf16[32,16], index: 7, kind: input, shape index: {}]
  %s8 = inlined_call_operand.vmem [shape: f32[2,8,32], index: 8, kind: input, shape index: {}]
  %s9 = inlined_call_operand.vmem [shape: bf16[2,32,160], index: 9, kind: input, shape index: {}]
  %s10 = inlined_call_operand.vmem [shape: bf16[2,2,16,32], index: 10, kind: input, shape index: {}]
  %s11 = inlined_call_operand.vmem [shape: bf16[2,64,32], index: 11, kind: input, shape index: {}]
  %s12 = inlined_call_operand.vmem [shape: f32[2,1,352], index: 12, kind: input, shape index: {}]
  %s13 = inlined_call_operand.vmem [shape: f32[2,32], index: 13, kind: input, shape index: {}]
  %s14 = inlined_call_operand.vmem [shape: bf16[32,16], index: 14, kind: input, shape index: {}]
  %s15 = inlined_call_operand.hbm [shape: f32[2,128], index: 15, kind: output, shape index: {}]
  %s16 = sld [smem:[#allocation0]]
  $region70: #{clip_wrapper_forward.1} parent=0
    _
  %s18 = ssub.s32 1, %s16
  %s19 = scalar_select 0, %s18, %s16
  $region1: #{clip_wrapper_forward.1} parent=0
    #allocation3 [shape = 'u8[1024]{0}', space=vmem, size = 0x400, scoped, tag = 'output window, operand 0, single buffered']
    #allocation4 [shape = 's32[1]{0}', space=sflag, size = 0x4, scoped, tag = 'scoped memory for clip_wrapper_forward.1']
    %20 = vsyncpa [#allocation4], 0
    // Predicated region
    $region2: #{clip_wrapper_forward.1} parent=1 // pred_check
      _
    $region3: #{clip_wrapper_forward.1} parent=1 // pred_check_branch
      %22 = sbr.rel (0) target = $region5
    $region4: #{clip_wrapper_forward.1} parent=1 // pred_region
      _
    $region5: #{clip_wrapper_forward.1} parent=1 // pred_fallthru
      _
    // Predicated region
    $region6: #{clip_wrapper_forward.1} parent=1 // pred_check
      _
    $region7: #{clip_wrapper_forward.1} parent=1 // pred_check_branch
      %24 = sbr.rel (0) target = $region9
    $region8: #{clip_wrapper_forward.1} parent=1 // pred_region
      _
    $region9: #{clip_wrapper_forward.1} parent=1 // pred_fallthru
      _
    // Predicated region
    $region10: #{clip_wrapper_forward.1} parent=1 // pred_check
      _
    $region11: #{clip_wrapper_forward.1} parent=1 // pred_check_branch
      %26 = sbr.rel (0) target = $region13
    $region12: #{clip_wrapper_forward.1} parent=1 // pred_region
      _
    $region13: #{clip_wrapper_forward.1} parent=1 // pred_fallthru
      _
    // Predicated region
    $region14: #{clip_wrapper_forward.1} parent=1 // pred_check
      _
    $region15: #{clip_wrapper_forward.1} parent=1 // pred_check_branch
      %28 = sbr.rel (0) target = $region17
    $region16: #{clip_wrapper_forward.1} parent=1 // pred_region
      _
    $region17: #{clip_wrapper_forward.1} parent=1 // pred_fallthru
      _
    // Predicated region
    $region18: #{clip_wrapper_forward.1} parent=1 // pred_check
      _
    $region19: #{clip_wrapper_forward.1} parent=1 // pred_check_branch
      %30 = sbr.rel (0) target = $region21
    $region20: #{clip_wrapper_forward.1} parent=1 // pred_region
      _
    $region21: #{clip_wrapper_forward.1} parent=1 // pred_fallthru
      _
    // Predicated region
    $region22: #{clip_wrapper_forward.1} parent=1 // pred_check
      _
    $region23: #{clip_wrapper_forward.1} parent=1 // pred_check_branch
      %32 = sbr.rel (0) target = $region25
    $region24: #{clip_wrapper_forward.1} parent=1 // pred_region
      _
    $region25: #{clip_wrapper_forward.1} parent=1 // pred_fallthru
      _
    // Predicated region
    $region26: #{clip_wrapper_forward.1} parent=1 // pred_check
      _
    $region27: #{clip_wrapper_forward.1} parent=1 // pred_check_branch
      %34 = sbr.rel (0) target = $region29
    $region28: #{clip_wrapper_forward.1} parent=1 // pred_region
      _
    $region29: #{clip_wrapper_forward.1} parent=1 // pred_fallthru
      _
    // Predicated region
    $region30: #{clip_wrapper_forward.1} parent=1 // pred_check
      _
    $region31: #{clip_wrapper_forward.1} parent=1 // pred_check_branch
      %36 = sbr.rel (0) target = $region33
    $region32: #{clip_wrapper_forward.1} parent=1 // pred_region
      _
    $region33: #{clip_wrapper_forward.1} parent=1 // pred_fallthru
      _
    // Predicated region
    $region34: #{clip_wrapper_forward.1} parent=1 // pred_check
      _
    $region35: #{clip_wrapper_forward.1} parent=1 // pred_check_branch
      %38 = sbr.rel (0) target = $region37
    $region36: #{clip_wrapper_forward.1} parent=1 // pred_region
      _
    $region37: #{clip_wrapper_forward.1} parent=1 // pred_fallthru
      _
    // Predicated region
    $region38: #{clip_wrapper_forward.1} parent=1 // pred_check
      _
    $region39: #{clip_wrapper_forward.1} parent=1 // pred_check_branch
      %40 = sbr.rel (0) target = $region41
    $region40: #{clip_wrapper_forward.1} parent=1 // pred_region
      _
    $region41: #{clip_wrapper_forward.1} parent=1 // pred_fallthru
      _
    // Predicated region
    $region42: #{clip_wrapper_forward.1} parent=1 // pred_check
      _
    $region43: #{clip_wrapper_forward.1} parent=1 // pred_check_branch
      %42 = sbr.rel (0) target = $region45
    $region44: #{clip_wrapper_forward.1} parent=1 // pred_region
      _
    $region45: #{clip_wrapper_forward.1} parent=1 // pred_fallthru
      _
    // Predicated region
    $region46: #{clip_wrapper_forward.1} parent=1 // pred_check
      _
    $region47: #{clip_wrapper_forward.1} parent=1 // pred_check_branch
      %44 = sbr.rel (0) target = $region49
    $region48: #{clip_wrapper_forward.1} parent=1 // pred_region
      _
    $region49: #{clip_wrapper_forward.1} parent=1 // pred_fallthru
      _
    // Predicated region
    $region50: #{clip_wrapper_forward.1} parent=1 // pred_check
      _
    $region51: #{clip_wrapper_forward.1} parent=1 // pred_check_branch
      %46 = sbr.rel (0) target = $region53
    $region52: #{clip_wrapper_forward.1} parent=1 // pred_region
      _
    $region53: #{clip_wrapper_forward.1} parent=1 // pred_fallthru
      _
    // Predicated region
    $region54: #{clip_wrapper_forward.1} parent=1 // pred_check
      _
    $region55: #{clip_wrapper_forward.1} parent=1 // pred_check_branch
      %48 = sbr.rel (0) target = $region57
    $region56: #{clip_wrapper_forward.1} parent=1 // pred_region
      _
    $region57: #{clip_wrapper_forward.1} parent=1 // pred_fallthru
      _
    // Predicated region
    $region58: #{clip_wrapper_forward.1} parent=1 // pred_check
      _
    $region59: #{clip_wrapper_forward.1} parent=1 // pred_check_branch
      %50 = sbr.rel (0) target = $region61
    $region60: #{clip_wrapper_forward.1} parent=1 // pred_region
      _
    $region61: #{clip_wrapper_forward.1} parent=1 // pred_fallthru
      _
    %v52 = vld [vmem:[%s0] sm:$0xff]
    %v53 = vld [vmem:[%s0 + $0x8] sm:$0xff]
    %v54 = vld [vmem:[%s0 + $0x10] sm:$0xff]
    %v55 = vld [vmem:[%s0 + $0x18] sm:$0xff]
    %v56 = vld [vmem:[%s0 + $0x20] sm:$0xff]
    %v57 = vld [vmem:[%s0 + $0x28] sm:$0xff]
    %v58 = vld [vmem:[%s2] sm:$0xff]
    %v59 = vld [vmem:[%s2 + $0x8] sm:$0xff]
    %v60 = vld [vmem:[%s2 + $0x10] sm:$0xff]
    %v61 = vld [vmem:[%s2 + $0x18] sm:$0x1]
    %v62 = vld [vmem:[%s2 + $0x19] sm:$0x1]
    %v63 = vld [vmem:[%s2 + $0x1a] sm:$0x1]
    %v64 = vld [vmem:[%s2 + $0x1b] sm:$0x1]
    %v65 = vld [vmem:[%s1] sm:$0xf]
    %v66 = vld [vmem:[%s1 + $0x4] sm:$0xf]
    %v67 = vld [vmem:[%s1 + $0x8] sm:$0xf]
    %v68 = vld [vmem:[%s1 + $0xc] sm:$0xf]
    %v69 = vld [vmem:[%s1 + $0x10] sm:$0xf]
    %v70 = vld [vmem:[%s1 + $0x14] sm:$0xf]
    %v71 = vpack.c.bf16 %v53, %v52
    %v72 = vpack.c.bf16 %v55, %v54
    %v73 = vpack.c.bf16 %v57, %v56
    %v80 = vunpack.c.l.b16 %v65
    %v81 = vunpack.c.l.b16 %v66
    %v82 = vunpack.c.l.b16 %v67
    %v83 = vunpack.c.l.b16 %v68
    %v84 = vunpack.c.l.b16 %v69
    %v85 = vunpack.c.l.b16 %v70
    %v86 = vpack.c.b16 %v81, %v80
    %v87 = vpack.c.b16 %v83, %v82
    %v88 = vpack.c.b16 %v85, %v84
    %vm92 = vcmask 392192
    %v94 = vsel %vm92, %v71, 0
    %v97 = vsel %vm92, %v72, 0
    %v100 = vsel %vm92, %v73, 0
    %102 = vmatprep.subr.bf16.mxu0 0
    %103 = vmatpush1.bf16.msra.mxu0 %v86
    %104 = vmatprep.subr.bf16.mxu0 0
    %105 = vmatpush1.bf16.msra.mxu0 %v87
    %106 = vmatprep.subr.bf16.mxu0 0
    %107 = vmatpush1.bf16.msra.mxu0 %v88
    %108 = vmatprep.subr.bf16.mxu0 0
    %109 = vmatpush1.bf16.msra.mxu0 0
    %110 = vmatprep.subr.bf16.mxu0 0
    %111 = vmatpush1.bf16.msra.mxu0 0
    %112 = vmatprep.subr.bf16.mxu0 0
    %113 = vmatpush1.bf16.msra.mxu0 0
    %114 = vmatprep.subr.bf16.mxu0 0
    %115 = vmatpush1.bf16.msra.mxu0 0
    %116 = vmatprep.subr.bf16.mxu0 0
    %117 = vmatpush1.bf16.msra.mxu0 0
    %118 = vmatprep.subr.bf16.mxu0 0
    %119 = vmatpush1.bf16.msra.mxu0 0
    %120 = vmatprep.subr.bf16.mxu0 0
    %121 = vmatpush1.bf16.msra.mxu0 0
    %122 = vmatprep.subr.bf16.mxu0 0
    %123 = vmatpush1.bf16.msra.mxu0 0
    %124 = vmatprep.subr.bf16.mxu0 0
    %125 = vmatpush1.bf16.msra.mxu0 0
    %126 = vmatprep.subr.bf16.mxu0 0
    %127 = vmatpush1.bf16.msra.mxu0 0
    %128 = vmatprep.subr.bf16.mxu0 0
    %129 = vmatpush1.bf16.msra.mxu0 0
    %130 = vmatprep.subr.bf16.mxu0 0
    %131 = vmatpush1.bf16.msra.mxu0 0
    %132 = vmatprep.subr.bf16.mxu0 0
    %133 = vmatpush1.bf16.msra.mxu0 0
    %134 = vmatprep.mubr.bf16.mxu0 0
    %135 = vmatmul.mubr.bf16.gmra.mrb[0].mxu0 %v94
    %v136 = vpop.f32.mrb[0].mxu0
    %v137 = vadd.f32 0.0, %v136
    %v138 = vpop.f32.mrb[0].mxu0
    %v139 = vpop.f32.mrb[0].mxu0
    %v140 = vadd.f32 0.0, %v139
    %v141 = vpop.f32.mrb[0].mxu0
    %142 = vmatprep.mubr.bf16.mxu0 0
    %143 = vmatmul.mubr.bf16.gmra.mrb[0].mxu0 %v97
    %v144 = vpop.f32.mrb[0].mxu0
    %v145 = vadd.f32 0.0, %v144
    %v146 = vpop.f32.mrb[0].mxu0
    %v147 = vpop.f32.mrb[0].mxu0
    %v148 = vadd.f32 0.0, %v147
    %v149 = vpop.f32.mrb[0].mxu0
    %150 = vmatprep.mubr.bf16.mxu0 0
    %151 = vmatmul.mubr.bf16.gmra.mrb[0].mxu0 %v100
    %v152 = vpop.f32.mrb[0].mxu0
    %v153 = vadd.f32 0.0, %v152
    %v154 = vpop.f32.mrb[0].mxu0
    %v155 = vpop.f32.mrb[0].mxu0
    %v156 = vadd.f32 0.0, %v155
    %v157 = vpop.f32.mrb[0].mxu0
    %158 = vdwg.mxu0
    %v159 = vadd.f32 %v137, %v58
    %v160 = vadd.f32 %v140, %v59
    %v161 = vadd.f32 %v145, %v60
    %v162 = vadd.f32 %v148, %v58
    %v163 = vadd.f32 %v153, %v59
    %v164 = vadd.f32 %v156, %v60
    %vm165 = vcmask 261120
    %v166 = vsel %vm165, %v159, 0.0
    %167 = vadd.xlane.f32.xlu0 %v166
    %v168 = vpop.xlane.xlu0 %167
    %v169 = vsel %vm165, %v160, 0.0
    %170 = vadd.xlane.f32.xlu0 %v169
    %v171 = vpop.xlane.xlu0 %170
    %v172 = vsel %vm165, %v161, 0.0
    %173 = vadd.xlane.f32.xlu0 %v172
    %v174 = vpop.xlane.xlu0 %173
    %v175 = vsel %vm165, %v162, 0.0
    %176 = vadd.xlane.f32.xlu0 %v175
    %v177 = vpop.xlane.xlu0 %176
    %v178 = vsel %vm165, %v163, 0.0
    %179 = vadd.xlane.f32.xlu0 %v178
    %v180 = vpop.xlane.xlu0 %179
    %v181 = vsel %vm165, %v164, 0.0
    %182 = vadd.xlane.f32.xlu0 %v181
    %v183 = vpop.xlane.xlu0 %182
    %v184 = vrcp.pop 32.0
    %v185 = vmul.f32 %v168, %v184
    %v186 = vmul.f32 %v171, %v184
    %v187 = vmul.f32 %v174, %v184
    %v188 = vmul.f32 %v177, %v184
    %v189 = vmul.f32 %v180, %v184
    %v190 = vmul.f32 %v183, %v184
    %v191 = vsub.f32 %v159, %v185
    %v192 = vsub.f32 %v160, %v186
    %v193 = vsub.f32 %v161, %v187
    %v194 = vsub.f32 %v162, %v188
    %v195 = vsub.f32 %v163, %v189
    %v196 = vsub.f32 %v164, %v190
    %v197 = vmul.f32 %v191, %v191
    %v198 = vmul.f32 %v192, %v192
    %v199 = vmul.f32 %v193, %v193
    %v200 = vmul.f32 %v194, %v194
    %v201 = vmul.f32 %v195, %v195
    %v202 = vmul.f32 %v196, %v196
    %v203 = vsel %vm165, %v197, 0.0
    %204 = vadd.xlane.f32.xlu0 %v203
    %v205 = vpop.xlane.xlu0 %204
    %v206 = vsel %vm165, %v198, 0.0
    %207 = vadd.xlane.f32.xlu0 %v206
    %v208 = vpop.xlane.xlu0 %207
    %v209 = vsel %vm165, %v199, 0.0
    %210 = vadd.xlane.f32.xlu0 %v209
    %v211 = vpop.xlane.xlu0 %210
    %v212 = vsel %vm165, %v200, 0.0
    %213 = vadd.xlane.f32.xlu0 %v212
    %v214 = vpop.xlane.xlu0 %213
    %v215 = vsel %vm165, %v201, 0.0
    %216 = vadd.xlane.f32.xlu0 %v215
    %v217 = vpop.xlane.xlu0 %216
    %v218 = vsel %vm165, %v202, 0.0
    %219 = vadd.xlane.f32.xlu0 %v218
    %v220 = vpop.xlane.xlu0 %219
    %v221 = vmul.f32 %v205, %v184
    %v222 = vmul.f32 %v208, %v184
    %v223 = vmul.f32 %v211, %v184
    %v224 = vmul.f32 %v214, %v184
    %v225 = vmul.f32 %v217, %v184
    %v226 = vmul.f32 %v220, %v184
    %v227 = vadd.f32 %v221, 1e-05
    %v228 = vadd.f32 %v222, 1e-05
    %v229 = vadd.f32 %v223, 1e-05
    %v230 = vadd.f32 %v224, 1e-05
    %v231 = vadd.f32 %v225, 1e-05
    %v232 = vadd.f32 %v226, 1e-05
    %v233 = vrsqrt.pop %v227
    %v234 = vrsqrt.pop %v228
    %v235 = vrsqrt.pop %v229
    %v236 = vrsqrt.pop %v230
    %v237 = vrsqrt.pop %v231
    %v238 = vrsqrt.pop %v232
    %v239 = vmul.f32 %v191, %v233
    %v240 = vmul.f32 %v192, %v234
    %v241 = vmul.f32 %v193, %v235
    %v242 = vmul.f32 %v194, %v236
    %v243 = vmul.f32 %v195, %v237
    %v244 = vmul.f32 %v196, %v238
    %v245 = vlaneseq
    %v246 = vshrl.u32 %v245, 7
    %v247 = vsub.s32 0, %v246
    %v248 = vrot.slane %v61, %v247
    %v249 = vmul.f32 %v239, %v248
    %v250 = vmul.f32 %v240, %v248
    %v251 = vmul.f32 %v241, %v248
    %v252 = vmul.f32 %v242, %v248
    %v253 = vmul.f32 %v243, %v248
    %v254 = vmul.f32 %v244, %v248
    %v255 = vlaneseq
    %v256 = vshrl.u32 %v255, 7
    %v257 = vsub.s32 0, %v256
    %v258 = vrot.slane %v62, %v257
    %v259 = vadd.f32 %v249, %v258
    %v260 = vadd.f32 %v250, %v258
    %v261 = vadd.f32 %v251, %v258
    %v262 = vadd.f32 %v252, %v258
    %v263 = vadd.f32 %v253, %v258
    %v264 = vadd.f32 %v254, %v258
    %v265 = vlaneseq
    %v266 = vand.u32 %v265, 127
    %vm267 = vcmp.lt.s32.totalorder %v266, 17
    %v268 = vsel %vm267, 0.0, -1e+09
    %v269 = vld [vmem:[%s6] sm:$0x1]
    %v270 = vsel %vm165, %v259, 0.0
    %271 = vadd.xlane.f32.xlu0 %v270
    %v272 = vpop.xlane.xlu0 %271
    %v273 = vsel %vm165, %v260, 0.0
    %274 = vadd.xlane.f32.xlu0 %v273
    %v275 = vpop.xlane.xlu0 %274
    %v276 = vsel %vm165, %v261, 0.0
    %277 = vadd.xlane.f32.xlu0 %v276
    %v278 = vpop.xlane.xlu0 %277
    %v279 = vsel %vm165, %v262, 0.0
    %280 = vadd.xlane.f32.xlu0 %v279
    %v281 = vpop.xlane.xlu0 %280
    %v282 = vsel %vm165, %v263, 0.0
    %283 = vadd.xlane.f32.xlu0 %v282
    %v284 = vpop.xlane.xlu0 %283
    %v285 = vsel %vm165, %v264, 0.0
    %286 = vadd.xlane.f32.xlu0 %v285
    %v287 = vpop.xlane.xlu0 %286
    %v288 = vmul.f32 %v272, %v184
    %v289 = vmul.f32 %v275, %v184
    %v290 = vmul.f32 %v278, %v184
    %v291 = vmul.f32 %v281, %v184
    %v292 = vmul.f32 %v284, %v184
    %v293 = vmul.f32 %v287, %v184
    %v294 = vsub.f32 %v259, %v288
    %v295 = vsub.f32 %v260, %v289
    %v296 = vsub.f32 %v261, %v290
    %v297 = vsub.f32 %v262, %v291
    %v298 = vsub.f32 %v263, %v292
    %v299 = vsub.f32 %v264, %v293
    %v300 = vmul.f32 %v294, %v294
    %v301 = vmul.f32 %v295, %v295
    %v302 = vmul.f32 %v296, %v296
    %v303 = vmul.f32 %v297, %v297
    %v304 = vmul.f32 %v298, %v298
    %v305 = vmul.f32 %v299, %v299
    %v306 = vsel %vm165, %v300, 0.0
    %307 = vadd.xlane.f32.xlu0 %v306
    %v308 = vpop.xlane.xlu0 %307
    %v309 = vsel %vm165, %v301, 0.0
    %310 = vadd.xlane.f32.xlu0 %v309
    %v311 = vpop.xlane.xlu0 %310
    %v312 = vsel %vm165, %v302, 0.0
    %313 = vadd.xlane.f32.xlu0 %v312
    %v314 = vpop.xlane.xlu0 %313
    %v315 = vsel %vm165, %v303, 0.0
    %316 = vadd.xlane.f32.xlu0 %v315
    %v317 = vpop.xlane.xlu0 %316
    %v318 = vsel %vm165, %v304, 0.0
    %319 = vadd.xlane.f32.xlu0 %v318
    %v320 = vpop.xlane.xlu0 %319
    %v321 = vsel %vm165, %v305, 0.0
    %322 = vadd.xlane.f32.xlu0 %v321
    %v323 = vpop.xlane.xlu0 %322
    %v324 = vmul.f32 %v308, %v184
    %v325 = vmul.f32 %v311, %v184
    %v326 = vmul.f32 %v314, %v184
    %v327 = vmul.f32 %v317, %v184
    %v328 = vmul.f32 %v320, %v184
    %v329 = vmul.f32 %v323, %v184
    %v330 = vadd.f32 %v324, 1e-05
    %v331 = vadd.f32 %v325, 1e-05
    %v332 = vadd.f32 %v326, 1e-05
    %v333 = vadd.f32 %v327, 1e-05
    %v334 = vadd.f32 %v328, 1e-05
    %v335 = vadd.f32 %v329, 1e-05
    %v336 = vrsqrt.pop %v330
    %v337 = vrsqrt.pop %v331
    %v338 = vrsqrt.pop %v332
    %v339 = vrsqrt.pop %v333
    %v340 = vrsqrt.pop %v334
    %v341 = vrsqrt.pop %v335
    %v342 = vmul.f32 %v294, %v336
    %v343 = vmul.f32 %v295, %v337
    %v344 = vmul.f32 %v296, %v338
    %v345 = vmul.f32 %v297, %v339
    %v346 = vmul.f32 %v298, %v340
    %v347 = vmul.f32 %v299, %v341
    %v349 = vlaneseq
    %v350 = vshrl.u32 %v349, 7
    %v351 = vsub.s32 0, %v350
    %v352 = vrot.slane %v269, %v351
    %v354 = vmul.f32 %v342, %v352
    %v355 = vmul.f32 %v343, %v352
    %v356 = vmul.f32 %v344, %v352
    %v357 = vmul.f32 %v345, %v352
    %v358 = vmul.f32 %v346, %v352
    %v359 = vmul.f32 %v347, %v352
    %360 = vrot.lane.b32.xlu0 %v352, 96
    %v361 = vpop.permute.xlu0 %360
    %v363 = vadd.f32 %v354, %v361
    %v364 = vadd.f32 %v355, %v361
    %v365 = vadd.f32 %v356, %v361
    %v366 = vadd.f32 %v357, %v361
    %v367 = vadd.f32 %v358, %v361
    %v368 = vadd.f32 %v359, %v361
    %v369 = vld [vmem:[%s3] sm:$0xf]
    %v370 = vld [vmem:[%s3 + $0x8] sm:$0xf]
    %v371 = vld [vmem:[%s3 + $0x10] sm:$0xf]
    %v372 = vld [vmem:[%s3 + $0x18] sm:$0xf]
    %v373 = vpack.c.bf16 %v364, %v363
    %v374 = vpack.c.bf16 %v366, %v365
    %v375 = vpack.c.bf16 %v368, %v367
    %v376 = vld [vmem:[%s6] sm:$0x3]
    %v378 = vlaneseq
    %v379 = vshrl.u32 %v378, 7
    %v380 = vsub.s32 0, %v379
    %v381 = vrot.slane %v376, %v380
    %v382 = vlaneseq
    %v383 = vshrl.u32 %v382, 7
    %v384 = vsub.s32 1, %v383
    %v385 = vrot.slane %v376, %v384
    %v390 = vunpack.c.l.b16 %v369
    %v391 = vunpack.c.l.b16 %v370
    %v392 = vunpack.c.l.b16 %v371
    %v393 = vunpack.c.l.b16 %v372
    %v394 = vpack.c.b16 %v391, %v390
    %v395 = vpack.c.b16 %v393, %v392
    %398 = vrot.lane.b32.xlu0 %v381, 64
    %v399 = vpop.permute.xlu0 %398
    %400 = vrot.lane.b32.xlu0 %v385, 64
    %v401 = vpop.permute.xlu0 %400
    %vm402 = vcmask 523264
    %v403 = vsel %vm402, %v399, %v401
    %v406 = vsel %vm165, %v373, 0
    %v409 = vsel %vm165, %v374, 0
    %v412 = vsel %vm165, %v375, 0
    %414 = vmatprep.subr.bf16.mxu0 0
    %415 = vmatpush1.bf16.msra.mxu0 %v394
    %416 = vmatprep.subr.bf16.mxu0 0
    %417 = vmatpush1.bf16.msra.mxu0 %v395
    %418 = vmatprep.subr.bf16.mxu0 0
    %419 = vmatpush1.bf16.msra.mxu0 0
    %420 = vmatprep.subr.bf16.mxu0 0
    %421 = vmatpush1.bf16.msra.mxu0 0
    %422 = vmatprep.subr.bf16.mxu0 0
    %423 = vmatpush1.bf16.msra.mxu0 0
    %424 = vmatprep.subr.bf16.mxu0 0
    %425 = vmatpush1.bf16.msra.mxu0 0
    %426 = vmatprep.subr.bf16.mxu0 0
    %427 = vmatpush1.bf16.msra.mxu0 0
    %428 = vmatprep.subr.bf16.mxu0 0
    %429 = vmatpush1.bf16.msra.mxu0 0
    %430 = vmatprep.subr.bf16.mxu0 0
    %431 = vmatpush1.bf16.msra.mxu0 0
    %432 = vmatprep.subr.bf16.mxu0 0
    %433 = vmatpush1.bf16.msra.mxu0 0
    %434 = vmatprep.subr.bf16.mxu0 0
    %435 = vmatpush1.bf16.msra.mxu0 0
    %436 = vmatprep.subr.bf16.mxu0 0
    %437 = vmatpush1.bf16.msra.mxu0 0
    %438 = vmatprep.subr.bf16.mxu0 0
    %439 = vmatpush1.bf16.msra.mxu0 0
    %440 = vmatprep.subr.bf16.mxu0 0
    %441 = vmatpush1.bf16.msra.mxu0 0
    %442 = vmatprep.subr.bf16.mxu0 0
    %443 = vmatpush1.bf16.msra.mxu0 0
    %444 = vmatprep.subr.bf16.mxu0 0
    %445 = vmatpush1.bf16.msra.mxu0 0
    %446 = vmatprep.mubr.bf16.mxu0 0
    %447 = vmatmul.mubr.bf16.gmra.mrb[0].mxu0 %v406
    %v448 = vpop.f32.mrb[0].mxu0
    %v449 = vadd.f32 %v403, %v448
    %v450 = vpop.f32.mrb[0].mxu0
    %v451 = vpop.f32.mrb[0].mxu0
    %v452 = vadd.f32 %v403, %v451
    %v453 = vpop.f32.mrb[0].mxu0
    %454 = vmatprep.mubr.bf16.mxu0 0
    %455 = vmatmul.mubr.bf16.gmra.mrb[0].mxu0 %v409
    %v456 = vpop.f32.mrb[0].mxu0
    %v457 = vadd.f32 %v403, %v456
    %v458 = vpop.f32.mrb[0].mxu0
    %v459 = vpop.f32.mrb[0].mxu0
    %v460 = vadd.f32 %v403, %v459
    %v461 = vpop.f32.mrb[0].mxu0
    %462 = vmatprep.mubr.bf16.mxu0 0
    %463 = vmatmul.mubr.bf16.gmra.mrb[0].mxu0 %v412
    %v464 = vpop.f32.mrb[0].mxu0
    %v465 = vadd.f32 %v403, %v464
    %v466 = vpop.f32.mrb[0].mxu0
    %v467 = vpop.f32.mrb[0].mxu0
    %v468 = vadd.f32 %v403, %v467
    %v469 = vpop.f32.mrb[0].mxu0
    %470 = vdwg.mxu0
    %v471 = vld [vmem:[%s6 + $0x1] sm:$0x1]
    %v472 = vpack.c.bf16 %v452, %v449
    %v473 = vpack.c.bf16 %v457, %v457
    %v474 = vpack.c.bf16 %v465, %v460
    %v475 = vpack.c.bf16 %v468, %v468
    %478 = vrot.lane.b32.xlu0 %v472, 96
    %v479 = vpop.permute.xlu0 %478
    %480 = vrot.lane.b32.xlu0 %v473, 96
    %v481 = vpop.permute.xlu0 %480
    %vm482 = vcmask 130048
    %v484 = vsel %vm482, %v472, 0
    %v487 = vsel %vm482, %v473, 0
    %v490 = vsel %vm482, %v479, 0
    %v493 = vsel %vm482, %v481, 0
    %495 = vmatprep.subr.bf16.mxu0 0
    %496 = vmatpush1.bf16.xpose.msra.mxu0 %v490
    %497 = vmatprep.subr.bf16.mxu0 0
    %498 = vmatpush1.bf16.xpose.msra.mxu0 %v493
    %499 = vmatprep.subr.bf16.mxu0 0
    %500 = vmatpush1.bf16.xpose.msra.mxu0 0
    %501 = vmatprep.subr.bf16.mxu0 0
    %502 = vmatpush1.bf16.xpose.msra.mxu0 0
    %503 = vmatprep.subr.bf16.mxu0 0
    %504 = vmatpush1.bf16.xpose.msra.mxu0 0
    %505 = vmatprep.subr.bf16.mxu0 0
    %506 = vmatpush1.bf16.xpose.msra.mxu0 0
    %507 = vmatprep.subr.bf16.mxu0 0
    %508 = vmatpush1.bf16.xpose.msra.mxu0 0
    %509 = vmatprep.subr.bf16.mxu0 0
    %510 = vmatpush1.bf16.xpose.msra.mxu0 0
    %511 = vmatprep.subr.bf16.mxu0 0
    %512 = vmatpush1.bf16.xpose.msra.mxu0 0
    %513 = vmatprep.subr.bf16.mxu0 0
    %514 = vmatpush1.bf16.xpose.msra.mxu0 0
    %515 = vmatprep.subr.bf16.mxu0 0
    %516 = vmatpush1.bf16.xpose.msra.mxu0 0
    %517 = vmatprep.subr.bf16.mxu0 0
    %518 = vmatpush1.bf16.xpose.msra.mxu0 0
    %519 = vmatprep.subr.bf16.mxu0 0
    %520 = vmatpush1.bf16.xpose.msra.mxu0 0
    %521 = vmatprep.subr.bf16.mxu0 0
    %522 = vmatpush1.bf16.xpose.msra.mxu0 0
    %523 = vmatprep.subr.bf16.mxu0 0
    %524 = vmatpush1.bf16.xpose.msra.mxu0 0
    %525 = vmatprep.subr.bf16.mxu0 0
    %526 = vmatpush1.bf16.xpose.msra.mxu0 0
    %527 = vmatprep.mubr.bf16.mxu0 0
    %528 = vmatmul.mubr.bf16.gmra.mrb[0].mxu0 %v484
    %v529 = vpop.f32.mrb[0].mxu0
    %v530 = vadd.f32 0.0, %v529
    %v531 = vpop.f32.mrb[0].mxu0
    %v532 = vpop.f32.mrb[0].mxu0
    %v533 = vadd.f32 0.0, %v532
    %v534 = vpop.f32.mrb[0].mxu0
    %535 = vmatprep.mubr.bf16.mxu0 0
    %536 = vmatmul.mubr.bf16.gmra.mrb[0].mxu0 %v487
    %v537 = vpop.f32.mrb[0].mxu0
    %v538 = vadd.f32 0.0, %v537
    %v539 = vpop.f32.mrb[0].mxu0
    %v540 = vpop.f32.mrb[0].mxu0
    %v541 = vpop.f32.mrb[0].mxu0
    %542 = vdwg.mxu0
    %545 = vrot.lane.b32.xlu0 %v474, 96
    %v546 = vpop.permute.xlu0 %545
    %547 = vrot.lane.b32.xlu0 %v475, 96
    %v548 = vpop.permute.xlu0 %547
    %v550 = vsel %vm482, %v474, 0
    %v553 = vsel %vm482, %v475, 0
    %v556 = vsel %vm482, %v546, 0
    %v559 = vsel %vm482, %v548, 0
    %561 = vmatprep.subr.bf16.mxu0 0
    %562 = vmatpush1.bf16.xpose.msra.mxu0 %v556
    %563 = vmatprep.subr.bf16.mxu0 0
    %564 = vmatpush1.bf16.xpose.msra.mxu0 %v559
    %565 = vmatprep.subr.bf16.mxu0 0
    %566 = vmatpush1.bf16.xpose.msra.mxu0 0
    %567 = vmatprep.subr.bf16.mxu0 0
    %568 = vmatpush1.bf16.xpose.msra.mxu0 0
    %569 = vmatprep.subr.bf16.mxu0 0
    %570 = vmatpush1.bf16.xpose.msra.mxu0 0
    %571 = vmatprep.subr.bf16.mxu0 0
    %572 = vmatpush1.bf16.xpose.msra.mxu0 0
    %573 = vmatprep.subr.bf16.mxu0 0
    %574 = vmatpush1.bf16.xpose.msra.mxu0 0
    %575 = vmatprep.subr.bf16.mxu0 0
    %576 = vmatpush1.bf16.xpose.msra.mxu0 0
    %577 = vmatprep.subr.bf16.mxu0 0
    %578 = vmatpush1.bf16.xpose.msra.mxu0 0
    %579 = vmatprep.subr.bf16.mxu0 0
    %580 = vmatpush1.bf16.xpose.msra.mxu0 0
    %581 = vmatprep.subr.bf16.mxu0 0
    %582 = vmatpush1.bf16.xpose.msra.mxu0 0
    %583 = vmatprep.subr.bf16.mxu0 0
    %584 = vmatpush1.bf16.xpose.msra.mxu0 0
    %585 = vmatprep.subr.bf16.mxu0 0
    %586 = vmatpush1.bf16.xpose.msra.mxu0 0
    %587 = vmatprep.subr.bf16.mxu0 0
    %588 = vmatpush1.bf16.xpose.msra.mxu0 0
    %589 = vmatprep.subr.bf16.mxu0 0
    %590 = vmatpush1.bf16.xpose.msra.mxu0 0
    %591 = vmatprep.subr.bf16.mxu0 0
    %592 = vmatpush1.bf16.xpose.msra.mxu0 0
    %593 = vmatprep.mubr.bf16.mxu0 0
    %594 = vmatmul.mubr.bf16.gmra.mrb[0].mxu0 %v550
    %v595 = vpop.f32.mrb[0].mxu0
    %v596 = vadd.f32 0.0, %v595
    %v597 = vpop.f32.mrb[0].mxu0
    %v598 = vpop.f32.mrb[0].mxu0
    %v599 = vadd.f32 0.0, %v598
    %v600 = vpop.f32.mrb[0].mxu0
    %601 = vmatprep.mubr.bf16.mxu0 0
    %602 = vmatmul.mubr.bf16.gmra.mrb[0].mxu0 %v553
    %v603 = vpop.f32.mrb[0].mxu0
    %v604 = vadd.f32 0.0, %v603
    %v605 = vpop.f32.mrb[0].mxu0
    %v606 = vpop.f32.mrb[0].mxu0
    %v607 = vpop.f32.mrb[0].mxu0
    %608 = vdwg.mxu0
    %v609 = vmul.f32 %v530, 0.25
    %v610 = vmul.f32 %v533, 0.25
    %v611 = vmul.f32 %v538, 0.25
    %v612 = vmul.f32 %v596, 0.25
    %v613 = vmul.f32 %v599, 0.25
    %v614 = vmul.f32 %v604, 0.25
    %v615 = vadd.f32 %v609, %v268
    %v616 = vadd.f32 %v610, %v268
    %v617 = vadd.f32 %v611, %v268
    %v618 = vadd.f32 %v612, %v268
    %v619 = vadd.f32 %v613, %v268
    %v620 = vadd.f32 %v614, %v268
    %vm621 = vcmask 195584
    %v622 = vsel %vm621, %v615, -inf
    %623 = vmax.xlane.f32.xlu0 %v622
    %v624 = vpop.xlane.xlu0 %623
    %v625 = vsel %vm621, %v616, -inf
    %626 = vmax.xlane.f32.xlu0 %v625
    %v627 = vpop.xlane.xlu0 %626
    %v628 = vsel %vm621, %v617, -inf
    %629 = vmax.xlane.f32.xlu0 %v628
    %v630 = vpop.xlane.xlu0 %629
    %v631 = vsel %vm621, %v618, -inf
    %632 = vmax.xlane.f32.xlu0 %v631
    %v633 = vpop.xlane.xlu0 %632
    %v634 = vsel %vm621, %v619, -inf
    %635 = vmax.xlane.f32.xlu0 %v634
    %v636 = vpop.xlane.xlu0 %635
    %v637 = vsel %vm621, %v620, -inf
    %638 = vmax.xlane.f32.xlu0 %v637
    %v639 = vpop.xlane.xlu0 %638
    %v640 = vsub.f32 %v615, %v624
    %v641 = vsub.f32 %v616, %v627
    %v642 = vsub.f32 %v617, %v630
    %v643 = vsub.f32 %v618, %v633
    %v644 = vsub.f32 %v619, %v636
    %v645 = vsub.f32 %v620, %v639
    %v646 = vmul.f32 %v640, 1.442695
    %v647 = vpow.pop %v646
    %v648 = vmul.f32 %v641, 1.442695
    %v649 = vpow.pop %v648
    %v650 = vmul.f32 %v642, 1.442695
    %v651 = vpow.pop %v650
    %v652 = vmul.f32 %v643, 1.442695
    %v653 = vpow.pop %v652
    %v654 = vmul.f32 %v644, 1.442695
    %v655 = vpow.pop %v654
    %v656 = vmul.f32 %v645, 1.442695
    %v657 = vpow.pop %v656
    %v658 = vsel %vm621, %v647, 0.0
    %659 = vadd.xlane.f32.xlu0 %v658
    %v660 = vpop.xlane.xlu0 %659
    %v661 = vsel %vm621, %v649, 0.0
    %662 = vadd.xlane.f32.xlu0 %v661
    %v663 = vpop.xlane.xlu0 %662
    %v664 = vsel %vm621, %v651, 0.0
    %665 = vadd.xlane.f32.xlu0 %v664
    %v666 = vpop.xlane.xlu0 %665
    %v667 = vsel %vm621, %v653, 0.0
    %668 = vadd.xlane.f32.xlu0 %v667
    %v669 = vpop.xlane.xlu0 %668
    %v670 = vsel %vm621, %v655, 0.0
    %671 = vadd.xlane.f32.xlu0 %v670
    %v672 = vpop.xlane.xlu0 %671
    %v673 = vsel %vm621, %v657, 0.0
    %674 = vadd.xlane.f32.xlu0 %v673
    %v675 = vpop.xlane.xlu0 %674
    %v676 = vrcp.pop %v660
    %v677 = vrcp.pop %v663
    %v678 = vrcp.pop %v666
    %v679 = vrcp.pop %v669
    %v680 = vrcp.pop %v672
    %v681 = vrcp.pop %v675
    %v682 = vmul.f32 %v647, %v676
    %v683 = vmul.f32 %v649, %v677
    %v684 = vmul.f32 %v651, %v678
    %v685 = vmul.f32 %v653, %v679
    %v686 = vmul.f32 %v655, %v680
    %v687 = vmul.f32 %v657, %v681
    %v688 = vpack.c.bf16 %v683, %v682
    %v689 = vpack.c.bf16 %v684, %v684
    %v690 = vpack.c.bf16 %v686, %v685
    %v691 = vpack.c.bf16 %v687, %v687
    %692 = vrot.lane.b32.xlu0 %v472, 64
    %v693 = vpop.permute.xlu0 %692
    %694 = vrot.lane.b32.xlu0 %v473, 64
    %v695 = vpop.permute.xlu0 %694
    %v698 = vsel %vm621, %v688, 0
    %v701 = vsel %vm621, %v689, 0
    %vm703 = vcmask 1043456
    %v705 = vsel %vm703, %v695, 0
    %707 = vmatprep.subr.bf16.mxu0 0
    %708 = vmatpush1.bf16.msra.mxu0 %v693
    %709 = vmatprep.subr.bf16.mxu0 0
    %710 = vmatpush1.bf16.msra.mxu0 %v705
    %711 = vmatprep.subr.bf16.mxu0 0
    %712 = vmatpush1.bf16.msra.mxu0 0
    %713 = vmatprep.subr.bf16.mxu0 0
    %714 = vmatpush1.bf16.msra.mxu0 0
    %715 = vmatprep.subr.bf16.mxu0 0
    %716 = vmatpush1.bf16.msra.mxu0 0
    %717 = vmatprep.subr.bf16.mxu0 0
    %718 = vmatpush1.bf16.msra.mxu0 0
    %719 = vmatprep.subr.bf16.mxu0 0
    %720 = vmatpush1.bf16.msra.mxu0 0
    %721 = vmatprep.subr.bf16.mxu0 0
    %722 = vmatpush1.bf16.msra.mxu0 0
    %723 = vmatprep.subr.bf16.mxu0 0
    %724 = vmatpush1.bf16.msra.mxu0 0
    %725 = vmatprep.subr.bf16.mxu0 0
    %726 = vmatpush1.bf16.msra.mxu0 0
    %727 = vmatprep.subr.bf16.mxu0 0
    %728 = vmatpush1.bf16.msra.mxu0 0
    %729 = vmatprep.subr.bf16.mxu0 0
    %730 = vmatpush1.bf16.msra.mxu0 0
    %731 = vmatprep.subr.bf16.mxu0 0
    %732 = vmatpush1.bf16.msra.mxu0 0
    %733 = vmatprep.subr.bf16.mxu0 0
    %734 = vmatpush1.bf16.msra.mxu0 0
    %735 = vmatprep.subr.bf16.mxu0 0
    %736 = vmatpush1.bf16.msra.mxu0 0
    %737 = vmatprep.subr.bf16.mxu0 0
    %738 = vmatpush1.bf16.msra.mxu0 0
    %739 = vmatprep.mubr.bf16.mxu0 0
    %740 = vmatmul.mubr.bf16.gmra.mrb[0].mxu0 %v698
    %v741 = vpop.f32.mrb[0].mxu0
    %v742 = vadd.f32 0.0, %v741
    %v743 = vpop.f32.mrb[0].mxu0
    %v744 = vpop.f32.mrb[0].mxu0
    %v745 = vadd.f32 0.0, %v744
    %v746 = vpop.f32.mrb[0].mxu0
    %747 = vmatprep.mubr.bf16.mxu0 0
    %748 = vmatmul.mubr.bf16.gmra.mrb[0].mxu0 %v701
    %v749 = vpop.f32.mrb[0].mxu0
    %v750 = vadd.f32 0.0, %v749
    %v751 = vpop.f32.mrb[0].mxu0
    %v752 = vpop.f32.mrb[0].mxu0
    %v753 = vpop.f32.mrb[0].mxu0
    %754 = vdwg.mxu0
    %755 = vrot.lane.b32.xlu0 %v474, 64
    %v756 = vpop.permute.xlu0 %755
    %757 = vrot.lane.b32.xlu0 %v475, 64
    %v758 = vpop.permute.xlu0 %757
    %v761 = vsel %vm621, %v690, 0
    %v764 = vsel %vm621, %v691, 0
    %v767 = vsel %vm703, %v758, 0
    %769 = vmatprep.subr.bf16.mxu0 0
    %770 = vmatpush1.bf16.msra.mxu0 %v756
    %771 = vmatprep.subr.bf16.mxu0 0
    %772 = vmatpush1.bf16.msra.mxu0 %v767
    %773 = vmatprep.subr.bf16.mxu0 0
    %774 = vmatpush1.bf16.msra.mxu0 0
    %775 = vmatprep.subr.bf16.mxu0 0
    %776 = vmatpush1.bf16.msra.mxu0 0
    %777 = vmatprep.subr.bf16.mxu0 0
    %778 = vmatpush1.bf16.msra.mxu0 0
    %779 = vmatprep.subr.bf16.mxu0 0
    %780 = vmatpush1.bf16.msra.mxu0 0
    %781 = vmatprep.subr.bf16.mxu0 0
    %782 = vmatpush1.bf16.msra.mxu0 0
    %783 = vmatprep.subr.bf16.mxu0 0
    %784 = vmatpush1.bf16.msra.mxu0 0
    %785 = vmatprep.subr.bf16.mxu0 0
    %786 = vmatpush1.bf16.msra.mxu0 0
    %787 = vmatprep.subr.bf16.mxu0 0
    %788 = vmatpush1.bf16.msra.mxu0 0
    %789 = vmatprep.subr.bf16.mxu0 0
    %790 = vmatpush1.bf16.msra.mxu0 0
    %791 = vmatprep.subr.bf16.mxu0 0
    %792 = vmatpush1.bf16.msra.mxu0 0
    %793 = vmatprep.subr.bf16.mxu0 0
    %794 = vmatpush1.bf16.msra.mxu0 0
    %795 = vmatprep.subr.bf16.mxu0 0
    %796 = vmatpush1.bf16.msra.mxu0 0
    %797 = vmatprep.subr.bf16.mxu0 0
    %798 = vmatpush1.bf16.msra.mxu0 0
    %799 = vmatprep.subr.bf16.mxu0 0
    %800 = vmatpush1.bf16.msra.mxu0 0
    %801 = vmatprep.mubr.bf16.mxu0 0
    %802 = vmatmul.mubr.bf16.gmra.mrb[0].mxu0 %v761
    %v803 = vpop.f32.mrb[0].mxu0
    %v804 = vadd.f32 0.0, %v803
    %v805 = vpop.f32.mrb[0].mxu0
    %v806 = vpop.f32.mrb[0].mxu0
    %v807 = vadd.f32 0.0, %v806
    %v808 = vpop.f32.mrb[0].mxu0
    %809 = vmatprep.mubr.bf16.mxu0 0
    %810 = vmatmul.mubr.bf16.gmra.mrb[0].mxu0 %v764
    %v811 = vpop.f32.mrb[0].mxu0
    %v812 = vadd.f32 0.0, %v811
    %v813 = vpop.f32.mrb[0].mxu0
    %v814 = vpop.f32.mrb[0].mxu0
    %v815 = vpop.f32.mrb[0].mxu0
    %816 = vdwg.mxu0
    %v817 = vld [vmem:[%s4] sm:$0xf]
    %v818 = vld [vmem:[%s4 + $0x4] sm:$0xf]
    %v819 = vpack.c.bf16 %v745, %v742
    %v820 = vpack.c.bf16 %v804, %v750
    %v821 = vpack.c.bf16 %v812, %v807
    %v824 = vunpack.c.l.b16 %v817
    %v825 = vunpack.c.l.b16 %v818
    %v826 = vpack.c.b16 %v825, %v824
    %v829 = vsel %vm482, %v819, 0
    %v832 = vsel %vm482, %v820, 0
    %v835 = vsel %vm482, %v821, 0
    %837 = vmatprep.subr.bf16.mxu0 0
    %838 = vmatpush1.bf16.msra.mxu0 %v826
    %839 = vmatprep.subr.bf16.mxu0 0
    %840 = vmatpush1.bf16.msra.mxu0 0
    %841 = vmatprep.subr.bf16.mxu0 0
    %842 = vmatpush1.bf16.msra.mxu0 0
    %843 = vmatprep.subr.bf16.mxu0 0
    %844 = vmatpush1.bf16.msra.mxu0 0
    %845 = vmatprep.subr.bf16.mxu0 0
    %846 = vmatpush1.bf16.msra.mxu0 0
    %847 = vmatprep.subr.bf16.mxu0 0
    %848 = vmatpush1.bf16.msra.mxu0 0
    %849 = vmatprep.subr.bf16.mxu0 0
    %850 = vmatpush1.bf16.msra.mxu0 0
    %851 = vmatprep.subr.bf16.mxu0 0
    %852 = vmatpush1.bf16.msra.mxu0 0
    %853 = vmatprep.subr.bf16.mxu0 0
    %854 = vmatpush1.bf16.msra.mxu0 0
    %855 = vmatprep.subr.bf16.mxu0 0
    %856 = vmatpush1.bf16.msra.mxu0 0
    %857 = vmatprep.subr.bf16.mxu0 0
    %858 = vmatpush1.bf16.msra.mxu0 0
    %859 = vmatprep.subr.bf16.mxu0 0
    %860 = vmatpush1.bf16.msra.mxu0 0
    %861 = vmatprep.subr.bf16.mxu0 0
    %862 = vmatpush1.bf16.msra.mxu0 0
    %863 = vmatprep.subr.bf16.mxu0 0
    %864 = vmatpush1.bf16.msra.mxu0 0
    %865 = vmatprep.subr.bf16.mxu0 0
    %866 = vmatpush1.bf16.msra.mxu0 0
    %867 = vmatprep.subr.bf16.mxu0 0
    %868 = vmatpush1.bf16.msra.mxu0 0
    %869 = vmatprep.mubr.bf16.mxu0 0
    %870 = vmatmul.mubr.bf16.gmra.mrb[0].mxu0 %v829
    %v871 = vpop.f32.mrb[0].mxu0
    %v872 = vadd.f32 0.0, %v871
    %v873 = vpop.f32.mrb[0].mxu0
    %v874 = vpop.f32.mrb[0].mxu0
    %v875 = vadd.f32 0.0, %v874
    %v876 = vpop.f32.mrb[0].mxu0
    %877 = vmatprep.mubr.bf16.mxu0 0
    %878 = vmatmul.mubr.bf16.gmra.mrb[0].mxu0 %v832
    %v879 = vpop.f32.mrb[0].mxu0
    %v880 = vadd.f32 0.0, %v879
    %v881 = vpop.f32.mrb[0].mxu0
    %v882 = vpop.f32.mrb[0].mxu0
    %v883 = vadd.f32 0.0, %v882
    %v884 = vpop.f32.mrb[0].mxu0
    %885 = vmatprep.mubr.bf16.mxu0 0
    %886 = vmatmul.mubr.bf16.gmra.mrb[0].mxu0 %v835
    %v887 = vpop.f32.mrb[0].mxu0
    %v888 = vadd.f32 0.0, %v887
    %v889 = vpop.f32.mrb[0].mxu0
    %v890 = vpop.f32.mrb[0].mxu0
    %v891 = vadd.f32 0.0, %v890
    %v892 = vpop.f32.mrb[0].mxu0
    %893 = vdwg.mxu0
    %v895 = vlaneseq
    %v896 = vshrl.u32 %v895, 7
    %v897 = vsub.s32 0, %v896
    %v898 = vrot.slane %v471, %v897
    %906 = vrot.lane.b32.xlu0 %v872, 32
    %v907 = vpop.permute.xlu0 %906
    %908 = vrot.lane.b32.xlu0 %v875, 32
    %v909 = vpop.permute.xlu0 %908
    %910 = vrot.lane.b32.xlu0 %v880, 32
    %v911 = vpop.permute.xlu0 %910
    %912 = vrot.lane.b32.xlu0 %v883, 32
    %v913 = vpop.permute.xlu0 %912
    %914 = vrot.lane.b32.xlu0 %v888, 32
    %v915 = vpop.permute.xlu0 %914
    %916 = vrot.lane.b32.xlu0 %v891, 32
    %v917 = vpop.permute.xlu0 %916
    %v924 = vadd.f32 %v898, %v907
    %v925 = vadd.f32 %v898, %v909
    %v926 = vadd.f32 %v898, %v911
    %v927 = vadd.f32 %v898, %v913
    %v928 = vadd.f32 %v898, %v915
    %v929 = vadd.f32 %v898, %v917
    %930 = vrot.lane.b32.xlu0 %v472, 112
    %v931 = vpop.permute.xlu0 %930
    %932 = vrot.lane.b32.xlu0 %v473, 112
    %v933 = vpop.permute.xlu0 %932
    %934 = vrot.lane.b32.xlu0 %v472, 80
    %v935 = vpop.permute.xlu0 %934
    %936 = vrot.lane.b32.xlu0 %v473, 80
    %v937 = vpop.permute.xlu0 %936
    %v939 = vsel %vm482, %v931, 0
    %v942 = vsel %vm482, %v933, 0
    %v945 = vsel %vm482, %v935, 0
    %v948 = vsel %vm482, %v937, 0
    %950 = vmatprep.subr.bf16.mxu0 0
    %951 = vmatpush1.bf16.xpose.msra.mxu0 %v945
    %952 = vmatprep.subr.bf16.mxu0 0
    %953 = vmatpush1.bf16.xpose.msra.mxu0 %v948
    %954 = vmatprep.subr.bf16.mxu0 0
    %955 = vmatpush1.bf16.xpose.msra.mxu0 0
    %956 = vmatprep.subr.bf16.mxu0 0
    %957 = vmatpush1.bf16.xpose.msra.mxu0 0
    %958 = vmatprep.subr.bf16.mxu0 0
    %959 = vmatpush1.bf16.xpose.msra.mxu0 0
    %960 = vmatprep.subr.bf16.mxu0 0
    %961 = vmatpush1.bf16.xpose.msra.mxu0 0
    %962 = vmatprep.subr.bf16.mxu0 0
    %963 = vmatpush1.bf16.xpose.msra.mxu0 0
    %964 = vmatprep.subr.bf16.mxu0 0
    %965 = vmatpush1.bf16.xpose.msra.mxu0 0
    %966 = vmatprep.subr.bf16.mxu0 0
    %967 = vmatpush1.bf16.xpose.msra.mxu0 0
    %968 = vmatprep.subr.bf16.mxu0 0
    %969 = vmatpush1.bf16.xpose.msra.mxu0 0
    %970 = vmatprep.subr.bf16.mxu0 0
    %971 = vmatpush1.bf16.xpose.msra.mxu0 0
    %972 = vmatprep.subr.bf16.mxu0 0
    %973 = vmatpush1.bf16.xpose.msra.mxu0 0
    %974 = vmatprep.subr.bf16.mxu0 0
    %975 = vmatpush1.bf16.xpose.msra.mxu0 0
    %976 = vmatprep.subr.bf16.mxu0 0
    %977 = vmatpush1.bf16.xpose.msra.mxu0 0
    %978 = vmatprep.subr.bf16.mxu0 0
    %979 = vmatpush1.bf16.xpose.msra.mxu0 0
    %980 = vmatprep.subr.bf16.mxu0 0
    %981 = vmatpush1.bf16.xpose.msra.mxu0 0
    %982 = vmatprep.mubr.bf16.mxu0 0
    %983 = vmatmul.mubr.bf16.gmra.mrb[0].mxu0 %v939
    %v984 = vpop.f32.mrb[0].mxu0
    %v985 = vadd.f32 0.0, %v984
    %v986 = vpop.f32.mrb[0].mxu0
    %v987 = vpop.f32.mrb[0].mxu0
    %v988 = vadd.f32 0.0, %v987
    %v989 = vpop.f32.mrb[0].mxu0
    %990 = vmatprep.mubr.bf16.mxu0 0
    %991 = vmatmul.mubr.bf16.gmra.mrb[0].mxu0 %v942
    %v992 = vpop.f32.mrb[0].mxu0
    %v993 = vadd.f32 0.0, %v992
    %v994 = vpop.f32.mrb[0].mxu0
    %v995 = vpop.f32.mrb[0].mxu0
    %v996 = vpop.f32.mrb[0].mxu0
    %997 = vdwg.mxu0
    %998 = vrot.lane.b32.xlu0 %v474, 112
    %v999 = vpop.permute.xlu0 %998
    %1000 = vrot.lane.b32.xlu0 %v475, 112
    %v1001 = vpop.permute.xlu0 %1000
    %1002 = vrot.lane.b32.xlu0 %v474, 80
    %v1003 = vpop.permute.xlu0 %1002
    %1004 = vrot.lane.b32.xlu0 %v475, 80
    %v1005 = vpop.permute.xlu0 %1004
    %v1007 = vsel %vm482, %v999, 0
    %v1010 = vsel %vm482, %v1001, 0
    %v1013 = vsel %vm482, %v1003, 0
    %v1016 = vsel %vm482, %v1005, 0
    %1018 = vmatprep.subr.bf16.mxu0 0
    %1019 = vmatpush1.bf16.xpose.msra.mxu0 %v1013
    %1020 = vmatprep.subr.bf16.mxu0 0
    %1021 = vmatpush1.bf16.xpose.msra.mxu0 %v1016
    %1022 = vmatprep.subr.bf16.mxu0 0
    %1023 = vmatpush1.bf16.xpose.msra.mxu0 0
    %1024 = vmatprep.subr.bf16.mxu0 0
    %1025 = vmatpush1.bf16.xpose.msra.mxu0 0
    %1026 = vmatprep.subr.bf16.mxu0 0
    %1027 = vmatpush1.bf16.xpose.msra.mxu0 0
    %1028 = vmatprep.subr.bf16.mxu0 0
    %1029 = vmatpush1.bf16.xpose.msra.mxu0 0
    %1030 = vmatprep.subr.bf16.mxu0 0
    %1031 = vmatpush1.bf16.xpose.msra.mxu0 0
    %1032 = vmatprep.subr.bf16.mxu0 0
    %1033 = vmatpush1.bf16.xpose.msra.mxu0 0
    %1034 = vmatprep.subr.bf16.mxu0 0
    %1035 = vmatpush1.bf16.xpose.msra.mxu0 0
    %1036 = vmatprep.subr.bf16.mxu0 0
    %1037 = vmatpush1.bf16.xpose.msra.mxu0 0
    %1038 = vmatprep.subr.bf16.mxu0 0
    %1039 = vmatpush1.bf16.xpose.msra.mxu0 0
    %1040 = vmatprep.subr.bf16.mxu0 0
    %1041 = vmatpush1.bf16.xpose.msra.mxu0 0
    %1042 = vmatprep.subr.bf16.mxu0 0
    %1043 = vmatpush1.bf16.xpose.msra.mxu0 0
    %1044 = vmatprep.subr.bf16.mxu0 0
    %1045 = vmatpush1.bf16.xpose.msra.mxu0 0
    %1046 = vmatprep.subr.bf16.mxu0 0
    %1047 = vmatpush1.bf16.xpose.msra.mxu0 0
    %1048 = vmatprep.subr.bf16.mxu0 0
    %1049 = vmatpush1.bf16.xpose.msra.mxu0 0
    %1050 = vmatprep.mubr.bf16.mxu0 0
    %1051 = vmatmul.mubr.bf16.gmra.mrb[0].mxu0 %v1007
    %v1052 = vpop.f32.mrb[0].mxu0
    %v1053 = vadd.f32 0.0, %v1052
    %v1054 = vpop.f32.mrb[0].mxu0
    %v1055 = vpop.f32.mrb[0].mxu0
    %v1056 = vadd.f32 0.0, %v1055
    %v1057 = vpop.f32.mrb[0].mxu0
    %1058 = vmatprep.mubr.bf16.mxu0 0
    %1059 = vmatmul.mubr.bf16.gmra.mrb[0].mxu0 %v1010
    %v1060 = vpop.f32.mrb[0].mxu0
    %v1061 = vadd.f32 0.0, %v1060
    %v1062 = vpop.f32.mrb[0].mxu0
    %v1063 = vpop.f32.mrb[0].mxu0
    %v1064 = vpop.f32.mrb[0].mxu0
    %1065 = vdwg.mxu0
    %v1066 = vmul.f32 %v985, 0.25
    %v1067 = vmul.f32 %v988, 0.25
    %v1068 = vmul.f32 %v993, 0.25
    %v1069 = vmul.f32 %v1053, 0.25
    %v1070 = vmul.f32 %v1056, 0.25
    %v1071 = vmul.f32 %v1061, 0.25
    %v1072 = vadd.f32 %v1066, %v268
    %v1073 = vadd.f32 %v1067, %v268
    %v1074 = vadd.f32 %v1068, %v268
    %v1075 = vadd.f32 %v1069, %v268
    %v1076 = vadd.f32 %v1070, %v268
    %v1077 = vadd.f32 %v1071, %v268
    %v1078 = vsel %vm621, %v1072, -inf
    %1079 = vmax.xlane.f32.xlu0 %v1078
    %v1080 = vpop.xlane.xlu0 %1079
    %v1081 = vsel %vm621, %v1073, -inf
    %1082 = vmax.xlane.f32.xlu0 %v1081
    %v1083 = vpop.xlane.xlu0 %1082
    %v1084 = vsel %vm621, %v1074, -inf
    %1085 = vmax.xlane.f32.xlu0 %v1084
    %v1086 = vpop.xlane.xlu0 %1085
    %v1087 = vsel %vm621, %v1075, -inf
    %1088 = vmax.xlane.f32.xlu0 %v1087
    %v1089 = vpop.xlane.xlu0 %1088
    %v1090 = vsel %vm621, %v1076, -inf
    %1091 = vmax.xlane.f32.xlu0 %v1090
    %v1092 = vpop.xlane.xlu0 %1091
    %v1093 = vsel %vm621, %v1077, -inf
    %1094 = vmax.xlane.f32.xlu0 %v1093
    %v1095 = vpop.xlane.xlu0 %1094
    %v1096 = vsub.f32 %v1072, %v1080
    %v1097 = vsub.f32 %v1073, %v1083
    %v1098 = vsub.f32 %v1074, %v1086
    %v1099 = vsub.f32 %v1075, %v1089
    %v1100 = vsub.f32 %v1076, %v1092
    %v1101 = vsub.f32 %v1077, %v1095
    %v1102 = vmul.f32 %v1096, 1.442695
    %v1103 = vpow.pop %v1102
    %v1104 = vmul.f32 %v1097, 1.442695
    %v1105 = vpow.pop %v1104
    %v1106 = vmul.f32 %v1098, 1.442695
    %v1107 = vpow.pop %v1106
    %v1108 = vmul.f32 %v1099, 1.442695
    %v1109 = vpow.pop %v1108
    %v1110 = vmul.f32 %v1100, 1.442695
    %v1111 = vpow.pop %v1110
    %v1112 = vmul.f32 %v1101, 1.442695
    %v1113 = vpow.pop %v1112
    %v1114 = vsel %vm621, %v1103, 0.0
    %1115 = vadd.xlane.f32.xlu0 %v1114
    %v1116 = vpop.xlane.xlu0 %1115
    %v1117 = vsel %vm621, %v1105, 0.0
    %1118 = vadd.xlane.f32.xlu0 %v1117
    %v1119 = vpop.xlane.xlu0 %1118
    %v1120 = vsel %vm621, %v1107, 0.0
    %1121 = vadd.xlane.f32.xlu0 %v1120
    %v1122 = vpop.xlane.xlu0 %1121
    %v1123 = vsel %vm621, %v1109, 0.0
    %1124 = vadd.xlane.f32.xlu0 %v1123
    %v1125 = vpop.xlane.xlu0 %1124
    %v1126 = vsel %vm621, %v1111, 0.0
    %1127 = vadd.xlane.f32.xlu0 %v1126
    %v1128 = vpop.xlane.xlu0 %1127
    %v1129 = vsel %vm621, %v1113, 0.0
    %1130 = vadd.xlane.f32.xlu0 %v1129
    %v1131 = vpop.xlane.xlu0 %1130
    %v1132 = vrcp.pop %v1116
    %v1133 = vrcp.pop %v1119
    %v1134 = vrcp.pop %v1122
    %v1135 = vrcp.pop %v1125
    %v1136 = vrcp.pop %v1128
    %v1137 = vrcp.pop %v1131
    %v1138 = vmul.f32 %v1103, %v1132
    %v1139 = vmul.f32 %v1105, %v1133
    %v1140 = vmul.f32 %v1107, %v1134
    %v1141 = vmul.f32 %v1109, %v1135
    %v1142 = vmul.f32 %v1111, %v1136
    %v1143 = vmul.f32 %v1113, %v1137
    %v1144 = vpack.c.bf16 %v1139, %v1138
    %v1145 = vpack.c.bf16 %v1140, %v1140
    %v1146 = vpack.c.bf16 %v1142, %v1141
    %v1147 = vpack.c.bf16 %v1143, %v1143
    %1148 = vrot.lane.b32.xlu0 %v472, 48
    %v1149 = vpop.permute.xlu0 %1148
    %1150 = vrot.lane.b32.xlu0 %v473, 48
    %v1151 = vpop.permute.xlu0 %1150
    %v1154 = vsel %vm621, %v1144, 0
    %v1157 = vsel %vm621, %v1145, 0
    %v1160 = vsel %vm703, %v1151, 0
    %1162 = vmatprep.subr.bf16.mxu0 0
    %1163 = vmatpush1.bf16.msra.mxu0 %v1149
    %1164 = vmatprep.subr.bf16.mxu0 0
    %1165 = vmatpush1.bf16.msra.mxu0 %v1160
    %1166 = vmatprep.subr.bf16.mxu0 0
    %1167 = vmatpush1.bf16.msra.mxu0 0
    %1168 = vmatprep.subr.bf16.mxu0 0
    %1169 = vmatpush1.bf16.msra.mxu0 0
    %1170 = vmatprep.subr.bf16.mxu0 0
    %1171 = vmatpush1.bf16.msra.mxu0 0
    %1172 = vmatprep.subr.bf16.mxu0 0
    %1173 = vmatpush1.bf16.msra.mxu0 0
    %1174 = vmatprep.subr.bf16.mxu0 0
    %1175 = vmatpush1.bf16.msra.mxu0 0
    %1176 = vmatprep.subr.bf16.mxu0 0
    %1177 = vmatpush1.bf16.msra.mxu0 0
    %1178 = vmatprep.subr.bf16.mxu0 0
    %1179 = vmatpush1.bf16.msra.mxu0 0
    %1180 = vmatprep.subr.bf16.mxu0 0
    %1181 = vmatpush1.bf16.msra.mxu0 0
    %1182 = vmatprep.subr.bf16.mxu0 0
    %1183 = vmatpush1.bf16.msra.mxu0 0
    %1184 = vmatprep.subr.bf16.mxu0 0
    %1185 = vmatpush1.bf16.msra.mxu0 0
    %1186 = vmatprep.subr.bf16.mxu0 0
    %1187 = vmatpush1.bf16.msra.mxu0 0
    %1188 = vmatprep.subr.bf16.mxu0 0
    %1189 = vmatpush1.bf16.msra.mxu0 0
    %1190 = vmatprep.subr.bf16.mxu0 0
    %1191 = vmatpush1.bf16.msra.mxu0 0
    %1192 = vmatprep.subr.bf16.mxu0 0
    %1193 = vmatpush1.bf16.msra.mxu0 0
    %1194 = vmatprep.mubr.bf16.mxu0 0
    %1195 = vmatmul.mubr.bf16.gmra.mrb[0].mxu0 %v1154
    %v1196 = vpop.f32.mrb[0].mxu0
    %v1197 = vadd.f32 0.0, %v1196
    %v1198 = vpop.f32.mrb[0].mxu0
    %v1199 = vpop.f32.mrb[0].mxu0
    %v1200 = vadd.f32 0.0, %v1199
    %v1201 = vpop.f32.mrb[0].mxu0
    %1202 = vmatprep.mubr.bf16.mxu0 0
    %1203 = vmatmul.mubr.bf16.gmra.mrb[0].mxu0 %v1157
    %v1204 = vpop.f32.mrb[0].mxu0
    %v1205 = vadd.f32 0.0, %v1204
    %v1206 = vpop.f32.mrb[0].mxu0
    %v1207 = vpop.f32.mrb[0].mxu0
    %v1208 = vpop.f32.mrb[0].mxu0
    %1209 = vdwg.mxu0
    %1210 = vrot.lane.b32.xlu0 %v474, 48
    %v1211 = vpop.permute.xlu0 %1210
    %1212 = vrot.lane.b32.xlu0 %v475, 48
    %v1213 = vpop.permute.xlu0 %1212
    %v1216 = vsel %vm621, %v1146, 0
    %v1219 = vsel %vm621, %v1147, 0
    %v1222 = vsel %vm703, %v1213, 0
    %1224 = vmatprep.subr.bf16.mxu0 0
    %1225 = vmatpush1.bf16.msra.mxu0 %v1211
    %1226 = vmatprep.subr.bf16.mxu0 0
    %1227 = vmatpush1.bf16.msra.mxu0 %v1222
    %1228 = vmatprep.subr.bf16.mxu0 0
    %1229 = vmatpush1.bf16.msra.mxu0 0
    %1230 = vmatprep.subr.bf16.mxu0 0
    %1231 = vmatpush1.bf16.msra.mxu0 0
    %1232 = vmatprep.subr.bf16.mxu0 0
    %1233 = vmatpush1.bf16.msra.mxu0 0
    %1234 = vmatprep.subr.bf16.mxu0 0
    %1235 = vmatpush1.bf16.msra.mxu0 0
    %1236 = vmatprep.subr.bf16.mxu0 0
    %1237 = vmatpush1.bf16.msra.mxu0 0
    %1238 = vmatprep.subr.bf16.mxu0 0
    %1239 = vmatpush1.bf16.msra.mxu0 0
    %1240 = vmatprep.subr.bf16.mxu0 0
    %1241 = vmatpush1.bf16.msra.mxu0 0
    %1242 = vmatprep.subr.bf16.mxu0 0
    %1243 = vmatpush1.bf16.msra.mxu0 0
    %1244 = vmatprep.subr.bf16.mxu0 0
    %1245 = vmatpush1.bf16.msra.mxu0 0
    %1246 = vmatprep.subr.bf16.mxu0 0
    %1247 = vmatpush1.bf16.msra.mxu0 0
    %1248 = vmatprep.subr.bf16.mxu0 0
    %1249 = vmatpush1.bf16.msra.mxu0 0
    %1250 = vmatprep.subr.bf16.mxu0 0
    %1251 = vmatpush1.bf16.msra.mxu0 0
    %1252 = vmatprep.subr.bf16.mxu0 0
    %1253 = vmatpush1.bf16.msra.mxu0 0
    %1254 = vmatprep.subr.bf16.mxu0 0
    %1255 = vmatpush1.bf16.msra.mxu0 0
    %1256 = vmatprep.mubr.bf16.mxu0 0
    %1257 = vmatmul.mubr.bf16.gmra.mrb[0].mxu0 %v1216
    %v1258 = vpop.f32.mrb[0].mxu0
    %v1259 = vadd.f32 0.0, %v1258
    %v1260 = vpop.f32.mrb[0].mxu0
    %v1261 = vpop.f32.mrb[0].mxu0
    %v1262 = vadd.f32 0.0, %v1261
    %v1263 = vpop.f32.mrb[0].mxu0
    %1264 = vmatprep.mubr.bf16.mxu0 0
    %1265 = vmatmul.mubr.bf16.gmra.mrb[0].mxu0 %v1219
    %v1266 = vpop.f32.mrb[0].mxu0
    %v1267 = vadd.f32 0.0, %v1266
    %v1268 = vpop.f32.mrb[0].mxu0
    %v1269 = vpop.f32.mrb[0].mxu0
    %v1270 = vpop.f32.mrb[0].mxu0
    %1271 = vdwg.mxu0
    %s1272 = scalar_lea.vmem %s4, 8
    %v1273 = vld [vmem:[%s1272] sm:$0xf]
    %v1274 = vld [vmem:[%s1272 + $0x4] sm:$0xf]
    %v1275 = vpack.c.bf16 %v1200, %v1197
    %v1276 = vpack.c.bf16 %v1259, %v1205
    %v1277 = vpack.c.bf16 %v1267, %v1262
    %v1280 = vunpack.c.l.b16 %v1273
    %v1281 = vunpack.c.l.b16 %v1274
    %v1282 = vpack.c.b16 %v1281, %v1280
    %v1285 = vsel %vm482, %v1275, 0
    %v1288 = vsel %vm482, %v1276, 0
    %v1291 = vsel %vm482, %v1277, 0
    %1293 = vmatprep.subr.bf16.mxu0 0
    %1294 = vmatpush1.bf16.msra.mxu0 %v1282
    %1295 = vmatprep.subr.bf16.mxu0 0
    %1296 = vmatpush1.bf16.msra.mxu0 0
    %1297 = vmatprep.subr.bf16.mxu0 0
    %1298 = vmatpush1.bf16.msra.mxu0 0
    %1299 = vmatprep.subr.bf16.mxu0 0
    %1300 = vmatpush1.bf16.msra.mxu0 0
    %1301 = vmatprep.subr.bf16.mxu0 0
    %1302 = vmatpush1.bf16.msra.mxu0 0
    %1303 = vmatprep.subr.bf16.mxu0 0
    %1304 = vmatpush1.bf16.msra.mxu0 0
    %1305 = vmatprep.subr.bf16.mxu0 0
    %1306 = vmatpush1.bf16.msra.mxu0 0
    %1307 = vmatprep.subr.bf16.mxu0 0
    %1308 = vmatpush1.bf16.msra.mxu0 0
    %1309 = vmatprep.subr.bf16.mxu0 0
    %1310 = vmatpush1.bf16.msra.mxu0 0
    %1311 = vmatprep.subr.bf16.mxu0 0
    %1312 = vmatpush1.bf16.msra.mxu0 0
    %1313 = vmatprep.subr.bf16.mxu0 0
    %1314 = vmatpush1.bf16.msra.mxu0 0
    %1315 = vmatprep.subr.bf16.mxu0 0
    %1316 = vmatpush1.bf16.msra.mxu0 0
    %1317 = vmatprep.subr.bf16.mxu0 0
    %1318 = vmatpush1.bf16.msra.mxu0 0
    %1319 = vmatprep.subr.bf16.mxu0 0
    %1320 = vmatpush1.bf16.msra.mxu0 0
    %1321 = vmatprep.subr.bf16.mxu0 0
    %1322 = vmatpush1.bf16.msra.mxu0 0
    %1323 = vmatprep.subr.bf16.mxu0 0
    %1324 = vmatpush1.bf16.msra.mxu0 0
    %1325 = vmatprep.mubr.bf16.mxu0 0
    %1326 = vmatmul.mubr.bf16.gmra.mrb[0].mxu0 %v1285
    %v1327 = vpop.f32.mrb[0].mxu0
    %v1328 = vadd.f32 0.0, %v1327
    %v1329 = vpop.f32.mrb[0].mxu0
    %v1330 = vpop.f32.mrb[0].mxu0
    %v1331 = vadd.f32 0.0, %v1330
    %v1332 = vpop.f32.mrb[0].mxu0
    %1333 = vmatprep.mubr.bf16.mxu0 0
    %1334 = vmatmul.mubr.bf16.gmra.mrb[0].mxu0 %v1288
    %v1335 = vpop.f32.mrb[0].mxu0
    %v1336 = vadd.f32 0.0, %v1335
    %v1337 = vpop.f32.mrb[0].mxu0
    %v1338 = vpop.f32.mrb[0].mxu0
    %v1339 = vadd.f32 0.0, %v1338
    %v1340 = vpop.f32.mrb[0].mxu0
    %1341 = vmatprep.mubr.bf16.mxu0 0
    %1342 = vmatmul.mubr.bf16.gmra.mrb[0].mxu0 %v1291
    %v1343 = vpop.f32.mrb[0].mxu0
    %v1344 = vadd.f32 0.0, %v1343
    %v1345 = vpop.f32.mrb[0].mxu0
    %v1346 = vpop.f32.mrb[0].mxu0
    %v1347 = vadd.f32 0.0, %v1346
    %v1348 = vpop.f32.mrb[0].mxu0
    %1349 = vdwg.mxu0
    %1356 = vrot.lane.b32.xlu0 %v1328, 32
    %v1357 = vpop.permute.xlu0 %1356
    %1358 = vrot.lane.b32.xlu0 %v1331, 32
    %v1359 = vpop.permute.xlu0 %1358
    %1360 = vrot.lane.b32.xlu0 %v1336, 32
    %v1361 = vpop.permute.xlu0 %1360
    %1362 = vrot.lane.b32.xlu0 %v1339, 32
    %v1363 = vpop.permute.xlu0 %1362
    %1364 = vrot.lane.b32.xlu0 %v1344, 32
    %v1365 = vpop.permute.xlu0 %1364
    %1366 = vrot.lane.b32.xlu0 %v1347, 32
    %v1367 = vpop.permute.xlu0 %1366
    %v1374 = vadd.f32 %v924, %v1357
    %v1375 = vadd.f32 %v925, %v1359
    %v1376 = vadd.f32 %v926, %v1361
    %v1377 = vadd.f32 %v927, %v1363
    %v1378 = vadd.f32 %v928, %v1365
    %v1379 = vadd.f32 %v929, %v1367
    %1386 = vrot.lane.b32.xlu0 %v1374, 96
    %v1387 = vpop.permute.xlu0 %1386
    %1388 = vrot.lane.b32.xlu0 %v1375, 96
    %v1389 = vpop.permute.xlu0 %1388
    %1390 = vrot.lane.b32.xlu0 %v1376, 96
    %v1391 = vpop.permute.xlu0 %1390
    %1392 = vrot.lane.b32.xlu0 %v1377, 96
    %v1393 = vpop.permute.xlu0 %1392
    %1394 = vrot.lane.b32.xlu0 %v1378, 96
    %v1395 = vpop.permute.xlu0 %1394
    %1396 = vrot.lane.b32.xlu0 %v1379, 96
    %v1397 = vpop.permute.xlu0 %1396
    %v1404 = vadd.f32 %v259, %v1387
    %v1405 = vadd.f32 %v260, %v1389
    %v1406 = vadd.f32 %v261, %v1391
    %v1407 = vadd.f32 %v262, %v1393
    %v1408 = vadd.f32 %v263, %v1395
    %v1409 = vadd.f32 %v264, %v1397
    %v1410 = vld [vmem:[%s6 + $0x1] sm:$0x1]
    %v1411 = vsel %vm165, %v1404, 0.0
    %1412 = vadd.xlane.f32.xlu0 %v1411
    %v1413 = vpop.xlane.xlu0 %1412
    %v1414 = vsel %vm165, %v1405, 0.0
    %1415 = vadd.xlane.f32.xlu0 %v1414
    %v1416 = vpop.xlane.xlu0 %1415
    %v1417 = vsel %vm165, %v1406, 0.0
    %1418 = vadd.xlane.f32.xlu0 %v1417
    %v1419 = vpop.xlane.xlu0 %1418
    %v1420 = vsel %vm165, %v1407, 0.0
    %1421 = vadd.xlane.f32.xlu0 %v1420
    %v1422 = vpop.xlane.xlu0 %1421
    %v1423 = vsel %vm165, %v1408, 0.0
    %1424 = vadd.xlane.f32.xlu0 %v1423
    %v1425 = vpop.xlane.xlu0 %1424
    %v1426 = vsel %vm165, %v1409, 0.0
    %1427 = vadd.xlane.f32.xlu0 %v1426
    %v1428 = vpop.xlane.xlu0 %1427
    %v1429 = vmul.f32 %v1413, %v184
    %v1430 = vmul.f32 %v1416, %v184
    %v1431 = vmul.f32 %v1419, %v184
    %v1432 = vmul.f32 %v1422, %v184
    %v1433 = vmul.f32 %v1425, %v184
    %v1434 = vmul.f32 %v1428, %v184
    %v1435 = vsub.f32 %v1404, %v1429
    %v1436 = vsub.f32 %v1405, %v1430
    %v1437 = vsub.f32 %v1406, %v1431
    %v1438 = vsub.f32 %v1407, %v1432
    %v1439 = vsub.f32 %v1408, %v1433
    %v1440 = vsub.f32 %v1409, %v1434
    %v1441 = vmul.f32 %v1435, %v1435
    %v1442 = vmul.f32 %v1436, %v1436
    %v1443 = vmul.f32 %v1437, %v1437
    %v1444 = vmul.f32 %v1438, %v1438
    %v1445 = vmul.f32 %v1439, %v1439
    %v1446 = vmul.f32 %v1440, %v1440
    %v1447 = vsel %vm165, %v1441, 0.0
    %1448 = vadd.xlane.f32.xlu0 %v1447
    %v1449 = vpop.xlane.xlu0 %1448
    %v1450 = vsel %vm165, %v1442, 0.0
    %1451 = vadd.xlane.f32.xlu0 %v1450
    %v1452 = vpop.xlane.xlu0 %1451
    %v1453 = vsel %vm165, %v1443, 0.0
    %1454 = vadd.xlane.f32.xlu0 %v1453
    %v1455 = vpop.xlane.xlu0 %1454
    %v1456 = vsel %vm165, %v1444, 0.0
    %1457 = vadd.xlane.f32.xlu0 %v1456
    %v1458 = vpop.xlane.xlu0 %1457
    %v1459 = vsel %vm165, %v1445, 0.0
    %1460 = vadd.xlane.f32.xlu0 %v1459
    %v1461 = vpop.xlane.xlu0 %1460
    %v1462 = vsel %vm165, %v1446, 0.0
    %1463 = vadd.xlane.f32.xlu0 %v1462
    %v1464 = vpop.xlane.xlu0 %1463
    %v1465 = vmul.f32 %v1449, %v184
    %v1466 = vmul.f32 %v1452, %v184
    %v1467 = vmul.f32 %v1455, %v184
    %v1468 = vmul.f32 %v1458, %v184
    %v1469 = vmul.f32 %v1461, %v184
    %v1470 = vmul.f32 %v1464, %v184
    %v1471 = vadd.f32 %v1465, 1e-05
    %v1472 = vadd.f32 %v1466, 1e-05
    %v1473 = vadd.f32 %v1467, 1e-05
    %v1474 = vadd.f32 %v1468, 1e-05
    %v1475 = vadd.f32 %v1469, 1e-05
    %v1476 = vadd.f32 %v1470, 1e-05
    %v1477 = vrsqrt.pop %v1471
    %v1478 = vrsqrt.pop %v1472
    %v1479 = vrsqrt.pop %v1473
    %v1480 = vrsqrt.pop %v1474
    %v1481 = vrsqrt.pop %v1475
    %v1482 = vrsqrt.pop %v1476
    %v1483 = vmul.f32 %v1435, %v1477
    %v1484 = vmul.f32 %v1436, %v1478
    %v1485 = vmul.f32 %v1437, %v1479
    %v1486 = vmul.f32 %v1438, %v1480
    %v1487 = vmul.f32 %v1439, %v1481
    %v1488 = vmul.f32 %v1440, %v1482
    %v1490 = vlaneseq
    %v1491 = vshrl.u32 %v1490, 7
    %v1492 = vsub.s32 0, %v1491
    %v1493 = vrot.slane %v1410, %v1492
    %1494 = vrot.lane.b32.xlu0 %v1493, 64
    %v1495 = vpop.permute.xlu0 %1494
    %v1497 = vmul.f32 %v1483, %v1495
    %v1498 = vmul.f32 %v1484, %v1495
    %v1499 = vmul.f32 %v1485, %v1495
    %v1500 = vmul.f32 %v1486, %v1495
    %v1501 = vmul.f32 %v1487, %v1495
    %v1502 = vmul.f32 %v1488, %v1495
    %1503 = vrot.lane.b32.xlu0 %v1493, 32
    %v1504 = vpop.permute.xlu0 %1503
    %v1506 = vadd.f32 %v1497, %v1504
    %v1507 = vadd.f32 %v1498, %v1504
    %v1508 = vadd.f32 %v1499, %v1504
    %v1509 = vadd.f32 %v1500, %v1504
    %v1510 = vadd.f32 %v1501, %v1504
    %v1511 = vadd.f32 %v1502, %v1504
    %v1512 = vld [vmem:[%s3] sm:$0xff]
    %v1513 = vld [vmem:[%s3 + $0x8] sm:$0xff]
    %v1514 = vld [vmem:[%s3 + $0x10] sm:$0xff]
    %v1515 = vld [vmem:[%s3 + $0x18] sm:$0xff]
    %v1516 = vpack.c.bf16 %v1507, %v1506
    %v1517 = vpack.c.bf16 %v1509, %v1508
    %v1518 = vpack.c.bf16 %v1511, %v1510
    %v1519 = vld [vmem:[%s6 + $0x2] sm:$0x1]
    %v1521 = vlaneseq
    %v1522 = vshrl.u32 %v1521, 7
    %v1523 = vsub.s32 0, %v1522
    %v1524 = vrot.slane %v1519, %v1523
    %v1530 = vunpack.c.l.b16 %v1512
    %v1531 = vunpack.c.h.b16 %v1512
    %v1532 = vunpack.c.l.b16 %v1513
    %v1533 = vunpack.c.h.b16 %v1513
    %v1534 = vunpack.c.l.b16 %v1514
    %v1535 = vunpack.c.h.b16 %v1514
    %v1536 = vunpack.c.l.b16 %v1515
    %v1537 = vunpack.c.h.b16 %v1515
    %v1538 = vpack.c.b16 %v1532, %v1530
    %v1539 = vpack.c.b16 %v1533, %v1531
    %v1540 = vpack.c.b16 %v1536, %v1534
    %v1541 = vpack.c.b16 %v1537, %v1535
    %1542 = vrot.lane.b32.xlu0 %v1538, 32
    %v1543 = vpop.permute.xlu0 %1542
    %1544 = vrot.lane.b32.xlu0 %v1539, 32
    %v1545 = vpop.permute.xlu0 %1544
    %1546 = vrot.lane.b32.xlu0 %v1540, 32
    %v1547 = vpop.permute.xlu0 %1546
    %1548 = vrot.lane.b32.xlu0 %v1541, 32
    %v1549 = vpop.permute.xlu0 %1548
    %vm1550 = vcmask 261120
    %v1551 = vsel %vm1550, %v1543, %v1545
    %v1552 = vsel %vm1550, %v1547, %v1549
    %v1556 = vsel %vm165, %v1516, 0
    %v1559 = vsel %vm165, %v1517, 0
    %v1562 = vsel %vm165, %v1518, 0
    %1564 = vmatprep.subr.bf16.mxu0 0
    %1565 = vmatpush1.bf16.msra.mxu0 %v1551
    %1566 = vmatprep.subr.bf16.mxu0 0
    %1567 = vmatpush1.bf16.msra.mxu0 %v1552
    %1568 = vmatprep.subr.bf16.mxu0 0
    %1569 = vmatpush1.bf16.msra.mxu0 0
    %1570 = vmatprep.subr.bf16.mxu0 0
    %1571 = vmatpush1.bf16.msra.mxu0 0
    %1572 = vmatprep.subr.bf16.mxu0 0
    %1573 = vmatpush1.bf16.msra.mxu0 0
    %1574 = vmatprep.subr.bf16.mxu0 0
    %1575 = vmatpush1.bf16.msra.mxu0 0
    %1576 = vmatprep.subr.bf16.mxu0 0
    %1577 = vmatpush1.bf16.msra.mxu0 0
    %1578 = vmatprep.subr.bf16.mxu0 0
    %1579 = vmatpush1.bf16.msra.mxu0 0
    %1580 = vmatprep.subr.bf16.mxu0 0
    %1581 = vmatpush1.bf16.msra.mxu0 0
    %1582 = vmatprep.subr.bf16.mxu0 0
    %1583 = vmatpush1.bf16.msra.mxu0 0
    %1584 = vmatprep.subr.bf16.mxu0 0
    %1585 = vmatpush1.bf16.msra.mxu0 0
    %1586 = vmatprep.subr.bf16.mxu0 0
    %1587 = vmatpush1.bf16.msra.mxu0 0
    %1588 = vmatprep.subr.bf16.mxu0 0
    %1589 = vmatpush1.bf16.msra.mxu0 0
    %1590 = vmatprep.subr.bf16.mxu0 0
    %1591 = vmatpush1.bf16.msra.mxu0 0
    %1592 = vmatprep.subr.bf16.mxu0 0
    %1593 = vmatpush1.bf16.msra.mxu0 0
    %1594 = vmatprep.subr.bf16.mxu0 0
    %1595 = vmatpush1.bf16.msra.mxu0 0
    %1596 = vmatprep.mubr.bf16.mxu0 0
    %1597 = vmatmul.mubr.bf16.gmra.mrb[0].mxu0 %v1556
    %v1598 = vpop.f32.mrb[0].mxu0
    %v1599 = vadd.f32 %v1524, %v1598
    %v1600 = vpop.f32.mrb[0].mxu0
    %v1601 = vpop.f32.mrb[0].mxu0
    %v1602 = vadd.f32 %v1524, %v1601
    %v1603 = vpop.f32.mrb[0].mxu0
    %1604 = vmatprep.mubr.bf16.mxu0 0
    %1605 = vmatmul.mubr.bf16.gmra.mrb[0].mxu0 %v1559
    %v1606 = vpop.f32.mrb[0].mxu0
    %v1607 = vadd.f32 %v1524, %v1606
    %v1608 = vpop.f32.mrb[0].mxu0
    %v1609 = vpop.f32.mrb[0].mxu0
    %v1610 = vadd.f32 %v1524, %v1609
    %v1611 = vpop.f32.mrb[0].mxu0
    %1612 = vmatprep.mubr.bf16.mxu0 0
    %1613 = vmatmul.mubr.bf16.gmra.mrb[0].mxu0 %v1562
    %v1614 = vpop.f32.mrb[0].mxu0
    %v1615 = vadd.f32 %v1524, %v1614
    %v1616 = vpop.f32.mrb[0].mxu0
    %v1617 = vpop.f32.mrb[0].mxu0
    %v1618 = vadd.f32 %v1524, %v1617
    %v1619 = vpop.f32.mrb[0].mxu0
    %1620 = vdwg.mxu0
    %v1621 = vmul.f32 %v1599, 1.702
    %v1622 = vmul.f32 %v1602, 1.702
    %v1623 = vmul.f32 %v1607, 1.702
    %v1624 = vmul.f32 %v1610, 1.702
    %v1625 = vmul.f32 %v1615, 1.702
    %v1626 = vmul.f32 %v1618, 1.702
    %v1627 = vxor.u32 %v1621, 2147483648
    %v1628 = vxor.u32 %v1622, 2147483648
    %v1629 = vxor.u32 %v1623, 2147483648
    %v1630 = vxor.u32 %v1624, 2147483648
    %v1631 = vxor.u32 %v1625, 2147483648
    %v1632 = vxor.u32 %v1626, 2147483648
    %v1633 = vmul.f32 %v1627, 1.442695
    %v1634 = vpow.pop %v1633
    %v1635 = vmul.f32 %v1628, 1.442695
    %v1636 = vpow.pop %v1635
    %v1637 = vmul.f32 %v1629, 1.442695
    %v1638 = vpow.pop %v1637
    %v1639 = vmul.f32 %v1630, 1.442695
    %v1640 = vpow.pop %v1639
    %v1641 = vmul.f32 %v1631, 1.442695
    %v1642 = vpow.pop %v1641
    %v1643 = vmul.f32 %v1632, 1.442695
    %v1644 = vpow.pop %v1643
    %v1645 = vadd.f32 %v1634, 1.0
    %v1646 = vadd.f32 %v1636, 1.0
    %v1647 = vadd.f32 %v1638, 1.0
    %v1648 = vadd.f32 %v1640, 1.0
    %v1649 = vadd.f32 %v1642, 1.0
    %v1650 = vadd.f32 %v1644, 1.0
    %v1651 = vrcp.pop %v1645
    %v1652 = vmul.f32 1.0, %v1651
    %v1653 = vrcp.pop %v1646
    %v1654 = vmul.f32 1.0, %v1653
    %v1655 = vrcp.pop %v1647
    %v1656 = vmul.f32 1.0, %v1655
    %v1657 = vrcp.pop %v1648
    %v1658 = vmul.f32 1.0, %v1657
    %v1659 = vrcp.pop %v1649
    %v1660 = vmul.f32 1.0, %v1659
    %v1661 = vrcp.pop %v1650
    %v1662 = vmul.f32 1.0, %v1661
    %v1663 = vmul.f32 %v1599, %v1652
    %v1664 = vmul.f32 %v1602, %v1654
    %v1665 = vmul.f32 %v1607, %v1656
    %v1666 = vmul.f32 %v1610, %v1658
    %v1667 = vmul.f32 %v1615, %v1660
    %v1668 = vmul.f32 %v1618, %v1662
    %v1669 = vld [vmem:[%s5] sm:$0xf]
    %v1670 = vld [vmem:[%s5 + $0x4] sm:$0xf]
    %v1671 = vld [vmem:[%s5 + $0x8] sm:$0xf]
    %v1672 = vld [vmem:[%s5 + $0xc] sm:$0xf]
    %v1673 = vld [vmem:[%s5 + $0x10] sm:$0xf]
    %v1674 = vld [vmem:[%s5 + $0x14] sm:$0xf]
    %v1675 = vld [vmem:[%s5 + $0x18] sm:$0xf]
    %v1676 = vld [vmem:[%s5 + $0x1c] sm:$0xf]
    %v1677 = vpack.c.bf16 %v1664, %v1663
    %v1678 = vpack.c.bf16 %v1666, %v1665
    %v1679 = vpack.c.bf16 %v1668, %v1667
    %v1688 = vunpack.c.l.b16 %v1669
    %v1689 = vunpack.c.l.b16 %v1670
    %v1690 = vunpack.c.l.b16 %v1671
    %v1691 = vunpack.c.l.b16 %v1672
    %v1692 = vunpack.c.l.b16 %v1673
    %v1693 = vunpack.c.l.b16 %v1674
    %v1694 = vunpack.c.l.b16 %v1675
    %v1695 = vunpack.c.l.b16 %v1676
    %v1696 = vpack.c.b16 %v1689, %v1688
    %v1697 = vpack.c.b16 %v1691, %v1690
    %v1698 = vpack.c.b16 %v1693, %v1692
    %v1699 = vpack.c.b16 %v1695, %v1694
    %1704 = vrot.lane.b32.xlu0 %v1524, 64
    %v1705 = vpop.permute.xlu0 %1704
    %v1708 = vsel %vm402, %v1677, 0
    %v1711 = vsel %vm402, %v1678, 0
    %v1714 = vsel %vm402, %v1679, 0
    %1716 = vmatprep.subr.bf16.mxu0 0
    %1717 = vmatpush1.bf16.msra.mxu0 %v1696
    %1718 = vmatprep.subr.bf16.mxu0 0
    %1719 = vmatpush1.bf16.msra.mxu0 %v1697
    %1720 = vmatprep.subr.bf16.mxu0 0
    %1721 = vmatpush1.bf16.msra.mxu0 %v1698
    %1722 = vmatprep.subr.bf16.mxu0 0
    %1723 = vmatpush1.bf16.msra.mxu0 %v1699
    %1724 = vmatprep.subr.bf16.mxu0 0
    %1725 = vmatpush1.bf16.msra.mxu0 0
    %1726 = vmatprep.subr.bf16.mxu0 0
    %1727 = vmatpush1.bf16.msra.mxu0 0
    %1728 = vmatprep.subr.bf16.mxu0 0
    %1729 = vmatpush1.bf16.msra.mxu0 0
    %1730 = vmatprep.subr.bf16.mxu0 0
    %1731 = vmatpush1.bf16.msra.mxu0 0
    %1732 = vmatprep.subr.bf16.mxu0 0
    %1733 = vmatpush1.bf16.msra.mxu0 0
    %1734 = vmatprep.subr.bf16.mxu0 0
    %1735 = vmatpush1.bf16.msra.mxu0 0
    %1736 = vmatprep.subr.bf16.mxu0 0
    %1737 = vmatpush1.bf16.msra.mxu0 0
    %1738 = vmatprep.subr.bf16.mxu0 0
    %1739 = vmatpush1.bf16.msra.mxu0 0
    %1740 = vmatprep.subr.bf16.mxu0 0
    %1741 = vmatpush1.bf16.msra.mxu0 0
    %1742 = vmatprep.subr.bf16.mxu0 0
    %1743 = vmatpush1.bf16.msra.mxu0 0
    %1744 = vmatprep.subr.bf16.mxu0 0
    %1745 = vmatpush1.bf16.msra.mxu0 0
    %1746 = vmatprep.subr.bf16.mxu0 0
    %1747 = vmatpush1.bf16.msra.mxu0 0
    %1748 = vmatprep.mubr.bf16.mxu0 0
    %1749 = vmatmul.mubr.bf16.gmra.mrb[0].mxu0 %v1708
    %v1750 = vpop.f32.mrb[0].mxu0
    %v1751 = vadd.f32 %v1705, %v1750
    %v1752 = vpop.f32.mrb[0].mxu0
    %v1753 = vpop.f32.mrb[0].mxu0
    %v1754 = vadd.f32 %v1705, %v1753
    %v1755 = vpop.f32.mrb[0].mxu0
    %1756 = vmatprep.mubr.bf16.mxu0 0
    %1757 = vmatmul.mubr.bf16.gmra.mrb[0].mxu0 %v1711
    %v1758 = vpop.f32.mrb[0].mxu0
    %v1759 = vadd.f32 %v1705, %v1758
    %v1760 = vpop.f32.mrb[0].mxu0
    %v1761 = vpop.f32.mrb[0].mxu0
    %v1762 = vadd.f32 %v1705, %v1761
    %v1763 = vpop.f32.mrb[0].mxu0
    %1764 = vmatprep.mubr.bf16.mxu0 0
    %1765 = vmatmul.mubr.bf16.gmra.mrb[0].mxu0 %v1714
    %v1766 = vpop.f32.mrb[0].mxu0
    %v1767 = vadd.f32 %v1705, %v1766
    %v1768 = vpop.f32.mrb[0].mxu0
    %v1769 = vpop.f32.mrb[0].mxu0
    %v1770 = vadd.f32 %v1705, %v1769
    %v1771 = vpop.f32.mrb[0].mxu0
    %1772 = vdwg.mxu0
    %v1773 = vadd.f32 %v1404, %v1751
    %v1774 = vadd.f32 %v1405, %v1754
    %v1775 = vadd.f32 %v1406, %v1759
    %v1776 = vadd.f32 %v1407, %v1762
    %v1777 = vadd.f32 %v1408, %v1767
    %v1778 = vadd.f32 %v1409, %v1770
    %s1779 = scalar_lea.vmem %s6, 3
    %v1780 = vld [vmem:[%s1779] sm:$0x1]
    %v1781 = vsel %vm165, %v1773, 0.0
    %1782 = vadd.xlane.f32.xlu0 %v1781
    %v1783 = vpop.xlane.xlu0 %1782
    %v1784 = vsel %vm165, %v1774, 0.0
    %1785 = vadd.xlane.f32.xlu0 %v1784
    %v1786 = vpop.xlane.xlu0 %1785
    %v1787 = vsel %vm165, %v1775, 0.0
    %1788 = vadd.xlane.f32.xlu0 %v1787
    %v1789 = vpop.xlane.xlu0 %1788
    %v1790 = vsel %vm165, %v1776, 0.0
    %1791 = vadd.xlane.f32.xlu0 %v1790
    %v1792 = vpop.xlane.xlu0 %1791
    %v1793 = vsel %vm165, %v1777, 0.0
    %1794 = vadd.xlane.f32.xlu0 %v1793
    %v1795 = vpop.xlane.xlu0 %1794
    %v1796 = vsel %vm165, %v1778, 0.0
    %1797 = vadd.xlane.f32.xlu0 %v1796
    %v1798 = vpop.xlane.xlu0 %1797
    %v1799 = vmul.f32 %v1783, %v184
    %v1800 = vmul.f32 %v1786, %v184
    %v1801 = vmul.f32 %v1789, %v184
    %v1802 = vmul.f32 %v1792, %v184
    %v1803 = vmul.f32 %v1795, %v184
    %v1804 = vmul.f32 %v1798, %v184
    %v1805 = vsub.f32 %v1773, %v1799
    %v1806 = vsub.f32 %v1774, %v1800
    %v1807 = vsub.f32 %v1775, %v1801
    %v1808 = vsub.f32 %v1776, %v1802
    %v1809 = vsub.f32 %v1777, %v1803
    %v1810 = vsub.f32 %v1778, %v1804
    %v1811 = vmul.f32 %v1805, %v1805
    %v1812 = vmul.f32 %v1806, %v1806
    %v1813 = vmul.f32 %v1807, %v1807
    %v1814 = vmul.f32 %v1808, %v1808
    %v1815 = vmul.f32 %v1809, %v1809
    %v1816 = vmul.f32 %v1810, %v1810
    %v1817 = vsel %vm165, %v1811, 0.0
    %1818 = vadd.xlane.f32.xlu0 %v1817
    %v1819 = vpop.xlane.xlu0 %1818
    %v1820 = vsel %vm165, %v1812, 0.0
    %1821 = vadd.xlane.f32.xlu0 %v1820
    %v1822 = vpop.xlane.xlu0 %1821
    %v1823 = vsel %vm165, %v1813, 0.0
    %1824 = vadd.xlane.f32.xlu0 %v1823
    %v1825 = vpop.xlane.xlu0 %1824
    %v1826 = vsel %vm165, %v1814, 0.0
    %1827 = vadd.xlane.f32.xlu0 %v1826
    %v1828 = vpop.xlane.xlu0 %1827
    %v1829 = vsel %vm165, %v1815, 0.0
    %1830 = vadd.xlane.f32.xlu0 %v1829
    %v1831 = vpop.xlane.xlu0 %1830
    %v1832 = vsel %vm165, %v1816, 0.0
    %1833 = vadd.xlane.f32.xlu0 %v1832
    %v1834 = vpop.xlane.xlu0 %1833
    %v1835 = vmul.f32 %v1819, %v184
    %v1836 = vmul.f32 %v1822, %v184
    %v1837 = vmul.f32 %v1825, %v184
    %v1838 = vmul.f32 %v1828, %v184
    %v1839 = vmul.f32 %v1831, %v184
    %v1840 = vmul.f32 %v1834, %v184
    %v1841 = vadd.f32 %v1835, 1e-05
    %v1842 = vadd.f32 %v1836, 1e-05
    %v1843 = vadd.f32 %v1837, 1e-05
    %v1844 = vadd.f32 %v1838, 1e-05
    %v1845 = vadd.f32 %v1839, 1e-05
    %v1846 = vadd.f32 %v1840, 1e-05
    %v1847 = vrsqrt.pop %v1841
    %v1848 = vrsqrt.pop %v1842
    %v1849 = vrsqrt.pop %v1843
    %v1850 = vrsqrt.pop %v1844
    %v1851 = vrsqrt.pop %v1845
    %v1852 = vrsqrt.pop %v1846
    %v1853 = vmul.f32 %v1805, %v1847
    %v1854 = vmul.f32 %v1806, %v1848
    %v1855 = vmul.f32 %v1807, %v1849
    %v1856 = vmul.f32 %v1808, %v1850
    %v1857 = vmul.f32 %v1809, %v1851
    %v1858 = vmul.f32 %v1810, %v1852
    %v1860 = vlaneseq
    %v1861 = vshrl.u32 %v1860, 7
    %v1862 = vsub.s32 0, %v1861
    %v1863 = vrot.slane %v1780, %v1862
    %v1865 = vmul.f32 %v1853, %v1863
    %v1866 = vmul.f32 %v1854, %v1863
    %v1867 = vmul.f32 %v1855, %v1863
    %v1868 = vmul.f32 %v1856, %v1863
    %v1869 = vmul.f32 %v1857, %v1863
    %v1870 = vmul.f32 %v1858, %v1863
    %1871 = vrot.lane.b32.xlu0 %v1863, 96
    %v1872 = vpop.permute.xlu0 %1871
    %v1874 = vadd.f32 %v1865, %v1872
    %v1875 = vadd.f32 %v1866, %v1872
    %v1876 = vadd.f32 %v1867, %v1872
    %v1877 = vadd.f32 %v1868, %v1872
    %v1878 = vadd.f32 %v1869, %v1872
    %v1879 = vadd.f32 %v1870, %v1872
    %s1880 = scalar_lea.vmem %s3, 32
    %v1881 = vld [vmem:[%s1880] sm:$0xf]
    %v1882 = vld [vmem:[%s1880 + $0x8] sm:$0xf]
    %v1883 = vld [vmem:[%s1880 + $0x10] sm:$0xf]
    %v1884 = vld [vmem:[%s1880 + $0x18] sm:$0xf]
    %v1885 = vpack.c.bf16 %v1875, %v1874
    %v1886 = vpack.c.bf16 %v1877, %v1876
    %v1887 = vpack.c.bf16 %v1879, %v1878
    %v1888 = vld [vmem:[%s1779] sm:$0x3]
    %v1890 = vlaneseq
    %v1891 = vshrl.u32 %v1890, 7
    %v1892 = vsub.s32 0, %v1891
    %v1893 = vrot.slane %v1888, %v1892
    %v1894 = vlaneseq
    %v1895 = vshrl.u32 %v1894, 7
    %v1896 = vsub.s32 1, %v1895
    %v1897 = vrot.slane %v1888, %v1896
    %v1902 = vunpack.c.l.b16 %v1881
    %v1903 = vunpack.c.l.b16 %v1882
    %v1904 = vunpack.c.l.b16 %v1883
    %v1905 = vunpack.c.l.b16 %v1884
    %v1906 = vpack.c.b16 %v1903, %v1902
    %v1907 = vpack.c.b16 %v1905, %v1904
    %1910 = vrot.lane.b32.xlu0 %v1893, 64
    %v1911 = vpop.permute.xlu0 %1910
    %1912 = vrot.lane.b32.xlu0 %v1897, 64
    %v1913 = vpop.permute.xlu0 %1912
    %v1914 = vsel %vm402, %v1911, %v1913
    %v1917 = vsel %vm165, %v1885, 0
    %v1920 = vsel %vm165, %v1886, 0
    %v1923 = vsel %vm165, %v1887, 0
    %1925 = vmatprep.subr.bf16.mxu0 0
    %1926 = vmatpush1.bf16.msra.mxu0 %v1906
    %1927 = vmatprep.subr.bf16.mxu0 0
    %1928 = vmatpush1.bf16.msra.mxu0 %v1907
    %1929 = vmatprep.subr.bf16.mxu0 0
    %1930 = vmatpush1.bf16.msra.mxu0 0
    %1931 = vmatprep.subr.bf16.mxu0 0
    %1932 = vmatpush1.bf16.msra.mxu0 0
    %1933 = vmatprep.subr.bf16.mxu0 0
    %1934 = vmatpush1.bf16.msra.mxu0 0
    %1935 = vmatprep.subr.bf16.mxu0 0
    %1936 = vmatpush1.bf16.msra.mxu0 0
    %1937 = vmatprep.subr.bf16.mxu0 0
    %1938 = vmatpush1.bf16.msra.mxu0 0
    %1939 = vmatprep.subr.bf16.mxu0 0
    %1940 = vmatpush1.bf16.msra.mxu0 0
    %1941 = vmatprep.subr.bf16.mxu0 0
    %1942 = vmatpush1.bf16.msra.mxu0 0
    %1943 = vmatprep.subr.bf16.mxu0 0
    %1944 = vmatpush1.bf16.msra.mxu0 0
    %1945 = vmatprep.subr.bf16.mxu0 0
    %1946 = vmatpush1.bf16.msra.mxu0 0
    %1947 = vmatprep.subr.bf16.mxu0 0
    %1948 = vmatpush1.bf16.msra.mxu0 0
    %1949 = vmatprep.subr.bf16.mxu0 0
    %1950 = vmatpush1.bf16.msra.mxu0 0
    %1951 = vmatprep.subr.bf16.mxu0 0
    %1952 = vmatpush1.bf16.msra.mxu0 0
    %1953 = vmatprep.subr.bf16.mxu0 0
    %1954 = vmatpush1.bf16.msra.mxu0 0
    %1955 = vmatprep.subr.bf16.mxu0 0
    %1956 = vmatpush1.bf16.msra.mxu0 0
    %1957 = vmatprep.mubr.bf16.mxu0 0
    %1958 = vmatmul.mubr.bf16.gmra.mrb[0].mxu0 %v1917
    %v1959 = vpop.f32.mrb[0].mxu0
    %v1960 = vadd.f32 %v1914, %v1959
    %v1961 = vpop.f32.mrb[0].mxu0
    %v1962 = vpop.f32.mrb[0].mxu0
    %v1963 = vadd.f32 %v1914, %v1962
    %v1964 = vpop.f32.mrb[0].mxu0
    %1965 = vmatprep.mubr.bf16.mxu0 0
    %1966 = vmatmul.mubr.bf16.gmra.mrb[0].mxu0 %v1920
    %v1967 = vpop.f32.mrb[0].mxu0
    %v1968 = vadd.f32 %v1914, %v1967
    %v1969 = vpop.f32.mrb[0].mxu0
    %v1970 = vpop.f32.mrb[0].mxu0
    %v1971 = vadd.f32 %v1914, %v1970
    %v1972 = vpop.f32.mrb[0].mxu0
    %1973 = vmatprep.mubr.bf16.mxu0 0
    %1974 = vmatmul.mubr.bf16.gmra.mrb[0].mxu0 %v1923
    %v1975 = vpop.f32.mrb[0].mxu0
    %v1976 = vadd.f32 %v1914, %v1975
    %v1977 = vpop.f32.mrb[0].mxu0
    %v1978 = vpop.f32.mrb[0].mxu0
    %v1979 = vadd.f32 %v1914, %v1978
    %v1980 = vpop.f32.mrb[0].mxu0
    %1981 = vdwg.mxu0
    %v1982 = vld [vmem:[%s1779 + $0x1] sm:$0x1]
    %v1983 = vpack.c.bf16 %v1963, %v1960
    %v1984 = vpack.c.bf16 %v1968, %v1968
    %v1985 = vpack.c.bf16 %v1976, %v1971
    %v1986 = vpack.c.bf16 %v1979, %v1979
    %1989 = vrot.lane.b32.xlu0 %v1983, 96
    %v1990 = vpop.permute.xlu0 %1989
    %1991 = vrot.lane.b32.xlu0 %v1984, 96
    %v1992 = vpop.permute.xlu0 %1991
    %v1994 = vsel %vm482, %v1983, 0
    %v1997 = vsel %vm482, %v1984, 0
    %v2000 = vsel %vm482, %v1990, 0
    %v2003 = vsel %vm482, %v1992, 0
    %2005 = vmatprep.subr.bf16.mxu0 0
    %2006 = vmatpush1.bf16.xpose.msra.mxu0 %v2000
    %2007 = vmatprep.subr.bf16.mxu0 0
    %2008 = vmatpush1.bf16.xpose.msra.mxu0 %v2003
    %2009 = vmatprep.subr.bf16.mxu0 0
    %2010 = vmatpush1.bf16.xpose.msra.mxu0 0
    %2011 = vmatprep.subr.bf16.mxu0 0
    %2012 = vmatpush1.bf16.xpose.msra.mxu0 0
    %2013 = vmatprep.subr.bf16.mxu0 0
    %2014 = vmatpush1.bf16.xpose.msra.mxu0 0
    %2015 = vmatprep.subr.bf16.mxu0 0
    %2016 = vmatpush1.bf16.xpose.msra.mxu0 0
    %2017 = vmatprep.subr.bf16.mxu0 0
    %2018 = vmatpush1.bf16.xpose.msra.mxu0 0
    %2019 = vmatprep.subr.bf16.mxu0 0
    %2020 = vmatpush1.bf16.xpose.msra.mxu0 0
    %2021 = vmatprep.subr.bf16.mxu0 0
    %2022 = vmatpush1.bf16.xpose.msra.mxu0 0
    %2023 = vmatprep.subr.bf16.mxu0 0
    %2024 = vmatpush1.bf16.xpose.msra.mxu0 0
    %2025 = vmatprep.subr.bf16.mxu0 0
    %2026 = vmatpush1.bf16.xpose.msra.mxu0 0
    %2027 = vmatprep.subr.bf16.mxu0 0
    %2028 = vmatpush1.bf16.xpose.msra.mxu0 0
    %2029 = vmatprep.subr.bf16.mxu0 0
    %2030 = vmatpush1.bf16.xpose.msra.mxu0 0
    %2031 = vmatprep.subr.bf16.mxu0 0
    %2032 = vmatpush1.bf16.xpose.msra.mxu0 0
    %2033 = vmatprep.subr.bf16.mxu0 0
    %2034 = vmatpush1.bf16.xpose.msra.mxu0 0
    %2035 = vmatprep.subr.bf16.mxu0 0
    %2036 = vmatpush1.bf16.xpose.msra.mxu0 0
    %2037 = vmatprep.mubr.bf16.mxu0 0
    %2038 = vmatmul.mubr.bf16.gmra.mrb[0].mxu0 %v1994
    %v2039 = vpop.f32.mrb[0].mxu0
    %v2040 = vadd.f32 0.0, %v2039
    %v2041 = vpop.f32.mrb[0].mxu0
    %v2042 = vpop.f32.mrb[0].mxu0
    %v2043 = vadd.f32 0.0, %v2042
    %v2044 = vpop.f32.mrb[0].mxu0
    %2045 = vmatprep.mubr.bf16.mxu0 0
    %2046 = vmatmul.mubr.bf16.gmra.mrb[0].mxu0 %v1997
    %v2047 = vpop.f32.mrb[0].mxu0
    %v2048 = vadd.f32 0.0, %v2047
    %v2049 = vpop.f32.mrb[0].mxu0
    %v2050 = vpop.f32.mrb[0].mxu0
    %v2051 = vpop.f32.mrb[0].mxu0
    %2052 = vdwg.mxu0
    %2055 = vrot.lane.b32.xlu0 %v1985, 96
    %v2056 = vpop.permute.xlu0 %2055
    %2057 = vrot.lane.b32.xlu0 %v1986, 96
    %v2058 = vpop.permute.xlu0 %2057
    %v2060 = vsel %vm482, %v1985, 0
    %v2063 = vsel %vm482, %v1986, 0
    %v2066 = vsel %vm482, %v2056, 0
    %v2069 = vsel %vm482, %v2058, 0
    %2071 = vmatprep.subr.bf16.mxu0 0
    %2072 = vmatpush1.bf16.xpose.msra.mxu0 %v2066
    %2073 = vmatprep.subr.bf16.mxu0 0
    %2074 = vmatpush1.bf16.xpose.msra.mxu0 %v2069
    %2075 = vmatprep.subr.bf16.mxu0 0
    %2076 = vmatpush1.bf16.xpose.msra.mxu0 0
    %2077 = vmatprep.subr.bf16.mxu0 0
    %2078 = vmatpush1.bf16.xpose.msra.mxu0 0
    %2079 = vmatprep.subr.bf16.mxu0 0
    %2080 = vmatpush1.bf16.xpose.msra.mxu0 0
    %2081 = vmatprep.subr.bf16.mxu0 0
    %2082 = vmatpush1.bf16.xpose.msra.mxu0 0
    %2083 = vmatprep.subr.bf16.mxu0 0
    %2084 = vmatpush1.bf16.xpose.msra.mxu0 0
    %2085 = vmatprep.subr.bf16.mxu0 0
    %2086 = vmatpush1.bf16.xpose.msra.mxu0 0
    %2087 = vmatprep.subr.bf16.mxu0 0
    %2088 = vmatpush1.bf16.xpose.msra.mxu0 0
    %2089 = vmatprep.subr.bf16.mxu0 0
    %2090 = vmatpush1.bf16.xpose.msra.mxu0 0
    %2091 = vmatprep.subr.bf16.mxu0 0
    %2092 = vmatpush1.bf16.xpose.msra.mxu0 0
    %2093 = vmatprep.subr.bf16.mxu0 0
    %2094 = vmatpush1.bf16.xpose.msra.mxu0 0
    %2095 = vmatprep.subr.bf16.mxu0 0
    %2096 = vmatpush1.bf16.xpose.msra.mxu0 0
    %2097 = vmatprep.subr.bf16.mxu0 0
    %2098 = vmatpush1.bf16.xpose.msra.mxu0 0
    %2099 = vmatprep.subr.bf16.mxu0 0
    %2100 = vmatpush1.bf16.xpose.msra.mxu0 0
    %2101 = vmatprep.subr.bf16.mxu0 0
    %2102 = vmatpush1.bf16.xpose.msra.mxu0 0
    %2103 = vmatprep.mubr.bf16.mxu0 0
    %2104 = vmatmul.mubr.bf16.gmra.mrb[0].mxu0 %v2060
    %v2105 = vpop.f32.mrb[0].mxu0
    %v2106 = vadd.f32 0.0, %v2105
    %v2107 = vpop.f32.mrb[0].mxu0
    %v2108 = vpop.f32.mrb[0].mxu0
    %v2109 = vadd.f32 0.0, %v2108
    %v2110 = vpop.f32.mrb[0].mxu0
    %2111 = vmatprep.mubr.bf16.mxu0 0
    %2112 = vmatmul.mubr.bf16.gmra.mrb[0].mxu0 %v2063
    %v2113 = vpop.f32.mrb[0].mxu0
    %v2114 = vadd.f32 0.0, %v2113
    %v2115 = vpop.f32.mrb[0].mxu0
    %v2116 = vpop.f32.mrb[0].mxu0
    %v2117 = vpop.f32.mrb[0].mxu0
    %2118 = vdwg.mxu0
    %v2119 = vmul.f32 %v2040, 0.25
    %v2120 = vmul.f32 %v2043, 0.25
    %v2121 = vmul.f32 %v2048, 0.25
    %v2122 = vmul.f32 %v2106, 0.25
    %v2123 = vmul.f32 %v2109, 0.25
    %v2124 = vmul.f32 %v2114, 0.25
    %v2125 = vadd.f32 %v2119, %v268
    %v2126 = vadd.f32 %v2120, %v268
    %v2127 = vadd.f32 %v2121, %v268
    %v2128 = vadd.f32 %v2122, %v268
    %v2129 = vadd.f32 %v2123, %v268
    %v2130 = vadd.f32 %v2124, %v268
    %v2131 = vsel %vm621, %v2125, -inf
    %2132 = vmax.xlane.f32.xlu0 %v2131
    %v2133 = vpop.xlane.xlu0 %2132
    %v2134 = vsel %vm621, %v2126, -inf
    %2135 = vmax.xlane.f32.xlu0 %v2134
    %v2136 = vpop.xlane.xlu0 %2135
    %v2137 = vsel %vm621, %v2127, -inf
    %2138 = vmax.xlane.f32.xlu0 %v2137
    %v2139 = vpop.xlane.xlu0 %2138
    %v2140 = vsel %vm621, %v2128, -inf
    %2141 = vmax.xlane.f32.xlu0 %v2140
    %v2142 = vpop.xlane.xlu0 %2141
    %v2143 = vsel %vm621, %v2129, -inf
    %2144 = vmax.xlane.f32.xlu0 %v2143
    %v2145 = vpop.xlane.xlu0 %2144
    %v2146 = vsel %vm621, %v2130, -inf
    %2147 = vmax.xlane.f32.xlu0 %v2146
    %v2148 = vpop.xlane.xlu0 %2147
    %v2149 = vsub.f32 %v2125, %v2133
    %v2150 = vsub.f32 %v2126, %v2136
    %v2151 = vsub.f32 %v2127, %v2139
    %v2152 = vsub.f32 %v2128, %v2142
    %v2153 = vsub.f32 %v2129, %v2145
    %v2154 = vsub.f32 %v2130, %v2148
    %v2155 = vmul.f32 %v2149, 1.442695
    %v2156 = vpow.pop %v2155
    %v2157 = vmul.f32 %v2150, 1.442695
    %v2158 = vpow.pop %v2157
    %v2159 = vmul.f32 %v2151, 1.442695
    %v2160 = vpow.pop %v2159
    %v2161 = vmul.f32 %v2152, 1.442695
    %v2162 = vpow.pop %v2161
    %v2163 = vmul.f32 %v2153, 1.442695
    %v2164 = vpow.pop %v2163
    %v2165 = vmul.f32 %v2154, 1.442695
    %v2166 = vpow.pop %v2165
    %v2167 = vsel %vm621, %v2156, 0.0
    %2168 = vadd.xlane.f32.xlu0 %v2167
    %v2169 = vpop.xlane.xlu0 %2168
    %v2170 = vsel %vm621, %v2158, 0.0
    %2171 = vadd.xlane.f32.xlu0 %v2170
    %v2172 = vpop.xlane.xlu0 %2171
    %v2173 = vsel %vm621, %v2160, 0.0
    %2174 = vadd.xlane.f32.xlu0 %v2173
    %v2175 = vpop.xlane.xlu0 %2174
    %v2176 = vsel %vm621, %v2162, 0.0
    %2177 = vadd.xlane.f32.xlu0 %v2176
    %v2178 = vpop.xlane.xlu0 %2177
    %v2179 = vsel %vm621, %v2164, 0.0
    %2180 = vadd.xlane.f32.xlu0 %v2179
    %v2181 = vpop.xlane.xlu0 %2180
    %v2182 = vsel %vm621, %v2166, 0.0
    %2183 = vadd.xlane.f32.xlu0 %v2182
    %v2184 = vpop.xlane.xlu0 %2183
    %v2185 = vrcp.pop %v2169
    %v2186 = vrcp.pop %v2172
    %v2187 = vrcp.pop %v2175
    %v2188 = vrcp.pop %v2178
    %v2189 = vrcp.pop %v2181
    %v2190 = vrcp.pop %v2184
    %v2191 = vmul.f32 %v2156, %v2185
    %v2192 = vmul.f32 %v2158, %v2186
    %v2193 = vmul.f32 %v2160, %v2187
    %v2194 = vmul.f32 %v2162, %v2188
    %v2195 = vmul.f32 %v2164, %v2189
    %v2196 = vmul.f32 %v2166, %v2190
    %v2197 = vpack.c.bf16 %v2192, %v2191
    %v2198 = vpack.c.bf16 %v2193, %v2193
    %v2199 = vpack.c.bf16 %v2195, %v2194
    %v2200 = vpack.c.bf16 %v2196, %v2196
    %2201 = vrot.lane.b32.xlu0 %v1983, 64
    %v2202 = vpop.permute.xlu0 %2201
    %2203 = vrot.lane.b32.xlu0 %v1984, 64
    %v2204 = vpop.permute.xlu0 %2203
    %v2207 = vsel %vm621, %v2197, 0
    %v2210 = vsel %vm621, %v2198, 0
    %v2213 = vsel %vm703, %v2204, 0
    %2215 = vmatprep.subr.bf16.mxu0 0
    %2216 = vmatpush1.bf16.msra.mxu0 %v2202
    %2217 = vmatprep.subr.bf16.mxu0 0
    %2218 = vmatpush1.bf16.msra.mxu0 %v2213
    %2219 = vmatprep.subr.bf16.mxu0 0
    %2220 = vmatpush1.bf16.msra.mxu0 0
    %2221 = vmatprep.subr.bf16.mxu0 0
    %2222 = vmatpush1.bf16.msra.mxu0 0
    %2223 = vmatprep.subr.bf16.mxu0 0
    %2224 = vmatpush1.bf16.msra.mxu0 0
    %2225 = vmatprep.subr.bf16.mxu0 0
    %2226 = vmatpush1.bf16.msra.mxu0 0
    %2227 = vmatprep.subr.bf16.mxu0 0
    %2228 = vmatpush1.bf16.msra.mxu0 0
    %2229 = vmatprep.subr.bf16.mxu0 0
    %2230 = vmatpush1.bf16.msra.mxu0 0
    %2231 = vmatprep.subr.bf16.mxu0 0
    %2232 = vmatpush1.bf16.msra.mxu0 0
    %2233 = vmatprep.subr.bf16.mxu0 0
    %2234 = vmatpush1.bf16.msra.mxu0 0
    %2235 = vmatprep.subr.bf16.mxu0 0
    %2236 = vmatpush1.bf16.msra.mxu0 0
    %2237 = vmatprep.subr.bf16.mxu0 0
    %2238 = vmatpush1.bf16.msra.mxu0 0
    %2239 = vmatprep.subr.bf16.mxu0 0
    %2240 = vmatpush1.bf16.msra.mxu0 0
    %2241 = vmatprep.subr.bf16.mxu0 0
    %2242 = vmatpush1.bf16.msra.mxu0 0
    %2243 = vmatprep.subr.bf16.mxu0 0
    %2244 = vmatpush1.bf16.msra.mxu0 0
    %2245 = vmatprep.subr.bf16.mxu0 0
    %2246 = vmatpush1.bf16.msra.mxu0 0
    %2247 = vmatprep.mubr.bf16.mxu0 0
    %2248 = vmatmul.mubr.bf16.gmra.mrb[0].mxu0 %v2207
    %v2249 = vpop.f32.mrb[0].mxu0
    %v2250 = vadd.f32 0.0, %v2249
    %v2251 = vpop.f32.mrb[0].mxu0
    %v2252 = vpop.f32.mrb[0].mxu0
    %v2253 = vadd.f32 0.0, %v2252
    %v2254 = vpop.f32.mrb[0].mxu0
    %2255 = vmatprep.mubr.bf16.mxu0 0
    %2256 = vmatmul.mubr.bf16.gmra.mrb[0].mxu0 %v2210
    %v2257 = vpop.f32.mrb[0].mxu0
    %v2258 = vadd.f32 0.0, %v2257
    %v2259 = vpop.f32.mrb[0].mxu0
    %v2260 = vpop.f32.mrb[0].mxu0
    %v2261 = vpop.f32.mrb[0].mxu0
    %2262 = vdwg.mxu0
    %2263 = vrot.lane.b32.xlu0 %v1985, 64
    %v2264 = vpop.permute.xlu0 %2263
    %2265 = vrot.lane.b32.xlu0 %v1986, 64
    %v2266 = vpop.permute.xlu0 %2265
    %v2269 = vsel %vm621, %v2199, 0
    %v2272 = vsel %vm621, %v2200, 0
    %v2275 = vsel %vm703, %v2266, 0
    %2277 = vmatprep.subr.bf16.mxu0 0
    %2278 = vmatpush1.bf16.msra.mxu0 %v2264
    %2279 = vmatprep.subr.bf16.mxu0 0
    %2280 = vmatpush1.bf16.msra.mxu0 %v2275
    %2281 = vmatprep.subr.bf16.mxu0 0
    %2282 = vmatpush1.bf16.msra.mxu0 0
    %2283 = vmatprep.subr.bf16.mxu0 0
    %2284 = vmatpush1.bf16.msra.mxu0 0
    %2285 = vmatprep.subr.bf16.mxu0 0
    %2286 = vmatpush1.bf16.msra.mxu0 0
    %2287 = vmatprep.subr.bf16.mxu0 0
    %2288 = vmatpush1.bf16.msra.mxu0 0
    %2289 = vmatprep.subr.bf16.mxu0 0
    %2290 = vmatpush1.bf16.msra.mxu0 0
    %2291 = vmatprep.subr.bf16.mxu0 0
    %2292 = vmatpush1.bf16.msra.mxu0 0
    %2293 = vmatprep.subr.bf16.mxu0 0
    %2294 = vmatpush1.bf16.msra.mxu0 0
    %2295 = vmatprep.subr.bf16.mxu0 0
    %2296 = vmatpush1.bf16.msra.mxu0 0
    %2297 = vmatprep.subr.bf16.mxu0 0
    %2298 = vmatpush1.bf16.msra.mxu0 0
    %2299 = vmatprep.subr.bf16.mxu0 0
    %2300 = vmatpush1.bf16.msra.mxu0 0
    %2301 = vmatprep.subr.bf16.mxu0 0
    %2302 = vmatpush1.bf16.msra.mxu0 0
    %2303 = vmatprep.subr.bf16.mxu0 0
    %2304 = vmatpush1.bf16.msra.mxu0 0
    %2305 = vmatprep.subr.bf16.mxu0 0
    %2306 = vmatpush1.bf16.msra.mxu0 0
    %2307 = vmatprep.subr.bf16.mxu0 0
    %2308 = vmatpush1.bf16.msra.mxu0 0
    %2309 = vmatprep.mubr.bf16.mxu0 0
    %2310 = vmatmul.mubr.bf16.gmra.mrb[0].mxu0 %v2269
    %v2311 = vpop.f32.mrb[0].mxu0
    %v2312 = vadd.f32 0.0, %v2311
    %v2313 = vpop.f32.mrb[0].mxu0
    %v2314 = vpop.f32.mrb[0].mxu0
    %v2315 = vadd.f32 0.0, %v2314
    %v2316 = vpop.f32.mrb[0].mxu0
    %2317 = vmatprep.mubr.bf16.mxu0 0
    %2318 = vmatmul.mubr.bf16.gmra.mrb[0].mxu0 %v2272
    %v2319 = vpop.f32.mrb[0].mxu0
    %v2320 = vadd.f32 0.0, %v2319
    %v2321 = vpop.f32.mrb[0].mxu0
    %v2322 = vpop.f32.mrb[0].mxu0
    %v2323 = vpop.f32.mrb[0].mxu0
    %2324 = vdwg.mxu0
    %s2325 = scalar_lea.vmem %s4, 16
    %v2326 = vld [vmem:[%s2325] sm:$0xf]
    %v2327 = vld [vmem:[%s2325 + $0x4] sm:$0xf]
    %v2328 = vpack.c.bf16 %v2253, %v2250
    %v2329 = vpack.c.bf16 %v2312, %v2258
    %v2330 = vpack.c.bf16 %v2320, %v2315
    %v2333 = vunpack.c.l.b16 %v2326
    %v2334 = vunpack.c.l.b16 %v2327
    %v2335 = vpack.c.b16 %v2334, %v2333
    %v2338 = vsel %vm482, %v2328, 0
    %v2341 = vsel %vm482, %v2329, 0
    %v2344 = vsel %vm482, %v2330, 0
    %2346 = vmatprep.subr.bf16.mxu0 0
    %2347 = vmatpush1.bf16.msra.mxu0 %v2335
    %2348 = vmatprep.subr.bf16.mxu0 0
    %2349 = vmatpush1.bf16.msra.mxu0 0
    %2350 = vmatprep.subr.bf16.mxu0 0
    %2351 = vmatpush1.bf16.msra.mxu0 0
    %2352 = vmatprep.subr.bf16.mxu0 0
    %2353 = vmatpush1.bf16.msra.mxu0 0
    %2354 = vmatprep.subr.bf16.mxu0 0
    %2355 = vmatpush1.bf16.msra.mxu0 0
    %2356 = vmatprep.subr.bf16.mxu0 0
    %2357 = vmatpush1.bf16.msra.mxu0 0
    %2358 = vmatprep.subr.bf16.mxu0 0
    %2359 = vmatpush1.bf16.msra.mxu0 0
    %2360 = vmatprep.subr.bf16.mxu0 0
    %2361 = vmatpush1.bf16.msra.mxu0 0
    %2362 = vmatprep.subr.bf16.mxu0 0
    %2363 = vmatpush1.bf16.msra.mxu0 0
    %2364 = vmatprep.subr.bf16.mxu0 0
    %2365 = vmatpush1.bf16.msra.mxu0 0
    %2366 = vmatprep.subr.bf16.mxu0 0
    %2367 = vmatpush1.bf16.msra.mxu0 0
    %2368 = vmatprep.subr.bf16.mxu0 0
    %2369 = vmatpush1.bf16.msra.mxu0 0
    %2370 = vmatprep.subr.bf16.mxu0 0
    %2371 = vmatpush1.bf16.msra.mxu0 0
    %2372 = vmatprep.subr.bf16.mxu0 0
    %2373 = vmatpush1.bf16.msra.mxu0 0
    %2374 = vmatprep.subr.bf16.mxu0 0
    %2375 = vmatpush1.bf16.msra.mxu0 0
    %2376 = vmatprep.subr.bf16.mxu0 0
    %2377 = vmatpush1.bf16.msra.mxu0 0
    %2378 = vmatprep.mubr.bf16.mxu0 0
    %2379 = vmatmul.mubr.bf16.gmra.mrb[0].mxu0 %v2338
    %v2380 = vpop.f32.mrb[0].mxu0
    %v2381 = vadd.f32 0.0, %v2380
    %v2382 = vpop.f32.mrb[0].mxu0
    %v2383 = vpop.f32.mrb[0].mxu0
    %v2384 = vadd.f32 0.0, %v2383
    %v2385 = vpop.f32.mrb[0].mxu0
    %2386 = vmatprep.mubr.bf16.mxu0 0
    %2387 = vmatmul.mubr.bf16.gmra.mrb[0].mxu0 %v2341
    %v2388 = vpop.f32.mrb[0].mxu0
    %v2389 = vadd.f32 0.0, %v2388
    %v2390 = vpop.f32.mrb[0].mxu0
    %v2391 = vpop.f32.mrb[0].mxu0
    %v2392 = vadd.f32 0.0, %v2391
    %v2393 = vpop.f32.mrb[0].mxu0
    %2394 = vmatprep.mubr.bf16.mxu0 0
    %2395 = vmatmul.mubr.bf16.gmra.mrb[0].mxu0 %v2344
    %v2396 = vpop.f32.mrb[0].mxu0
    %v2397 = vadd.f32 0.0, %v2396
    %v2398 = vpop.f32.mrb[0].mxu0
    %v2399 = vpop.f32.mrb[0].mxu0
    %v2400 = vadd.f32 0.0, %v2399
    %v2401 = vpop.f32.mrb[0].mxu0
    %2402 = vdwg.mxu0
    %v2404 = vlaneseq
    %v2405 = vshrl.u32 %v2404, 7
    %v2406 = vsub.s32 0, %v2405
    %v2407 = vrot.slane %v1982, %v2406
    %2415 = vrot.lane.b32.xlu0 %v2381, 32
    %v2416 = vpop.permute.xlu0 %2415
    %2417 = vrot.lane.b32.xlu0 %v2384, 32
    %v2418 = vpop.permute.xlu0 %2417
    %2419 = vrot.lane.b32.xlu0 %v2389, 32
    %v2420 = vpop.permute.xlu0 %2419
    %2421 = vrot.lane.b32.xlu0 %v2392, 32
    %v2422 = vpop.permute.xlu0 %2421
    %2423 = vrot.lane.b32.xlu0 %v2397, 32
    %v2424 = vpop.permute.xlu0 %2423
    %2425 = vrot.lane.b32.xlu0 %v2400, 32
    %v2426 = vpop.permute.xlu0 %2425
    %v2433 = vadd.f32 %v2407, %v2416
    %v2434 = vadd.f32 %v2407, %v2418
    %v2435 = vadd.f32 %v2407, %v2420
    %v2436 = vadd.f32 %v2407, %v2422
    %v2437 = vadd.f32 %v2407, %v2424
    %v2438 = vadd.f32 %v2407, %v2426
    %2439 = vrot.lane.b32.xlu0 %v1983, 112
    %v2440 = vpop.permute.xlu0 %2439
    %2441 = vrot.lane.b32.xlu0 %v1984, 112
    %v2442 = vpop.permute.xlu0 %2441
    %2443 = vrot.lane.b32.xlu0 %v1983, 80
    %v2444 = vpop.permute.xlu0 %2443
    %2445 = vrot.lane.b32.xlu0 %v1984, 80
    %v2446 = vpop.permute.xlu0 %2445
    %v2448 = vsel %vm482, %v2440, 0
    %v2451 = vsel %vm482, %v2442, 0
    %v2454 = vsel %vm482, %v2444, 0
    %v2457 = vsel %vm482, %v2446, 0
    %2459 = vmatprep.subr.bf16.mxu0 0
    %2460 = vmatpush1.bf16.xpose.msra.mxu0 %v2454
    %2461 = vmatprep.subr.bf16.mxu0 0
    %2462 = vmatpush1.bf16.xpose.msra.mxu0 %v2457
    %2463 = vmatprep.subr.bf16.mxu0 0
    %2464 = vmatpush1.bf16.xpose.msra.mxu0 0
    %2465 = vmatprep.subr.bf16.mxu0 0
    %2466 = vmatpush1.bf16.xpose.msra.mxu0 0
    %2467 = vmatprep.subr.bf16.mxu0 0
    %2468 = vmatpush1.bf16.xpose.msra.mxu0 0
    %2469 = vmatprep.subr.bf16.mxu0 0
    %2470 = vmatpush1.bf16.xpose.msra.mxu0 0
    %2471 = vmatprep.subr.bf16.mxu0 0
    %2472 = vmatpush1.bf16.xpose.msra.mxu0 0
    %2473 = vmatprep.subr.bf16.mxu0 0
    %2474 = vmatpush1.bf16.xpose.msra.mxu0 0
    %2475 = vmatprep.subr.bf16.mxu0 0
    %2476 = vmatpush1.bf16.xpose.msra.mxu0 0
    %2477 = vmatprep.subr.bf16.mxu0 0
    %2478 = vmatpush1.bf16.xpose.msra.mxu0 0
    %2479 = vmatprep.subr.bf16.mxu0 0
    %2480 = vmatpush1.bf16.xpose.msra.mxu0 0
    %2481 = vmatprep.subr.bf16.mxu0 0
    %2482 = vmatpush1.bf16.xpose.msra.mxu0 0
    %2483 = vmatprep.subr.bf16.mxu0 0
    %2484 = vmatpush1.bf16.xpose.msra.mxu0 0
    %2485 = vmatprep.subr.bf16.mxu0 0
    %2486 = vmatpush1.bf16.xpose.msra.mxu0 0
    %2487 = vmatprep.subr.bf16.mxu0 0
    %2488 = vmatpush1.bf16.xpose.msra.mxu0 0
    %2489 = vmatprep.subr.bf16.mxu0 0
    %2490 = vmatpush1.bf16.xpose.msra.mxu0 0
    %2491 = vmatprep.mubr.bf16.mxu0 0
    %2492 = vmatmul.mubr.bf16.gmra.mrb[0].mxu0 %v2448
    %v2493 = vpop.f32.mrb[0].mxu0
    %v2494 = vadd.f32 0.0, %v2493
    %v2495 = vpop.f32.mrb[0].mxu0
    %v2496 = vpop.f32.mrb[0].mxu0
    %v2497 = vadd.f32 0.0, %v2496
    %v2498 = vpop.f32.mrb[0].mxu0
    %2499 = vmatprep.mubr.bf16.mxu0 0
    %2500 = vmatmul.mubr.bf16.gmra.mrb[0].mxu0 %v2451
    %v2501 = vpop.f32.mrb[0].mxu0
    %v2502 = vadd.f32 0.0, %v2501
    %v2503 = vpop.f32.mrb[0].mxu0
    %v2504 = vpop.f32.mrb[0].mxu0
    %v2505 = vpop.f32.mrb[0].mxu0
    %2506 = vdwg.mxu0
    %2507 = vrot.lane.b32.xlu0 %v1985, 112
    %v2508 = vpop.permute.xlu0 %2507
    %2509 = vrot.lane.b32.xlu0 %v1986, 112
    %v2510 = vpop.permute.xlu0 %2509
    %2511 = vrot.lane.b32.xlu0 %v1985, 80
    %v2512 = vpop.permute.xlu0 %2511
    %2513 = vrot.lane.b32.xlu0 %v1986, 80
    %v2514 = vpop.permute.xlu0 %2513
    %v2516 = vsel %vm482, %v2508, 0
    %v2519 = vsel %vm482, %v2510, 0
    %v2522 = vsel %vm482, %v2512, 0
    %v2525 = vsel %vm482, %v2514, 0
    %2527 = vmatprep.subr.bf16.mxu0 0
    %2528 = vmatpush1.bf16.xpose.msra.mxu0 %v2522
    %2529 = vmatprep.subr.bf16.mxu0 0
    %2530 = vmatpush1.bf16.xpose.msra.mxu0 %v2525
    %2531 = vmatprep.subr.bf16.mxu0 0
    %2532 = vmatpush1.bf16.xpose.msra.mxu0 0
    %2533 = vmatprep.subr.bf16.mxu0 0
    %2534 = vmatpush1.bf16.xpose.msra.mxu0 0
    %2535 = vmatprep.subr.bf16.mxu0 0
    %2536 = vmatpush1.bf16.xpose.msra.mxu0 0
    %2537 = vmatprep.subr.bf16.mxu0 0
    %2538 = vmatpush1.bf16.xpose.msra.mxu0 0
    %2539 = vmatprep.subr.bf16.mxu0 0
    %2540 = vmatpush1.bf16.xpose.msra.mxu0 0
    %2541 = vmatprep.subr.bf16.mxu0 0
    %2542 = vmatpush1.bf16.xpose.msra.mxu0 0
    %2543 = vmatprep.subr.bf16.mxu0 0
    %2544 = vmatpush1.bf16.xpose.msra.mxu0 0
    %2545 = vmatprep.subr.bf16.mxu0 0
    %2546 = vmatpush1.bf16.xpose.msra.mxu0 0
    %2547 = vmatprep.subr.bf16.mxu0 0
    %2548 = vmatpush1.bf16.xpose.msra.mxu0 0
    %2549 = vmatprep.subr.bf16.mxu0 0
    %2550 = vmatpush1.bf16.xpose.msra.mxu0 0
    %2551 = vmatprep.subr.bf16.mxu0 0
    %2552 = vmatpush1.bf16.xpose.msra.mxu0 0
    %2553 = vmatprep.subr.bf16.mxu0 0
    %2554 = vmatpush1.bf16.xpose.msra.mxu0 0
    %2555 = vmatprep.subr.bf16.mxu0 0
    %2556 = vmatpush1.bf16.xpose.msra.mxu0 0
    %2557 = vmatprep.subr.bf16.mxu0 0
    %2558 = vmatpush1.bf16.xpose.msra.mxu0 0
    %2559 = vmatprep.mubr.bf16.mxu0 0
    %2560 = vmatmul.mubr.bf16.gmra.mrb[0].mxu0 %v2516
    %v2561 = vpop.f32.mrb[0].mxu0
    %v2562 = vadd.f32 0.0, %v2561
    %v2563 = vpop.f32.mrb[0].mxu0
    %v2564 = vpop.f32.mrb[0].mxu0
    %v2565 = vadd.f32 0.0, %v2564
    %v2566 = vpop.f32.mrb[0].mxu0
    %2567 = vmatprep.mubr.bf16.mxu0 0
    %2568 = vmatmul.mubr.bf16.gmra.mrb[0].mxu0 %v2519
    %v2569 = vpop.f32.mrb[0].mxu0
    %v2570 = vadd.f32 0.0, %v2569
    %v2571 = vpop.f32.mrb[0].mxu0
    %v2572 = vpop.f32.mrb[0].mxu0
    %v2573 = vpop.f32.mrb[0].mxu0
    %2574 = vdwg.mxu0
    %v2575 = vmul.f32 %v2494, 0.25
    %v2576 = vmul.f32 %v2497, 0.25
    %v2577 = vmul.f32 %v2502, 0.25
    %v2578 = vmul.f32 %v2562, 0.25
    %v2579 = vmul.f32 %v2565, 0.25
    %v2580 = vmul.f32 %v2570, 0.25
    %v2581 = vadd.f32 %v2575, %v268
    %v2582 = vadd.f32 %v2576, %v268
    %v2583 = vadd.f32 %v2577, %v268
    %v2584 = vadd.f32 %v2578, %v268
    %v2585 = vadd.f32 %v2579, %v268
    %v2586 = vadd.f32 %v2580, %v268
    %v2587 = vsel %vm621, %v2581, -inf
    %2588 = vmax.xlane.f32.xlu0 %v2587
    %v2589 = vpop.xlane.xlu0 %2588
    %v2590 = vsel %vm621, %v2582, -inf
    %2591 = vmax.xlane.f32.xlu0 %v2590
    %v2592 = vpop.xlane.xlu0 %2591
    %v2593 = vsel %vm621, %v2583, -inf
    %2594 = vmax.xlane.f32.xlu0 %v2593
    %v2595 = vpop.xlane.xlu0 %2594
    %v2596 = vsel %vm621, %v2584, -inf
    %2597 = vmax.xlane.f32.xlu0 %v2596
    %v2598 = vpop.xlane.xlu0 %2597
    %v2599 = vsel %vm621, %v2585, -inf
    %2600 = vmax.xlane.f32.xlu0 %v2599
    %v2601 = vpop.xlane.xlu0 %2600
    %v2602 = vsel %vm621, %v2586, -inf
    %2603 = vmax.xlane.f32.xlu0 %v2602
    %v2604 = vpop.xlane.xlu0 %2603
    %v2605 = vsub.f32 %v2581, %v2589
    %v2606 = vsub.f32 %v2582, %v2592
    %v2607 = vsub.f32 %v2583, %v2595
    %v2608 = vsub.f32 %v2584, %v2598
    %v2609 = vsub.f32 %v2585, %v2601
    %v2610 = vsub.f32 %v2586, %v2604
    %v2611 = vmul.f32 %v2605, 1.442695
    %v2612 = vpow.pop %v2611
    %v2613 = vmul.f32 %v2606, 1.442695
    %v2614 = vpow.pop %v2613
    %v2615 = vmul.f32 %v2607, 1.442695
    %v2616 = vpow.pop %v2615
    %v2617 = vmul.f32 %v2608, 1.442695
    %v2618 = vpow.pop %v2617
    %v2619 = vmul.f32 %v2609, 1.442695
    %v2620 = vpow.pop %v2619
    %v2621 = vmul.f32 %v2610, 1.442695
    %v2622 = vpow.pop %v2621
    %v2623 = vsel %vm621, %v2612, 0.0
    %2624 = vadd.xlane.f32.xlu0 %v2623
    %v2625 = vpop.xlane.xlu0 %2624
    %v2626 = vsel %vm621, %v2614, 0.0
    %2627 = vadd.xlane.f32.xlu0 %v2626
    %v2628 = vpop.xlane.xlu0 %2627
    %v2629 = vsel %vm621, %v2616, 0.0
    %2630 = vadd.xlane.f32.xlu0 %v2629
    %v2631 = vpop.xlane.xlu0 %2630
    %v2632 = vsel %vm621, %v2618, 0.0
    %2633 = vadd.xlane.f32.xlu0 %v2632
    %v2634 = vpop.xlane.xlu0 %2633
    %v2635 = vsel %vm621, %v2620, 0.0
    %2636 = vadd.xlane.f32.xlu0 %v2635
    %v2637 = vpop.xlane.xlu0 %2636
    %v2638 = vsel %vm621, %v2622, 0.0
    %2639 = vadd.xlane.f32.xlu0 %v2638
    %v2640 = vpop.xlane.xlu0 %2639
    %v2641 = vrcp.pop %v2625
    %v2642 = vrcp.pop %v2628
    %v2643 = vrcp.pop %v2631
    %v2644 = vrcp.pop %v2634
    %v2645 = vrcp.pop %v2637
    %v2646 = vrcp.pop %v2640
    %v2647 = vmul.f32 %v2612, %v2641
    %v2648 = vmul.f32 %v2614, %v2642
    %v2649 = vmul.f32 %v2616, %v2643
    %v2650 = vmul.f32 %v2618, %v2644
    %v2651 = vmul.f32 %v2620, %v2645
    %v2652 = vmul.f32 %v2622, %v2646
    %v2653 = vpack.c.bf16 %v2648, %v2647
    %v2654 = vpack.c.bf16 %v2649, %v2649
    %v2655 = vpack.c.bf16 %v2651, %v2650
    %v2656 = vpack.c.bf16 %v2652, %v2652
    %2657 = vrot.lane.b32.xlu0 %v1983, 48
    %v2658 = vpop.permute.xlu0 %2657
    %2659 = vrot.lane.b32.xlu0 %v1984, 48
    %v2660 = vpop.permute.xlu0 %2659
    %v2663 = vsel %vm621, %v2653, 0
    %v2666 = vsel %vm621, %v2654, 0
    %v2669 = vsel %vm703, %v2660, 0
    %2671 = vmatprep.subr.bf16.mxu0 0
    %2672 = vmatpush1.bf16.msra.mxu0 %v2658
    %2673 = vmatprep.subr.bf16.mxu0 0
    %2674 = vmatpush1.bf16.msra.mxu0 %v2669
    %2675 = vmatprep.subr.bf16.mxu0 0
    %2676 = vmatpush1.bf16.msra.mxu0 0
    %2677 = vmatprep.subr.bf16.mxu0 0
    %2678 = vmatpush1.bf16.msra.mxu0 0
    %2679 = vmatprep.subr.bf16.mxu0 0
    %2680 = vmatpush1.bf16.msra.mxu0 0
    %2681 = vmatprep.subr.bf16.mxu0 0
    %2682 = vmatpush1.bf16.msra.mxu0 0
    %2683 = vmatprep.subr.bf16.mxu0 0
    %2684 = vmatpush1.bf16.msra.mxu0 0
    %2685 = vmatprep.subr.bf16.mxu0 0
    %2686 = vmatpush1.bf16.msra.mxu0 0
    %2687 = vmatprep.subr.bf16.mxu0 0
    %2688 = vmatpush1.bf16.msra.mxu0 0
    %2689 = vmatprep.subr.bf16.mxu0 0
    %2690 = vmatpush1.bf16.msra.mxu0 0
    %2691 = vmatprep.subr.bf16.mxu0 0
    %2692 = vmatpush1.bf16.msra.mxu0 0
    %2693 = vmatprep.subr.bf16.mxu0 0
    %2694 = vmatpush1.bf16.msra.mxu0 0
    %2695 = vmatprep.subr.bf16.mxu0 0
    %2696 = vmatpush1.bf16.msra.mxu0 0
    %2697 = vmatprep.subr.bf16.mxu0 0
    %2698 = vmatpush1.bf16.msra.mxu0 0
    %2699 = vmatprep.subr.bf16.mxu0 0
    %2700 = vmatpush1.bf16.msra.mxu0 0
    %2701 = vmatprep.subr.bf16.mxu0 0
    %2702 = vmatpush1.bf16.msra.mxu0 0
    %2703 = vmatprep.mubr.bf16.mxu0 0
    %2704 = vmatmul.mubr.bf16.gmra.mrb[0].mxu0 %v2663
    %v2705 = vpop.f32.mrb[0].mxu0
    %v2706 = vadd.f32 0.0, %v2705
    %v2707 = vpop.f32.mrb[0].mxu0
    %v2708 = vpop.f32.mrb[0].mxu0
    %v2709 = vadd.f32 0.0, %v2708
    %v2710 = vpop.f32.mrb[0].mxu0
    %2711 = vmatprep.mubr.bf16.mxu0 0
    %2712 = vmatmul.mubr.bf16.gmra.mrb[0].mxu0 %v2666
    %v2713 = vpop.f32.mrb[0].mxu0
    %v2714 = vadd.f32 0.0, %v2713
    %v2715 = vpop.f32.mrb[0].mxu0
    %v2716 = vpop.f32.mrb[0].mxu0
    %v2717 = vpop.f32.mrb[0].mxu0
    %2718 = vdwg.mxu0
    %2719 = vrot.lane.b32.xlu0 %v1985, 48
    %v2720 = vpop.permute.xlu0 %2719
    %2721 = vrot.lane.b32.xlu0 %v1986, 48
    %v2722 = vpop.permute.xlu0 %2721
    %v2725 = vsel %vm621, %v2655, 0
    %v2728 = vsel %vm621, %v2656, 0
    %v2731 = vsel %vm703, %v2722, 0
    %2733 = vmatprep.subr.bf16.mxu0 0
    %2734 = vmatpush1.bf16.msra.mxu0 %v2720
    %2735 = vmatprep.subr.bf16.mxu0 0
    %2736 = vmatpush1.bf16.msra.mxu0 %v2731
    %2737 = vmatprep.subr.bf16.mxu0 0
    %2738 = vmatpush1.bf16.msra.mxu0 0
    %2739 = vmatprep.subr.bf16.mxu0 0
    %2740 = vmatpush1.bf16.msra.mxu0 0
    %2741 = vmatprep.subr.bf16.mxu0 0
    %2742 = vmatpush1.bf16.msra.mxu0 0
    %2743 = vmatprep.subr.bf16.mxu0 0
    %2744 = vmatpush1.bf16.msra.mxu0 0
    %2745 = vmatprep.subr.bf16.mxu0 0
    %2746 = vmatpush1.bf16.msra.mxu0 0
    %2747 = vmatprep.subr.bf16.mxu0 0
    %2748 = vmatpush1.bf16.msra.mxu0 0
    %2749 = vmatprep.subr.bf16.mxu0 0
    %2750 = vmatpush1.bf16.msra.mxu0 0
    %2751 = vmatprep.subr.bf16.mxu0 0
    %2752 = vmatpush1.bf16.msra.mxu0 0
    %2753 = vmatprep.subr.bf16.mxu0 0
    %2754 = vmatpush1.bf16.msra.mxu0 0
    %2755 = vmatprep.subr.bf16.mxu0 0
    %2756 = vmatpush1.bf16.msra.mxu0 0
    %2757 = vmatprep.subr.bf16.mxu0 0
    %2758 = vmatpush1.bf16.msra.mxu0 0
    %2759 = vmatprep.subr.bf16.mxu0 0
    %2760 = vmatpush1.bf16.msra.mxu0 0
    %2761 = vmatprep.subr.bf16.mxu0 0
    %2762 = vmatpush1.bf16.msra.mxu0 0
    %2763 = vmatprep.subr.bf16.mxu0 0
    %2764 = vmatpush1.bf16.msra.mxu0 0
    %2765 = vmatprep.mubr.bf16.mxu0 0
    %2766 = vmatmul.mubr.bf16.gmra.mrb[0].mxu0 %v2725
    %v2767 = vpop.f32.mrb[0].mxu0
    %v2768 = vadd.f32 0.0, %v2767
    %v2769 = vpop.f32.mrb[0].mxu0
    %v2770 = vpop.f32.mrb[0].mxu0
    %v2771 = vadd.f32 0.0, %v2770
    %v2772 = vpop.f32.mrb[0].mxu0
    %2773 = vmatprep.mubr.bf16.mxu0 0
    %2774 = vmatmul.mubr.bf16.gmra.mrb[0].mxu0 %v2728
    %v2775 = vpop.f32.mrb[0].mxu0
    %v2776 = vadd.f32 0.0, %v2775
    %v2777 = vpop.f32.mrb[0].mxu0
    %v2778 = vpop.f32.mrb[0].mxu0
    %v2779 = vpop.f32.mrb[0].mxu0
    %2780 = vdwg.mxu0
    %s2781 = scalar_lea.vmem %s4, 24
    %v2782 = vld [vmem:[%s2781] sm:$0xf]
    %v2783 = vld [vmem:[%s2781 + $0x4] sm:$0xf]
    %v2784 = vpack.c.bf16 %v2709, %v2706
    %v2785 = vpack.c.bf16 %v2768, %v2714
    %v2786 = vpack.c.bf16 %v2776, %v2771
    %v2789 = vunpack.c.l.b16 %v2782
    %v2790 = vunpack.c.l.b16 %v2783
    %v2791 = vpack.c.b16 %v2790, %v2789
    %v2794 = vsel %vm482, %v2784, 0
    %v2797 = vsel %vm482, %v2785, 0
    %v2800 = vsel %vm482, %v2786, 0
    %2802 = vmatprep.subr.bf16.mxu0 0
    %2803 = vmatpush1.bf16.msra.mxu0 %v2791
    %2804 = vmatprep.subr.bf16.mxu0 0
    %2805 = vmatpush1.bf16.msra.mxu0 0
    %2806 = vmatprep.subr.bf16.mxu0 0
    %2807 = vmatpush1.bf16.msra.mxu0 0
    %2808 = vmatprep.subr.bf16.mxu0 0
    %2809 = vmatpush1.bf16.msra.mxu0 0
    %2810 = vmatprep.subr.bf16.mxu0 0
    %2811 = vmatpush1.bf16.msra.mxu0 0
    %2812 = vmatprep.subr.bf16.mxu0 0
    %2813 = vmatpush1.bf16.msra.mxu0 0
    %2814 = vmatprep.subr.bf16.mxu0 0
    %2815 = vmatpush1.bf16.msra.mxu0 0
    %2816 = vmatprep.subr.bf16.mxu0 0
    %2817 = vmatpush1.bf16.msra.mxu0 0
    %2818 = vmatprep.subr.bf16.mxu0 0
    %2819 = vmatpush1.bf16.msra.mxu0 0
    %2820 = vmatprep.subr.bf16.mxu0 0
    %2821 = vmatpush1.bf16.msra.mxu0 0
    %2822 = vmatprep.subr.bf16.mxu0 0
    %2823 = vmatpush1.bf16.msra.mxu0 0
    %2824 = vmatprep.subr.bf16.mxu0 0
    %2825 = vmatpush1.bf16.msra.mxu0 0
    %2826 = vmatprep.subr.bf16.mxu0 0
    %2827 = vmatpush1.bf16.msra.mxu0 0
    %2828 = vmatprep.subr.bf16.mxu0 0
    %2829 = vmatpush1.bf16.msra.mxu0 0
    %2830 = vmatprep.subr.bf16.mxu0 0
    %2831 = vmatpush1.bf16.msra.mxu0 0
    %2832 = vmatprep.subr.bf16.mxu0 0
    %2833 = vmatpush1.bf16.msra.mxu0 0
    %2834 = vmatprep.mubr.bf16.mxu0 0
    %2835 = vmatmul.mubr.bf16.gmra.mrb[0].mxu0 %v2794
    %v2836 = vpop.f32.mrb[0].mxu0
    %v2837 = vadd.f32 0.0, %v2836
    %v2838 = vpop.f32.mrb[0].mxu0
    %v2839 = vpop.f32.mrb[0].mxu0
    %v2840 = vadd.f32 0.0, %v2839
    %v2841 = vpop.f32.mrb[0].mxu0
    %2842 = vmatprep.mubr.bf16.mxu0 0
    %2843 = vmatmul.mubr.bf16.gmra.mrb[0].mxu0 %v2797
    %v2844 = vpop.f32.mrb[0].mxu0
    %v2845 = vadd.f32 0.0, %v2844
    %v2846 = vpop.f32.mrb[0].mxu0
    %v2847 = vpop.f32.mrb[0].mxu0
    %v2848 = vadd.f32 0.0, %v2847
    %v2849 = vpop.f32.mrb[0].mxu0
    %2850 = vmatprep.mubr.bf16.mxu0 0
    %2851 = vmatmul.mubr.bf16.gmra.mrb[0].mxu0 %v2800
    %v2852 = vpop.f32.mrb[0].mxu0
    %v2853 = vadd.f32 0.0, %v2852
    %v2854 = vpop.f32.mrb[0].mxu0
    %v2855 = vpop.f32.mrb[0].mxu0
    %v2856 = vadd.f32 0.0, %v2855
    %v2857 = vpop.f32.mrb[0].mxu0
    %2858 = vdwg.mxu0
    %2865 = vrot.lane.b32.xlu0 %v2837, 32
    %v2866 = vpop.permute.xlu0 %2865
    %2867 = vrot.lane.b32.xlu0 %v2840, 32
    %v2868 = vpop.permute.xlu0 %2867
    %2869 = vrot.lane.b32.xlu0 %v2845, 32
    %v2870 = vpop.permute.xlu0 %2869
    %2871 = vrot.lane.b32.xlu0 %v2848, 32
    %v2872 = vpop.permute.xlu0 %2871
    %2873 = vrot.lane.b32.xlu0 %v2853, 32
    %v2874 = vpop.permute.xlu0 %2873
    %2875 = vrot.lane.b32.xlu0 %v2856, 32
    %v2876 = vpop.permute.xlu0 %2875
    %v2883 = vadd.f32 %v2433, %v2866
    %v2884 = vadd.f32 %v2434, %v2868
    %v2885 = vadd.f32 %v2435, %v2870
    %v2886 = vadd.f32 %v2436, %v2872
    %v2887 = vadd.f32 %v2437, %v2874
    %v2888 = vadd.f32 %v2438, %v2876
    %2895 = vrot.lane.b32.xlu0 %v2883, 96
    %v2896 = vpop.permute.xlu0 %2895
    %2897 = vrot.lane.b32.xlu0 %v2884, 96
    %v2898 = vpop.permute.xlu0 %2897
    %2899 = vrot.lane.b32.xlu0 %v2885, 96
    %v2900 = vpop.permute.xlu0 %2899
    %2901 = vrot.lane.b32.xlu0 %v2886, 96
    %v2902 = vpop.permute.xlu0 %2901
    %2903 = vrot.lane.b32.xlu0 %v2887, 96
    %v2904 = vpop.permute.xlu0 %2903
    %2905 = vrot.lane.b32.xlu0 %v2888, 96
    %v2906 = vpop.permute.xlu0 %2905
    %v2913 = vadd.f32 %v1773, %v2896
    %v2914 = vadd.f32 %v1774, %v2898
    %v2915 = vadd.f32 %v1775, %v2900
    %v2916 = vadd.f32 %v1776, %v2902
    %v2917 = vadd.f32 %v1777, %v2904
    %v2918 = vadd.f32 %v1778, %v2906
    %v2919 = vld [vmem:[%s1779 + $0x1] sm:$0x1]
    %v2920 = vsel %vm165, %v2913, 0.0
    %2921 = vadd.xlane.f32.xlu0 %v2920
    %v2922 = vpop.xlane.xlu0 %2921
    %v2923 = vsel %vm165, %v2914, 0.0
    %2924 = vadd.xlane.f32.xlu0 %v2923
    %v2925 = vpop.xlane.xlu0 %2924
    %v2926 = vsel %vm165, %v2915, 0.0
    %2927 = vadd.xlane.f32.xlu0 %v2926
    %v2928 = vpop.xlane.xlu0 %2927
    %v2929 = vsel %vm165, %v2916, 0.0
    %2930 = vadd.xlane.f32.xlu0 %v2929
    %v2931 = vpop.xlane.xlu0 %2930
    %v2932 = vsel %vm165, %v2917, 0.0
    %2933 = vadd.xlane.f32.xlu0 %v2932
    %v2934 = vpop.xlane.xlu0 %2933
    %v2935 = vsel %vm165, %v2918, 0.0
    %2936 = vadd.xlane.f32.xlu0 %v2935
    %v2937 = vpop.xlane.xlu0 %2936
    %v2938 = vmul.f32 %v2922, %v184
    %v2939 = vmul.f32 %v2925, %v184
    %v2940 = vmul.f32 %v2928, %v184
    %v2941 = vmul.f32 %v2931, %v184
    %v2942 = vmul.f32 %v2934, %v184
    %v2943 = vmul.f32 %v2937, %v184
    %v2944 = vsub.f32 %v2913, %v2938
    %v2945 = vsub.f32 %v2914, %v2939
    %v2946 = vsub.f32 %v2915, %v2940
    %v2947 = vsub.f32 %v2916, %v2941
    %v2948 = vsub.f32 %v2917, %v2942
    %v2949 = vsub.f32 %v2918, %v2943
    %v2950 = vmul.f32 %v2944, %v2944
    %v2951 = vmul.f32 %v2945, %v2945
    %v2952 = vmul.f32 %v2946, %v2946
    %v2953 = vmul.f32 %v2947, %v2947
    %v2954 = vmul.f32 %v2948, %v2948
    %v2955 = vmul.f32 %v2949, %v2949
    %v2956 = vsel %vm165, %v2950, 0.0
    %2957 = vadd.xlane.f32.xlu0 %v2956
    %v2958 = vpop.xlane.xlu0 %2957
    %v2959 = vsel %vm165, %v2951, 0.0
    %2960 = vadd.xlane.f32.xlu0 %v2959
    %v2961 = vpop.xlane.xlu0 %2960
    %v2962 = vsel %vm165, %v2952, 0.0
    %2963 = vadd.xlane.f32.xlu0 %v2962
    %v2964 = vpop.xlane.xlu0 %2963
    %v2965 = vsel %vm165, %v2953, 0.0
    %2966 = vadd.xlane.f32.xlu0 %v2965
    %v2967 = vpop.xlane.xlu0 %2966
    %v2968 = vsel %vm165, %v2954, 0.0
    %2969 = vadd.xlane.f32.xlu0 %v2968
    %v2970 = vpop.xlane.xlu0 %2969
    %v2971 = vsel %vm165, %v2955, 0.0
    %2972 = vadd.xlane.f32.xlu0 %v2971
    %v2973 = vpop.xlane.xlu0 %2972
    %v2974 = vmul.f32 %v2958, %v184
    %v2975 = vmul.f32 %v2961, %v184
    %v2976 = vmul.f32 %v2964, %v184
    %v2977 = vmul.f32 %v2967, %v184
    %v2978 = vmul.f32 %v2970, %v184
    %v2979 = vmul.f32 %v2973, %v184
    %v2980 = vadd.f32 %v2974, 1e-05
    %v2981 = vadd.f32 %v2975, 1e-05
    %v2982 = vadd.f32 %v2976, 1e-05
    %v2983 = vadd.f32 %v2977, 1e-05
    %v2984 = vadd.f32 %v2978, 1e-05
    %v2985 = vadd.f32 %v2979, 1e-05
    %v2986 = vrsqrt.pop %v2980
    %v2987 = vrsqrt.pop %v2981
    %v2988 = vrsqrt.pop %v2982
    %v2989 = vrsqrt.pop %v2983
    %v2990 = vrsqrt.pop %v2984
    %v2991 = vrsqrt.pop %v2985
    %v2992 = vmul.f32 %v2944, %v2986
    %v2993 = vmul.f32 %v2945, %v2987
    %v2994 = vmul.f32 %v2946, %v2988
    %v2995 = vmul.f32 %v2947, %v2989
    %v2996 = vmul.f32 %v2948, %v2990
    %v2997 = vmul.f32 %v2949, %v2991
    %v2999 = vlaneseq
    %v3000 = vshrl.u32 %v2999, 7
    %v3001 = vsub.s32 0, %v3000
    %v3002 = vrot.slane %v2919, %v3001
    %3003 = vrot.lane.b32.xlu0 %v3002, 64
    %v3004 = vpop.permute.xlu0 %3003
    %v3006 = vmul.f32 %v2992, %v3004
    %v3007 = vmul.f32 %v2993, %v3004
    %v3008 = vmul.f32 %v2994, %v3004
    %v3009 = vmul.f32 %v2995, %v3004
    %v3010 = vmul.f32 %v2996, %v3004
    %v3011 = vmul.f32 %v2997, %v3004
    %3012 = vrot.lane.b32.xlu0 %v3002, 32
    %v3013 = vpop.permute.xlu0 %3012
    %v3015 = vadd.f32 %v3006, %v3013
    %v3016 = vadd.f32 %v3007, %v3013
    %v3017 = vadd.f32 %v3008, %v3013
    %v3018 = vadd.f32 %v3009, %v3013
    %v3019 = vadd.f32 %v3010, %v3013
    %v3020 = vadd.f32 %v3011, %v3013
    %v3021 = vld [vmem:[%s1880] sm:$0xff]
    %v3022 = vld [vmem:[%s1880 + $0x8] sm:$0xff]
    %v3023 = vld [vmem:[%s1880 + $0x10] sm:$0xff]
    %v3024 = vld [vmem:[%s1880 + $0x18] sm:$0xff]
    %v3025 = vpack.c.bf16 %v3016, %v3015
    %v3026 = vpack.c.bf16 %v3018, %v3017
    %v3027 = vpack.c.bf16 %v3020, %v3019
    %v3028 = vld [vmem:[%s1779 + $0x2] sm:$0x1]
    %v3030 = vlaneseq
    %v3031 = vshrl.u32 %v3030, 7
    %v3032 = vsub.s32 0, %v3031
    %v3033 = vrot.slane %v3028, %v3032
    %v3039 = vunpack.c.l.b16 %v3021
    %v3040 = vunpack.c.h.b16 %v3021
    %v3041 = vunpack.c.l.b16 %v3022
    %v3042 = vunpack.c.h.b16 %v3022
    %v3043 = vunpack.c.l.b16 %v3023
    %v3044 = vunpack.c.h.b16 %v3023
    %v3045 = vunpack.c.l.b16 %v3024
    %v3046 = vunpack.c.h.b16 %v3024
    %v3047 = vpack.c.b16 %v3041, %v3039
    %v3048 = vpack.c.b16 %v3042, %v3040
    %v3049 = vpack.c.b16 %v3045, %v3043
    %v3050 = vpack.c.b16 %v3046, %v3044
    %3051 = vrot.lane.b32.xlu0 %v3047, 32
    %v3052 = vpop.permute.xlu0 %3051
    %3053 = vrot.lane.b32.xlu0 %v3048, 32
    %v3054 = vpop.permute.xlu0 %3053
    %3055 = vrot.lane.b32.xlu0 %v3049, 32
    %v3056 = vpop.permute.xlu0 %3055
    %3057 = vrot.lane.b32.xlu0 %v3050, 32
    %v3058 = vpop.permute.xlu0 %3057
    %v3059 = vsel %vm1550, %v3052, %v3054
    %v3060 = vsel %vm1550, %v3056, %v3058
    %v3064 = vsel %vm165, %v3025, 0
    %v3067 = vsel %vm165, %v3026, 0
    %v3070 = vsel %vm165, %v3027, 0
    %3072 = vmatprep.subr.bf16.mxu0 0
    %3073 = vmatpush1.bf16.msra.mxu0 %v3059
    %3074 = vmatprep.subr.bf16.mxu0 0
    %3075 = vmatpush1.bf16.msra.mxu0 %v3060
    %3076 = vmatprep.subr.bf16.mxu0 0
    %3077 = vmatpush1.bf16.msra.mxu0 0
    %3078 = vmatprep.subr.bf16.mxu0 0
    %3079 = vmatpush1.bf16.msra.mxu0 0
    %3080 = vmatprep.subr.bf16.mxu0 0
    %3081 = vmatpush1.bf16.msra.mxu0 0
    %3082 = vmatprep.subr.bf16.mxu0 0
    %3083 = vmatpush1.bf16.msra.mxu0 0
    %3084 = vmatprep.subr.bf16.mxu0 0
    %3085 = vmatpush1.bf16.msra.mxu0 0
    %3086 = vmatprep.subr.bf16.mxu0 0
    %3087 = vmatpush1.bf16.msra.mxu0 0
    %3088 = vmatprep.subr.bf16.mxu0 0
    %3089 = vmatpush1.bf16.msra.mxu0 0
    %3090 = vmatprep.subr.bf16.mxu0 0
    %3091 = vmatpush1.bf16.msra.mxu0 0
    %3092 = vmatprep.subr.bf16.mxu0 0
    %3093 = vmatpush1.bf16.msra.mxu0 0
    %3094 = vmatprep.subr.bf16.mxu0 0
    %3095 = vmatpush1.bf16.msra.mxu0 0
    %3096 = vmatprep.subr.bf16.mxu0 0
    %3097 = vmatpush1.bf16.msra.mxu0 0
    %3098 = vmatprep.subr.bf16.mxu0 0
    %3099 = vmatpush1.bf16.msra.mxu0 0
    %3100 = vmatprep.subr.bf16.mxu0 0
    %3101 = vmatpush1.bf16.msra.mxu0 0
    %3102 = vmatprep.subr.bf16.mxu0 0
    %3103 = vmatpush1.bf16.msra.mxu0 0
    %3104 = vmatprep.mubr.bf16.mxu0 0
    %3105 = vmatmul.mubr.bf16.gmra.mrb[0].mxu0 %v3064
    %v3106 = vpop.f32.mrb[0].mxu0
    %v3107 = vadd.f32 %v3033, %v3106
    %v3108 = vpop.f32.mrb[0].mxu0
    %v3109 = vpop.f32.mrb[0].mxu0
    %v3110 = vadd.f32 %v3033, %v3109
    %v3111 = vpop.f32.mrb[0].mxu0
    %3112 = vmatprep.mubr.bf16.mxu0 0
    %3113 = vmatmul.mubr.bf16.gmra.mrb[0].mxu0 %v3067
    %v3114 = vpop.f32.mrb[0].mxu0
    %v3115 = vadd.f32 %v3033, %v3114
    %v3116 = vpop.f32.mrb[0].mxu0
    %v3117 = vpop.f32.mrb[0].mxu0
    %v3118 = vadd.f32 %v3033, %v3117
    %v3119 = vpop.f32.mrb[0].mxu0
    %3120 = vmatprep.mubr.bf16.mxu0 0
    %3121 = vmatmul.mubr.bf16.gmra.mrb[0].mxu0 %v3070
    %v3122 = vpop.f32.mrb[0].mxu0
    %v3123 = vadd.f32 %v3033, %v3122
    %v3124 = vpop.f32.mrb[0].mxu0
    %v3125 = vpop.f32.mrb[0].mxu0
    %v3126 = vadd.f32 %v3033, %v3125
    %v3127 = vpop.f32.mrb[0].mxu0
    %3128 = vdwg.mxu0
    %v3129 = vmul.f32 %v3107, 1.702
    %v3130 = vmul.f32 %v3110, 1.702
    %v3131 = vmul.f32 %v3115, 1.702
    %v3132 = vmul.f32 %v3118, 1.702
    %v3133 = vmul.f32 %v3123, 1.702
    %v3134 = vmul.f32 %v3126, 1.702
    %v3135 = vxor.u32 %v3129, 2147483648
    %v3136 = vxor.u32 %v3130, 2147483648
    %v3137 = vxor.u32 %v3131, 2147483648
    %v3138 = vxor.u32 %v3132, 2147483648
    %v3139 = vxor.u32 %v3133, 2147483648
    %v3140 = vxor.u32 %v3134, 2147483648
    %v3141 = vmul.f32 %v3135, 1.442695
    %v3142 = vpow.pop %v3141
    %v3143 = vmul.f32 %v3136, 1.442695
    %v3144 = vpow.pop %v3143
    %v3145 = vmul.f32 %v3137, 1.442695
    %v3146 = vpow.pop %v3145
    %v3147 = vmul.f32 %v3138, 1.442695
    %v3148 = vpow.pop %v3147
    %v3149 = vmul.f32 %v3139, 1.442695
    %v3150 = vpow.pop %v3149
    %v3151 = vmul.f32 %v3140, 1.442695
    %v3152 = vpow.pop %v3151
    %v3153 = vadd.f32 %v3142, 1.0
    %v3154 = vadd.f32 %v3144, 1.0
    %v3155 = vadd.f32 %v3146, 1.0
    %v3156 = vadd.f32 %v3148, 1.0
    %v3157 = vadd.f32 %v3150, 1.0
    %v3158 = vadd.f32 %v3152, 1.0
    %v3159 = vrcp.pop %v3153
    %v3160 = vmul.f32 1.0, %v3159
    %v3161 = vrcp.pop %v3154
    %v3162 = vmul.f32 1.0, %v3161
    %v3163 = vrcp.pop %v3155
    %v3164 = vmul.f32 1.0, %v3163
    %v3165 = vrcp.pop %v3156
    %v3166 = vmul.f32 1.0, %v3165
    %v3167 = vrcp.pop %v3157
    %v3168 = vmul.f32 1.0, %v3167
    %v3169 = vrcp.pop %v3158
    %v3170 = vmul.f32 1.0, %v3169
    %v3171 = vmul.f32 %v3107, %v3160
    %v3172 = vmul.f32 %v3110, %v3162
    %v3173 = vmul.f32 %v3115, %v3164
    %v3174 = vmul.f32 %v3118, %v3166
    %v3175 = vmul.f32 %v3123, %v3168
    %v3176 = vmul.f32 %v3126, %v3170
    %s3177 = scalar_lea.vmem %s5, 32
    %v3178 = vld [vmem:[%s3177] sm:$0xf]
    %v3179 = vld [vmem:[%s3177 + $0x4] sm:$0xf]
    %v3180 = vld [vmem:[%s3177 + $0x8] sm:$0xf]
    %v3181 = vld [vmem:[%s3177 + $0xc] sm:$0xf]
    %v3182 = vld [vmem:[%s3177 + $0x10] sm:$0xf]
    %v3183 = vld [vmem:[%s3177 + $0x14] sm:$0xf]
    %v3184 = vld [vmem:[%s3177 + $0x18] sm:$0xf]
    %v3185 = vld [vmem:[%s3177 + $0x1c] sm:$0xf]
    %v3186 = vpack.c.bf16 %v3172, %v3171
    %v3187 = vpack.c.bf16 %v3174, %v3173
    %v3188 = vpack.c.bf16 %v3176, %v3175
    %v3197 = vunpack.c.l.b16 %v3178
    %v3198 = vunpack.c.l.b16 %v3179
    %v3199 = vunpack.c.l.b16 %v3180
    %v3200 = vunpack.c.l.b16 %v3181
    %v3201 = vunpack.c.l.b16 %v3182
    %v3202 = vunpack.c.l.b16 %v3183
    %v3203 = vunpack.c.l.b16 %v3184
    %v3204 = vunpack.c.l.b16 %v3185
    %v3205 = vpack.c.b16 %v3198, %v3197
    %v3206 = vpack.c.b16 %v3200, %v3199
    %v3207 = vpack.c.b16 %v3202, %v3201
    %v3208 = vpack.c.b16 %v3204, %v3203
    %3213 = vrot.lane.b32.xlu0 %v3033, 64
    %v3214 = vpop.permute.xlu0 %3213
    %v3217 = vsel %vm402, %v3186, 0
    %v3220 = vsel %vm402, %v3187, 0
    %v3223 = vsel %vm402, %v3188, 0
    %3225 = vmatprep.subr.bf16.mxu0 0
    %3226 = vmatpush1.bf16.msra.mxu0 %v3205
    %3227 = vmatprep.subr.bf16.mxu0 0
    %3228 = vmatpush1.bf16.msra.mxu0 %v3206
    %3229 = vmatprep.subr.bf16.mxu0 0
    %3230 = vmatpush1.bf16.msra.mxu0 %v3207
    %3231 = vmatprep.subr.bf16.mxu0 0
    %3232 = vmatpush1.bf16.msra.mxu0 %v3208
    %3233 = vmatprep.subr.bf16.mxu0 0
    %3234 = vmatpush1.bf16.msra.mxu0 0
    %3235 = vmatprep.subr.bf16.mxu0 0
    %3236 = vmatpush1.bf16.msra.mxu0 0
    %3237 = vmatprep.subr.bf16.mxu0 0
    %3238 = vmatpush1.bf16.msra.mxu0 0
    %3239 = vmatprep.subr.bf16.mxu0 0
    %3240 = vmatpush1.bf16.msra.mxu0 0
    %3241 = vmatprep.subr.bf16.mxu0 0
    %3242 = vmatpush1.bf16.msra.mxu0 0
    %3243 = vmatprep.subr.bf16.mxu0 0
    %3244 = vmatpush1.bf16.msra.mxu0 0
    %3245 = vmatprep.subr.bf16.mxu0 0
    %3246 = vmatpush1.bf16.msra.mxu0 0
    %3247 = vmatprep.subr.bf16.mxu0 0
    %3248 = vmatpush1.bf16.msra.mxu0 0
    %3249 = vmatprep.subr.bf16.mxu0 0
    %3250 = vmatpush1.bf16.msra.mxu0 0
    %3251 = vmatprep.subr.bf16.mxu0 0
    %3252 = vmatpush1.bf16.msra.mxu0 0
    %3253 = vmatprep.subr.bf16.mxu0 0
    %3254 = vmatpush1.bf16.msra.mxu0 0
    %3255 = vmatprep.subr.bf16.mxu0 0
    %3256 = vmatpush1.bf16.msra.mxu0 0
    %3257 = vmatprep.mubr.bf16.mxu0 0
    %3258 = vmatmul.mubr.bf16.gmra.mrb[0].mxu0 %v3217
    %v3259 = vpop.f32.mrb[0].mxu0
    %v3260 = vadd.f32 %v3214, %v3259
    %v3261 = vpop.f32.mrb[0].mxu0
    %v3262 = vpop.f32.mrb[0].mxu0
    %v3263 = vpop.f32.mrb[0].mxu0
    %3264 = vmatprep.mubr.bf16.mxu0 0
    %3265 = vmatmul.mubr.bf16.gmra.mrb[0].mxu0 %v3220
    %v3266 = vpop.f32.mrb[0].mxu0
    %v3267 = vpop.f32.mrb[0].mxu0
    %v3268 = vpop.f32.mrb[0].mxu0
    %v3269 = vadd.f32 %v3214, %v3268
    %v3270 = vpop.f32.mrb[0].mxu0
    %3271 = vmatprep.mubr.bf16.mxu0 0
    %3272 = vmatmul.mubr.bf16.gmra.mrb[0].mxu0 %v3223
    %v3273 = vpop.f32.mrb[0].mxu0
    %v3274 = vpop.f32.mrb[0].mxu0
    %v3275 = vpop.f32.mrb[0].mxu0
    %v3276 = vpop.f32.mrb[0].mxu0
    %3277 = vdwg.mxu0
    %v3278 = vadd.f32 %v2913, %v3260
    %v3279 = vadd.f32 %v2916, %v3269
    %v3281 = vrot.slane %v3279, 7
    %vm3283 = vcmask 1040384
    %v3284 = vsel %vm3283, %v3278, %v3281
    %vm3285 = vcmask 254976
    %v3286 = vsel %vm3285, %v3284, 0.0
    %3287 = vadd.xlane.f32.xlu0 %v3286
    %v3288 = vpop.xlane.xlu0 %3287
    %v3289 = vmul.f32 %v3288, %v184
    %v3290 = vsub.f32 %v3284, %v3289
    %v3291 = vmul.f32 %v3290, %v3290
    %v3292 = vsel %vm3285, %v3291, 0.0
    %3293 = vadd.xlane.f32.xlu0 %v3292
    %v3294 = vpop.xlane.xlu0 %3293
    %v3295 = vmul.f32 %v3294, %v184
    %v3296 = vadd.f32 %v3295, 1e-05
    %v3297 = vrsqrt.pop %v3296
    %v3298 = vmul.f32 %v3290, %v3297
    %v3299 = vlaneseq
    %v3300 = vshrl.u32 %v3299, 7
    %v3301 = vsub.s32 0, %v3300
    %v3302 = vrot.slane %v63, %v3301
    %v3303 = vmul.f32 %v3298, %v3302
    %v3304 = vlaneseq
    %v3305 = vshrl.u32 %v3304, 7
    %v3306 = vsub.s32 0, %v3305
    %v3307 = vrot.slane %v64, %v3306
    %v3308 = vadd.f32 %v3303, %v3307
    %v3309 = vld [vmem:[%s7] sm:$0xf]
    %v3310 = vld [vmem:[%s7 + $0x4] sm:$0xf]
    %v3311 = vld [vmem:[%s7 + $0x8] sm:$0xf]
    %v3312 = vld [vmem:[%s7 + $0xc] sm:$0xf]
    %v3313 = vpack.c.bf16 %v3308, %v3308
    %v3318 = vunpack.c.l.b16 %v3309
    %v3319 = vunpack.c.l.b16 %v3310
    %v3320 = vunpack.c.l.b16 %v3311
    %v3321 = vunpack.c.l.b16 %v3312
    %v3322 = vpack.c.b16 %v3319, %v3318
    %v3323 = vpack.c.b16 %v3321, %v3320
    %v3327 = vsel %vm165, %v3313, 0
    %3329 = vmatprep.subr.bf16.mxu0 0
    %3330 = vmatpush1.bf16.msra.mxu0 %v3322
    %3331 = vmatprep.subr.bf16.mxu0 0
    %3332 = vmatpush1.bf16.msra.mxu0 %v3323
    %3333 = vmatprep.subr.bf16.mxu0 0
    %3334 = vmatpush1.bf16.msra.mxu0 0
    %3335 = vmatprep.subr.bf16.mxu0 0
    %3336 = vmatpush1.bf16.msra.mxu0 0
    %3337 = vmatprep.subr.bf16.mxu0 0
    %3338 = vmatpush1.bf16.msra.mxu0 0
    %3339 = vmatprep.subr.bf16.mxu0 0
    %3340 = vmatpush1.bf16.msra.mxu0 0
    %3341 = vmatprep.subr.bf16.mxu0 0
    %3342 = vmatpush1.bf16.msra.mxu0 0
    %3343 = vmatprep.subr.bf16.mxu0 0
    %3344 = vmatpush1.bf16.msra.mxu0 0
    %3345 = vmatprep.subr.bf16.mxu0 0
    %3346 = vmatpush1.bf16.msra.mxu0 0
    %3347 = vmatprep.subr.bf16.mxu0 0
    %3348 = vmatpush1.bf16.msra.mxu0 0
    %3349 = vmatprep.subr.bf16.mxu0 0
    %3350 = vmatpush1.bf16.msra.mxu0 0
    %3351 = vmatprep.subr.bf16.mxu0 0
    %3352 = vmatpush1.bf16.msra.mxu0 0
    %3353 = vmatprep.subr.bf16.mxu0 0
    %3354 = vmatpush1.bf16.msra.mxu0 0
    %3355 = vmatprep.subr.bf16.mxu0 0
    %3356 = vmatpush1.bf16.msra.mxu0 0
    %3357 = vmatprep.subr.bf16.mxu0 0
    %3358 = vmatpush1.bf16.msra.mxu0 0
    %3359 = vmatprep.subr.bf16.mxu0 0
    %3360 = vmatpush1.bf16.msra.mxu0 0
    %3361 = vmatprep.mubr.bf16.mxu0 0
    %3362 = vmatmul.mubr.bf16.gmra.mrb[0].mxu0 %v3327
    %v3363 = vpop.f32.mrb[0].mxu0
    %v3364 = vadd.f32 0.0, %v3363
    %v3365 = vpop.f32.mrb[0].mxu0
    %v3366 = vpop.f32.mrb[0].mxu0
    %v3367 = vpop.f32.mrb[0].mxu0
    %3368 = vdwg.mxu0
    %v3369 = vld [vmem:[%s8] sm:$0xff]
    %v3370 = vld [vmem:[%s8 + $0x8] sm:$0xff]
    %v3371 = vlaneseq
    %v3372 = vshrl.u32 %v3371, 7
    %vm3373 = vcmp.le.s32.totalorder %v266, %v3372
    %v3374 = vsel %vm3373, 0.0, -1e+09
    %v3375 = vld [vmem:[%s12] sm:$0x1]
    %v3376 = vsel %vm165, %v3369, 0.0
    %3377 = vadd.xlane.f32.xlu0 %v3376
    %v3378 = vpop.xlane.xlu0 %3377
    %v3379 = vsel %vm165, %v3370, 0.0
    %3380 = vadd.xlane.f32.xlu0 %v3379
    %v3381 = vpop.xlane.xlu0 %3380
    %v3382 = vmul.f32 %v3378, %v184
    %v3383 = vmul.f32 %v3381, %v184
    %v3384 = vsub.f32 %v3369, %v3382
    %v3385 = vsub.f32 %v3370, %v3383
    %v3386 = vmul.f32 %v3384, %v3384
    %v3387 = vmul.f32 %v3385, %v3385
    %v3388 = vsel %vm165, %v3386, 0.0
    %3389 = vadd.xlane.f32.xlu0 %v3388
    %v3390 = vpop.xlane.xlu0 %3389
    %v3391 = vsel %vm165, %v3387, 0.0
    %3392 = vadd.xlane.f32.xlu0 %v3391
    %v3393 = vpop.xlane.xlu0 %3392
    %v3394 = vmul.f32 %v3390, %v184
    %v3395 = vmul.f32 %v3393, %v184
    %v3396 = vadd.f32 %v3394, 1e-05
    %v3397 = vadd.f32 %v3395, 1e-05
    %v3398 = vrsqrt.pop %v3396
    %v3399 = vrsqrt.pop %v3397
    %v3400 = vmul.f32 %v3384, %v3398
    %v3401 = vmul.f32 %v3385, %v3399
    %v3403 = vlaneseq
    %v3404 = vshrl.u32 %v3403, 7
    %v3405 = vsub.s32 0, %v3404
    %v3406 = vrot.slane %v3375, %v3405
    %v3408 = vmul.f32 %v3400, %v3406
    %v3409 = vmul.f32 %v3401, %v3406
    %3410 = vrot.lane.b32.xlu0 %v3406, 96
    %v3411 = vpop.permute.xlu0 %3410
    %v3413 = vadd.f32 %v3408, %v3411
    %v3414 = vadd.f32 %v3409, %v3411
    %v3415 = vld [vmem:[%s9] sm:$0xf]
    %v3416 = vld [vmem:[%s9 + $0x8] sm:$0xf]
    %v3417 = vld [vmem:[%s9 + $0x10] sm:$0xf]
    %v3418 = vld [vmem:[%s9 + $0x18] sm:$0xf]
    %v3419 = vpack.c.bf16 %v3414, %v3413
    %v3420 = vld [vmem:[%s12] sm:$0x3]
    %v3422 = vlaneseq
    %v3423 = vshrl.u32 %v3422, 7
    %v3424 = vsub.s32 0, %v3423
    %v3425 = vrot.slane %v3420, %v3424
    %v3426 = vlaneseq
    %v3427 = vshrl.u32 %v3426, 7
    %v3428 = vsub.s32 1, %v3427
    %v3429 = vrot.slane %v3420, %v3428
    %v3434 = vunpack.c.l.b16 %v3415
    %v3435 = vunpack.c.l.b16 %v3416
    %v3436 = vunpack.c.l.b16 %v3417
    %v3437 = vunpack.c.l.b16 %v3418
    %v3438 = vpack.c.b16 %v3435, %v3434
    %v3439 = vpack.c.b16 %v3437, %v3436
    %3442 = vrot.lane.b32.xlu0 %v3425, 64
    %v3443 = vpop.permute.xlu0 %3442
    %3444 = vrot.lane.b32.xlu0 %v3429, 64
    %v3445 = vpop.permute.xlu0 %3444
    %v3446 = vsel %vm402, %v3443, %v3445
    %v3449 = vsel %vm165, %v3419, 0
    %3451 = vmatprep.subr.bf16.mxu0 0
    %3452 = vmatpush1.bf16.msra.mxu0 %v3438
    %3453 = vmatprep.subr.bf16.mxu0 0
    %3454 = vmatpush1.bf16.msra.mxu0 %v3439
    %3455 = vmatprep.subr.bf16.mxu0 0
    %3456 = vmatpush1.bf16.msra.mxu0 0
    %3457 = vmatprep.subr.bf16.mxu0 0
    %3458 = vmatpush1.bf16.msra.mxu0 0
    %3459 = vmatprep.subr.bf16.mxu0 0
    %3460 = vmatpush1.bf16.msra.mxu0 0
    %3461 = vmatprep.subr.bf16.mxu0 0
    %3462 = vmatpush1.bf16.msra.mxu0 0
    %3463 = vmatprep.subr.bf16.mxu0 0
    %3464 = vmatpush1.bf16.msra.mxu0 0
    %3465 = vmatprep.subr.bf16.mxu0 0
    %3466 = vmatpush1.bf16.msra.mxu0 0
    %3467 = vmatprep.subr.bf16.mxu0 0
    %3468 = vmatpush1.bf16.msra.mxu0 0
    %3469 = vmatprep.subr.bf16.mxu0 0
    %3470 = vmatpush1.bf16.msra.mxu0 0
    %3471 = vmatprep.subr.bf16.mxu0 0
    %3472 = vmatpush1.bf16.msra.mxu0 0
    %3473 = vmatprep.subr.bf16.mxu0 0
    %3474 = vmatpush1.bf16.msra.mxu0 0
    %3475 = vmatprep.subr.bf16.mxu0 0
    %3476 = vmatpush1.bf16.msra.mxu0 0
    %3477 = vmatprep.subr.bf16.mxu0 0
    %3478 = vmatpush1.bf16.msra.mxu0 0
    %3479 = vmatprep.subr.bf16.mxu0 0
    %3480 = vmatpush1.bf16.msra.mxu0 0
    %3481 = vmatprep.subr.bf16.mxu0 0
    %3482 = vmatpush1.bf16.msra.mxu0 0
    %3483 = vmatprep.mubr.bf16.mxu0 0
    %3484 = vmatmul.mubr.bf16.gmra.mrb[0].mxu0 %v3449
    %v3485 = vpop.f32.mrb[0].mxu0
    %v3486 = vadd.f32 %v3446, %v3485
    %v3487 = vpop.f32.mrb[0].mxu0
    %v3488 = vpop.f32.mrb[0].mxu0
    %v3489 = vadd.f32 %v3446, %v3488
    %v3490 = vpop.f32.mrb[0].mxu0
    %3491 = vdwg.mxu0
    %v3492 = vld [vmem:[%s12 + $0x1] sm:$0x1]
    %v3493 = vpack.c.bf16 %v3486, %v3486
    %v3494 = vpack.c.bf16 %v3489, %v3489
    %3496 = vrot.lane.b32.xlu0 %v3493, 96
    %v3497 = vpop.permute.xlu0 %3496
    %v3499 = vsel %vm482, %v3493, 0
    %v3502 = vsel %vm482, %v3497, 0
    %3504 = vmatprep.subr.bf16.mxu0 0
    %3505 = vmatpush1.bf16.xpose.msra.mxu0 %v3502
    %3506 = vmatprep.subr.bf16.mxu0 0
    %3507 = vmatpush1.bf16.xpose.msra.mxu0 0
    %3508 = vmatprep.subr.bf16.mxu0 0
    %3509 = vmatpush1.bf16.xpose.msra.mxu0 0
    %3510 = vmatprep.subr.bf16.mxu0 0
    %3511 = vmatpush1.bf16.xpose.msra.mxu0 0
    %3512 = vmatprep.subr.bf16.mxu0 0
    %3513 = vmatpush1.bf16.xpose.msra.mxu0 0
    %3514 = vmatprep.subr.bf16.mxu0 0
    %3515 = vmatpush1.bf16.xpose.msra.mxu0 0
    %3516 = vmatprep.subr.bf16.mxu0 0
    %3517 = vmatpush1.bf16.xpose.msra.mxu0 0
    %3518 = vmatprep.subr.bf16.mxu0 0
    %3519 = vmatpush1.bf16.xpose.msra.mxu0 0
    %3520 = vmatprep.subr.bf16.mxu0 0
    %3521 = vmatpush1.bf16.xpose.msra.mxu0 0
    %3522 = vmatprep.subr.bf16.mxu0 0
    %3523 = vmatpush1.bf16.xpose.msra.mxu0 0
    %3524 = vmatprep.subr.bf16.mxu0 0
    %3525 = vmatpush1.bf16.xpose.msra.mxu0 0
    %3526 = vmatprep.subr.bf16.mxu0 0
    %3527 = vmatpush1.bf16.xpose.msra.mxu0 0
    %3528 = vmatprep.subr.bf16.mxu0 0
    %3529 = vmatpush1.bf16.xpose.msra.mxu0 0
    %3530 = vmatprep.subr.bf16.mxu0 0
    %3531 = vmatpush1.bf16.xpose.msra.mxu0 0
    %3532 = vmatprep.subr.bf16.mxu0 0
    %3533 = vmatpush1.bf16.xpose.msra.mxu0 0
    %3534 = vmatprep.subr.bf16.mxu0 0
    %3535 = vmatpush1.bf16.xpose.msra.mxu0 0
    %3536 = vmatprep.mubr.bf16.mxu0 0
    %3537 = vmatmul.mubr.bf16.gmra.mrb[0].mxu0 %v3499
    %v3538 = vpop.f32.mrb[0].mxu0
    %v3539 = vadd.f32 0.0, %v3538
    %v3540 = vpop.f32.mrb[0].mxu0
    %v3541 = vpop.f32.mrb[0].mxu0
    %v3542 = vpop.f32.mrb[0].mxu0
    %3543 = vdwg.mxu0
    %3545 = vrot.lane.b32.xlu0 %v3494, 96
    %v3546 = vpop.permute.xlu0 %3545
    %v3548 = vsel %vm482, %v3494, 0
    %v3551 = vsel %vm482, %v3546, 0
    %3553 = vmatprep.subr.bf16.mxu0 0
    %3554 = vmatpush1.bf16.xpose.msra.mxu0 %v3551
    %3555 = vmatprep.subr.bf16.mxu0 0
    %3556 = vmatpush1.bf16.xpose.msra.mxu0 0
    %3557 = vmatprep.subr.bf16.mxu0 0
    %3558 = vmatpush1.bf16.xpose.msra.mxu0 0
    %3559 = vmatprep.subr.bf16.mxu0 0
    %3560 = vmatpush1.bf16.xpose.msra.mxu0 0
    %3561 = vmatprep.subr.bf16.mxu0 0
    %3562 = vmatpush1.bf16.xpose.msra.mxu0 0
    %3563 = vmatprep.subr.bf16.mxu0 0
    %3564 = vmatpush1.bf16.xpose.msra.mxu0 0
    %3565 = vmatprep.subr.bf16.mxu0 0
    %3566 = vmatpush1.bf16.xpose.msra.mxu0 0
    %3567 = vmatprep.subr.bf16.mxu0 0
    %3568 = vmatpush1.bf16.xpose.msra.mxu0 0
    %3569 = vmatprep.subr.bf16.mxu0 0
    %3570 = vmatpush1.bf16.xpose.msra.mxu0 0
    %3571 = vmatprep.subr.bf16.mxu0 0
    %3572 = vmatpush1.bf16.xpose.msra.mxu0 0
    %3573 = vmatprep.subr.bf16.mxu0 0
    %3574 = vmatpush1.bf16.xpose.msra.mxu0 0
    %3575 = vmatprep.subr.bf16.mxu0 0
    %3576 = vmatpush1.bf16.xpose.msra.mxu0 0
    %3577 = vmatprep.subr.bf16.mxu0 0
    %3578 = vmatpush1.bf16.xpose.msra.mxu0 0
    %3579 = vmatprep.subr.bf16.mxu0 0
    %3580 = vmatpush1.bf16.xpose.msra.mxu0 0
    %3581 = vmatprep.subr.bf16.mxu0 0
    %3582 = vmatpush1.bf16.xpose.msra.mxu0 0
    %3583 = vmatprep.subr.bf16.mxu0 0
    %3584 = vmatpush1.bf16.xpose.msra.mxu0 0
    %3585 = vmatprep.mubr.bf16.mxu0 0
    %3586 = vmatmul.mubr.bf16.gmra.mrb[0].mxu0 %v3548
    %v3587 = vpop.f32.mrb[0].mxu0
    %v3588 = vadd.f32 0.0, %v3587
    %v3589 = vpop.f32.mrb[0].mxu0
    %v3590 = vpop.f32.mrb[0].mxu0
    %v3591 = vpop.f32.mrb[0].mxu0
    %3592 = vdwg.mxu0
    %v3593 = vmul.f32 %v3539, 0.25
    %v3594 = vmul.f32 %v3588, 0.25
    %v3595 = vadd.f32 %v3593, %v3374
    %v3596 = vadd.f32 %v3594, %v3374
    %vm3597 = vcmask 64512
    %v3598 = vsel %vm3597, %v3595, -inf
    %3599 = vmax.xlane.f32.xlu0 %v3598
    %v3600 = vpop.xlane.xlu0 %3599
    %v3601 = vsel %vm3597, %v3596, -inf
    %3602 = vmax.xlane.f32.xlu0 %v3601
    %v3603 = vpop.xlane.xlu0 %3602
    %v3604 = vsub.f32 %v3595, %v3600
    %v3605 = vsub.f32 %v3596, %v3603
    %v3606 = vmul.f32 %v3604, 1.442695
    %v3607 = vpow.pop %v3606
    %v3608 = vmul.f32 %v3605, 1.442695
    %v3609 = vpow.pop %v3608
    %v3610 = vsel %vm3597, %v3607, 0.0
    %3611 = vadd.xlane.f32.xlu0 %v3610
    %v3612 = vpop.xlane.xlu0 %3611
    %v3613 = vsel %vm3597, %v3609, 0.0
    %3614 = vadd.xlane.f32.xlu0 %v3613
    %v3615 = vpop.xlane.xlu0 %3614
    %v3616 = vrcp.pop %v3612
    %v3617 = vrcp.pop %v3615
    %v3618 = vmul.f32 %v3607, %v3616
    %v3619 = vmul.f32 %v3609, %v3617
    %v3620 = vpack.c.bf16 %v3618, %v3618
    %v3621 = vpack.c.bf16 %v3619, %v3619
    %3622 = vrot.lane.b32.xlu0 %v3493, 64
    %v3623 = vpop.permute.xlu0 %3622
    %v3625 = vsel %vm3597, %v3620, 0
    %v3628 = vsel %vm703, %v3623, 0
    %3630 = vmatprep.subr.bf16.mxu0 0
    %3631 = vmatpush1.bf16.msra.mxu0 %v3628
    %3632 = vmatprep.subr.bf16.mxu0 0
    %3633 = vmatpush1.bf16.msra.mxu0 0
    %3634 = vmatprep.subr.bf16.mxu0 0
    %3635 = vmatpush1.bf16.msra.mxu0 0
    %3636 = vmatprep.subr.bf16.mxu0 0
    %3637 = vmatpush1.bf16.msra.mxu0 0
    %3638 = vmatprep.subr.bf16.mxu0 0
    %3639 = vmatpush1.bf16.msra.mxu0 0
    %3640 = vmatprep.subr.bf16.mxu0 0
    %3641 = vmatpush1.bf16.msra.mxu0 0
    %3642 = vmatprep.subr.bf16.mxu0 0
    %3643 = vmatpush1.bf16.msra.mxu0 0
    %3644 = vmatprep.subr.bf16.mxu0 0
    %3645 = vmatpush1.bf16.msra.mxu0 0
    %3646 = vmatprep.subr.bf16.mxu0 0
    %3647 = vmatpush1.bf16.msra.mxu0 0
    %3648 = vmatprep.subr.bf16.mxu0 0
    %3649 = vmatpush1.bf16.msra.mxu0 0
    %3650 = vmatprep.subr.bf16.mxu0 0
    %3651 = vmatpush1.bf16.msra.mxu0 0
    %3652 = vmatprep.subr.bf16.mxu0 0
    %3653 = vmatpush1.bf16.msra.mxu0 0
    %3654 = vmatprep.subr.bf16.mxu0 0
    %3655 = vmatpush1.bf16.msra.mxu0 0
    %3656 = vmatprep.subr.bf16.mxu0 0
    %3657 = vmatpush1.bf16.msra.mxu0 0
    %3658 = vmatprep.subr.bf16.mxu0 0
    %3659 = vmatpush1.bf16.msra.mxu0 0
    %3660 = vmatprep.subr.bf16.mxu0 0
    %3661 = vmatpush1.bf16.msra.mxu0 0
    %3662 = vmatprep.mubr.bf16.mxu0 0
    %3663 = vmatmul.mubr.bf16.gmra.mrb[0].mxu0 %v3625
    %v3664 = vpop.f32.mrb[0].mxu0
    %v3665 = vadd.f32 0.0, %v3664
    %v3666 = vpop.f32.mrb[0].mxu0
    %v3667 = vpop.f32.mrb[0].mxu0
    %v3668 = vpop.f32.mrb[0].mxu0
    %3669 = vdwg.mxu0
    %3670 = vrot.lane.b32.xlu0 %v3494, 64
    %v3671 = vpop.permute.xlu0 %3670
    %v3673 = vsel %vm3597, %v3621, 0
    %v3676 = vsel %vm703, %v3671, 0
    %3678 = vmatprep.subr.bf16.mxu0 0
    %3679 = vmatpush1.bf16.msra.mxu0 %v3676
    %3680 = vmatprep.subr.bf16.mxu0 0
    %3681 = vmatpush1.bf16.msra.mxu0 0
    %3682 = vmatprep.subr.bf16.mxu0 0
    %3683 = vmatpush1.bf16.msra.mxu0 0
    %3684 = vmatprep.subr.bf16.mxu0 0
    %3685 = vmatpush1.bf16.msra.mxu0 0
    %3686 = vmatprep.subr.bf16.mxu0 0
    %3687 = vmatpush1.bf16.msra.mxu0 0
    %3688 = vmatprep.subr.bf16.mxu0 0
    %3689 = vmatpush1.bf16.msra.mxu0 0
    %3690 = vmatprep.subr.bf16.mxu0 0
    %3691 = vmatpush1.bf16.msra.mxu0 0
    %3692 = vmatprep.subr.bf16.mxu0 0
    %3693 = vmatpush1.bf16.msra.mxu0 0
    %3694 = vmatprep.subr.bf16.mxu0 0
    %3695 = vmatpush1.bf16.msra.mxu0 0
    %3696 = vmatprep.subr.bf16.mxu0 0
    %3697 = vmatpush1.bf16.msra.mxu0 0
    %3698 = vmatprep.subr.bf16.mxu0 0
    %3699 = vmatpush1.bf16.msra.mxu0 0
    %3700 = vmatprep.subr.bf16.mxu0 0
    %3701 = vmatpush1.bf16.msra.mxu0 0
    %3702 = vmatprep.subr.bf16.mxu0 0
    %3703 = vmatpush1.bf16.msra.mxu0 0
    %3704 = vmatprep.subr.bf16.mxu0 0
    %3705 = vmatpush1.bf16.msra.mxu0 0
    %3706 = vmatprep.subr.bf16.mxu0 0
    %3707 = vmatpush1.bf16.msra.mxu0 0
    %3708 = vmatprep.subr.bf16.mxu0 0
    %3709 = vmatpush1.bf16.msra.mxu0 0
    %3710 = vmatprep.mubr.bf16.mxu0 0
    %3711 = vmatmul.mubr.bf16.gmra.mrb[0].mxu0 %v3673
    %v3712 = vpop.f32.mrb[0].mxu0
    %v3713 = vadd.f32 0.0, %v3712
    %v3714 = vpop.f32.mrb[0].mxu0
    %v3715 = vpop.f32.mrb[0].mxu0
    %v3716 = vpop.f32.mrb[0].mxu0
    %3717 = vdwg.mxu0
    %v3718 = vld [vmem:[%s10] sm:$0xf]
    %v3719 = vld [vmem:[%s10 + $0x4] sm:$0xf]
    %v3720 = vpack.c.bf16 %v3713, %v3665
    %v3723 = vunpack.c.l.b16 %v3718
    %v3724 = vunpack.c.l.b16 %v3719
    %v3725 = vpack.c.b16 %v3724, %v3723
    %v3728 = vsel %vm482, %v3720, 0
    %3730 = vmatprep.subr.bf16.mxu0 0
    %3731 = vmatpush1.bf16.msra.mxu0 %v3725
    %3732 = vmatprep.subr.bf16.mxu0 0
    %3733 = vmatpush1.bf16.msra.mxu0 0
    %3734 = vmatprep.subr.bf16.mxu0 0
    %3735 = vmatpush1.bf16.msra.mxu0 0
    %3736 = vmatprep.subr.bf16.mxu0 0
    %3737 = vmatpush1.bf16.msra.mxu0 0
    %3738 = vmatprep.subr.bf16.mxu0 0
    %3739 = vmatpush1.bf16.msra.mxu0 0
    %3740 = vmatprep.subr.bf16.mxu0 0
    %3741 = vmatpush1.bf16.msra.mxu0 0
    %3742 = vmatprep.subr.bf16.mxu0 0
    %3743 = vmatpush1.bf16.msra.mxu0 0
    %3744 = vmatprep.subr.bf16.mxu0 0
    %3745 = vmatpush1.bf16.msra.mxu0 0
    %3746 = vmatprep.subr.bf16.mxu0 0
    %3747 = vmatpush1.bf16.msra.mxu0 0
    %3748 = vmatprep.subr.bf16.mxu0 0
    %3749 = vmatpush1.bf16.msra.mxu0 0
    %3750 = vmatprep.subr.bf16.mxu0 0
    %3751 = vmatpush1.bf16.msra.mxu0 0
    %3752 = vmatprep.subr.bf16.mxu0 0
    %3753 = vmatpush1.bf16.msra.mxu0 0
    %3754 = vmatprep.subr.bf16.mxu0 0
    %3755 = vmatpush1.bf16.msra.mxu0 0
    %3756 = vmatprep.subr.bf16.mxu0 0
    %3757 = vmatpush1.bf16.msra.mxu0 0
    %3758 = vmatprep.subr.bf16.mxu0 0
    %3759 = vmatpush1.bf16.msra.mxu0 0
    %3760 = vmatprep.subr.bf16.mxu0 0
    %3761 = vmatpush1.bf16.msra.mxu0 0
    %3762 = vmatprep.mubr.bf16.mxu0 0
    %3763 = vmatmul.mubr.bf16.gmra.mrb[0].mxu0 %v3728
    %v3764 = vpop.f32.mrb[0].mxu0
    %v3765 = vadd.f32 0.0, %v3764
    %v3766 = vpop.f32.mrb[0].mxu0
    %v3767 = vpop.f32.mrb[0].mxu0
    %v3768 = vadd.f32 0.0, %v3767
    %v3769 = vpop.f32.mrb[0].mxu0
    %3770 = vdwg.mxu0
    %v3772 = vlaneseq
    %v3773 = vshrl.u32 %v3772, 7
    %v3774 = vsub.s32 0, %v3773
    %v3775 = vrot.slane %v3492, %v3774
    %3779 = vrot.lane.b32.xlu0 %v3765, 32
    %v3780 = vpop.permute.xlu0 %3779
    %3781 = vrot.lane.b32.xlu0 %v3768, 32
    %v3782 = vpop.permute.xlu0 %3781
    %v3785 = vadd.f32 %v3775, %v3780
    %v3786 = vadd.f32 %v3775, %v3782
    %3787 = vrot.lane.b32.xlu0 %v3493, 112
    %v3788 = vpop.permute.xlu0 %3787
    %3789 = vrot.lane.b32.xlu0 %v3493, 80
    %v3790 = vpop.permute.xlu0 %3789
    %v3792 = vsel %vm482, %v3788, 0
    %v3795 = vsel %vm482, %v3790, 0
    %3797 = vmatprep.subr.bf16.mxu0 0
    %3798 = vmatpush1.bf16.xpose.msra.mxu0 %v3795
    %3799 = vmatprep.subr.bf16.mxu0 0
    %3800 = vmatpush1.bf16.xpose.msra.mxu0 0
    %3801 = vmatprep.subr.bf16.mxu0 0
    %3802 = vmatpush1.bf16.xpose.msra.mxu0 0
    %3803 = vmatprep.subr.bf16.mxu0 0
    %3804 = vmatpush1.bf16.xpose.msra.mxu0 0
    %3805 = vmatprep.subr.bf16.mxu0 0
    %3806 = vmatpush1.bf16.xpose.msra.mxu0 0
    %3807 = vmatprep.subr.bf16.mxu0 0
    %3808 = vmatpush1.bf16.xpose.msra.mxu0 0
    %3809 = vmatprep.subr.bf16.mxu0 0
    %3810 = vmatpush1.bf16.xpose.msra.mxu0 0
    %3811 = vmatprep.subr.bf16.mxu0 0
    %3812 = vmatpush1.bf16.xpose.msra.mxu0 0
    %3813 = vmatprep.subr.bf16.mxu0 0
    %3814 = vmatpush1.bf16.xpose.msra.mxu0 0
    %3815 = vmatprep.subr.bf16.mxu0 0
    %3816 = vmatpush1.bf16.xpose.msra.mxu0 0
    %3817 = vmatprep.subr.bf16.mxu0 0
    %3818 = vmatpush1.bf16.xpose.msra.mxu0 0
    %3819 = vmatprep.subr.bf16.mxu0 0
    %3820 = vmatpush1.bf16.xpose.msra.mxu0 0
    %3821 = vmatprep.subr.bf16.mxu0 0
    %3822 = vmatpush1.bf16.xpose.msra.mxu0 0
    %3823 = vmatprep.subr.bf16.mxu0 0
    %3824 = vmatpush1.bf16.xpose.msra.mxu0 0
    %3825 = vmatprep.subr.bf16.mxu0 0
    %3826 = vmatpush1.bf16.xpose.msra.mxu0 0
    %3827 = vmatprep.subr.bf16.mxu0 0
    %3828 = vmatpush1.bf16.xpose.msra.mxu0 0
    %3829 = vmatprep.mubr.bf16.mxu0 0
    %3830 = vmatmul.mubr.bf16.gmra.mrb[0].mxu0 %v3792
    %v3831 = vpop.f32.mrb[0].mxu0
    %v3832 = vadd.f32 0.0, %v3831
    %v3833 = vpop.f32.mrb[0].mxu0
    %v3834 = vpop.f32.mrb[0].mxu0
    %v3835 = vpop.f32.mrb[0].mxu0
    %3836 = vdwg.mxu0
    %3837 = vrot.lane.b32.xlu0 %v3494, 112
    %v3838 = vpop.permute.xlu0 %3837
    %3839 = vrot.lane.b32.xlu0 %v3494, 80
    %v3840 = vpop.permute.xlu0 %3839
    %v3842 = vsel %vm482, %v3838, 0
    %v3845 = vsel %vm482, %v3840, 0
    %3847 = vmatprep.subr.bf16.mxu0 0
    %3848 = vmatpush1.bf16.xpose.msra.mxu0 %v3845
    %3849 = vmatprep.subr.bf16.mxu0 0
    %3850 = vmatpush1.bf16.xpose.msra.mxu0 0
    %3851 = vmatprep.subr.bf16.mxu0 0
    %3852 = vmatpush1.bf16.xpose.msra.mxu0 0
    %3853 = vmatprep.subr.bf16.mxu0 0
    %3854 = vmatpush1.bf16.xpose.msra.mxu0 0
    %3855 = vmatprep.subr.bf16.mxu0 0
    %3856 = vmatpush1.bf16.xpose.msra.mxu0 0
    %3857 = vmatprep.subr.bf16.mxu0 0
    %3858 = vmatpush1.bf16.xpose.msra.mxu0 0
    %3859 = vmatprep.subr.bf16.mxu0 0
    %3860 = vmatpush1.bf16.xpose.msra.mxu0 0
    %3861 = vmatprep.subr.bf16.mxu0 0
    %3862 = vmatpush1.bf16.xpose.msra.mxu0 0
    %3863 = vmatprep.subr.bf16.mxu0 0
    %3864 = vmatpush1.bf16.xpose.msra.mxu0 0
    %3865 = vmatprep.subr.bf16.mxu0 0
    %3866 = vmatpush1.bf16.xpose.msra.mxu0 0
    %3867 = vmatprep.subr.bf16.mxu0 0
    %3868 = vmatpush1.bf16.xpose.msra.mxu0 0
    %3869 = vmatprep.subr.bf16.mxu0 0
    %3870 = vmatpush1.bf16.xpose.msra.mxu0 0
    %3871 = vmatprep.subr.bf16.mxu0 0
    %3872 = vmatpush1.bf16.xpose.msra.mxu0 0
    %3873 = vmatprep.subr.bf16.mxu0 0
    %3874 = vmatpush1.bf16.xpose.msra.mxu0 0
    %3875 = vmatprep.subr.bf16.mxu0 0
    %3876 = vmatpush1.bf16.xpose.msra.mxu0 0
    %3877 = vmatprep.subr.bf16.mxu0 0
    %3878 = vmatpush1.bf16.xpose.msra.mxu0 0
    %3879 = vmatprep.mubr.bf16.mxu0 0
    %3880 = vmatmul.mubr.bf16.gmra.mrb[0].mxu0 %v3842
    %v3881 = vpop.f32.mrb[0].mxu0
    %v3882 = vadd.f32 0.0, %v3881
    %v3883 = vpop.f32.mrb[0].mxu0
    %v3884 = vpop.f32.mrb[0].mxu0
    %v3885 = vpop.f32.mrb[0].mxu0
    %3886 = vdwg.mxu0
    %v3887 = vmul.f32 %v3832, 0.25
    %v3888 = vmul.f32 %v3882, 0.25
    %v3889 = vadd.f32 %v3887, %v3374
    %v3890 = vadd.f32 %v3888, %v3374
    %v3891 = vsel %vm3597, %v3889, -inf
    %3892 = vmax.xlane.f32.xlu0 %v3891
    %v3893 = vpop.xlane.xlu0 %3892
    %v3894 = vsel %vm3597, %v3890, -inf
    %3895 = vmax.xlane.f32.xlu0 %v3894
    %v3896 = vpop.xlane.xlu0 %3895
    %v3897 = vsub.f32 %v3889, %v3893
    %v3898 = vsub.f32 %v3890, %v3896
    %v3899 = vmul.f32 %v3897, 1.442695
    %v3900 = vpow.pop %v3899
    %v3901 = vmul.f32 %v3898, 1.442695
    %v3902 = vpow.pop %v3901
    %v3903 = vsel %vm3597, %v3900, 0.0
    %3904 = vadd.xlane.f32.xlu0 %v3903
    %v3905 = vpop.xlane.xlu0 %3904
    %v3906 = vsel %vm3597, %v3902, 0.0
    %3907 = vadd.xlane.f32.xlu0 %v3906
    %v3908 = vpop.xlane.xlu0 %3907
    %v3909 = vrcp.pop %v3905
    %v3910 = vrcp.pop %v3908
    %v3911 = vmul.f32 %v3900, %v3909
    %v3912 = vmul.f32 %v3902, %v3910
    %v3913 = vpack.c.bf16 %v3911, %v3911
    %v3914 = vpack.c.bf16 %v3912, %v3912
    %3915 = vrot.lane.b32.xlu0 %v3493, 48
    %v3916 = vpop.permute.xlu0 %3915
    %v3918 = vsel %vm3597, %v3913, 0
    %v3921 = vsel %vm703, %v3916, 0
    %3923 = vmatprep.subr.bf16.mxu0 0
    %3924 = vmatpush1.bf16.msra.mxu0 %v3921
    %3925 = vmatprep.subr.bf16.mxu0 0
    %3926 = vmatpush1.bf16.msra.mxu0 0
    %3927 = vmatprep.subr.bf16.mxu0 0
    %3928 = vmatpush1.bf16.msra.mxu0 0
    %3929 = vmatprep.subr.bf16.mxu0 0
    %3930 = vmatpush1.bf16.msra.mxu0 0
    %3931 = vmatprep.subr.bf16.mxu0 0
    %3932 = vmatpush1.bf16.msra.mxu0 0
    %3933 = vmatprep.subr.bf16.mxu0 0
    %3934 = vmatpush1.bf16.msra.mxu0 0
    %3935 = vmatprep.subr.bf16.mxu0 0
    %3936 = vmatpush1.bf16.msra.mxu0 0
    %3937 = vmatprep.subr.bf16.mxu0 0
    %3938 = vmatpush1.bf16.msra.mxu0 0
    %3939 = vmatprep.subr.bf16.mxu0 0
    %3940 = vmatpush1.bf16.msra.mxu0 0
    %3941 = vmatprep.subr.bf16.mxu0 0
    %3942 = vmatpush1.bf16.msra.mxu0 0
    %3943 = vmatprep.subr.bf16.mxu0 0
    %3944 = vmatpush1.bf16.msra.mxu0 0
    %3945 = vmatprep.subr.bf16.mxu0 0
    %3946 = vmatpush1.bf16.msra.mxu0 0
    %3947 = vmatprep.subr.bf16.mxu0 0
    %3948 = vmatpush1.bf16.msra.mxu0 0
    %3949 = vmatprep.subr.bf16.mxu0 0
    %3950 = vmatpush1.bf16.msra.mxu0 0
    %3951 = vmatprep.subr.bf16.mxu0 0
    %3952 = vmatpush1.bf16.msra.mxu0 0
    %3953 = vmatprep.subr.bf16.mxu0 0
    %3954 = vmatpush1.bf16.msra.mxu0 0
    %3955 = vmatprep.mubr.bf16.mxu0 0
    %3956 = vmatmul.mubr.bf16.gmra.mrb[0].mxu0 %v3918
    %v3957 = vpop.f32.mrb[0].mxu0
    %v3958 = vadd.f32 0.0, %v3957
    %v3959 = vpop.f32.mrb[0].mxu0
    %v3960 = vpop.f32.mrb[0].mxu0
    %v3961 = vpop.f32.mrb[0].mxu0
    %3962 = vdwg.mxu0
    %3963 = vrot.lane.b32.xlu0 %v3494, 48
    %v3964 = vpop.permute.xlu0 %3963
    %v3966 = vsel %vm3597, %v3914, 0
    %v3969 = vsel %vm703, %v3964, 0
    %3971 = vmatprep.subr.bf16.mxu0 0
    %3972 = vmatpush1.bf16.msra.mxu0 %v3969
    %3973 = vmatprep.subr.bf16.mxu0 0
    %3974 = vmatpush1.bf16.msra.mxu0 0
    %3975 = vmatprep.subr.bf16.mxu0 0
    %3976 = vmatpush1.bf16.msra.mxu0 0
    %3977 = vmatprep.subr.bf16.mxu0 0
    %3978 = vmatpush1.bf16.msra.mxu0 0
    %3979 = vmatprep.subr.bf16.mxu0 0
    %3980 = vmatpush1.bf16.msra.mxu0 0
    %3981 = vmatprep.subr.bf16.mxu0 0
    %3982 = vmatpush1.bf16.msra.mxu0 0
    %3983 = vmatprep.subr.bf16.mxu0 0
    %3984 = vmatpush1.bf16.msra.mxu0 0
    %3985 = vmatprep.subr.bf16.mxu0 0
    %3986 = vmatpush1.bf16.msra.mxu0 0
    %3987 = vmatprep.subr.bf16.mxu0 0
    %3988 = vmatpush1.bf16.msra.mxu0 0
    %3989 = vmatprep.subr.bf16.mxu0 0
    %3990 = vmatpush1.bf16.msra.mxu0 0
    %3991 = vmatprep.subr.bf16.mxu0 0
    %3992 = vmatpush1.bf16.msra.mxu0 0
    %3993 = vmatprep.subr.bf16.mxu0 0
    %3994 = vmatpush1.bf16.msra.mxu0 0
    %3995 = vmatprep.subr.bf16.mxu0 0
    %3996 = vmatpush1.bf16.msra.mxu0 0
    %3997 = vmatprep.subr.bf16.mxu0 0
    %3998 = vmatpush1.bf16.msra.mxu0 0
    %3999 = vmatprep.subr.bf16.mxu0 0
    %4000 = vmatpush1.bf16.msra.mxu0 0
    %4001 = vmatprep.subr.bf16.mxu0 0
    %4002 = vmatpush1.bf16.msra.mxu0 0
    %4003 = vmatprep.mubr.bf16.mxu0 0
    %4004 = vmatmul.mubr.bf16.gmra.mrb[0].mxu0 %v3966
    %v4005 = vpop.f32.mrb[0].mxu0
    %v4006 = vadd.f32 0.0, %v4005
    %v4007 = vpop.f32.mrb[0].mxu0
    %v4008 = vpop.f32.mrb[0].mxu0
    %v4009 = vpop.f32.mrb[0].mxu0
    %4010 = vdwg.mxu0
    %s4011 = scalar_lea.vmem %s10, 8
    %v4012 = vld [vmem:[%s4011] sm:$0xf]
    %v4013 = vld [vmem:[%s4011 + $0x4] sm:$0xf]
    %v4014 = vpack.c.bf16 %v4006, %v3958
    %v4017 = vunpack.c.l.b16 %v4012
    %v4018 = vunpack.c.l.b16 %v4013
    %v4019 = vpack.c.b16 %v4018, %v4017
    %v4022 = vsel %vm482, %v4014, 0
    %4024 = vmatprep.subr.bf16.mxu0 0
    %4025 = vmatpush1.bf16.msra.mxu0 %v4019
    %4026 = vmatprep.subr.bf16.mxu0 0
    %4027 = vmatpush1.bf16.msra.mxu0 0
    %4028 = vmatprep.subr.bf16.mxu0 0
    %4029 = vmatpush1.bf16.msra.mxu0 0
    %4030 = vmatprep.subr.bf16.mxu0 0
    %4031 = vmatpush1.bf16.msra.mxu0 0
    %4032 = vmatprep.subr.bf16.mxu0 0
    %4033 = vmatpush1.bf16.msra.mxu0 0
    %4034 = vmatprep.subr.bf16.mxu0 0
    %4035 = vmatpush1.bf16.msra.mxu0 0
    %4036 = vmatprep.subr.bf16.mxu0 0
    %4037 = vmatpush1.bf16.msra.mxu0 0
    %4038 = vmatprep.subr.bf16.mxu0 0
    %4039 = vmatpush1.bf16.msra.mxu0 0
    %4040 = vmatprep.subr.bf16.mxu0 0
    %4041 = vmatpush1.bf16.msra.mxu0 0
    %4042 = vmatprep.subr.bf16.mxu0 0
    %4043 = vmatpush1.bf16.msra.mxu0 0
    %4044 = vmatprep.subr.bf16.mxu0 0
    %4045 = vmatpush1.bf16.msra.mxu0 0
    %4046 = vmatprep.subr.bf16.mxu0 0
    %4047 = vmatpush1.bf16.msra.mxu0 0
    %4048 = vmatprep.subr.bf16.mxu0 0
    %4049 = vmatpush1.bf16.msra.mxu0 0
    %4050 = vmatprep.subr.bf16.mxu0 0
    %4051 = vmatpush1.bf16.msra.mxu0 0
    %4052 = vmatprep.subr.bf16.mxu0 0
    %4053 = vmatpush1.bf16.msra.mxu0 0
    %4054 = vmatprep.subr.bf16.mxu0 0
    %4055 = vmatpush1.bf16.msra.mxu0 0
    %4056 = vmatprep.mubr.bf16.mxu0 0
    %4057 = vmatmul.mubr.bf16.gmra.mrb[0].mxu0 %v4022
    %v4058 = vpop.f32.mrb[0].mxu0
    %v4059 = vadd.f32 0.0, %v4058
    %v4060 = vpop.f32.mrb[0].mxu0
    %v4061 = vpop.f32.mrb[0].mxu0
    %v4062 = vadd.f32 0.0, %v4061
    %v4063 = vpop.f32.mrb[0].mxu0
    %4064 = vdwg.mxu0
    %4067 = vrot.lane.b32.xlu0 %v4059, 32
    %v4068 = vpop.permute.xlu0 %4067
    %4069 = vrot.lane.b32.xlu0 %v4062, 32
    %v4070 = vpop.permute.xlu0 %4069
    %v4073 = vadd.f32 %v3785, %v4068
    %v4074 = vadd.f32 %v3786, %v4070
    %4077 = vrot.lane.b32.xlu0 %v4073, 96
    %v4078 = vpop.permute.xlu0 %4077
    %4079 = vrot.lane.b32.xlu0 %v4074, 96
    %v4080 = vpop.permute.xlu0 %4079
    %v4083 = vadd.f32 %v3369, %v4078
    %v4084 = vadd.f32 %v3370, %v4080
    %v4085 = vld [vmem:[%s12 + $0x1] sm:$0x1]
    %v4086 = vsel %vm165, %v4083, 0.0
    %4087 = vadd.xlane.f32.xlu0 %v4086
    %v4088 = vpop.xlane.xlu0 %4087
    %v4089 = vsel %vm165, %v4084, 0.0
    %4090 = vadd.xlane.f32.xlu0 %v4089
    %v4091 = vpop.xlane.xlu0 %4090
    %v4092 = vmul.f32 %v4088, %v184
    %v4093 = vmul.f32 %v4091, %v184
    %v4094 = vsub.f32 %v4083, %v4092
    %v4095 = vsub.f32 %v4084, %v4093
    %v4096 = vmul.f32 %v4094, %v4094
    %v4097 = vmul.f32 %v4095, %v4095
    %v4098 = vsel %vm165, %v4096, 0.0
    %4099 = vadd.xlane.f32.xlu0 %v4098
    %v4100 = vpop.xlane.xlu0 %4099
    %v4101 = vsel %vm165, %v4097, 0.0
    %4102 = vadd.xlane.f32.xlu0 %v4101
    %v4103 = vpop.xlane.xlu0 %4102
    %v4104 = vmul.f32 %v4100, %v184
    %v4105 = vmul.f32 %v4103, %v184
    %v4106 = vadd.f32 %v4104, 1e-05
    %v4107 = vadd.f32 %v4105, 1e-05
    %v4108 = vrsqrt.pop %v4106
    %v4109 = vrsqrt.pop %v4107
    %v4110 = vmul.f32 %v4094, %v4108
    %v4111 = vmul.f32 %v4095, %v4109
    %v4113 = vlaneseq
    %v4114 = vshrl.u32 %v4113, 7
    %v4115 = vsub.s32 0, %v4114
    %v4116 = vrot.slane %v4085, %v4115
    %4117 = vrot.lane.b32.xlu0 %v4116, 64
    %v4118 = vpop.permute.xlu0 %4117
    %v4120 = vmul.f32 %v4110, %v4118
    %v4121 = vmul.f32 %v4111, %v4118
    %4122 = vrot.lane.b32.xlu0 %v4116, 32
    %v4123 = vpop.permute.xlu0 %4122
    %v4125 = vadd.f32 %v4120, %v4123
    %v4126 = vadd.f32 %v4121, %v4123
    %v4127 = vld [vmem:[%s9] sm:$0xff]
    %v4128 = vld [vmem:[%s9 + $0x8] sm:$0xff]
    %v4129 = vld [vmem:[%s9 + $0x10] sm:$0xff]
    %v4130 = vld [vmem:[%s9 + $0x18] sm:$0xff]
    %v4131 = vpack.c.bf16 %v4126, %v4125
    %v4132 = vld [vmem:[%s12 + $0x2] sm:$0x1]
    %v4134 = vlaneseq
    %v4135 = vshrl.u32 %v4134, 7
    %v4136 = vsub.s32 0, %v4135
    %v4137 = vrot.slane %v4132, %v4136
    %v4143 = vunpack.c.l.b16 %v4127
    %v4144 = vunpack.c.h.b16 %v4127
    %v4145 = vunpack.c.l.b16 %v4128
    %v4146 = vunpack.c.h.b16 %v4128
    %v4147 = vunpack.c.l.b16 %v4129
    %v4148 = vunpack.c.h.b16 %v4129
    %v4149 = vunpack.c.l.b16 %v4130
    %v4150 = vunpack.c.h.b16 %v4130
    %v4151 = vpack.c.b16 %v4145, %v4143
    %v4152 = vpack.c.b16 %v4146, %v4144
    %v4153 = vpack.c.b16 %v4149, %v4147
    %v4154 = vpack.c.b16 %v4150, %v4148
    %4155 = vrot.lane.b32.xlu0 %v4151, 32
    %v4156 = vpop.permute.xlu0 %4155
    %4157 = vrot.lane.b32.xlu0 %v4152, 32
    %v4158 = vpop.permute.xlu0 %4157
    %4159 = vrot.lane.b32.xlu0 %v4153, 32
    %v4160 = vpop.permute.xlu0 %4159
    %4161 = vrot.lane.b32.xlu0 %v4154, 32
    %v4162 = vpop.permute.xlu0 %4161
    %v4163 = vsel %vm1550, %v4156, %v4158
    %v4164 = vsel %vm1550, %v4160, %v4162
    %v4168 = vsel %vm165, %v4131, 0
    %4170 = vmatprep.subr.bf16.mxu0 0
    %4171 = vmatpush1.bf16.msra.mxu0 %v4163
    %4172 = vmatprep.subr.bf16.mxu0 0
    %4173 = vmatpush1.bf16.msra.mxu0 %v4164
    %4174 = vmatprep.subr.bf16.mxu0 0
    %4175 = vmatpush1.bf16.msra.mxu0 0
    %4176 = vmatprep.subr.bf16.mxu0 0
    %4177 = vmatpush1.bf16.msra.mxu0 0
    %4178 = vmatprep.subr.bf16.mxu0 0
    %4179 = vmatpush1.bf16.msra.mxu0 0
    %4180 = vmatprep.subr.bf16.mxu0 0
    %4181 = vmatpush1.bf16.msra.mxu0 0
    %4182 = vmatprep.subr.bf16.mxu0 0
    %4183 = vmatpush1.bf16.msra.mxu0 0
    %4184 = vmatprep.subr.bf16.mxu0 0
    %4185 = vmatpush1.bf16.msra.mxu0 0
    %4186 = vmatprep.subr.bf16.mxu0 0
    %4187 = vmatpush1.bf16.msra.mxu0 0
    %4188 = vmatprep.subr.bf16.mxu0 0
    %4189 = vmatpush1.bf16.msra.mxu0 0
    %4190 = vmatprep.subr.bf16.mxu0 0
    %4191 = vmatpush1.bf16.msra.mxu0 0
    %4192 = vmatprep.subr.bf16.mxu0 0
    %4193 = vmatpush1.bf16.msra.mxu0 0
    %4194 = vmatprep.subr.bf16.mxu0 0
    %4195 = vmatpush1.bf16.msra.mxu0 0
    %4196 = vmatprep.subr.bf16.mxu0 0
    %4197 = vmatpush1.bf16.msra.mxu0 0
    %4198 = vmatprep.subr.bf16.mxu0 0
    %4199 = vmatpush1.bf16.msra.mxu0 0
    %4200 = vmatprep.subr.bf16.mxu0 0
    %4201 = vmatpush1.bf16.msra.mxu0 0
    %4202 = vmatprep.mubr.bf16.mxu0 0
    %4203 = vmatmul.mubr.bf16.gmra.mrb[0].mxu0 %v4168
    %v4204 = vpop.f32.mrb[0].mxu0
    %v4205 = vadd.f32 %v4137, %v4204
    %v4206 = vpop.f32.mrb[0].mxu0
    %v4207 = vpop.f32.mrb[0].mxu0
    %v4208 = vadd.f32 %v4137, %v4207
    %v4209 = vpop.f32.mrb[0].mxu0
    %4210 = vdwg.mxu0
    %v4211 = vmul.f32 %v4205, 1.702
    %v4212 = vmul.f32 %v4208, 1.702
    %v4213 = vxor.u32 %v4211, 2147483648
    %v4214 = vxor.u32 %v4212, 2147483648
    %v4215 = vmul.f32 %v4213, 1.442695
    %v4216 = vpow.pop %v4215
    %v4217 = vmul.f32 %v4214, 1.442695
    %v4218 = vpow.pop %v4217
    %v4219 = vadd.f32 %v4216, 1.0
    %v4220 = vadd.f32 %v4218, 1.0
    %v4221 = vrcp.pop %v4219
    %v4222 = vmul.f32 1.0, %v4221
    %v4223 = vrcp.pop %v4220
    %v4224 = vmul.f32 1.0, %v4223
    %v4225 = vmul.f32 %v4205, %v4222
    %v4226 = vmul.f32 %v4208, %v4224
    %v4227 = vld [vmem:[%s11] sm:$0xf]
    %v4228 = vld [vmem:[%s11 + $0x4] sm:$0xf]
    %v4229 = vld [vmem:[%s11 + $0x8] sm:$0xf]
    %v4230 = vld [vmem:[%s11 + $0xc] sm:$0xf]
    %v4231 = vld [vmem:[%s11 + $0x10] sm:$0xf]
    %v4232 = vld [vmem:[%s11 + $0x14] sm:$0xf]
    %v4233 = vld [vmem:[%s11 + $0x18] sm:$0xf]
    %v4234 = vld [vmem:[%s11 + $0x1c] sm:$0xf]
    %v4235 = vpack.c.bf16 %v4226, %v4225
    %v4244 = vunpack.c.l.b16 %v4227
    %v4245 = vunpack.c.l.b16 %v4228
    %v4246 = vunpack.c.l.b16 %v4229
    %v4247 = vunpack.c.l.b16 %v4230
    %v4248 = vunpack.c.l.b16 %v4231
    %v4249 = vunpack.c.l.b16 %v4232
    %v4250 = vunpack.c.l.b16 %v4233
    %v4251 = vunpack.c.l.b16 %v4234
    %v4252 = vpack.c.b16 %v4245, %v4244
    %v4253 = vpack.c.b16 %v4247, %v4246
    %v4254 = vpack.c.b16 %v4249, %v4248
    %v4255 = vpack.c.b16 %v4251, %v4250
    %4260 = vrot.lane.b32.xlu0 %v4137, 64
    %v4261 = vpop.permute.xlu0 %4260
    %v4264 = vsel %vm402, %v4235, 0
    %4266 = vmatprep.subr.bf16.mxu0 0
    %4267 = vmatpush1.bf16.msra.mxu0 %v4252
    %4268 = vmatprep.subr.bf16.mxu0 0
    %4269 = vmatpush1.bf16.msra.mxu0 %v4253
    %4270 = vmatprep.subr.bf16.mxu0 0
    %4271 = vmatpush1.bf16.msra.mxu0 %v4254
    %4272 = vmatprep.subr.bf16.mxu0 0
    %4273 = vmatpush1.bf16.msra.mxu0 %v4255
    %4274 = vmatprep.subr.bf16.mxu0 0
    %4275 = vmatpush1.bf16.msra.mxu0 0
    %4276 = vmatprep.subr.bf16.mxu0 0
    %4277 = vmatpush1.bf16.msra.mxu0 0
    %4278 = vmatprep.subr.bf16.mxu0 0
    %4279 = vmatpush1.bf16.msra.mxu0 0
    %4280 = vmatprep.subr.bf16.mxu0 0
    %4281 = vmatpush1.bf16.msra.mxu0 0
    %4282 = vmatprep.subr.bf16.mxu0 0
    %4283 = vmatpush1.bf16.msra.mxu0 0
    %4284 = vmatprep.subr.bf16.mxu0 0
    %4285 = vmatpush1.bf16.msra.mxu0 0
    %4286 = vmatprep.subr.bf16.mxu0 0
    %4287 = vmatpush1.bf16.msra.mxu0 0
    %4288 = vmatprep.subr.bf16.mxu0 0
    %4289 = vmatpush1.bf16.msra.mxu0 0
    %4290 = vmatprep.subr.bf16.mxu0 0
    %4291 = vmatpush1.bf16.msra.mxu0 0
    %4292 = vmatprep.subr.bf16.mxu0 0
    %4293 = vmatpush1.bf16.msra.mxu0 0
    %4294 = vmatprep.subr.bf16.mxu0 0
    %4295 = vmatpush1.bf16.msra.mxu0 0
    %4296 = vmatprep.subr.bf16.mxu0 0
    %4297 = vmatpush1.bf16.msra.mxu0 0
    %4298 = vmatprep.mubr.bf16.mxu0 0
    %4299 = vmatmul.mubr.bf16.gmra.mrb[0].mxu0 %v4264
    %v4300 = vpop.f32.mrb[0].mxu0
    %v4301 = vadd.f32 %v4261, %v4300
    %v4302 = vpop.f32.mrb[0].mxu0
    %v4303 = vpop.f32.mrb[0].mxu0
    %v4304 = vadd.f32 %v4261, %v4303
    %v4305 = vpop.f32.mrb[0].mxu0
    %4306 = vdwg.mxu0
    %v4307 = vadd.f32 %v4083, %v4301
    %v4308 = vadd.f32 %v4084, %v4304
    %s4309 = scalar_lea.vmem %s12, 3
    %v4310 = vld [vmem:[%s4309] sm:$0x1]
    %v4311 = vsel %vm165, %v4307, 0.0
    %4312 = vadd.xlane.f32.xlu0 %v4311
    %v4313 = vpop.xlane.xlu0 %4312
    %v4314 = vsel %vm165, %v4308, 0.0
    %4315 = vadd.xlane.f32.xlu0 %v4314
    %v4316 = vpop.xlane.xlu0 %4315
    %v4317 = vmul.f32 %v4313, %v184
    %v4318 = vmul.f32 %v4316, %v184
    %v4319 = vsub.f32 %v4307, %v4317
    %v4320 = vsub.f32 %v4308, %v4318
    %v4321 = vmul.f32 %v4319, %v4319
    %v4322 = vmul.f32 %v4320, %v4320
    %v4323 = vsel %vm165, %v4321, 0.0
    %4324 = vadd.xlane.f32.xlu0 %v4323
    %v4325 = vpop.xlane.xlu0 %4324
    %v4326 = vsel %vm165, %v4322, 0.0
    %4327 = vadd.xlane.f32.xlu0 %v4326
    %v4328 = vpop.xlane.xlu0 %4327
    %v4329 = vmul.f32 %v4325, %v184
    %v4330 = vmul.f32 %v4328, %v184
    %v4331 = vadd.f32 %v4329, 1e-05
    %v4332 = vadd.f32 %v4330, 1e-05
    %v4333 = vrsqrt.pop %v4331
    %v4334 = vrsqrt.pop %v4332
    %v4335 = vmul.f32 %v4319, %v4333
    %v4336 = vmul.f32 %v4320, %v4334
    %v4338 = vlaneseq
    %v4339 = vshrl.u32 %v4338, 7
    %v4340 = vsub.s32 0, %v4339
    %v4341 = vrot.slane %v4310, %v4340
    %v4343 = vmul.f32 %v4335, %v4341
    %v4344 = vmul.f32 %v4336, %v4341
    %4345 = vrot.lane.b32.xlu0 %v4341, 96
    %v4346 = vpop.permute.xlu0 %4345
    %v4348 = vadd.f32 %v4343, %v4346
    %v4349 = vadd.f32 %v4344, %v4346
    %s4350 = scalar_lea.vmem %s9, 32
    %v4351 = vld [vmem:[%s4350] sm:$0xf]
    %v4352 = vld [vmem:[%s4350 + $0x8] sm:$0xf]
    %v4353 = vld [vmem:[%s4350 + $0x10] sm:$0xf]
    %v4354 = vld [vmem:[%s4350 + $0x18] sm:$0xf]
    %v4355 = vpack.c.bf16 %v4349, %v4348
    %v4356 = vld [vmem:[%s4309] sm:$0x3]
    %v4358 = vlaneseq
    %v4359 = vshrl.u32 %v4358, 7
    %v4360 = vsub.s32 0, %v4359
    %v4361 = vrot.slane %v4356, %v4360
    %v4362 = vlaneseq
    %v4363 = vshrl.u32 %v4362, 7
    %v4364 = vsub.s32 1, %v4363
    %v4365 = vrot.slane %v4356, %v4364
    %v4370 = vunpack.c.l.b16 %v4351
    %v4371 = vunpack.c.l.b16 %v4352
    %v4372 = vunpack.c.l.b16 %v4353
    %v4373 = vunpack.c.l.b16 %v4354
    %v4374 = vpack.c.b16 %v4371, %v4370
    %v4375 = vpack.c.b16 %v4373, %v4372
    %4378 = vrot.lane.b32.xlu0 %v4361, 64
    %v4379 = vpop.permute.xlu0 %4378
    %4380 = vrot.lane.b32.xlu0 %v4365, 64
    %v4381 = vpop.permute.xlu0 %4380
    %v4382 = vsel %vm402, %v4379, %v4381
    %v4385 = vsel %vm165, %v4355, 0
    %4387 = vmatprep.subr.bf16.mxu0 0
    %4388 = vmatpush1.bf16.msra.mxu0 %v4374
    %4389 = vmatprep.subr.bf16.mxu0 0
    %4390 = vmatpush1.bf16.msra.mxu0 %v4375
    %4391 = vmatprep.subr.bf16.mxu0 0
    %4392 = vmatpush1.bf16.msra.mxu0 0
    %4393 = vmatprep.subr.bf16.mxu0 0
    %4394 = vmatpush1.bf16.msra.mxu0 0
    %4395 = vmatprep.subr.bf16.mxu0 0
    %4396 = vmatpush1.bf16.msra.mxu0 0
    %4397 = vmatprep.subr.bf16.mxu0 0
    %4398 = vmatpush1.bf16.msra.mxu0 0
    %4399 = vmatprep.subr.bf16.mxu0 0
    %4400 = vmatpush1.bf16.msra.mxu0 0
    %4401 = vmatprep.subr.bf16.mxu0 0
    %4402 = vmatpush1.bf16.msra.mxu0 0
    %4403 = vmatprep.subr.bf16.mxu0 0
    %4404 = vmatpush1.bf16.msra.mxu0 0
    %4405 = vmatprep.subr.bf16.mxu0 0
    %4406 = vmatpush1.bf16.msra.mxu0 0
    %4407 = vmatprep.subr.bf16.mxu0 0
    %4408 = vmatpush1.bf16.msra.mxu0 0
    %4409 = vmatprep.subr.bf16.mxu0 0
    %4410 = vmatpush1.bf16.msra.mxu0 0
    %4411 = vmatprep.subr.bf16.mxu0 0
    %4412 = vmatpush1.bf16.msra.mxu0 0
    %4413 = vmatprep.subr.bf16.mxu0 0
    %4414 = vmatpush1.bf16.msra.mxu0 0
    %4415 = vmatprep.subr.bf16.mxu0 0
    %4416 = vmatpush1.bf16.msra.mxu0 0
    %4417 = vmatprep.subr.bf16.mxu0 0
    %4418 = vmatpush1.bf16.msra.mxu0 0
    %4419 = vmatprep.mubr.bf16.mxu0 0
    %4420 = vmatmul.mubr.bf16.gmra.mrb[0].mxu0 %v4385
    %v4421 = vpop.f32.mrb[0].mxu0
    %v4422 = vadd.f32 %v4382, %v4421
    %v4423 = vpop.f32.mrb[0].mxu0
    %v4424 = vpop.f32.mrb[0].mxu0
    %v4425 = vadd.f32 %v4382, %v4424
    %v4426 = vpop.f32.mrb[0].mxu0
    %4427 = vdwg.mxu0
    %v4428 = vld [vmem:[%s4309 + $0x1] sm:$0x1]
    %v4429 = vpack.c.bf16 %v4422, %v4422
    %v4430 = vpack.c.bf16 %v4425, %v4425
    %4432 = vrot.lane.b32.xlu0 %v4429, 96
    %v4433 = vpop.permute.xlu0 %4432
    %v4435 = vsel %vm482, %v4429, 0
    %v4438 = vsel %vm482, %v4433, 0
    %4440 = vmatprep.subr.bf16.mxu0 0
    %4441 = vmatpush1.bf16.xpose.msra.mxu0 %v4438
    %4442 = vmatprep.subr.bf16.mxu0 0
    %4443 = vmatpush1.bf16.xpose.msra.mxu0 0
    %4444 = vmatprep.subr.bf16.mxu0 0
    %4445 = vmatpush1.bf16.xpose.msra.mxu0 0
    %4446 = vmatprep.subr.bf16.mxu0 0
    %4447 = vmatpush1.bf16.xpose.msra.mxu0 0
    %4448 = vmatprep.subr.bf16.mxu0 0
    %4449 = vmatpush1.bf16.xpose.msra.mxu0 0
    %4450 = vmatprep.subr.bf16.mxu0 0
    %4451 = vmatpush1.bf16.xpose.msra.mxu0 0
    %4452 = vmatprep.subr.bf16.mxu0 0
    %4453 = vmatpush1.bf16.xpose.msra.mxu0 0
    %4454 = vmatprep.subr.bf16.mxu0 0
    %4455 = vmatpush1.bf16.xpose.msra.mxu0 0
    %4456 = vmatprep.subr.bf16.mxu0 0
    %4457 = vmatpush1.bf16.xpose.msra.mxu0 0
    %4458 = vmatprep.subr.bf16.mxu0 0
    %4459 = vmatpush1.bf16.xpose.msra.mxu0 0
    %4460 = vmatprep.subr.bf16.mxu0 0
    %4461 = vmatpush1.bf16.xpose.msra.mxu0 0
    %4462 = vmatprep.subr.bf16.mxu0 0
    %4463 = vmatpush1.bf16.xpose.msra.mxu0 0
    %4464 = vmatprep.subr.bf16.mxu0 0
    %4465 = vmatpush1.bf16.xpose.msra.mxu0 0
    %4466 = vmatprep.subr.bf16.mxu0 0
    %4467 = vmatpush1.bf16.xpose.msra.mxu0 0
    %4468 = vmatprep.subr.bf16.mxu0 0
    %4469 = vmatpush1.bf16.xpose.msra.mxu0 0
    %4470 = vmatprep.subr.bf16.mxu0 0
    %4471 = vmatpush1.bf16.xpose.msra.mxu0 0
    %4472 = vmatprep.mubr.bf16.mxu0 0
    %4473 = vmatmul.mubr.bf16.gmra.mrb[0].mxu0 %v4435
    %v4474 = vpop.f32.mrb[0].mxu0
    %v4475 = vadd.f32 0.0, %v4474
    %v4476 = vpop.f32.mrb[0].mxu0
    %v4477 = vpop.f32.mrb[0].mxu0
    %v4478 = vpop.f32.mrb[0].mxu0
    %4479 = vdwg.mxu0
    %4481 = vrot.lane.b32.xlu0 %v4430, 96
    %v4482 = vpop.permute.xlu0 %4481
    %v4484 = vsel %vm482, %v4430, 0
    %v4487 = vsel %vm482, %v4482, 0
    %4489 = vmatprep.subr.bf16.mxu0 0
    %4490 = vmatpush1.bf16.xpose.msra.mxu0 %v4487
    %4491 = vmatprep.subr.bf16.mxu0 0
    %4492 = vmatpush1.bf16.xpose.msra.mxu0 0
    %4493 = vmatprep.subr.bf16.mxu0 0
    %4494 = vmatpush1.bf16.xpose.msra.mxu0 0
    %4495 = vmatprep.subr.bf16.mxu0 0
    %4496 = vmatpush1.bf16.xpose.msra.mxu0 0
    %4497 = vmatprep.subr.bf16.mxu0 0
    %4498 = vmatpush1.bf16.xpose.msra.mxu0 0
    %4499 = vmatprep.subr.bf16.mxu0 0
    %4500 = vmatpush1.bf16.xpose.msra.mxu0 0
    %4501 = vmatprep.subr.bf16.mxu0 0
    %4502 = vmatpush1.bf16.xpose.msra.mxu0 0
    %4503 = vmatprep.subr.bf16.mxu0 0
    %4504 = vmatpush1.bf16.xpose.msra.mxu0 0
    %4505 = vmatprep.subr.bf16.mxu0 0
    %4506 = vmatpush1.bf16.xpose.msra.mxu0 0
    %4507 = vmatprep.subr.bf16.mxu0 0
    %4508 = vmatpush1.bf16.xpose.msra.mxu0 0
    %4509 = vmatprep.subr.bf16.mxu0 0
    %4510 = vmatpush1.bf16.xpose.msra.mxu0 0
    %4511 = vmatprep.subr.bf16.mxu0 0
    %4512 = vmatpush1.bf16.xpose.msra.mxu0 0
    %4513 = vmatprep.subr.bf16.mxu0 0
    %4514 = vmatpush1.bf16.xpose.msra.mxu0 0
    %4515 = vmatprep.subr.bf16.mxu0 0
    %4516 = vmatpush1.bf16.xpose.msra.mxu0 0
    %4517 = vmatprep.subr.bf16.mxu0 0
    %4518 = vmatpush1.bf16.xpose.msra.mxu0 0
    %4519 = vmatprep.subr.bf16.mxu0 0
    %4520 = vmatpush1.bf16.xpose.msra.mxu0 0
    %4521 = vmatprep.mubr.bf16.mxu0 0
    %4522 = vmatmul.mubr.bf16.gmra.mrb[0].mxu0 %v4484
    %v4523 = vpop.f32.mrb[0].mxu0
    %v4524 = vadd.f32 0.0, %v4523
    %v4525 = vpop.f32.mrb[0].mxu0
    %v4526 = vpop.f32.mrb[0].mxu0
    %v4527 = vpop.f32.mrb[0].mxu0
    %4528 = vdwg.mxu0
    %v4529 = vmul.f32 %v4475, 0.25
    %v4530 = vmul.f32 %v4524, 0.25
    %v4531 = vadd.f32 %v4529, %v3374
    %v4532 = vadd.f32 %v4530, %v3374
    %v4533 = vsel %vm3597, %v4531, -inf
    %4534 = vmax.xlane.f32.xlu0 %v4533
    %v4535 = vpop.xlane.xlu0 %4534
    %v4536 = vsel %vm3597, %v4532, -inf
    %4537 = vmax.xlane.f32.xlu0 %v4536
    %v4538 = vpop.xlane.xlu0 %4537
    %v4539 = vsub.f32 %v4531, %v4535
    %v4540 = vsub.f32 %v4532, %v4538
    %v4541 = vmul.f32 %v4539, 1.442695
    %v4542 = vpow.pop %v4541
    %v4543 = vmul.f32 %v4540, 1.442695
    %v4544 = vpow.pop %v4543
    %v4545 = vsel %vm3597, %v4542, 0.0
    %4546 = vadd.xlane.f32.xlu0 %v4545
    %v4547 = vpop.xlane.xlu0 %4546
    %v4548 = vsel %vm3597, %v4544, 0.0
    %4549 = vadd.xlane.f32.xlu0 %v4548
    %v4550 = vpop.xlane.xlu0 %4549
    %v4551 = vrcp.pop %v4547
    %v4552 = vrcp.pop %v4550
    %v4553 = vmul.f32 %v4542, %v4551
    %v4554 = vmul.f32 %v4544, %v4552
    %v4555 = vpack.c.bf16 %v4553, %v4553
    %v4556 = vpack.c.bf16 %v4554, %v4554
    %4557 = vrot.lane.b32.xlu0 %v4429, 64
    %v4558 = vpop.permute.xlu0 %4557
    %v4560 = vsel %vm3597, %v4555, 0
    %v4563 = vsel %vm703, %v4558, 0
    %4565 = vmatprep.subr.bf16.mxu0 0
    %4566 = vmatpush1.bf16.msra.mxu0 %v4563
    %4567 = vmatprep.subr.bf16.mxu0 0
    %4568 = vmatpush1.bf16.msra.mxu0 0
    %4569 = vmatprep.subr.bf16.mxu0 0
    %4570 = vmatpush1.bf16.msra.mxu0 0
    %4571 = vmatprep.subr.bf16.mxu0 0
    %4572 = vmatpush1.bf16.msra.mxu0 0
    %4573 = vmatprep.subr.bf16.mxu0 0
    %4574 = vmatpush1.bf16.msra.mxu0 0
    %4575 = vmatprep.subr.bf16.mxu0 0
    %4576 = vmatpush1.bf16.msra.mxu0 0
    %4577 = vmatprep.subr.bf16.mxu0 0
    %4578 = vmatpush1.bf16.msra.mxu0 0
    %4579 = vmatprep.subr.bf16.mxu0 0
    %4580 = vmatpush1.bf16.msra.mxu0 0
    %4581 = vmatprep.subr.bf16.mxu0 0
    %4582 = vmatpush1.bf16.msra.mxu0 0
    %4583 = vmatprep.subr.bf16.mxu0 0
    %4584 = vmatpush1.bf16.msra.mxu0 0
    %4585 = vmatprep.subr.bf16.mxu0 0
    %4586 = vmatpush1.bf16.msra.mxu0 0
    %4587 = vmatprep.subr.bf16.mxu0 0
    %4588 = vmatpush1.bf16.msra.mxu0 0
    %4589 = vmatprep.subr.bf16.mxu0 0
    %4590 = vmatpush1.bf16.msra.mxu0 0
    %4591 = vmatprep.subr.bf16.mxu0 0
    %4592 = vmatpush1.bf16.msra.mxu0 0
    %4593 = vmatprep.subr.bf16.mxu0 0
    %4594 = vmatpush1.bf16.msra.mxu0 0
    %4595 = vmatprep.subr.bf16.mxu0 0
    %4596 = vmatpush1.bf16.msra.mxu0 0
    %4597 = vmatprep.mubr.bf16.mxu0 0
    %4598 = vmatmul.mubr.bf16.gmra.mrb[0].mxu0 %v4560
    %v4599 = vpop.f32.mrb[0].mxu0
    %v4600 = vadd.f32 0.0, %v4599
    %v4601 = vpop.f32.mrb[0].mxu0
    %v4602 = vpop.f32.mrb[0].mxu0
    %v4603 = vpop.f32.mrb[0].mxu0
    %4604 = vdwg.mxu0
    %4605 = vrot.lane.b32.xlu0 %v4430, 64
    %v4606 = vpop.permute.xlu0 %4605
    %v4608 = vsel %vm3597, %v4556, 0
    %v4611 = vsel %vm703, %v4606, 0
    %4613 = vmatprep.subr.bf16.mxu0 0
    %4614 = vmatpush1.bf16.msra.mxu0 %v4611
    %4615 = vmatprep.subr.bf16.mxu0 0
    %4616 = vmatpush1.bf16.msra.mxu0 0
    %4617 = vmatprep.subr.bf16.mxu0 0
    %4618 = vmatpush1.bf16.msra.mxu0 0
    %4619 = vmatprep.subr.bf16.mxu0 0
    %4620 = vmatpush1.bf16.msra.mxu0 0
    %4621 = vmatprep.subr.bf16.mxu0 0
    %4622 = vmatpush1.bf16.msra.mxu0 0
    %4623 = vmatprep.subr.bf16.mxu0 0
    %4624 = vmatpush1.bf16.msra.mxu0 0
    %4625 = vmatprep.subr.bf16.mxu0 0
    %4626 = vmatpush1.bf16.msra.mxu0 0
    %4627 = vmatprep.subr.bf16.mxu0 0
    %4628 = vmatpush1.bf16.msra.mxu0 0
    %4629 = vmatprep.subr.bf16.mxu0 0
    %4630 = vmatpush1.bf16.msra.mxu0 0
    %4631 = vmatprep.subr.bf16.mxu0 0
    %4632 = vmatpush1.bf16.msra.mxu0 0
    %4633 = vmatprep.subr.bf16.mxu0 0
    %4634 = vmatpush1.bf16.msra.mxu0 0
    %4635 = vmatprep.subr.bf16.mxu0 0
    %4636 = vmatpush1.bf16.msra.mxu0 0
    %4637 = vmatprep.subr.bf16.mxu0 0
    %4638 = vmatpush1.bf16.msra.mxu0 0
    %4639 = vmatprep.subr.bf16.mxu0 0
    %4640 = vmatpush1.bf16.msra.mxu0 0
    %4641 = vmatprep.subr.bf16.mxu0 0
    %4642 = vmatpush1.bf16.msra.mxu0 0
    %4643 = vmatprep.subr.bf16.mxu0 0
    %4644 = vmatpush1.bf16.msra.mxu0 0
    %4645 = vmatprep.mubr.bf16.mxu0 0
    %4646 = vmatmul.mubr.bf16.gmra.mrb[0].mxu0 %v4608
    %v4647 = vpop.f32.mrb[0].mxu0
    %v4648 = vadd.f32 0.0, %v4647
    %v4649 = vpop.f32.mrb[0].mxu0
    %v4650 = vpop.f32.mrb[0].mxu0
    %v4651 = vpop.f32.mrb[0].mxu0
    %4652 = vdwg.mxu0
    %s4653 = scalar_lea.vmem %s10, 16
    %v4654 = vld [vmem:[%s4653] sm:$0xf]
    %v4655 = vld [vmem:[%s4653 + $0x4] sm:$0xf]
    %v4656 = vpack.c.bf16 %v4648, %v4600
    %v4659 = vunpack.c.l.b16 %v4654
    %v4660 = vunpack.c.l.b16 %v4655
    %v4661 = vpack.c.b16 %v4660, %v4659
    %v4664 = vsel %vm482, %v4656, 0
    %4666 = vmatprep.subr.bf16.mxu0 0
    %4667 = vmatpush1.bf16.msra.mxu0 %v4661
    %4668 = vmatprep.subr.bf16.mxu0 0
    %4669 = vmatpush1.bf16.msra.mxu0 0
    %4670 = vmatprep.subr.bf16.mxu0 0
    %4671 = vmatpush1.bf16.msra.mxu0 0
    %4672 = vmatprep.subr.bf16.mxu0 0
    %4673 = vmatpush1.bf16.msra.mxu0 0
    %4674 = vmatprep.subr.bf16.mxu0 0
    %4675 = vmatpush1.bf16.msra.mxu0 0
    %4676 = vmatprep.subr.bf16.mxu0 0
    %4677 = vmatpush1.bf16.msra.mxu0 0
    %4678 = vmatprep.subr.bf16.mxu0 0
    %4679 = vmatpush1.bf16.msra.mxu0 0
    %4680 = vmatprep.subr.bf16.mxu0 0
    %4681 = vmatpush1.bf16.msra.mxu0 0
    %4682 = vmatprep.subr.bf16.mxu0 0
    %4683 = vmatpush1.bf16.msra.mxu0 0
    %4684 = vmatprep.subr.bf16.mxu0 0
    %4685 = vmatpush1.bf16.msra.mxu0 0
    %4686 = vmatprep.subr.bf16.mxu0 0
    %4687 = vmatpush1.bf16.msra.mxu0 0
    %4688 = vmatprep.subr.bf16.mxu0 0
    %4689 = vmatpush1.bf16.msra.mxu0 0
    %4690 = vmatprep.subr.bf16.mxu0 0
    %4691 = vmatpush1.bf16.msra.mxu0 0
    %4692 = vmatprep.subr.bf16.mxu0 0
    %4693 = vmatpush1.bf16.msra.mxu0 0
    %4694 = vmatprep.subr.bf16.mxu0 0
    %4695 = vmatpush1.bf16.msra.mxu0 0
    %4696 = vmatprep.subr.bf16.mxu0 0
    %4697 = vmatpush1.bf16.msra.mxu0 0
    %4698 = vmatprep.mubr.bf16.mxu0 0
    %4699 = vmatmul.mubr.bf16.gmra.mrb[0].mxu0 %v4664
    %v4700 = vpop.f32.mrb[0].mxu0
    %v4701 = vadd.f32 0.0, %v4700
    %v4702 = vpop.f32.mrb[0].mxu0
    %v4703 = vpop.f32.mrb[0].mxu0
    %v4704 = vadd.f32 0.0, %v4703
    %v4705 = vpop.f32.mrb[0].mxu0
    %4706 = vdwg.mxu0
    %v4708 = vlaneseq
    %v4709 = vshrl.u32 %v4708, 7
    %v4710 = vsub.s32 0, %v4709
    %v4711 = vrot.slane %v4428, %v4710
    %4715 = vrot.lane.b32.xlu0 %v4701, 32
    %v4716 = vpop.permute.xlu0 %4715
    %4717 = vrot.lane.b32.xlu0 %v4704, 32
    %v4718 = vpop.permute.xlu0 %4717
    %v4721 = vadd.f32 %v4711, %v4716
    %v4722 = vadd.f32 %v4711, %v4718
    %4723 = vrot.lane.b32.xlu0 %v4429, 112
    %v4724 = vpop.permute.xlu0 %4723
    %4725 = vrot.lane.b32.xlu0 %v4429, 80
    %v4726 = vpop.permute.xlu0 %4725
    %v4728 = vsel %vm482, %v4724, 0
    %v4731 = vsel %vm482, %v4726, 0
    %4733 = vmatprep.subr.bf16.mxu0 0
    %4734 = vmatpush1.bf16.xpose.msra.mxu0 %v4731
    %4735 = vmatprep.subr.bf16.mxu0 0
    %4736 = vmatpush1.bf16.xpose.msra.mxu0 0
    %4737 = vmatprep.subr.bf16.mxu0 0
    %4738 = vmatpush1.bf16.xpose.msra.mxu0 0
    %4739 = vmatprep.subr.bf16.mxu0 0
    %4740 = vmatpush1.bf16.xpose.msra.mxu0 0
    %4741 = vmatprep.subr.bf16.mxu0 0
    %4742 = vmatpush1.bf16.xpose.msra.mxu0 0
    %4743 = vmatprep.subr.bf16.mxu0 0
    %4744 = vmatpush1.bf16.xpose.msra.mxu0 0
    %4745 = vmatprep.subr.bf16.mxu0 0
    %4746 = vmatpush1.bf16.xpose.msra.mxu0 0
    %4747 = vmatprep.subr.bf16.mxu0 0
    %4748 = vmatpush1.bf16.xpose.msra.mxu0 0
    %4749 = vmatprep.subr.bf16.mxu0 0
    %4750 = vmatpush1.bf16.xpose.msra.mxu0 0
    %4751 = vmatprep.subr.bf16.mxu0 0
    %4752 = vmatpush1.bf16.xpose.msra.mxu0 0
    %4753 = vmatprep.subr.bf16.mxu0 0
    %4754 = vmatpush1.bf16.xpose.msra.mxu0 0
    %4755 = vmatprep.subr.bf16.mxu0 0
    %4756 = vmatpush1.bf16.xpose.msra.mxu0 0
    %4757 = vmatprep.subr.bf16.mxu0 0
    %4758 = vmatpush1.bf16.xpose.msra.mxu0 0
    %4759 = vmatprep.subr.bf16.mxu0 0
    %4760 = vmatpush1.bf16.xpose.msra.mxu0 0
    %4761 = vmatprep.subr.bf16.mxu0 0
    %4762 = vmatpush1.bf16.xpose.msra.mxu0 0
    %4763 = vmatprep.subr.bf16.mxu0 0
    %4764 = vmatpush1.bf16.xpose.msra.mxu0 0
    %4765 = vmatprep.mubr.bf16.mxu0 0
    %4766 = vmatmul.mubr.bf16.gmra.mrb[0].mxu0 %v4728
    %v4767 = vpop.f32.mrb[0].mxu0
    %v4768 = vadd.f32 0.0, %v4767
    %v4769 = vpop.f32.mrb[0].mxu0
    %v4770 = vpop.f32.mrb[0].mxu0
    %v4771 = vpop.f32.mrb[0].mxu0
    %4772 = vdwg.mxu0
    %4773 = vrot.lane.b32.xlu0 %v4430, 112
    %v4774 = vpop.permute.xlu0 %4773
    %4775 = vrot.lane.b32.xlu0 %v4430, 80
    %v4776 = vpop.permute.xlu0 %4775
    %v4778 = vsel %vm482, %v4774, 0
    %v4781 = vsel %vm482, %v4776, 0
    %4783 = vmatprep.subr.bf16.mxu0 0
    %4784 = vmatpush1.bf16.xpose.msra.mxu0 %v4781
    %4785 = vmatprep.subr.bf16.mxu0 0
    %4786 = vmatpush1.bf16.xpose.msra.mxu0 0
    %4787 = vmatprep.subr.bf16.mxu0 0
    %4788 = vmatpush1.bf16.xpose.msra.mxu0 0
    %4789 = vmatprep.subr.bf16.mxu0 0
    %4790 = vmatpush1.bf16.xpose.msra.mxu0 0
    %4791 = vmatprep.subr.bf16.mxu0 0
    %4792 = vmatpush1.bf16.xpose.msra.mxu0 0
    %4793 = vmatprep.subr.bf16.mxu0 0
    %4794 = vmatpush1.bf16.xpose.msra.mxu0 0
    %4795 = vmatprep.subr.bf16.mxu0 0
    %4796 = vmatpush1.bf16.xpose.msra.mxu0 0
    %4797 = vmatprep.subr.bf16.mxu0 0
    %4798 = vmatpush1.bf16.xpose.msra.mxu0 0
    %4799 = vmatprep.subr.bf16.mxu0 0
    %4800 = vmatpush1.bf16.xpose.msra.mxu0 0
    %4801 = vmatprep.subr.bf16.mxu0 0
    %4802 = vmatpush1.bf16.xpose.msra.mxu0 0
    %4803 = vmatprep.subr.bf16.mxu0 0
    %4804 = vmatpush1.bf16.xpose.msra.mxu0 0
    %4805 = vmatprep.subr.bf16.mxu0 0
    %4806 = vmatpush1.bf16.xpose.msra.mxu0 0
    %4807 = vmatprep.subr.bf16.mxu0 0
    %4808 = vmatpush1.bf16.xpose.msra.mxu0 0
    %4809 = vmatprep.subr.bf16.mxu0 0
    %4810 = vmatpush1.bf16.xpose.msra.mxu0 0
    %4811 = vmatprep.subr.bf16.mxu0 0
    %4812 = vmatpush1.bf16.xpose.msra.mxu0 0
    %4813 = vmatprep.subr.bf16.mxu0 0
    %4814 = vmatpush1.bf16.xpose.msra.mxu0 0
    %4815 = vmatprep.mubr.bf16.mxu0 0
    %4816 = vmatmul.mubr.bf16.gmra.mrb[0].mxu0 %v4778
    %v4817 = vpop.f32.mrb[0].mxu0
    %v4818 = vadd.f32 0.0, %v4817
    %v4819 = vpop.f32.mrb[0].mxu0
    %v4820 = vpop.f32.mrb[0].mxu0
    %v4821 = vpop.f32.mrb[0].mxu0
    %4822 = vdwg.mxu0
    %v4823 = vmul.f32 %v4768, 0.25
    %v4824 = vmul.f32 %v4818, 0.25
    %v4825 = vadd.f32 %v4823, %v3374
    %v4826 = vadd.f32 %v4824, %v3374
    %v4827 = vsel %vm3597, %v4825, -inf
    %4828 = vmax.xlane.f32.xlu0 %v4827
    %v4829 = vpop.xlane.xlu0 %4828
    %v4830 = vsel %vm3597, %v4826, -inf
    %4831 = vmax.xlane.f32.xlu0 %v4830
    %v4832 = vpop.xlane.xlu0 %4831
    %v4833 = vsub.f32 %v4825, %v4829
    %v4834 = vsub.f32 %v4826, %v4832
    %v4835 = vmul.f32 %v4833, 1.442695
    %v4836 = vpow.pop %v4835
    %v4837 = vmul.f32 %v4834, 1.442695
    %v4838 = vpow.pop %v4837
    %v4839 = vsel %vm3597, %v4836, 0.0
    %4840 = vadd.xlane.f32.xlu0 %v4839
    %v4841 = vpop.xlane.xlu0 %4840
    %v4842 = vsel %vm3597, %v4838, 0.0
    %4843 = vadd.xlane.f32.xlu0 %v4842
    %v4844 = vpop.xlane.xlu0 %4843
    %v4845 = vrcp.pop %v4841
    %v4846 = vrcp.pop %v4844
    %v4847 = vmul.f32 %v4836, %v4845
    %v4848 = vmul.f32 %v4838, %v4846
    %v4849 = vpack.c.bf16 %v4847, %v4847
    %v4850 = vpack.c.bf16 %v4848, %v4848
    %4851 = vrot.lane.b32.xlu0 %v4429, 48
    %v4852 = vpop.permute.xlu0 %4851
    %v4854 = vsel %vm3597, %v4849, 0
    %v4857 = vsel %vm703, %v4852, 0
    %4859 = vmatprep.subr.bf16.mxu0 0
    %4860 = vmatpush1.bf16.msra.mxu0 %v4857
    %4861 = vmatprep.subr.bf16.mxu0 0
    %4862 = vmatpush1.bf16.msra.mxu0 0
    %4863 = vmatprep.subr.bf16.mxu0 0
    %4864 = vmatpush1.bf16.msra.mxu0 0
    %4865 = vmatprep.subr.bf16.mxu0 0
    %4866 = vmatpush1.bf16.msra.mxu0 0
    %4867 = vmatprep.subr.bf16.mxu0 0
    %4868 = vmatpush1.bf16.msra.mxu0 0
    %4869 = vmatprep.subr.bf16.mxu0 0
    %4870 = vmatpush1.bf16.msra.mxu0 0
    %4871 = vmatprep.subr.bf16.mxu0 0
    %4872 = vmatpush1.bf16.msra.mxu0 0
    %4873 = vmatprep.subr.bf16.mxu0 0
    %4874 = vmatpush1.bf16.msra.mxu0 0
    %4875 = vmatprep.subr.bf16.mxu0 0
    %4876 = vmatpush1.bf16.msra.mxu0 0
    %4877 = vmatprep.subr.bf16.mxu0 0
    %4878 = vmatpush1.bf16.msra.mxu0 0
    %4879 = vmatprep.subr.bf16.mxu0 0
    %4880 = vmatpush1.bf16.msra.mxu0 0
    %4881 = vmatprep.subr.bf16.mxu0 0
    %4882 = vmatpush1.bf16.msra.mxu0 0
    %4883 = vmatprep.subr.bf16.mxu0 0
    %4884 = vmatpush1.bf16.msra.mxu0 0
    %4885 = vmatprep.subr.bf16.mxu0 0
    %4886 = vmatpush1.bf16.msra.mxu0 0
    %4887 = vmatprep.subr.bf16.mxu0 0
    %4888 = vmatpush1.bf16.msra.mxu0 0
    %4889 = vmatprep.subr.bf16.mxu0 0
    %4890 = vmatpush1.bf16.msra.mxu0 0
    %4891 = vmatprep.mubr.bf16.mxu0 0
    %4892 = vmatmul.mubr.bf16.gmra.mrb[0].mxu0 %v4854
    %v4893 = vpop.f32.mrb[0].mxu0
    %v4894 = vadd.f32 0.0, %v4893
    %v4895 = vpop.f32.mrb[0].mxu0
    %v4896 = vpop.f32.mrb[0].mxu0
    %v4897 = vpop.f32.mrb[0].mxu0
    %4898 = vdwg.mxu0
    %4899 = vrot.lane.b32.xlu0 %v4430, 48
    %v4900 = vpop.permute.xlu0 %4899
    %v4902 = vsel %vm3597, %v4850, 0
    %v4905 = vsel %vm703, %v4900, 0
    %4907 = vmatprep.subr.bf16.mxu0 0
    %4908 = vmatpush1.bf16.msra.mxu0 %v4905
    %4909 = vmatprep.subr.bf16.mxu0 0
    %4910 = vmatpush1.bf16.msra.mxu0 0
    %4911 = vmatprep.subr.bf16.mxu0 0
    %4912 = vmatpush1.bf16.msra.mxu0 0
    %4913 = vmatprep.subr.bf16.mxu0 0
    %4914 = vmatpush1.bf16.msra.mxu0 0
    %4915 = vmatprep.subr.bf16.mxu0 0
    %4916 = vmatpush1.bf16.msra.mxu0 0
    %4917 = vmatprep.subr.bf16.mxu0 0
    %4918 = vmatpush1.bf16.msra.mxu0 0
    %4919 = vmatprep.subr.bf16.mxu0 0
    %4920 = vmatpush1.bf16.msra.mxu0 0
    %4921 = vmatprep.subr.bf16.mxu0 0
    %4922 = vmatpush1.bf16.msra.mxu0 0
    %4923 = vmatprep.subr.bf16.mxu0 0
    %4924 = vmatpush1.bf16.msra.mxu0 0
    %4925 = vmatprep.subr.bf16.mxu0 0
    %4926 = vmatpush1.bf16.msra.mxu0 0
    %4927 = vmatprep.subr.bf16.mxu0 0
    %4928 = vmatpush1.bf16.msra.mxu0 0
    %4929 = vmatprep.subr.bf16.mxu0 0
    %4930 = vmatpush1.bf16.msra.mxu0 0
    %4931 = vmatprep.subr.bf16.mxu0 0
    %4932 = vmatpush1.bf16.msra.mxu0 0
    %4933 = vmatprep.subr.bf16.mxu0 0
    %4934 = vmatpush1.bf16.msra.mxu0 0
    %4935 = vmatprep.subr.bf16.mxu0 0
    %4936 = vmatpush1.bf16.msra.mxu0 0
    %4937 = vmatprep.subr.bf16.mxu0 0
    %4938 = vmatpush1.bf16.msra.mxu0 0
    %4939 = vmatprep.mubr.bf16.mxu0 0
    %4940 = vmatmul.mubr.bf16.gmra.mrb[0].mxu0 %v4902
    %v4941 = vpop.f32.mrb[0].mxu0
    %v4942 = vadd.f32 0.0, %v4941
    %v4943 = vpop.f32.mrb[0].mxu0
    %v4944 = vpop.f32.mrb[0].mxu0
    %v4945 = vpop.f32.mrb[0].mxu0
    %4946 = vdwg.mxu0
    %s4947 = scalar_lea.vmem %s10, 24
    %v4948 = vld [vmem:[%s4947] sm:$0xf]
    %v4949 = vld [vmem:[%s4947 + $0x4] sm:$0xf]
    %v4950 = vpack.c.bf16 %v4942, %v4894
    %v4953 = vunpack.c.l.b16 %v4948
    %v4954 = vunpack.c.l.b16 %v4949
    %v4955 = vpack.c.b16 %v4954, %v4953
    %v4958 = vsel %vm482, %v4950, 0
    %4960 = vmatprep.subr.bf16.mxu0 0
    %4961 = vmatpush1.bf16.msra.mxu0 %v4955
    %4962 = vmatprep.subr.bf16.mxu0 0
    %4963 = vmatpush1.bf16.msra.mxu0 0
    %4964 = vmatprep.subr.bf16.mxu0 0
    %4965 = vmatpush1.bf16.msra.mxu0 0
    %4966 = vmatprep.subr.bf16.mxu0 0
    %4967 = vmatpush1.bf16.msra.mxu0 0
    %4968 = vmatprep.subr.bf16.mxu0 0
    %4969 = vmatpush1.bf16.msra.mxu0 0
    %4970 = vmatprep.subr.bf16.mxu0 0
    %4971 = vmatpush1.bf16.msra.mxu0 0
    %4972 = vmatprep.subr.bf16.mxu0 0
    %4973 = vmatpush1.bf16.msra.mxu0 0
    %4974 = vmatprep.subr.bf16.mxu0 0
    %4975 = vmatpush1.bf16.msra.mxu0 0
    %4976 = vmatprep.subr.bf16.mxu0 0
    %4977 = vmatpush1.bf16.msra.mxu0 0
    %4978 = vmatprep.subr.bf16.mxu0 0
    %4979 = vmatpush1.bf16.msra.mxu0 0
    %4980 = vmatprep.subr.bf16.mxu0 0
    %4981 = vmatpush1.bf16.msra.mxu0 0
    %4982 = vmatprep.subr.bf16.mxu0 0
    %4983 = vmatpush1.bf16.msra.mxu0 0
    %4984 = vmatprep.subr.bf16.mxu0 0
    %4985 = vmatpush1.bf16.msra.mxu0 0
    %4986 = vmatprep.subr.bf16.mxu0 0
    %4987 = vmatpush1.bf16.msra.mxu0 0
    %4988 = vmatprep.subr.bf16.mxu0 0
    %4989 = vmatpush1.bf16.msra.mxu0 0
    %4990 = vmatprep.subr.bf16.mxu0 0
    %4991 = vmatpush1.bf16.msra.mxu0 0
    %4992 = vmatprep.mubr.bf16.mxu0 0
    %4993 = vmatmul.mubr.bf16.gmra.mrb[0].mxu0 %v4958
    %v4994 = vpop.f32.mrb[0].mxu0
    %v4995 = vadd.f32 0.0, %v4994
    %v4996 = vpop.f32.mrb[0].mxu0
    %v4997 = vpop.f32.mrb[0].mxu0
    %v4998 = vadd.f32 0.0, %v4997
    %v4999 = vpop.f32.mrb[0].mxu0
    %5000 = vdwg.mxu0
    %5003 = vrot.lane.b32.xlu0 %v4995, 32
    %v5004 = vpop.permute.xlu0 %5003
    %5005 = vrot.lane.b32.xlu0 %v4998, 32
    %v5006 = vpop.permute.xlu0 %5005
    %v5009 = vadd.f32 %v4721, %v5004
    %v5010 = vadd.f32 %v4722, %v5006
    %5013 = vrot.lane.b32.xlu0 %v5009, 96
    %v5014 = vpop.permute.xlu0 %5013
    %5015 = vrot.lane.b32.xlu0 %v5010, 96
    %v5016 = vpop.permute.xlu0 %5015
    %v5019 = vadd.f32 %v4307, %v5014
    %v5020 = vadd.f32 %v4308, %v5016
    %v5021 = vld [vmem:[%s4309 + $0x1] sm:$0x1]
    %v5022 = vsel %vm165, %v5019, 0.0
    %5023 = vadd.xlane.f32.xlu0 %v5022
    %v5024 = vpop.xlane.xlu0 %5023
    %v5025 = vsel %vm165, %v5020, 0.0
    %5026 = vadd.xlane.f32.xlu0 %v5025
    %v5027 = vpop.xlane.xlu0 %5026
    %v5028 = vmul.f32 %v5024, %v184
    %v5029 = vmul.f32 %v5027, %v184
    %v5030 = vsub.f32 %v5019, %v5028
    %v5031 = vsub.f32 %v5020, %v5029
    %v5032 = vmul.f32 %v5030, %v5030
    %v5033 = vmul.f32 %v5031, %v5031
    %v5034 = vsel %vm165, %v5032, 0.0
    %5035 = vadd.xlane.f32.xlu0 %v5034
    %v5036 = vpop.xlane.xlu0 %5035
    %v5037 = vsel %vm165, %v5033, 0.0
    %5038 = vadd.xlane.f32.xlu0 %v5037
    %v5039 = vpop.xlane.xlu0 %5038
    %v5040 = vmul.f32 %v5036, %v184
    %v5041 = vmul.f32 %v5039, %v184
    %v5042 = vadd.f32 %v5040, 1e-05
    %v5043 = vadd.f32 %v5041, 1e-05
    %v5044 = vrsqrt.pop %v5042
    %v5045 = vrsqrt.pop %v5043
    %v5046 = vmul.f32 %v5030, %v5044
    %v5047 = vmul.f32 %v5031, %v5045
    %v5049 = vlaneseq
    %v5050 = vshrl.u32 %v5049, 7
    %v5051 = vsub.s32 0, %v5050
    %v5052 = vrot.slane %v5021, %v5051
    %5053 = vrot.lane.b32.xlu0 %v5052, 64
    %v5054 = vpop.permute.xlu0 %5053
    %v5056 = vmul.f32 %v5046, %v5054
    %v5057 = vmul.f32 %v5047, %v5054
    %5058 = vrot.lane.b32.xlu0 %v5052, 32
    %v5059 = vpop.permute.xlu0 %5058
    %v5061 = vadd.f32 %v5056, %v5059
    %v5062 = vadd.f32 %v5057, %v5059
    %v5063 = vld [vmem:[%s4350] sm:$0xff]
    %v5064 = vld [vmem:[%s4350 + $0x8] sm:$0xff]
    %v5065 = vld [vmem:[%s4350 + $0x10] sm:$0xff]
    %v5066 = vld [vmem:[%s4350 + $0x18] sm:$0xff]
    %v5067 = vpack.c.bf16 %v5062, %v5061
    %v5068 = vld [vmem:[%s4309 + $0x2] sm:$0x1]
    %v5070 = vlaneseq
    %v5071 = vshrl.u32 %v5070, 7
    %v5072 = vsub.s32 0, %v5071
    %v5073 = vrot.slane %v5068, %v5072
    %v5079 = vunpack.c.l.b16 %v5063
    %v5080 = vunpack.c.h.b16 %v5063
    %v5081 = vunpack.c.l.b16 %v5064
    %v5082 = vunpack.c.h.b16 %v5064
    %v5083 = vunpack.c.l.b16 %v5065
    %v5084 = vunpack.c.h.b16 %v5065
    %v5085 = vunpack.c.l.b16 %v5066
    %v5086 = vunpack.c.h.b16 %v5066
    %v5087 = vpack.c.b16 %v5081, %v5079
    %v5088 = vpack.c.b16 %v5082, %v5080
    %v5089 = vpack.c.b16 %v5085, %v5083
    %v5090 = vpack.c.b16 %v5086, %v5084
    %5091 = vrot.lane.b32.xlu0 %v5087, 32
    %v5092 = vpop.permute.xlu0 %5091
    %5093 = vrot.lane.b32.xlu0 %v5088, 32
    %v5094 = vpop.permute.xlu0 %5093
    %5095 = vrot.lane.b32.xlu0 %v5089, 32
    %v5096 = vpop.permute.xlu0 %5095
    %5097 = vrot.lane.b32.xlu0 %v5090, 32
    %v5098 = vpop.permute.xlu0 %5097
    %v5099 = vsel %vm1550, %v5092, %v5094
    %v5100 = vsel %vm1550, %v5096, %v5098
    %v5104 = vsel %vm165, %v5067, 0
    %5106 = vmatprep.subr.bf16.mxu0 0
    %5107 = vmatpush1.bf16.msra.mxu0 %v5099
    %5108 = vmatprep.subr.bf16.mxu0 0
    %5109 = vmatpush1.bf16.msra.mxu0 %v5100
    %5110 = vmatprep.subr.bf16.mxu0 0
    %5111 = vmatpush1.bf16.msra.mxu0 0
    %5112 = vmatprep.subr.bf16.mxu0 0
    %5113 = vmatpush1.bf16.msra.mxu0 0
    %5114 = vmatprep.subr.bf16.mxu0 0
    %5115 = vmatpush1.bf16.msra.mxu0 0
    %5116 = vmatprep.subr.bf16.mxu0 0
    %5117 = vmatpush1.bf16.msra.mxu0 0
    %5118 = vmatprep.subr.bf16.mxu0 0
    %5119 = vmatpush1.bf16.msra.mxu0 0
    %5120 = vmatprep.subr.bf16.mxu0 0
    %5121 = vmatpush1.bf16.msra.mxu0 0
    %5122 = vmatprep.subr.bf16.mxu0 0
    %5123 = vmatpush1.bf16.msra.mxu0 0
    %5124 = vmatprep.subr.bf16.mxu0 0
    %5125 = vmatpush1.bf16.msra.mxu0 0
    %5126 = vmatprep.subr.bf16.mxu0 0
    %5127 = vmatpush1.bf16.msra.mxu0 0
    %5128 = vmatprep.subr.bf16.mxu0 0
    %5129 = vmatpush1.bf16.msra.mxu0 0
    %5130 = vmatprep.subr.bf16.mxu0 0
    %5131 = vmatpush1.bf16.msra.mxu0 0
    %5132 = vmatprep.subr.bf16.mxu0 0
    %5133 = vmatpush1.bf16.msra.mxu0 0
    %5134 = vmatprep.subr.bf16.mxu0 0
    %5135 = vmatpush1.bf16.msra.mxu0 0
    %5136 = vmatprep.subr.bf16.mxu0 0
    %5137 = vmatpush1.bf16.msra.mxu0 0
    %5138 = vmatprep.mubr.bf16.mxu0 0
    %5139 = vmatmul.mubr.bf16.gmra.mrb[0].mxu0 %v5104
    %v5140 = vpop.f32.mrb[0].mxu0
    %v5141 = vadd.f32 %v5073, %v5140
    %v5142 = vpop.f32.mrb[0].mxu0
    %v5143 = vpop.f32.mrb[0].mxu0
    %v5144 = vadd.f32 %v5073, %v5143
    %v5145 = vpop.f32.mrb[0].mxu0
    %5146 = vdwg.mxu0
    %v5147 = vmul.f32 %v5141, 1.702
    %v5148 = vmul.f32 %v5144, 1.702
    %v5149 = vxor.u32 %v5147, 2147483648
    %v5150 = vxor.u32 %v5148, 2147483648
    %v5151 = vmul.f32 %v5149, 1.442695
    %v5152 = vpow.pop %v5151
    %v5153 = vmul.f32 %v5150, 1.442695
    %v5154 = vpow.pop %v5153
    %v5155 = vadd.f32 %v5152, 1.0
    %v5156 = vadd.f32 %v5154, 1.0
    %v5157 = vrcp.pop %v5155
    %v5158 = vmul.f32 1.0, %v5157
    %v5159 = vrcp.pop %v5156
    %v5160 = vmul.f32 1.0, %v5159
    %v5161 = vmul.f32 %v5141, %v5158
    %v5162 = vmul.f32 %v5144, %v5160
    %s5163 = scalar_lea.vmem %s11, 32
    %v5164 = vld [vmem:[%s5163] sm:$0xf]
    %v5165 = vld [vmem:[%s5163 + $0x4] sm:$0xf]
    %v5166 = vld [vmem:[%s5163 + $0x8] sm:$0xf]
    %v5167 = vld [vmem:[%s5163 + $0xc] sm:$0xf]
    %v5168 = vld [vmem:[%s5163 + $0x10] sm:$0xf]
    %v5169 = vld [vmem:[%s5163 + $0x14] sm:$0xf]
    %v5170 = vld [vmem:[%s5163 + $0x18] sm:$0xf]
    %v5171 = vld [vmem:[%s5163 + $0x1c] sm:$0xf]
    %v5172 = vpack.c.bf16 %v5162, %v5161
    %v5181 = vunpack.c.l.b16 %v5164
    %v5182 = vunpack.c.l.b16 %v5165
    %v5183 = vunpack.c.l.b16 %v5166
    %v5184 = vunpack.c.l.b16 %v5167
    %v5185 = vunpack.c.l.b16 %v5168
    %v5186 = vunpack.c.l.b16 %v5169
    %v5187 = vunpack.c.l.b16 %v5170
    %v5188 = vunpack.c.l.b16 %v5171
    %v5189 = vpack.c.b16 %v5182, %v5181
    %v5190 = vpack.c.b16 %v5184, %v5183
    %v5191 = vpack.c.b16 %v5186, %v5185
    %v5192 = vpack.c.b16 %v5188, %v5187
    %5197 = vrot.lane.b32.xlu0 %v5073, 64
    %v5198 = vpop.permute.xlu0 %5197
    %v5201 = vsel %vm402, %v5172, 0
    %5203 = vmatprep.subr.bf16.mxu0 0
    %5204 = vmatpush1.bf16.msra.mxu0 %v5189
    %5205 = vmatprep.subr.bf16.mxu0 0
    %5206 = vmatpush1.bf16.msra.mxu0 %v5190
    %5207 = vmatprep.subr.bf16.mxu0 0
    %5208 = vmatpush1.bf16.msra.mxu0 %v5191
    %5209 = vmatprep.subr.bf16.mxu0 0
    %5210 = vmatpush1.bf16.msra.mxu0 %v5192
    %5211 = vmatprep.subr.bf16.mxu0 0
    %5212 = vmatpush1.bf16.msra.mxu0 0
    %5213 = vmatprep.subr.bf16.mxu0 0
    %5214 = vmatpush1.bf16.msra.mxu0 0
    %5215 = vmatprep.subr.bf16.mxu0 0
    %5216 = vmatpush1.bf16.msra.mxu0 0
    %5217 = vmatprep.subr.bf16.mxu0 0
    %5218 = vmatpush1.bf16.msra.mxu0 0
    %5219 = vmatprep.subr.bf16.mxu0 0
    %5220 = vmatpush1.bf16.msra.mxu0 0
    %5221 = vmatprep.subr.bf16.mxu0 0
    %5222 = vmatpush1.bf16.msra.mxu0 0
    %5223 = vmatprep.subr.bf16.mxu0 0
    %5224 = vmatpush1.bf16.msra.mxu0 0
    %5225 = vmatprep.subr.bf16.mxu0 0
    %5226 = vmatpush1.bf16.msra.mxu0 0
    %5227 = vmatprep.subr.bf16.mxu0 0
    %5228 = vmatpush1.bf16.msra.mxu0 0
    %5229 = vmatprep.subr.bf16.mxu0 0
    %5230 = vmatpush1.bf16.msra.mxu0 0
    %5231 = vmatprep.subr.bf16.mxu0 0
    %5232 = vmatpush1.bf16.msra.mxu0 0
    %5233 = vmatprep.subr.bf16.mxu0 0
    %5234 = vmatpush1.bf16.msra.mxu0 0
    %5235 = vmatprep.mubr.bf16.mxu0 0
    %5236 = vmatmul.mubr.bf16.gmra.mrb[0].mxu0 %v5201
    %v5237 = vpop.f32.mrb[0].mxu0
    %v5238 = vadd.f32 %v5198, %v5237
    %v5239 = vpop.f32.mrb[0].mxu0
    %v5240 = vpop.f32.mrb[0].mxu0
    %v5241 = vadd.f32 %v5198, %v5240
    %v5242 = vpop.f32.mrb[0].mxu0
    %5243 = vdwg.mxu0
    %v5244 = vadd.f32 %v5019, %v5238
    %v5245 = vadd.f32 %v5020, %v5241
    %v5247 = vrot.slane %v5244, 7
    %v5250 = vrot.slane %v5245, 6
    %v5252 = vsel %vm3283, %v5247, %v5250
    %v5253 = vld [vmem:[%s13] sm:$0x1]
    %v5254 = vld [vmem:[%s13 + $0x1] sm:$0x1]
    %v5255 = vsel %vm3285, %v5252, 0.0
    %5256 = vadd.xlane.f32.xlu0 %v5255
    %v5257 = vpop.xlane.xlu0 %5256
    %v5258 = vmul.f32 %v5257, %v184
    %v5259 = vsub.f32 %v5252, %v5258
    %v5260 = vmul.f32 %v5259, %v5259
    %v5261 = vsel %vm3285, %v5260, 0.0
    %5262 = vadd.xlane.f32.xlu0 %v5261
    %v5263 = vpop.xlane.xlu0 %5262
    %v5264 = vmul.f32 %v5263, %v184
    %v5265 = vadd.f32 %v5264, 1e-05
    %v5266 = vrsqrt.pop %v5265
    %v5267 = vmul.f32 %v5259, %v5266
    %v5268 = vlaneseq
    %v5269 = vshrl.u32 %v5268, 7
    %v5270 = vsub.s32 0, %v5269
    %v5271 = vrot.slane %v5253, %v5270
    %v5272 = vmul.f32 %v5267, %v5271
    %v5273 = vlaneseq
    %v5274 = vshrl.u32 %v5273, 7
    %v5275 = vsub.s32 0, %v5274
    %v5276 = vrot.slane %v5254, %v5275
    %v5277 = vadd.f32 %v5272, %v5276
    %v5278 = vld [vmem:[%s14] sm:$0xf]
    %v5279 = vld [vmem:[%s14 + $0x4] sm:$0xf]
    %v5280 = vld [vmem:[%s14 + $0x8] sm:$0xf]
    %v5281 = vld [vmem:[%s14 + $0xc] sm:$0xf]
    %v5282 = vpack.c.bf16 %v5277, %v5277
    %v5287 = vunpack.c.l.b16 %v5278
    %v5288 = vunpack.c.l.b16 %v5279
    %v5289 = vunpack.c.l.b16 %v5280
    %v5290 = vunpack.c.l.b16 %v5281
    %v5291 = vpack.c.b16 %v5288, %v5287
    %v5292 = vpack.c.b16 %v5290, %v5289
    %v5296 = vsel %vm165, %v5282, 0
    %5298 = vmatprep.subr.bf16.mxu0 0
    %5299 = vmatpush1.bf16.msra.mxu0 %v5291
    %5300 = vmatprep.subr.bf16.mxu0 0
    %5301 = vmatpush1.bf16.msra.mxu0 %v5292
    %5302 = vmatprep.subr.bf16.mxu0 0
    %5303 = vmatpush1.bf16.msra.mxu0 0
    %5304 = vmatprep.subr.bf16.mxu0 0
    %5305 = vmatpush1.bf16.msra.mxu0 0
    %5306 = vmatprep.subr.bf16.mxu0 0
    %5307 = vmatpush1.bf16.msra.mxu0 0
    %5308 = vmatprep.subr.bf16.mxu0 0
    %5309 = vmatpush1.bf16.msra.mxu0 0
    %5310 = vmatprep.subr.bf16.mxu0 0
    %5311 = vmatpush1.bf16.msra.mxu0 0
    %5312 = vmatprep.subr.bf16.mxu0 0
    %5313 = vmatpush1.bf16.msra.mxu0 0
    %5314 = vmatprep.subr.bf16.mxu0 0
    %5315 = vmatpush1.bf16.msra.mxu0 0
    %5316 = vmatprep.subr.bf16.mxu0 0
    %5317 = vmatpush1.bf16.msra.mxu0 0
    %5318 = vmatprep.subr.bf16.mxu0 0
    %5319 = vmatpush1.bf16.msra.mxu0 0
    %5320 = vmatprep.subr.bf16.mxu0 0
    %5321 = vmatpush1.bf16.msra.mxu0 0
    %5322 = vmatprep.subr.bf16.mxu0 0
    %5323 = vmatpush1.bf16.msra.mxu0 0
    %5324 = vmatprep.subr.bf16.mxu0 0
    %5325 = vmatpush1.bf16.msra.mxu0 0
    %5326 = vmatprep.subr.bf16.mxu0 0
    %5327 = vmatpush1.bf16.msra.mxu0 0
    %5328 = vmatprep.subr.bf16.mxu0 0
    %5329 = vmatpush1.bf16.msra.mxu0 0
    %5330 = vmatprep.mubr.bf16.mxu0 0
    %5331 = vmatmul.mubr.bf16.gmra.mrb[0].mxu0 %v5296
    %v5332 = vpop.f32.mrb[0].mxu0
    %v5333 = vadd.f32 0.0, %v5332
    %v5334 = vpop.f32.mrb[0].mxu0
    %v5335 = vpop.f32.mrb[0].mxu0
    %v5336 = vpop.f32.mrb[0].mxu0
    %5337 = vdwg.mxu0
    %v5338 = vmul.f32 %v3364, %v3364
    %vm5339 = vcmask 123904
    %v5340 = vsel %vm5339, %v5338, 0.0
    %5341 = vadd.xlane.f32.xlu0 %v5340
    %v5342 = vpop.xlane.xlu0 %5341
    %v5343 = vadd.f32 %v5342, 1e-12
    %v5344 = vrsqrt.pop %v5343
    %v5345 = vmul.f32 %v3364, %v5344
    %v5346 = vmul.f32 %v5333, %v5333
    %v5347 = vsel %vm5339, %v5346, 0.0
    %5348 = vadd.xlane.f32.xlu0 %v5347
    %v5349 = vpop.xlane.xlu0 %5348
    %v5350 = vadd.f32 %v5349, 1e-12
    %v5351 = vrsqrt.pop %v5350
    %v5352 = vmul.f32 %v5333, %v5351
    %v5354 = vsel %vm482, %v5345, 0
    %v5357 = vsel %vm482, %v5352, 0
    %5359 = vmatprep.subr.mxu0 0.0
    %5360 = vmatpush1.xpose.msra.mxu0 %v5357
    %5361 = vmatprep.subr.mxu0 0.0
    %5362 = vmatpush1.xpose.msra.mxu0 0.0
    %5363 = vmatprep.subr.mxu0 0.0
    %5364 = vmatpush1.xpose.msra.mxu0 0.0
    %5365 = vmatprep.subr.mxu0 0.0
    %5366 = vmatpush1.xpose.msra.mxu0 0.0
    %5367 = vmatprep.subr.mxu0 0.0
    %5368 = vmatpush1.xpose.msra.mxu0 0.0
    %5369 = vmatprep.subr.mxu0 0.0
    %5370 = vmatpush1.xpose.msra.mxu0 0.0
    %5371 = vmatprep.subr.mxu0 0.0
    %5372 = vmatpush1.xpose.msra.mxu0 0.0
    %5373 = vmatprep.subr.mxu0 0.0
    %5374 = vmatpush1.xpose.msra.mxu0 0.0
    %5375 = vmatprep.subr.mxu0 0.0
    %5376 = vmatpush1.xpose.msra.mxu0 0.0
    %5377 = vmatprep.subr.mxu0 0.0
    %5378 = vmatpush1.xpose.msra.mxu0 0.0
    %5379 = vmatprep.subr.mxu0 0.0
    %5380 = vmatpush1.xpose.msra.mxu0 0.0
    %5381 = vmatprep.subr.mxu0 0.0
    %5382 = vmatpush1.xpose.msra.mxu0 0.0
    %5383 = vmatprep.subr.mxu0 0.0
    %5384 = vmatpush1.xpose.msra.mxu0 0.0
    %5385 = vmatprep.subr.mxu0 0.0
    %5386 = vmatpush1.xpose.msra.mxu0 0.0
    %5387 = vmatprep.subr.mxu0 0.0
    %5388 = vmatpush1.xpose.msra.mxu0 0.0
    %5389 = vmatprep.subr.mxu0 0.0
    %5390 = vmatpush1.xpose.msra.mxu0 0.0
    %5391 = vmatprep.subr.mxu0 0.0
    %5392 = vmatpush1.xpose.msra.mxu0 0.0
    %5393 = vmatprep.subr.mxu0 0.0
    %5394 = vmatpush1.xpose.msra.mxu0 0.0
    %5395 = vmatprep.subr.mxu0 0.0
    %5396 = vmatpush1.xpose.msra.mxu0 0.0
    %5397 = vmatprep.subr.mxu0 0.0
    %5398 = vmatpush1.xpose.msra.mxu0 0.0
    %5399 = vmatprep.subr.mxu0 0.0
    %5400 = vmatpush1.xpose.msra.mxu0 0.0
    %5401 = vmatprep.subr.mxu0 0.0
    %5402 = vmatpush1.xpose.msra.mxu0 0.0
    %5403 = vmatprep.subr.mxu0 0.0
    %5404 = vmatpush1.xpose.msra.mxu0 0.0
    %5405 = vmatprep.subr.mxu0 0.0
    %5406 = vmatpush1.xpose.msra.mxu0 0.0
    %5407 = vmatprep.subr.mxu0 0.0
    %5408 = vmatpush1.xpose.msra.mxu0 0.0
    %5409 = vmatprep.subr.mxu0 0.0
    %5410 = vmatpush1.xpose.msra.mxu0 0.0
    %5411 = vmatprep.subr.mxu0 0.0
    %5412 = vmatpush1.xpose.msra.mxu0 0.0
    %5413 = vmatprep.subr.mxu0 0.0
    %5414 = vmatpush1.xpose.msra.mxu0 0.0
    %5415 = vmatprep.subr.mxu0 0.0
    %5416 = vmatpush1.xpose.msra.mxu0 0.0
    %5417 = vmatprep.subr.mxu0 0.0
    %5418 = vmatpush1.xpose.msra.mxu0 0.0
    %5419 = vmatprep.subr.mxu0 0.0
    %5420 = vmatpush1.xpose.msra.mxu0 0.0
    %5421 = vmatprep.subr.mxu0 0.0
    %5422 = vmatpush1.xpose.msra.mxu0 0.0
    %5423 = vmatprep.mubr.f32.mxu0 0.0
    %5424 = vmatmul.mubr.f32.gmra.mrb[0].mxu0 %v5354
    %v5425 = vpop.f32.mrb[0].mxu0
    %v5426 = vadd.f32 0.0, %v5425
    %v5427 = vpop.f32.mrb[0].mxu0
    %5428 = vdwg.mxu0
    %v5429 = vmul.f32 %v5426, 100.0
    %vm5430 = vcmask 9216
    %v5431 = vsel %vm5430, %v5429, -inf
    %5432 = vmax.xlane.f32.xlu0 %v5431
    %v5433 = vpop.xlane.xlu0 %5432
    %v5434 = vsub.f32 %v5429, %v5433
    %v5435 = vmul.f32 %v5434, 1.442695
    %v5436 = vpow.pop %v5435
    %v5437 = vsel %vm5430, %v5436, 0.0
    %5438 = vadd.xlane.f32.xlu0 %v5437
    %v5439 = vpop.xlane.xlu0 %5438
    %v5440 = vrcp.pop %v5439
    %v5441 = vmul.f32 %v5436, %v5440
    %vm5442 = vcmask 15360
    %v5443 = vsel %vm5442, %v5441, 0.0
    %5444 = vst [vmem:[#allocation3] sm:$0x3] %v5443
    // Predicated region
    $region62: #{clip_wrapper_forward.1} parent=1 // pred_check
      _
    $region63: #{clip_wrapper_forward.1} parent=1 // pred_check_branch
      %5446 = sbr.rel (0) target = $region65
    $region64: #{clip_wrapper_forward.1} parent=1 // pred_region
      %s5448 = ssub.s32 32, 32
      %5449 = vsyncadd [#allocation4], %s5448
      %s5451 = sshll.u32 [#allocation3], 4
      %s5452 = int_to_ptr.vmem [resolvable:$true] %s5451
      %5454 = dma.vmem_to_hbm [thread:$0]  %s5452, 32, %s15, [#allocation4]
    $region65: #{clip_wrapper_forward.1} parent=1 // pred_fallthru
      _
    // Predicated region
    $region66: #{clip_wrapper_forward.1} parent=1 // pred_check
      _
    $region67: #{clip_wrapper_forward.1} parent=1 // pred_check_branch
      %5456 = sbr.rel (0) target = $region69
    $region68: #{clip_wrapper_forward.1} parent=1 // pred_region
      %5457 = dma.done [#allocation4], 32
    $region69: #{clip_wrapper_forward.1} parent=1 // pred_fallthru
      _
    %5458 = vsyncpa [#allocation4], 1

</llo_original>
